<compile_context>
chip_gen: v5e
topology: v5e:2x2
jax: 0.10.0
libtpu: 0.0.40
codegen_flags: <defaults>
</compile_context>

<pallas_src>
import jax
import jax.numpy as jnp
from jax.experimental import pallas as pl
from jax.experimental.pallas import tpu as pltpu

SUB = 8                     # TPU sublane width
EPS = 1e-5                  # nn.BatchNorm2d default eps

_VMEM_LIMIT_CACHE = None


def _vmem_limit_bytes():
    """Generation-aware scoped-VMEM limit with headroom (48 MiB on v7x, 96 MiB on v5e/v6e)."""
    global _VMEM_LIMIT_CACHE
    if _VMEM_LIMIT_CACHE is None:
        cap = 128 * 1024 * 1024
        try:
            cap = int(getattr(pltpu.get_tpu_info(), "vmem_capacity_bytes", cap))
        except Exception:
            pass
        _VMEM_LIMIT_CACHE = min((cap * 3) // 4, 96 * 1024 * 1024)
    return _VMEM_LIMIT_CACHE


def _choose_row_tile(m, tm_max):
    """Largest divisor of m that is <= tm_max, a multiple of 8 (or == m), preferring
    >= 2 grid steps so both megacore TensorCores stay busy."""
    best = None
    for cand in range(min(tm_max, m), 0, -1):
        if m % cand:
            continue
        if cand % SUB and cand != m:
            continue
        if best is None:
            best = cand
        if m // cand >= 2:
            return cand
    return best if best is not None else m


def _bn_scale_shift(sums, count, gamma, beta):
    """Training-mode BatchNorm (batch statistics, biased variance) -> per-channel affine."""
    mean = sums[0] / count
    var = jnp.maximum(sums[1] / count - mean * mean, 0.0)
    # TODO(synk): E[x^2]-E[x]^2 in f32 can lose precision when |mean| >> std; a shifted
    # two-pass accumulation would be needed for strict BN-stat parity.
    scale = gamma * jax.lax.rsqrt(var + EPS)
    shift = beta - mean * scale
    return scale.reshape(1, -1).astype(jnp.float32), shift.reshape(1, -1).astype(jnp.float32)


# ----------------------- cv1: 1x1 conv + fused BN stats ----------------------

def _mm_stats_kernel(x_ref, w_ref, y_ref, st_ref):
    # bf16 x bf16 -> f32 accumulation on the MXU (true K / N widths; MXU pads in VMEM).
    y = jnp.dot(x_ref[...], w_ref[...], preferred_element_type=jnp.float32)
    y_ref[...] = y.astype(y_ref.dtype)
    # Fused BatchNorm partial statistics for this M tile: two plain row stores.
    st_ref[0, 0:1, :] = jnp.sum(y, axis=0, keepdims=True)
    st_ref[0, 1:2, :] = jnp.sum(y * y, axis=0, keepdims=True)


def _conv1x1_bn_stats(x2d_bf16, w_bf16, tm_max=512):
    """x2d: [M, c1] bf16, w: [c1, c_] bf16 -> (y_pre [M, c_] bf16, sums [2, c_] f32)."""
    m, k = x2d_bf16.shape
    c = w_bf16.shape[1]
    tm = _choose_row_tile(m, tm_max)
    gm = m // tm
    y_pre, stats = pl.pallas_call(
        _mm_stats_kernel,
        out_shape=(jax.ShapeDtypeStruct((m, c), jnp.bfloat16),
                   jax.ShapeDtypeStruct((gm, 2, c), jnp.float32)),
        grid=(gm,),
        in_specs=[
            pl.BlockSpec((tm, k), lambda i: (i, 0)),
            pl.BlockSpec((k, c), lambda i: (0, 0)),
        ],
        out_specs=(
            pl.BlockSpec((tm, c), lambda i: (i, 0)),
            pl.BlockSpec((1, 2, c), lambda i: (i, 0, 0)),
        ),
        compiler_params=pltpu.CompilerParams(
            dimension_semantics=("parallel",),
            vmem_limit_bytes=_vmem_limit_bytes()),
    )(x2d_bf16, w_bf16)
    return y_pre, jnp.sum(stats, axis=0)


# --- cv2: depthwise 5x5 'same' conv with fused BN1-apply+SiLU prologue + BN2 stats ---

def _dw_tile_bytes(th, w, c):
    slab = (th + 4) * (w + 4) * c * 4      # activated, halo'd f32 scratch slab
    shifted = (th + 4) * w * c * 4         # one kx-shifted slice live at a time
    acc = th * w * c * 4                   # f32 accumulator
    z_out = 2 * th * w * c * 2             # double-buffered bf16 z_pre output tile
    return slab + shifted + acc + z_out


def _choose_dw_rows(h, w, c, budget):
    """Largest divisor of h (>= 2, so the 2-row halo stays within one neighbour tile)
    whose per-tile working set fits the budget."""
    cands = [d for d in range(h, 1, -1) if h % d == 0]
    for d in cands:
        if _dw_tile_bytes(d, w, c) <= budget:
            return d
    return cands[-1] if cands else h


def _make_dw5x5_kernel(h, w, c, th):
    n_th = h // th

    def kernel(y_ref, w_ref, sc_ref, sh_ref, z_ref, st_ref, slab_ref):
        t = pl.program_id(1)
        r0 = t * th
        scale = sc_ref[0]            # (c,)
        shift = sh_ref[0]            # (c,)

        def act(v):                  # cv1 BN apply + exact SiLU, f32 VPU math
            u = v.astype(jnp.float32) * scale + shift
            return u / (1.0 + jnp.exp(-u))

        # Zero the slab: 'same' padding applies to the *activated* y, so zero borders
        # are exactly the conv's zero padding; the interior is overwritten below.
        slab_ref[...] = jnp.zeros_like(slab_ref)

        # Center rows of this tile: activate once in VMEM (no separate BN+SiLU pass).
        slab_ref[2:th + 2, 2:w + 2, :] = act(y_ref[0, pl.ds(r0, th), :, :])

        # 2-row top / bottom halos (re-activated; stay zero at the image edges).
        @pl.when(t > 0)
        def _():
            slab_ref[0:2, 2:w + 2, :] = act(y_ref[0, pl.ds(r0 - 2, 2), :, :])

        @pl.when(t < n_th - 1)
        def _():
            slab_ref[th + 2:th + 4, 2:w + 2, :] = act(y_ref[0, pl.ds(r0 + th, 2), :, :])

        # Depthwise 5x5: hoist the sublane-unaligned W shift (5 shifted slabs), then
        # 5 cheap leading-axis H slices per slab -> 5 relayouts instead of 25.
        taps = w_ref[...]                                   # (25, c) f32
        acc = jnp.zeros((th, w, c), jnp.float32)
        for kx in range(5):
            sx = slab_ref[:, kx:kx + w, :]                  # (th+4, w, c)
            for ky in range(5):
                acc = acc + sx[ky:ky + th] * taps[ky * 5 + kx]
        z_ref[0] = acc.astype(z_ref.dtype)

        # Fused BatchNorm partial statistics for cv2: two plain row stores.
        st_ref[0, 0, 0:1, :] = jnp.sum(jnp.sum(acc, axis=0), axis=0, keepdims=True)
        st_ref[0, 0, 1:2, :] = jnp.sum(jnp.sum(acc * acc, axis=0), axis=0, keepdims=True)

    return kernel


def _dwconv5x5(y_pre_nhwc, w25, scale1, shift1):
    """Depthwise 5x5, stride 1, 'same' zero padding, groups = channels, applied to
    SiLU(BN(y_pre)) computed in the kernel prologue.  Returns (z_pre bf16, BN2 sums)."""
    n, h, w, c = y_pre_nhwc.shape
    th = _choose_dw_rows(h, w, c, _vmem_limit_bytes() // 4)
    n_th = h // th
    # TODO(synk): the y_pre image for one batch element stays resident in VMEM across
    # its row tiles; for extremely large single images a manual halo DMA (P4) would be
    # needed instead of the resident block.
    z_pre, stats = pl.pallas_call(
        _make_dw5x5_kernel(h, w, c, th),
        out_shape=(jax.ShapeDtypeStruct((n, h, w, c), jnp.bfloat16),
                   jax.ShapeDtypeStruct((n, n_th, 2, c), jnp.float32)),
        grid=(n, n_th),
        in_specs=[
            pl.BlockSpec((1, h, w, c), lambda i, j: (i, 0, 0, 0)),
            pl.BlockSpec((25, c), lambda i, j: (0, 0)),
            pl.BlockSpec((1, c), lambda i, j: (0, 0)),
            pl.BlockSpec((1, c), lambda i, j: (0, 0)),
        ],
        out_specs=(
            pl.BlockSpec((1, th, w, c), lambda i, j: (i, j, 0, 0)),
            pl.BlockSpec((1, 1, 2, c), lambda i, j: (i, j, 0, 0)),
        ),
        scratch_shapes=[pltpu.VMEM((th + 4, w + 4, c), jnp.float32)],
        compiler_params=pltpu.CompilerParams(
            dimension_semantics=("parallel", "parallel"),
            vmem_limit_bytes=_vmem_limit_bytes()),
    )(y_pre_nhwc, w25, scale1, shift1)
    return z_pre, jnp.sum(stats, axis=(0, 1))


# --------- final pass: BN+SiLU for both branches, emitted as (2, M, c_) ---------

def _bn_silu_pair_kernel(y_ref, z_ref, sc1_ref, sh1_ref, sc2_ref, sh2_ref, o_ref):
    a = y_ref[...].astype(jnp.float32) * sc1_ref[0] + sh1_ref[0]
    b = z_ref[...].astype(jnp.float32) * sc2_ref[0] + sh2_ref[0]
    o_ref[0] = a / (1.0 + jnp.exp(-a))      # exact SiLU
    o_ref[1] = b / (1.0 + jnp.exp(-b))


def _bn_silu_pair(y_pre, z_pre, sc1, sh1, sc2, sh2, tm_max=1024):
    m, c = y_pre.shape
    tm = _choose_row_tile(m, tm_max)
    return pl.pallas_call(
        _bn_silu_pair_kernel,
        out_shape=jax.ShapeDtypeStruct((2, m, c), jnp.float32),
        grid=(m // tm,),
        in_specs=[
            pl.BlockSpec((tm, c), lambda i: (i, 0)),
            pl.BlockSpec((tm, c), lambda i: (i, 0)),
            pl.BlockSpec((1, c), lambda i: (0, 0)),
            pl.BlockSpec((1, c), lambda i: (0, 0)),
            pl.BlockSpec((1, c), lambda i: (0, 0)),
            pl.BlockSpec((1, c), lambda i: (0, 0)),
        ],
        out_specs=pl.BlockSpec((2, tm, c), lambda i: (0, i, 0)),
        compiler_params=pltpu.CompilerParams(
            dimension_semantics=("parallel",),
            vmem_limit_bytes=_vmem_limit_bytes()),
    )(y_pre, z_pre, sc1, sh1, sc2, sh2)


# ------------------------------- GhostConv fwd -------------------------------

def ghost_conv_forward(x_nchw, params):
    n, c1, h, w = x_nchw.shape
    c_ = params["gamma1"].shape[0]
    m = n * h * w

    # NCHW -> NHWC, cast to bf16 once (MXU operand dtype).  Channels keep their true
    # width end-to-end; no 128-lane HBM padding anywhere.
    x_nhwc = jnp.transpose(x_nchw, (0, 2, 3, 1)).astype(jnp.bfloat16)

    # cv1: 1x1 conv (MXU matmul, f32 accumulation) + fused BN1 partial stats.
    w1 = params["w1"].astype(jnp.bfloat16)                           # (c1, c_)
    y_pre, sums1 = _conv1x1_bn_stats(x_nhwc.reshape(m, c1), w1)      # bf16 (m, c_)
    scale1, shift1 = _bn_scale_shift(sums1, float(m), params["gamma1"], params["beta1"])

    # cv2: depthwise 5x5 'same' (groups = c_) on SiLU(BN1(y_pre)) computed in-kernel,
    # with fused BN2 partial stats and in-VMEM halo handling (no HBM pad copy).
    w2 = params["w2"].reshape(25, c_).astype(jnp.float32)
    z_pre, sums2 = _dwconv5x5(y_pre.reshape(n, h, w, c_), w2, scale1, shift1)
    scale2, shift2 = _bn_scale_shift(sums2, float(m), params["gamma2"], params["beta2"])

    # Final pass: SiLU(BN1(y_pre)) and SiLU(BN2(z_pre)) written as the two halves of a
    # single (2, M, c_) buffer; the channel concat folds into the NCHW transpose below.
    out2 = _bn_silu_pair(y_pre, z_pre.reshape(m, c_), scale1, shift1, scale2, shift2)
    out2 = out2.reshape(2, n, h, w, c_)
    # (2, N, H, W, c_) -> (N, 2, c_, H, W) -> (N, 2*c_, H, W): y half first, z half second.
    return jnp.transpose(out2, (1, 0, 4, 2, 3)).reshape(n, 2 * c_, h, w)


# -------------------------------- parameters ---------------------------------

def init_ghost_conv(key, c1, c2):
    c_ = c2 // 2
    assert c_ >= 1, "c2 must be >= 2 so that c_ = c2 // 2 >= 1"
    ks = jax.random.split(key, 6)
    w1 = jax.random.normal(ks[0], (c1, c_), jnp.float32) / jnp.sqrt(float(c1))
    w2 = jax.random.normal(ks[1], (5, 5, c_), jnp.float32) / 5.0     # depthwise taps
    g1 = 1.0 + 0.1 * jax.random.normal(ks[2], (c_,), jnp.float32)
    b1 = 0.1 * jax.random.normal(ks[3], (c_,), jnp.float32)
    g2 = 1.0 + 0.1 * jax.random.normal(ks[4], (c_,), jnp.float32)
    b2 = 0.1 * jax.random.normal(ks[5], (c_,), jnp.float32)
    return {"w1": w1, "w2": w2,
            "gamma1": g1, "beta1": b1,
            "gamma2": g2, "beta2": b2}


if __name__ == "__main__":
    # Small shapes consistent with the module: GhostConv(c1=4, c2=8), 2x4x16x16 input.
    N, C1, C2, H, W = 2, 4, 8, 16, 16

    key = jax.random.PRNGKey(0)
    kx, kp = jax.random.split(key)
    x = jax.random.normal(kx, (N, C1, H, W), jnp.float32)
    params = init_ghost_conv(kp, C1, C2)

    fwd = jax.jit(ghost_conv_forward)
    y = fwd(x, params)
    jax.block_until_ready(y)

    assert y.shape == (N, C2, H, W), y.shape
    assert bool(jnp.all(jnp.isfinite(y)))
    print("KERNEL_OK")
</pallas_src>

<mosaic_0001>
module attributes {stable_mosaic.version = 11 : i64} {
  func.func @_mm_stats_kernel(%arg0: i32, %arg1: memref<256x4xbf16, #tpu.memory_space<vmem>>, %arg2: memref<4x4xbf16, #tpu.memory_space<vmem>>, %arg3: memref<256x4xbf16, #tpu.memory_space<vmem>>, %arg4: memref<1x2x4xf32, #tpu.memory_space<vmem>>) attributes {dimension_semantics = [#tpu.dimension_semantics<parallel>], iteration_bounds = array<i64: 2>, scalar_prefetch = 0 : i64, scratch_operands = 0 : i64, tpu.core_type = #tpu.core_type<tc>, window_params = [{transform_indices = @transform_0, window_bounds = array<i64: 256, 4>}, {pipeline_mode = #tpu.pipeline_mode<synchronous>, transform_indices = @transform_1, window_bounds = array<i64: 4, 4>}, {transform_indices = @transform_2, window_bounds = array<i64: 256, 4>}, {transform_indices = @transform_3, window_bounds = array<i64: 1, 2, 4>}]} {
    %c0 = arith.constant 0 : index
    %c0_0 = arith.constant 0 : index
    %0 = vector.load %arg1[%c0, %c0_0] : memref<256x4xbf16, #tpu.memory_space<vmem>>, vector<256x4xbf16>
    %c0_1 = arith.constant 0 : index
    %c0_2 = arith.constant 0 : index
    %1 = vector.load %arg2[%c0_1, %c0_2] : memref<4x4xbf16, #tpu.memory_space<vmem>>, vector<4x4xbf16>
    %cst = arith.constant dense<0.000000e+00> : vector<256x4xf32>
    %2 = tpu.matmul %0, %1, %cst {dimension_numbers = #tpu.dot_dimension_numbers<[1], [0], [0], [1], [0, 0, 1, 1], [], []>} : vector<256x4xbf16>, vector<4x4xbf16>, vector<256x4xf32> -> vector<256x4xf32>
    %3 = arith.truncf %2 : vector<256x4xf32> to vector<256x4xbf16>
    %c0_3 = arith.constant 0 : index
    %c0_4 = arith.constant 0 : index
    %4 = vector.load %arg3[%c0_3, %c0_4] : memref<256x4xbf16, #tpu.memory_space<vmem>>, vector<256x4xbf16>
    tpu.vector_store %arg3[%c0_3, %c0_4], %3 {strides = array<i32>} : memref<256x4xbf16, #tpu.memory_space<vmem>>, vector<256x4xbf16>,
    %cst_5 = arith.constant dense<0.000000e+00> : vector<4xf32>
    %5 = vector.multi_reduction <add>, %2, %cst_5 [0] : vector<256x4xf32> to vector<4xf32>
    %6 = vector.shape_cast %5 : vector<4xf32> to vector<1x4xf32>
    %c0_6 = arith.constant 0 : index
    %c0_7 = arith.constant 0 : index
    %c0_8 = arith.constant 0 : index
    %7 = vector.load %arg4[%c0_6, %c0_7, %c0_8] : memref<1x2x4xf32, #tpu.memory_space<vmem>>, vector<1x1x4xf32>
    %8 = vector.shape_cast %7 : vector<1x1x4xf32> to vector<1x4xf32>
    %9 = vector.shape_cast %6 : vector<1x4xf32> to vector<1x1x4xf32>
    tpu.vector_store %arg4[%c0_6, %c0_7, %c0_8], %9 {strides = array<i32>} : memref<1x2x4xf32, #tpu.memory_space<vmem>>, vector<1x1x4xf32>,
    %10 = arith.mulf %2, %2 : vector<256x4xf32>
    %cst_9 = arith.constant dense<0.000000e+00> : vector<4xf32>
    %11 = vector.multi_reduction <add>, %10, %cst_9 [0] : vector<256x4xf32> to vector<4xf32>
    %12 = vector.shape_cast %11 : vector<4xf32> to vector<1x4xf32>
    %c0_10 = arith.constant 0 : index
    %c1 = arith.constant 1 : index
    %c0_11 = arith.constant 0 : index
    %13 = vector.load %arg4[%c0_10, %c1, %c0_11] : memref<1x2x4xf32, #tpu.memory_space<vmem>>, vector<1x1x4xf32>
    %14 = vector.shape_cast %13 : vector<1x1x4xf32> to vector<1x4xf32>
    %15 = vector.shape_cast %12 : vector<1x4xf32> to vector<1x1x4xf32>
    tpu.vector_store %arg4[%c0_10, %c1, %c0_11], %15 {strides = array<i32>} : memref<1x2x4xf32, #tpu.memory_space<vmem>>, vector<1x1x4xf32>,
    return
  }
  func.func @transform_0(%arg0: i32) -> (i32, i32) {
    %c0_i32 = arith.constant 0 : i32
    %c0_i32_0 = arith.constant 0 : i32
    return %arg0, %c0_i32 : i32, i32
  }
  func.func @transform_1(%arg0: i32) -> (i32, i32) {
    %c0_i32 = arith.constant 0 : i32
    %c0_i32_0 = arith.constant 0 : i32
    %c0_i32_1 = arith.constant 0 : i32
    return %c0_i32, %c0_i32_0 : i32, i32
  }
  func.func @transform_2(%arg0: i32) -> (i32, i32) {
    %c0_i32 = arith.constant 0 : i32
    %c0_i32_0 = arith.constant 0 : i32
    return %arg0, %c0_i32 : i32, i32
  }
  func.func @transform_3(%arg0: i32) -> (i32, i32, i32) {
    %c0_i32 = arith.constant 0 : i32
    %c0_i32_0 = arith.constant 0 : i32
    %c0_i32_1 = arith.constant 0 : i32
    return %arg0, %c0_i32, %c0_i32_0 : i32, i32, i32
  }
}

module attributes {stable_mosaic.version = 11 : i64} {
  func.func @kernel(%arg0: i32, %arg1: i32, %arg2: memref<1x16x16x4xbf16, #tpu.memory_space<vmem>>, %arg3: memref<25x4xf32, #tpu.memory_space<vmem>>, %arg4: memref<1x4xf32, #tpu.memory_space<vmem>>, %arg5: memref<1x4xf32, #tpu.memory_space<vmem>>, %arg6: memref<1x16x16x4xbf16, #tpu.memory_space<vmem>>, %arg7: memref<1x1x2x4xf32, #tpu.memory_space<vmem>>, %arg8: memref<20x20x4xf32, #tpu.memory_space<vmem>>) attributes {dimension_semantics = [#tpu.dimension_semantics<parallel>, #tpu.dimension_semantics<parallel>], iteration_bounds = array<i64: 2, 1>, scalar_prefetch = 0 : i64, scratch_operands = 1 : i64, tpu.core_type = #tpu.core_type<tc>, window_params = [{transform_indices = @transform_0, window_bounds = array<i64: 1, 16, 16, 4>}, {pipeline_mode = #tpu.pipeline_mode<synchronous>, transform_indices = @transform_1, window_bounds = array<i64: 25, 4>}, {pipeline_mode = #tpu.pipeline_mode<synchronous>, transform_indices = @transform_2, window_bounds = array<i64: 1, 4>}, {pipeline_mode = #tpu.pipeline_mode<synchronous>, transform_indices = @transform_3, window_bounds = array<i64: 1, 4>}, {transform_indices = @transform_4, window_bounds = array<i64: 1, 16, 16, 4>}, {transform_indices = @transform_5, window_bounds = array<i64: 1, 1, 2, 4>}]} {
    %c16_i32 = arith.constant 16 : i32
    %0 = arith.muli %arg1, %c16_i32 : i32
    %c0 = arith.constant 0 : index
    %c0_0 = arith.constant 0 : index
    %1 = vector.load %arg4[%c0, %c0_0] : memref<1x4xf32, #tpu.memory_space<vmem>>, vector<1x4xf32>
    %2 = vector.shape_cast %1 : vector<1x4xf32> to vector<4xf32>
    %c0_1 = arith.constant 0 : index
    %c0_2 = arith.constant 0 : index
    %3 = vector.load %arg5[%c0_1, %c0_2] : memref<1x4xf32, #tpu.memory_space<vmem>>, vector<1x4xf32>
    %4 = vector.shape_cast %3 : vector<1x4xf32> to vector<4xf32>
    %cst = arith.constant 0.000000e+00 : f32
    %5 = vector.broadcast %cst : f32 to vector<20x20x4xf32>
    %c0_3 = arith.constant 0 : index
    %c0_4 = arith.constant 0 : index
    %c0_5 = arith.constant 0 : index
    %6 = vector.load %arg8[%c0_3, %c0_4, %c0_5] : memref<20x20x4xf32, #tpu.memory_space<vmem>>, vector<20x20x4xf32>
    tpu.vector_store %arg8[%c0_3, %c0_4, %c0_5], %5 {strides = array<i32>} : memref<20x20x4xf32, #tpu.memory_space<vmem>>, vector<20x20x4xf32>,
    %c0_6 = arith.constant 0 : index
    %7 = arith.index_cast %0 : i32 to index
    %c0_7 = arith.constant 0 : index
    %c0_8 = arith.constant 0 : index
    %8 = vector.load %arg2[%c0_6, %7, %c0_7, %c0_8] : memref<1x16x16x4xbf16, #tpu.memory_space<vmem>>, vector<1x16x16x4xbf16>
    %9 = vector.shape_cast %8 : vector<1x16x16x4xbf16> to vector<16x16x4xbf16>
    %10 = arith.extf %9 : vector<16x16x4xbf16> to vector<16x16x4xf32>
    %11 = vector.shape_cast %2 : vector<4xf32> to vector<1x1x4xf32>
    %12 = vector.broadcast %11 : vector<1x1x4xf32> to vector<16x16x4xf32>
    %13 = arith.mulf %10, %12 : vector<16x16x4xf32>
    %14 = vector.shape_cast %4 : vector<4xf32> to vector<1x1x4xf32>
    %15 = vector.broadcast %14 : vector<1x1x4xf32> to vector<16x16x4xf32>
    %16 = arith.addf %13, %15 : vector<16x16x4xf32>
    %cst_9 = arith.constant 0.000000e+00 : f32
    %17 = vector.broadcast %cst_9 : f32 to vector<16x16x4xf32>
    %18 = arith.subf %17, %16 : vector<16x16x4xf32>
    %19 = math.exp %18 : vector<16x16x4xf32>
    %cst_10 = arith.constant 1.000000e+00 : f32
    %20 = vector.broadcast %cst_10 : f32 to vector<16x16x4xf32>
    %21 = arith.addf %20, %19 : vector<16x16x4xf32>
    %22 = arith.divf %16, %21 : vector<16x16x4xf32>
    %c2 = arith.constant 2 : index
    %c2_11 = arith.constant 2 : index
    %c0_12 = arith.constant 0 : index
    %23 = vector.load %arg8[%c2, %c2_11, %c0_12] : memref<20x20x4xf32, #tpu.memory_space<vmem>>, vector<16x16x4xf32>
    tpu.vector_store %arg8[%c2, %c2_11, %c0_12], %22 {strides = array<i32>} : memref<20x20x4xf32, #tpu.memory_space<vmem>>, vector<16x16x4xf32>,
    %c0_i32 = arith.constant 0 : i32
    %24 = arith.cmpi sgt, %arg1, %c0_i32 : i32
    %25 = arith.extui %24 : i1 to i32
    %c0_i32_13 = arith.constant 0 : i32
    %26 = arith.cmpi ne, %25, %c0_i32_13 : i32
    scf.if %26 {
      %c2_i32 = arith.constant 2 : i32
      %229 = arith.subi %0, %c2_i32 : i32
      %c0_47 = arith.constant 0 : index
      %230 = arith.index_cast %229 : i32 to index
      %c0_48 = arith.constant 0 : index
      %c0_49 = arith.constant 0 : index
      %231 = vector.load %arg2[%c0_47, %230, %c0_48, %c0_49] : memref<1x16x16x4xbf16, #tpu.memory_space<vmem>>, vector<1x2x16x4xbf16>
      %232 = vector.shape_cast %231 : vector<1x2x16x4xbf16> to vector<2x16x4xbf16>
      %233 = arith.extf %232 : vector<2x16x4xbf16> to vector<2x16x4xf32>
      %234 = vector.shape_cast %2 : vector<4xf32> to vector<1x1x4xf32>
      %235 = vector.broadcast %234 : vector<1x1x4xf32> to vector<2x16x4xf32>
      %236 = arith.mulf %233, %235 : vector<2x16x4xf32>
      %237 = vector.shape_cast %4 : vector<4xf32> to vector<1x1x4xf32>
      %238 = vector.broadcast %237 : vector<1x1x4xf32> to vector<2x16x4xf32>
      %239 = arith.addf %236, %238 : vector<2x16x4xf32>
      %cst_50 = arith.constant 0.000000e+00 : f32
      %240 = vector.broadcast %cst_50 : f32 to vector<2x16x4xf32>
      %241 = arith.subf %240, %239 : vector<2x16x4xf32>
      %242 = math.exp %241 : vector<2x16x4xf32>
      %cst_51 = arith.constant 1.000000e+00 : f32
      %243 = vector.broadcast %cst_51 : f32 to vector<2x16x4xf32>
      %244 = arith.addf %243, %242 : vector<2x16x4xf32>
      %245 = arith.divf %239, %244 : vector<2x16x4xf32>
      %c0_52 = arith.constant 0 : index
      %c2_53 = arith.constant 2 : index
      %c0_54 = arith.constant 0 : index
      %246 = vector.load %arg8[%c0_52, %c2_53, %c0_54] : memref<20x20x4xf32, #tpu.memory_space<vmem>>, vector<2x16x4xf32>
      tpu.vector_store %arg8[%c0_52, %c2_53, %c0_54], %245 {strides = array<i32>} : memref<20x20x4xf32, #tpu.memory_space<vmem>>, vector<2x16x4xf32>,
    } else {
    }
    %c0_i32_14 = arith.constant 0 : i32
    %27 = arith.cmpi slt, %arg1, %c0_i32_14 : i32
    %28 = arith.extui %27 : i1 to i32
    %c0_i32_15 = arith.constant 0 : i32
    %29 = arith.cmpi ne, %28, %c0_i32_15 : i32
    scf.if %29 {
      %c16_i32_47 = arith.constant 16 : i32
      %229 = arith.addi %0, %c16_i32_47 : i32
      %c0_48 = arith.constant 0 : index
      %230 = arith.index_cast %229 : i32 to index
      %c0_49 = arith.constant 0 : index
      %c0_50 = arith.constant 0 : index
      %231 = vector.load %arg2[%c0_48, %230, %c0_49, %c0_50] : memref<1x16x16x4xbf16, #tpu.memory_space<vmem>>, vector<1x2x16x4xbf16>
      %232 = vector.shape_cast %231 : vector<1x2x16x4xbf16> to vector<2x16x4xbf16>
      %233 = arith.extf %232 : vector<2x16x4xbf16> to vector<2x16x4xf32>
      %234 = vector.shape_cast %2 : vector<4xf32> to vector<1x1x4xf32>
      %235 = vector.broadcast %234 : vector<1x1x4xf32> to vector<2x16x4xf32>
      %236 = arith.mulf %233, %235 : vector<2x16x4xf32>
      %237 = vector.shape_cast %4 : vector<4xf32> to vector<1x1x4xf32>
      %238 = vector.broadcast %237 : vector<1x1x4xf32> to vector<2x16x4xf32>
      %239 = arith.addf %236, %238 : vector<2x16x4xf32>
      %cst_51 = arith.constant 0.000000e+00 : f32
      %240 = vector.broadcast %cst_51 : f32 to vector<2x16x4xf32>
      %241 = arith.subf %240, %239 : vector<2x16x4xf32>
      %242 = math.exp %241 : vector<2x16x4xf32>
      %cst_52 = arith.constant 1.000000e+00 : f32
      %243 = vector.broadcast %cst_52 : f32 to vector<2x16x4xf32>
      %244 = arith.addf %243, %242 : vector<2x16x4xf32>
      %245 = arith.divf %239, %244 : vector<2x16x4xf32>
      %c18 = arith.constant 18 : index
      %c2_53 = arith.constant 2 : index
      %c0_54 = arith.constant 0 : index
      %246 = vector.load %arg8[%c18, %c2_53, %c0_54] : memref<20x20x4xf32, #tpu.memory_space<vmem>>, vector<2x16x4xf32>
      tpu.vector_store %arg8[%c18, %c2_53, %c0_54], %245 {strides = array<i32>} : memref<20x20x4xf32, #tpu.memory_space<vmem>>, vector<2x16x4xf32>,
    } else {
    }
    %c0_16 = arith.constant 0 : index
    %c0_17 = arith.constant 0 : index
    %30 = vector.load %arg3[%c0_16, %c0_17] : memref<25x4xf32, #tpu.memory_space<vmem>>, vector<25x4xf32>
    %cst_18 = arith.constant 0.000000e+00 : f32
    %31 = vector.broadcast %cst_18 : f32 to vector<16x16x4xf32>
    %c0_19 = arith.constant 0 : index
    %c0_20 = arith.constant 0 : index
    %c0_21 = arith.constant 0 : index
    %32 = vector.load %arg8[%c0_19, %c0_20, %c0_21] : memref<20x20x4xf32, #tpu.memory_space<vmem>>, vector<20x16x4xf32>
    %33 = vector.extract_strided_slice %32 {offsets = [0, 0, 0], sizes = [16, 16, 4], strides = [1, 1, 1]} : vector<20x16x4xf32> to vector<16x16x4xf32>
    %34 = vector.extract_strided_slice %30 {offsets = [0, 0], sizes = [1, 4], strides = [1, 1]} : vector<25x4xf32> to vector<1x4xf32>
    %35 = vector.shape_cast %34 : vector<1x4xf32> to vector<4xf32>
    %36 = vector.shape_cast %35 : vector<4xf32> to vector<1x1x4xf32>
    %37 = vector.broadcast %36 : vector<1x1x4xf32> to vector<16x16x4xf32>
    %38 = arith.mulf %33, %37 : vector<16x16x4xf32>
    %39 = arith.addf %31, %38 : vector<16x16x4xf32>
    %40 = vector.extract_strided_slice %32 {offsets = [1, 0, 0], sizes = [16, 16, 4], strides = [1, 1, 1]} : vector<20x16x4xf32> to vector<16x16x4xf32>
    %41 = vector.extract_strided_slice %30 {offsets = [5, 0], sizes = [1, 4], strides = [1, 1]} : vector<25x4xf32> to vector<1x4xf32>
    %42 = vector.shape_cast %41 : vector<1x4xf32> to vector<4xf32>
    %43 = vector.shape_cast %42 : vector<4xf32> to vector<1x1x4xf32>
    %44 = vector.broadcast %43 : vector<1x1x4xf32> to vector<16x16x4xf32>
    %45 = arith.mulf %40, %44 : vector<16x16x4xf32>
    %46 = arith.addf %39, %45 : vector<16x16x4xf32>
    %47 = vector.extract_strided_slice %32 {offsets = [2, 0, 0], sizes = [16, 16, 4], strides = [1, 1, 1]} : vector<20x16x4xf32> to vector<16x16x4xf32>
    %48 = vector.extract_strided_slice %30 {offsets = [10, 0], sizes = [1, 4], strides = [1, 1]} : vector<25x4xf32> to vector<1x4xf32>
    %49 = vector.shape_cast %48 : vector<1x4xf32> to vector<4xf32>
    %50 = vector.shape_cast %49 : vector<4xf32> to vector<1x1x4xf32>
    %51 = vector.broadcast %50 : vector<1x1x4xf32> to vector<16x16x4xf32>
    %52 = arith.mulf %47, %51 : vector<16x16x4xf32>
    %53 = arith.addf %46, %52 : vector<16x16x4xf32>
    %54 = vector.extract_strided_slice %32 {offsets = [3, 0, 0], sizes = [16, 16, 4], strides = [1, 1, 1]} : vector<20x16x4xf32> to vector<16x16x4xf32>
    %55 = vector.extract_strided_slice %30 {offsets = [15, 0], sizes = [1, 4], strides = [1, 1]} : vector<25x4xf32> to vector<1x4xf32>
    %56 = vector.shape_cast %55 : vector<1x4xf32> to vector<4xf32>
    %57 = vector.shape_cast %56 : vector<4xf32> to vector<1x1x4xf32>
    %58 = vector.broadcast %57 : vector<1x1x4xf32> to vector<16x16x4xf32>
    %59 = arith.mulf %54, %58 : vector<16x16x4xf32>
    %60 = arith.addf %53, %59 : vector<16x16x4xf32>
    %61 = vector.extract_strided_slice %32 {offsets = [4, 0, 0], sizes = [16, 16, 4], strides = [1, 1, 1]} : vector<20x16x4xf32> to vector<16x16x4xf32>
    %62 = vector.extract_strided_slice %30 {offsets = [20, 0], sizes = [1, 4], strides = [1, 1]} : vector<25x4xf32> to vector<1x4xf32>
    %63 = vector.shape_cast %62 : vector<1x4xf32> to vector<4xf32>
    %64 = vector.shape_cast %63 : vector<4xf32> to vector<1x1x4xf32>
    %65 = vector.broadcast %64 : vector<1x1x4xf32> to vector<16x16x4xf32>
    %66 = arith.mulf %61, %65 : vector<16x16x4xf32>
    %67 = arith.addf %60, %66 : vector<16x16x4xf32>
    %c0_22 = arith.constant 0 : index
    %c1 = arith.constant 1 : index
    %c0_23 = arith.constant 0 : index
    %68 = vector.load %arg8[%c0_22, %c1, %c0_23] : memref<20x20x4xf32, #tpu.memory_space<vmem>>, vector<20x16x4xf32>
    %69 = vector.extract_strided_slice %68 {offsets = [0, 0, 0], sizes = [16, 16, 4], strides = [1, 1, 1]} : vector<20x16x4xf32> to vector<16x16x4xf32>
    %70 = vector.extract_strided_slice %30 {offsets = [1, 0], sizes = [1, 4], strides = [1, 1]} : vector<25x4xf32> to vector<1x4xf32>
    %71 = vector.shape_cast %70 : vector<1x4xf32> to vector<4xf32>
    %72 = vector.shape_cast %71 : vector<4xf32> to vector<1x1x4xf32>
    %73 = vector.broadcast %72 : vector<1x1x4xf32> to vector<16x16x4xf32>
    %74 = arith.mulf %69, %73 : vector<16x16x4xf32>
    %75 = arith.addf %67, %74 : vector<16x16x4xf32>
    %76 = vector.extract_strided_slice %68 {offsets = [1, 0, 0], sizes = [16, 16, 4], strides = [1, 1, 1]} : vector<20x16x4xf32> to vector<16x16x4xf32>
    %77 = vector.extract_strided_slice %30 {offsets = [6, 0], sizes = [1, 4], strides = [1, 1]} : vector<25x4xf32> to vector<1x4xf32>
    %78 = vector.shape_cast %77 : vector<1x4xf32> to vector<4xf32>
    %79 = vector.shape_cast %78 : vector<4xf32> to vector<1x1x4xf32>
    %80 = vector.broadcast %79 : vector<1x1x4xf32> to vector<16x16x4xf32>
    %81 = arith.mulf %76, %80 : vector<16x16x4xf32>
    %82 = arith.addf %75, %81 : vector<16x16x4xf32>
    %83 = vector.extract_strided_slice %68 {offsets = [2, 0, 0], sizes = [16, 16, 4], strides = [1, 1, 1]} : vector<20x16x4xf32> to vector<16x16x4xf32>
    %84 = vector.extract_strided_slice %30 {offsets = [11, 0], sizes = [1, 4], strides = [1, 1]} : vector<25x4xf32> to vector<1x4xf32>
    %85 = vector.shape_cast %84 : vector<1x4xf32> to vector<4xf32>
    %86 = vector.shape_cast %85 : vector<4xf32> to vector<1x1x4xf32>
    %87 = vector.broadcast %86 : vector<1x1x4xf32> to vector<16x16x4xf32>
    %88 = arith.mulf %83, %87 : vector<16x16x4xf32>
    %89 = arith.addf %82, %88 : vector<16x16x4xf32>
    %90 = vector.extract_strided_slice %68 {offsets = [3, 0, 0], sizes = [16, 16, 4], strides = [1, 1, 1]} : vector<20x16x4xf32> to vector<16x16x4xf32>
    %91 = vector.extract_strided_slice %30 {offsets = [16, 0], sizes = [1, 4], strides = [1, 1]} : vector<25x4xf32> to vector<1x4xf32>
    %92 = vector.shape_cast %91 : vector<1x4xf32> to vector<4xf32>
    %93 = vector.shape_cast %92 : vector<4xf32> to vector<1x1x4xf32>
    %94 = vector.broadcast %93 : vector<1x1x4xf32> to vector<16x16x4xf32>
    %95 = arith.mulf %90, %94 : vector<16x16x4xf32>
    %96 = arith.addf %89, %95 : vector<16x16x4xf32>
    %97 = vector.extract_strided_slice %68 {offsets = [4, 0, 0], sizes = [16, 16, 4], strides = [1, 1, 1]} : vector<20x16x4xf32> to vector<16x16x4xf32>
    %98 = vector.extract_strided_slice %30 {offsets = [21, 0], sizes = [1, 4], strides = [1, 1]} : vector<25x4xf32> to vector<1x4xf32>
    %99 = vector.shape_cast %98 : vector<1x4xf32> to vector<4xf32>
    %100 = vector.shape_cast %99 : vector<4xf32> to vector<1x1x4xf32>
    %101 = vector.broadcast %100 : vector<1x1x4xf32> to vector<16x16x4xf32>
    %102 = arith.mulf %97, %101 : vector<16x16x4xf32>
    %103 = arith.addf %96, %102 : vector<16x16x4xf32>
    %c0_24 = arith.constant 0 : index
    %c2_25 = arith.constant 2 : index
    %c0_26 = arith.constant 0 : index
    %104 = vector.load %arg8[%c0_24, %c2_25, %c0_26] : memref<20x20x4xf32, #tpu.memory_space<vmem>>, vector<20x16x4xf32>
    %105 = vector.extract_strided_slice %104 {offsets = [0, 0, 0], sizes = [16, 16, 4], strides = [1, 1, 1]} : vector<20x16x4xf32> to vector<16x16x4xf32>
    %106 = vector.extract_strided_slice %30 {offsets = [2, 0], sizes = [1, 4], strides = [1, 1]} : vector<25x4xf32> to vector<1x4xf32>
    %107 = vector.shape_cast %106 : vector<1x4xf32> to vector<4xf32>
    %108 = vector.shape_cast %107 : vector<4xf32> to vector<1x1x4xf32>
    %109 = vector.broadcast %108 : vector<1x1x4xf32> to vector<16x16x4xf32>
    %110 = arith.mulf %105, %109 : vector<16x16x4xf32>
    %111 = arith.addf %103, %110 : vector<16x16x4xf32>
    %112 = vector.extract_strided_slice %104 {offsets = [1, 0, 0], sizes = [16, 16, 4], strides = [1, 1, 1]} : vector<20x16x4xf32> to vector<16x16x4xf32>
    %113 = vector.extract_strided_slice %30 {offsets = [7, 0], sizes = [1, 4], strides = [1, 1]} : vector<25x4xf32> to vector<1x4xf32>
    %114 = vector.shape_cast %113 : vector<1x4xf32> to vector<4xf32>
    %115 = vector.shape_cast %114 : vector<4xf32> to vector<1x1x4xf32>
    %116 = vector.broadcast %115 : vector<1x1x4xf32> to vector<16x16x4xf32>
    %117 = arith.mulf %112, %116 : vector<16x16x4xf32>
    %118 = arith.addf %111, %117 : vector<16x16x4xf32>
    %119 = vector.extract_strided_slice %104 {offsets = [2, 0, 0], sizes = [16, 16, 4], strides = [1, 1, 1]} : vector<20x16x4xf32> to vector<16x16x4xf32>
    %120 = vector.extract_strided_slice %30 {offsets = [12, 0], sizes = [1, 4], strides = [1, 1]} : vector<25x4xf32> to vector<1x4xf32>
    %121 = vector.shape_cast %120 : vector<1x4xf32> to vector<4xf32>
    %122 = vector.shape_cast %121 : vector<4xf32> to vector<1x1x4xf32>
    %123 = vector.broadcast %122 : vector<1x1x4xf32> to vector<16x16x4xf32>
    %124 = arith.mulf %119, %123 : vector<16x16x4xf32>
    %125 = arith.addf %118, %124 : vector<16x16x4xf32>
    %126 = vector.extract_strided_slice %104 {offsets = [3, 0, 0], sizes = [16, 16, 4], strides = [1, 1, 1]} : vector<20x16x4xf32> to vector<16x16x4xf32>
    %127 = vector.extract_strided_slice %30 {offsets = [17, 0], sizes = [1, 4], strides = [1, 1]} : vector<25x4xf32> to vector<1x4xf32>
    %128 = vector.shape_cast %127 : vector<1x4xf32> to vector<4xf32>
    %129 = vector.shape_cast %128 : vector<4xf32> to vector<1x1x4xf32>
    %130 = vector.broadcast %129 : vector<1x1x4xf32> to vector<16x16x4xf32>
    %131 = arith.mulf %126, %130 : vector<16x16x4xf32>
    %132 = arith.addf %125, %131 : vector<16x16x4xf32>
    %133 = vector.extract_strided_slice %104 {offsets = [4, 0, 0], sizes = [16, 16, 4], strides = [1, 1, 1]} : vector<20x16x4xf32> to vector<16x16x4xf32>
    %134 = vector.extract_strided_slice %30 {offsets = [22, 0], sizes = [1, 4], strides = [1, 1]} : vector<25x4xf32> to vector<1x4xf32>
    %135 = vector.shape_cast %134 : vector<1x4xf32> to vector<4xf32>
    %136 = vector.shape_cast %135 : vector<4xf32> to vector<1x1x4xf32>
    %137 = vector.broadcast %136 : vector<1x1x4xf32> to vector<16x16x4xf32>
    %138 = arith.mulf %133, %137 : vector<16x16x4xf32>
    %139 = arith.addf %132, %138 : vector<16x16x4xf32>
    %c0_27 = arith.constant 0 : index
    %c3 = arith.constant 3 : index
    %c0_28 = arith.constant 0 : index
    %140 = vector.load %arg8[%c0_27, %c3, %c0_28] : memref<20x20x4xf32, #tpu.memory_space<vmem>>, vector<20x16x4xf32>
    %141 = vector.extract_strided_slice %140 {offsets = [0, 0, 0], sizes = [16, 16, 4], strides = [1, 1, 1]} : vector<20x16x4xf32> to vector<16x16x4xf32>
    %142 = vector.extract_strided_slice %30 {offsets = [3, 0], sizes = [1, 4], strides = [1, 1]} : vector<25x4xf32> to vector<1x4xf32>
    %143 = vector.shape_cast %142 : vector<1x4xf32> to vector<4xf32>
    %144 = vector.shape_cast %143 : vector<4xf32> to vector<1x1x4xf32>
    %145 = vector.broadcast %144 : vector<1x1x4xf32> to vector<16x16x4xf32>
    %146 = arith.mulf %141, %145 : vector<16x16x4xf32>
    %147 = arith.addf %139, %146 : vector<16x16x4xf32>
    %148 = vector.extract_strided_slice %140 {offsets = [1, 0, 0], sizes = [16, 16, 4], strides = [1, 1, 1]} : vector<20x16x4xf32> to vector<16x16x4xf32>
    %149 = vector.extract_strided_slice %30 {offsets = [8, 0], sizes = [1, 4], strides = [1, 1]} : vector<25x4xf32> to vector<1x4xf32>
    %150 = vector.shape_cast %149 : vector<1x4xf32> to vector<4xf32>
    %151 = vector.shape_cast %150 : vector<4xf32> to vector<1x1x4xf32>
    %152 = vector.broadcast %151 : vector<1x1x4xf32> to vector<16x16x4xf32>
    %153 = arith.mulf %148, %152 : vector<16x16x4xf32>
    %154 = arith.addf %147, %153 : vector<16x16x4xf32>
    %155 = vector.extract_strided_slice %140 {offsets = [2, 0, 0], sizes = [16, 16, 4], strides = [1, 1, 1]} : vector<20x16x4xf32> to vector<16x16x4xf32>
    %156 = vector.extract_strided_slice %30 {offsets = [13, 0], sizes = [1, 4], strides = [1, 1]} : vector<25x4xf32> to vector<1x4xf32>
    %157 = vector.shape_cast %156 : vector<1x4xf32> to vector<4xf32>
    %158 = vector.shape_cast %157 : vector<4xf32> to vector<1x1x4xf32>
    %159 = vector.broadcast %158 : vector<1x1x4xf32> to vector<16x16x4xf32>
    %160 = arith.mulf %155, %159 : vector<16x16x4xf32>
    %161 = arith.addf %154, %160 : vector<16x16x4xf32>
    %162 = vector.extract_strided_slice %140 {offsets = [3, 0, 0], sizes = [16, 16, 4], strides = [1, 1, 1]} : vector<20x16x4xf32> to vector<16x16x4xf32>
    %163 = vector.extract_strided_slice %30 {offsets = [18, 0], sizes = [1, 4], strides = [1, 1]} : vector<25x4xf32> to vector<1x4xf32>
    %164 = vector.shape_cast %163 : vector<1x4xf32> to vector<4xf32>
    %165 = vector.shape_cast %164 : vector<4xf32> to vector<1x1x4xf32>
    %166 = vector.broadcast %165 : vector<1x1x4xf32> to vector<16x16x4xf32>
    %167 = arith.mulf %162, %166 : vector<16x16x4xf32>
    %168 = arith.addf %161, %167 : vector<16x16x4xf32>
    %169 = vector.extract_strided_slice %140 {offsets = [4, 0, 0], sizes = [16, 16, 4], strides = [1, 1, 1]} : vector<20x16x4xf32> to vector<16x16x4xf32>
    %170 = vector.extract_strided_slice %30 {offsets = [23, 0], sizes = [1, 4], strides = [1, 1]} : vector<25x4xf32> to vector<1x4xf32>
    %171 = vector.shape_cast %170 : vector<1x4xf32> to vector<4xf32>
    %172 = vector.shape_cast %171 : vector<4xf32> to vector<1x1x4xf32>
    %173 = vector.broadcast %172 : vector<1x1x4xf32> to vector<16x16x4xf32>
    %174 = arith.mulf %169, %173 : vector<16x16x4xf32>
    %175 = arith.addf %168, %174 : vector<16x16x4xf32>
    %c0_29 = arith.constant 0 : index
    %c4 = arith.constant 4 : index
    %c0_30 = arith.constant 0 : index
    %176 = vector.load %arg8[%c0_29, %c4, %c0_30] : memref<20x20x4xf32, #tpu.memory_space<vmem>>, vector<20x16x4xf32>
    %177 = vector.extract_strided_slice %176 {offsets = [0, 0, 0], sizes = [16, 16, 4], strides = [1, 1, 1]} : vector<20x16x4xf32> to vector<16x16x4xf32>
    %178 = vector.extract_strided_slice %30 {offsets = [4, 0], sizes = [1, 4], strides = [1, 1]} : vector<25x4xf32> to vector<1x4xf32>
    %179 = vector.shape_cast %178 : vector<1x4xf32> to vector<4xf32>
    %180 = vector.shape_cast %179 : vector<4xf32> to vector<1x1x4xf32>
    %181 = vector.broadcast %180 : vector<1x1x4xf32> to vector<16x16x4xf32>
    %182 = arith.mulf %177, %181 : vector<16x16x4xf32>
    %183 = arith.addf %175, %182 : vector<16x16x4xf32>
    %184 = vector.extract_strided_slice %176 {offsets = [1, 0, 0], sizes = [16, 16, 4], strides = [1, 1, 1]} : vector<20x16x4xf32> to vector<16x16x4xf32>
    %185 = vector.extract_strided_slice %30 {offsets = [9, 0], sizes = [1, 4], strides = [1, 1]} : vector<25x4xf32> to vector<1x4xf32>
    %186 = vector.shape_cast %185 : vector<1x4xf32> to vector<4xf32>
    %187 = vector.shape_cast %186 : vector<4xf32> to vector<1x1x4xf32>
    %188 = vector.broadcast %187 : vector<1x1x4xf32> to vector<16x16x4xf32>
    %189 = arith.mulf %184, %188 : vector<16x16x4xf32>
    %190 = arith.addf %183, %189 : vector<16x16x4xf32>
    %191 = vector.extract_strided_slice %176 {offsets = [2, 0, 0], sizes = [16, 16, 4], strides = [1, 1, 1]} : vector<20x16x4xf32> to vector<16x16x4xf32>
    %192 = vector.extract_strided_slice %30 {offsets = [14, 0], sizes = [1, 4], strides = [1, 1]} : vector<25x4xf32> to vector<1x4xf32>
    %193 = vector.shape_cast %192 : vector<1x4xf32> to vector<4xf32>
    %194 = vector.shape_cast %193 : vector<4xf32> to vector<1x1x4xf32>
    %195 = vector.broadcast %194 : vector<1x1x4xf32> to vector<16x16x4xf32>
    %196 = arith.mulf %191, %195 : vector<16x16x4xf32>
    %197 = arith.addf %190, %196 : vector<16x16x4xf32>
    %198 = vector.extract_strided_slice %176 {offsets = [3, 0, 0], sizes = [16, 16, 4], strides = [1, 1, 1]} : vector<20x16x4xf32> to vector<16x16x4xf32>
    %199 = vector.extract_strided_slice %30 {offsets = [19, 0], sizes = [1, 4], strides = [1, 1]} : vector<25x4xf32> to vector<1x4xf32>
    %200 = vector.shape_cast %199 : vector<1x4xf32> to vector<4xf32>
    %201 = vector.shape_cast %200 : vector<4xf32> to vector<1x1x4xf32>
    %202 = vector.broadcast %201 : vector<1x1x4xf32> to vector<16x16x4xf32>
    %203 = arith.mulf %198, %202 : vector<16x16x4xf32>
    %204 = arith.addf %197, %203 : vector<16x16x4xf32>
    %205 = vector.extract_strided_slice %176 {offsets = [4, 0, 0], sizes = [16, 16, 4], strides = [1, 1, 1]} : vector<20x16x4xf32> to vector<16x16x4xf32>
    %206 = vector.extract_strided_slice %30 {offsets = [24, 0], sizes = [1, 4], strides = [1, 1]} : vector<25x4xf32> to vector<1x4xf32>
    %207 = vector.shape_cast %206 : vector<1x4xf32> to vector<4xf32>
    %208 = vector.shape_cast %207 : vector<4xf32> to vector<1x1x4xf32>
    %209 = vector.broadcast %208 : vector<1x1x4xf32> to vector<16x16x4xf32>
    %210 = arith.mulf %205, %209 : vector<16x16x4xf32>
    %211 = arith.addf %204, %210 : vector<16x16x4xf32>
    %212 = arith.truncf %211 : vector<16x16x4xf32> to vector<16x16x4xbf16>
    %c0_31 = arith.constant 0 : index
    %c0_32 = arith.constant 0 : index
    %c0_33 = arith.constant 0 : index
    %c0_34 = arith.constant 0 : index
    %213 = vector.load %arg6[%c0_31, %c0_32, %c0_33, %c0_34] : memref<1x16x16x4xbf16, #tpu.memory_space<vmem>>, vector<1x16x16x4xbf16>
    %214 = vector.shape_cast %213 : vector<1x16x16x4xbf16> to vector<16x16x4xbf16>
    %215 = vector.shape_cast %212 : vector<16x16x4xbf16> to vector<1x16x16x4xbf16>
    tpu.vector_store %arg6[%c0_31, %c0_32, %c0_33, %c0_34], %215 {strides = array<i32>} : memref<1x16x16x4xbf16, #tpu.memory_space<vmem>>, vector<1x16x16x4xbf16>,
    %cst_35 = arith.constant dense<0.000000e+00> : vector<16x4xf32>
    %216 = vector.multi_reduction <add>, %211, %cst_35 [0] : vector<16x16x4xf32> to vector<16x4xf32>
    %cst_36 = arith.constant dense<0.000000e+00> : vector<4xf32>
    %217 = vector.multi_reduction <add>, %216, %cst_36 [0] : vector<16x4xf32> to vector<4xf32>
    %218 = vector.shape_cast %217 : vector<4xf32> to vector<1x4xf32>
    %c0_37 = arith.constant 0 : index
    %c0_38 = arith.constant 0 : index
    %c0_39 = arith.constant 0 : index
    %c0_40 = arith.constant 0 : index
    %219 = vector.load %arg7[%c0_37, %c0_38, %c0_39, %c0_40] : memref<1x1x2x4xf32, #tpu.memory_space<vmem>>, vector<1x1x1x4xf32>
    %220 = vector.shape_cast %219 : vector<1x1x1x4xf32> to vector<1x4xf32>
    %221 = vector.shape_cast %218 : vector<1x4xf32> to vector<1x1x1x4xf32>
    tpu.vector_store %arg7[%c0_37, %c0_38, %c0_39, %c0_40], %221 {strides = array<i32>} : memref<1x1x2x4xf32, #tpu.memory_space<vmem>>, vector<1x1x1x4xf32>,
    %222 = arith.mulf %211, %211 : vector<16x16x4xf32>
    %cst_41 = arith.constant dense<0.000000e+00> : vector<16x4xf32>
    %223 = vector.multi_reduction <add>, %222, %cst_41 [0] : vector<16x16x4xf32> to vector<16x4xf32>
    %cst_42 = arith.constant dense<0.000000e+00> : vector<4xf32>
    %224 = vector.multi_reduction <add>, %223, %cst_42 [0] : vector<16x4xf32> to vector<4xf32>
    %225 = vector.shape_cast %224 : vector<4xf32> to vector<1x4xf32>
    %c0_43 = arith.constant 0 : index
    %c0_44 = arith.constant 0 : index
    %c1_45 = arith.constant 1 : index
    %c0_46 = arith.constant 0 : index
    %226 = vector.load %arg7[%c0_43, %c0_44, %c1_45, %c0_46] : memref<1x1x2x4xf32, #tpu.memory_space<vmem>>, vector<1x1x1x4xf32>
    %227 = vector.shape_cast %226 : vector<1x1x1x4xf32> to vector<1x4xf32>
    %228 = vector.shape_cast %225 : vector<1x4xf32> to vector<1x1x1x4xf32>
    tpu.vector_store %arg7[%c0_43, %c0_44, %c1_45, %c0_46], %228 {strides = array<i32>} : memref<1x1x2x4xf32, #tpu.memory_space<vmem>>, vector<1x1x1x4xf32>,
    return
  }
  func.func @transform_0(%arg0: i32, %arg1: i32) -> (i32, i32, i32, i32) {
    %c0_i32 = arith.constant 0 : i32
    %c0_i32_0 = arith.constant 0 : i32
    %c0_i32_1 = arith.constant 0 : i32
    %c0_i32_2 = arith.constant 0 : i32
    return %arg0, %c0_i32, %c0_i32_0, %c0_i32_1 : i32, i32, i32, i32
  }
  func.func @transform_1(%arg0: i32, %arg1: i32) -> (i32, i32) {
    %c0_i32 = arith.constant 0 : i32
    %c0_i32_0 = arith.constant 0 : i32
    %c0_i32_1 = arith.constant 0 : i32
    return %c0_i32, %c0_i32_0 : i32, i32
  }
  func.func @transform_2(%arg0: i32, %arg1: i32) -> (i32, i32) {
    %c0_i32 = arith.constant 0 : i32
    %c0_i32_0 = arith.constant 0 : i32
    %c0_i32_1 = arith.constant 0 : i32
    return %c0_i32, %c0_i32_0 : i32, i32
  }
  func.func @transform_3(%arg0: i32, %arg1: i32) -> (i32, i32) {
    %c0_i32 = arith.constant 0 : i32
    %c0_i32_0 = arith.constant 0 : i32
    %c0_i32_1 = arith.constant 0 : i32
    return %c0_i32, %c0_i32_0 : i32, i32
  }
  func.func @transform_4(%arg0: i32, %arg1: i32) -> (i32, i32, i32, i32) {
    %c0_i32 = arith.constant 0 : i32
    %c0_i32_0 = arith.constant 0 : i32
    %c0_i32_1 = arith.constant 0 : i32
    return %arg0, %arg1, %c0_i32, %c0_i32_0 : i32, i32, i32, i32
  }
  func.func @transform_5(%arg0: i32, %arg1: i32) -> (i32, i32, i32, i32) {
    %c0_i32 = arith.constant 0 : i32
    %c0_i32_0 = arith.constant 0 : i32
    %c0_i32_1 = arith.constant 0 : i32
    return %arg0, %arg1, %c0_i32, %c0_i32_0 : i32, i32, i32, i32
  }
}

module attributes {stable_mosaic.version = 11 : i64} {
  func.func @_bn_silu_pair_kernel(%arg0: i32, %arg1: memref<256x4xbf16, #tpu.memory_space<vmem>>, %arg2: memref<256x4xbf16, #tpu.memory_space<vmem>>, %arg3: memref<1x4xf32, #tpu.memory_space<vmem>>, %arg4: memref<1x4xf32, #tpu.memory_space<vmem>>, %arg5: memref<1x4xf32, #tpu.memory_space<vmem>>, %arg6: memref<1x4xf32, #tpu.memory_space<vmem>>, %arg7: memref<2x256x4xf32, #tpu.memory_space<vmem>>) attributes {dimension_semantics = [#tpu.dimension_semantics<parallel>], iteration_bounds = array<i64: 2>, scalar_prefetch = 0 : i64, scratch_operands = 0 : i64, tpu.core_type = #tpu.core_type<tc>, window_params = [{transform_indices = @transform_0, window_bounds = array<i64: 256, 4>}, {transform_indices = @transform_1, window_bounds = array<i64: 256, 4>}, {pipeline_mode = #tpu.pipeline_mode<synchronous>, transform_indices = @transform_2, window_bounds = array<i64: 1, 4>}, {pipeline_mode = #tpu.pipeline_mode<synchronous>, transform_indices = @transform_3, window_bounds = array<i64: 1, 4>}, {pipeline_mode = #tpu.pipeline_mode<synchronous>, transform_indices = @transform_4, window_bounds = array<i64: 1, 4>}, {pipeline_mode = #tpu.pipeline_mode<synchronous>, transform_indices = @transform_5, window_bounds = array<i64: 1, 4>}, {transform_indices = @transform_6, window_bounds = array<i64: 2, 256, 4>}]} {
    %c0 = arith.constant 0 : index
    %c0_0 = arith.constant 0 : index
    %0 = vector.load %arg1[%c0, %c0_0] : memref<256x4xbf16, #tpu.memory_space<vmem>>, vector<256x4xbf16>
    %1 = arith.extf %0 : vector<256x4xbf16> to vector<256x4xf32>
    %c0_1 = arith.constant 0 : index
    %c0_2 = arith.constant 0 : index
    %2 = vector.load %arg3[%c0_1, %c0_2] : memref<1x4xf32, #tpu.memory_space<vmem>>, vector<1x4xf32>
    %3 = vector.shape_cast %2 : vector<1x4xf32> to vector<4xf32>
    %4 = vector.shape_cast %3 : vector<4xf32> to vector<1x4xf32>
    %5 = vector.broadcast %4 : vector<1x4xf32> to vector<256x4xf32>
    %6 = arith.mulf %1, %5 : vector<256x4xf32>
    %c0_3 = arith.constant 0 : index
    %c0_4 = arith.constant 0 : index
    %7 = vector.load %arg4[%c0_3, %c0_4] : memref<1x4xf32, #tpu.memory_space<vmem>>, vector<1x4xf32>
    %8 = vector.shape_cast %7 : vector<1x4xf32> to vector<4xf32>
    %9 = vector.shape_cast %8 : vector<4xf32> to vector<1x4xf32>
    %10 = vector.broadcast %9 : vector<1x4xf32> to vector<256x4xf32>
    %11 = arith.addf %6, %10 : vector<256x4xf32>
    %c0_5 = arith.constant 0 : index
    %c0_6 = arith.constant 0 : index
    %12 = vector.load %arg2[%c0_5, %c0_6] : memref<256x4xbf16, #tpu.memory_space<vmem>>, vector<256x4xbf16>
    %13 = arith.extf %12 : vector<256x4xbf16> to vector<256x4xf32>
    %c0_7 = arith.constant 0 : index
    %c0_8 = arith.constant 0 : index
    %14 = vector.load %arg5[%c0_7, %c0_8] : memref<1x4xf32, #tpu.memory_space<vmem>>, vector<1x4xf32>
    %15 = vector.shape_cast %14 : vector<1x4xf32> to vector<4xf32>
    %16 = vector.shape_cast %15 : vector<4xf32> to vector<1x4xf32>
    %17 = vector.broadcast %16 : vector<1x4xf32> to vector<256x4xf32>
    %18 = arith.mulf %13, %17 : vector<256x4xf32>
    %c0_9 = arith.constant 0 : index
    %c0_10 = arith.constant 0 : index
    %19 = vector.load %arg6[%c0_9, %c0_10] : memref<1x4xf32, #tpu.memory_space<vmem>>, vector<1x4xf32>
    %20 = vector.shape_cast %19 : vector<1x4xf32> to vector<4xf32>
    %21 = vector.shape_cast %20 : vector<4xf32> to vector<1x4xf32>
    %22 = vector.broadcast %21 : vector<1x4xf32> to vector<256x4xf32>
    %23 = arith.addf %18, %22 : vector<256x4xf32>
    %cst = arith.constant 0.000000e+00 : f32
    %24 = vector.broadcast %cst : f32 to vector<256x4xf32>
    %25 = arith.subf %24, %11 : vector<256x4xf32>
    %26 = math.exp %25 : vector<256x4xf32>
    %cst_11 = arith.constant 1.000000e+00 : f32
    %27 = vector.broadcast %cst_11 : f32 to vector<256x4xf32>
    %28 = arith.addf %27, %26 : vector<256x4xf32>
    %29 = arith.divf %11, %28 : vector<256x4xf32>
    %c0_12 = arith.constant 0 : index
    %c0_13 = arith.constant 0 : index
    %c0_14 = arith.constant 0 : index
    %30 = vector.load %arg7[%c0_12, %c0_13, %c0_14] : memref<2x256x4xf32, #tpu.memory_space<vmem>>, vector<1x256x4xf32>
    %31 = vector.shape_cast %30 : vector<1x256x4xf32> to vector<256x4xf32>
    %32 = vector.shape_cast %29 : vector<256x4xf32> to vector<1x256x4xf32>
    tpu.vector_store %arg7[%c0_12, %c0_13, %c0_14], %32 {strides = array<i32>} : memref<2x256x4xf32, #tpu.memory_space<vmem>>, vector<1x256x4xf32>,
    %cst_15 = arith.constant 0.000000e+00 : f32
    %33 = vector.broadcast %cst_15 : f32 to vector<256x4xf32>
    %34 = arith.subf %33, %23 : vector<256x4xf32>
    %35 = math.exp %34 : vector<256x4xf32>
    %cst_16 = arith.constant 1.000000e+00 : f32
    %36 = vector.broadcast %cst_16 : f32 to vector<256x4xf32>
    %37 = arith.addf %36, %35 : vector<256x4xf32>
    %38 = arith.divf %23, %37 : vector<256x4xf32>
    %c1 = arith.constant 1 : index
    %c0_17 = arith.constant 0 : index
    %c0_18 = arith.constant 0 : index
    %39 = vector.load %arg7[%c1, %c0_17, %c0_18] : memref<2x256x4xf32, #tpu.memory_space<vmem>>, vector<1x256x4xf32>
    %40 = vector.shape_cast %39 : vector<1x256x4xf32> to vector<256x4xf32>
    %41 = vector.shape_cast %38 : vector<256x4xf32> to vector<1x256x4xf32>
    tpu.vector_store %arg7[%c1, %c0_17, %c0_18], %41 {strides = array<i32>} : memref<2x256x4xf32, #tpu.memory_space<vmem>>, vector<1x256x4xf32>,
    return
  }
  func.func @transform_0(%arg0: i32) -> (i32, i32) {
    %c0_i32 = arith.constant 0 : i32
    %c0_i32_0 = arith.constant 0 : i32
    return %arg0, %c0_i32 : i32, i32
  }
  func.func @transform_1(%arg0: i32) -> (i32, i32) {
    %c0_i32 = arith.constant 0 : i32
    %c0_i32_0 = arith.constant 0 : i32
    return %arg0, %c0_i32 : i32, i32
  }
  func.func @transform_2(%arg0: i32) -> (i32, i32) {
    %c0_i32 = arith.constant 0 : i32
    %c0_i32_0 = arith.constant 0 : i32
    %c0_i32_1 = arith.constant 0 : i32
    return %c0_i32, %c0_i32_0 : i32, i32
  }
  func.func @transform_3(%arg0: i32) -> (i32, i32) {
    %c0_i32 = arith.constant 0 : i32
    %c0_i32_0 = arith.constant 0 : i32
    %c0_i32_1 = arith.constant 0 : i32
    return %c0_i32, %c0_i32_0 : i32, i32
  }
  func.func @transform_4(%arg0: i32) -> (i32, i32) {
    %c0_i32 = arith.constant 0 : i32
    %c0_i32_0 = arith.constant 0 : i32
    %c0_i32_1 = arith.constant 0 : i32
    return %c0_i32, %c0_i32_0 : i32, i32
  }
  func.func @transform_5(%arg0: i32) -> (i32, i32) {
    %c0_i32 = arith.constant 0 : i32
    %c0_i32_0 = arith.constant 0 : i32
    %c0_i32_1 = arith.constant 0 : i32
    return %c0_i32, %c0_i32_0 : i32, i32
  }
  func.func @transform_6(%arg0: i32) -> (i32, i32, i32) {
    %c0_i32 = arith.constant 0 : i32
    %c0_i32_0 = arith.constant 0 : i32
    %c0_i32_1 = arith.constant 0 : i32
    return %c0_i32, %arg0, %c0_i32_0 : i32, i32, i32
  }
}

</mosaic_0001>

<llo_original>
// kernel: ghost_conv_forward.3
$region0: #{ghost_conv_forward.3}
  #allocation0 [shape = 'u32[]', space=smem, size = 0x4, offset = 0x4, fixed_abs, tag = 'smem constant byte address 0x4 - core index']
  #allocation1 [shape = 'u32[72,128]{1,0:T(1,128)}', space=vmem, size = 0x9000, scoped, tag = 'internal scratch']
  %s0 = inlined_call_operand.vmem [shape: bf16[512,4], index: 0, kind: input, shape index: {}]
  %s1 = inlined_call_operand.vmem [shape: bf16[4,4], index: 1, kind: input, shape index: {}]
  %s2 = inlined_call_operand.vmem [shape: bf16[512,4], index: 2, kind: output, shape index: {0}]
  %s3 = inlined_call_operand.vmem [shape: f32[2,2,4], index: 3, kind: output, shape index: {1}]
  %4 = xla_tuple %s2, %s3
  %s5 = sld [smem:[#allocation0]]
  $region49: #{ghost_conv_forward.3} parent=0
    _
  %s7 = ssub.s32 1, %s5
  %s8 = scalar_select 0, %s7, %s5
  loop: start=0, step=1, limit=4
  $region2: #{ghost_conv_forward.3} parent=0 // loop_pre_header
    _
  $region3: #{ghost_conv_forward.3} parent=0 // loop_header
    %s10 = sphi 0, %s14
    %p11 = scmp.ge.s32.totalorder %s10, 4
    %s20 = sphi 0, %s22
    %s23 = sphi 0, %s20
    %s24 = sphi 0, %s23
    %s40 = sphi 0, %s24
    %s44 = sphi 0, %s44
    %s46 = sphi 0, %s44
    %s47 = sphi 0, %s46
    %s61 = sphi 0, %s47
    %s67 = sphi 0, %s69
    %s70 = sphi 0, %s67
    %s71 = sphi 0, %s70
    %s87 = sphi 0, %s71
    %s93 = sphi 0, %s95
    %s96 = sphi 0, %s93
    %s97 = sphi 0, %s96
    %s113 = sphi 0, %s97
  $region4: #{ghost_conv_forward.3} parent=0 // loop_header_branch
    %13 = sbr.rel (%p11) target = $region8
  $region5: #{ghost_conv_forward.3} parent=0 // loop_body
    %s15 = ssub.s32 %s10, 1
    %s16 = ssub.s32 %s10, 2
    %s17 = sadd.s32 %s10, 1
    %s18 = ssub.s32 %s10, %s17
    %p19 = scmp.eq.s32.totalorder %s18, 0
    %s21 = sadd.s32 %s20, 1
    %s22 = scalar_select %p19, %s20, %s21
    %p25 = pneg %p19
    %p26 = scmp.eq.s32.totalorder %s10, 1
    %p27 = por %p25, %p26
    %p28 = scmp.ne.s32.totalorder %s20, %s23
    %p29 = scmp.eq.s32.totalorder %s10, 0
    %p30 = por %p28, %p29
    %p31 = scmp.ne.s32.totalorder %s20, %s23
    %p32 = scmp.eq.s32.totalorder %s15, 1
    %p33 = por %p31, %p32
    %p34 = scmp.ne.s32.totalorder %s23, %s24
    %p35 = scmp.eq.s32.totalorder %s15, 0
    %p36 = por %p34, %p35
    %p37 = scmp.ne.s32.totalorder %s23, %s24
    %p38 = scmp.eq.s32.totalorder %s16, 1
    %p39 = por %p37, %p38
    %p41 = scmp.ne.s32.totalorder %s24, %s40
    %p42 = scmp.eq.s32.totalorder %s16, 0
    %p43 = por %p41, %p42
    %s45 = sadd.s32 %s44, 1
    %p48 = scmp.eq.s32.totalorder %s10, 1
    %p49 = scmp.ne.s32.totalorder %s44, %s46
    %p50 = scmp.eq.s32.totalorder %s10, 0
    %p51 = por %p49, %p50
    %p52 = scmp.ne.s32.totalorder %s44, %s46
    %p53 = scmp.eq.s32.totalorder %s15, 1
    %p54 = por %p52, %p53
    %p55 = scmp.ne.s32.totalorder %s46, %s47
    %p56 = scmp.eq.s32.totalorder %s15, 0
    %p57 = por %p55, %p56
    %p58 = scmp.ne.s32.totalorder %s46, %s47
    %p59 = scmp.eq.s32.totalorder %s16, 1
    %p60 = por %p58, %p59
    %p62 = scmp.ne.s32.totalorder %s47, %s61
    %p63 = scmp.eq.s32.totalorder %s16, 0
    %p64 = por %p62, %p63
    %s65 = ssub.s32 %s10, %s17
    %p66 = scmp.eq.s32.totalorder %s65, 0
    %s68 = sadd.s32 %s67, 1
    %s69 = scalar_select %p66, %s67, %s68
    %p72 = pneg %p66
    %p73 = scmp.eq.s32.totalorder %s10, 1
    %p74 = por %p72, %p73
    %p75 = scmp.ne.s32.totalorder %s67, %s70
    %p76 = scmp.eq.s32.totalorder %s10, 0
    %p77 = por %p75, %p76
    %p78 = scmp.ne.s32.totalorder %s67, %s70
    %p79 = scmp.eq.s32.totalorder %s15, 1
    %p80 = por %p78, %p79
    %p81 = scmp.ne.s32.totalorder %s70, %s71
    %p82 = scmp.eq.s32.totalorder %s15, 0
    %p83 = por %p81, %p82
    %p84 = scmp.ne.s32.totalorder %s70, %s71
    %p85 = scmp.eq.s32.totalorder %s16, 1
    %p86 = por %p84, %p85
    %p88 = scmp.ne.s32.totalorder %s71, %s87
    %p89 = scmp.eq.s32.totalorder %s16, 0
    %p90 = por %p88, %p89
    %s91 = ssub.s32 %s10, %s17
    %p92 = scmp.eq.s32.totalorder %s91, 0
    %s94 = sadd.s32 %s93, 1
    %s95 = scalar_select %p92, %s93, %s94
    %p98 = pneg %p92
    %p99 = scmp.eq.s32.totalorder %s10, 1
    %p100 = por %p98, %p99
    %p101 = scmp.ne.s32.totalorder %s93, %s96
    %p102 = scmp.eq.s32.totalorder %s10, 0
    %p103 = por %p101, %p102
    %p104 = scmp.ne.s32.totalorder %s93, %s96
    %p105 = scmp.eq.s32.totalorder %s15, 1
    %p106 = por %p104, %p105
    %p107 = scmp.ne.s32.totalorder %s96, %s97
    %p108 = scmp.eq.s32.totalorder %s15, 0
    %p109 = por %p107, %p108
    %p110 = scmp.ne.s32.totalorder %s96, %s97
    %p111 = scmp.eq.s32.totalorder %s16, 1
    %p112 = por %p110, %p111
    %p114 = scmp.ne.s32.totalorder %s97, %s113
    %p115 = scmp.eq.s32.totalorder %s16, 0
    %p116 = por %p114, %p115
    %p117 = scmp.le.s32.totalorder 1, %s10
    %p118 = scmp.lt.s32.totalorder %s10, 3
    %p119 = pnand %p117, %p118
    %p120 = pneg %p119
    // Predicated region
    $region9: #{ghost_conv_forward.3} parent=5 // pred_check
      _
    $region10: #{ghost_conv_forward.3} parent=5 // pred_check_branch
      %122 = sbr.rel (%p119) target = $region12
    $region11: #{ghost_conv_forward.3} parent=5 // pred_region
      %s123 = ssub.s32 %s10, 1
      // Predicated region
      $region13: #{ghost_conv_forward.3} parent=11 // pred_check
        %p124 = pneg %p57
      $region14: #{ghost_conv_forward.3} parent=11 // pred_check_branch
        %126 = sbr.rel (%p124) target = $region16
      $region15: #{ghost_conv_forward.3} parent=11 // pred_region
        _
      $region16: #{ghost_conv_forward.3} parent=11 // pred_fallthru
        _
    $region12: #{ghost_conv_forward.3} parent=5 // pred_fallthru
      _
    %p127 = scmp.lt.s32.totalorder %s10, 2
    // Predicated region
    $region17: #{ghost_conv_forward.3} parent=5 // pred_check
      %p128 = pneg %p127
    $region18: #{ghost_conv_forward.3} parent=5 // pred_check_branch
      %130 = sbr.rel (%p128) target = $region20
    $region19: #{ghost_conv_forward.3} parent=5 // pred_region
      // Predicated region
      $region21: #{ghost_conv_forward.3} parent=19 // pred_check
        %p131 = pneg %p30
      $region22: #{ghost_conv_forward.3} parent=19 // pred_check_branch
        %133 = sbr.rel (%p131) target = $region24
      $region23: #{ghost_conv_forward.3} parent=19 // pred_region
        %s134 = smul.u32 32, %s10
        %p135 = scmp.lt.s32.totalorder %s134, 63
        %s136 = scalar_select %p135, %s134, 63
        %s137 = smul.addr %s136, 4
        %s138 = scalar_lea.vmem %s0, %s137
        %s139 = smul.u32 32, %s10
      $region24: #{ghost_conv_forward.3} parent=19 // pred_fallthru
        _
    $region20: #{ghost_conv_forward.3} parent=5 // pred_fallthru
      _
    %p140 = scmp.le.s32.totalorder 1, %s10
    %p141 = scmp.lt.s32.totalorder %s10, 3
    %p142 = pnand %p140, %p141
    %p143 = pneg %p142
    // Predicated region
    $region25: #{ghost_conv_forward.3} parent=5 // pred_check
      _
    $region26: #{ghost_conv_forward.3} parent=5 // pred_check_branch
      %145 = sbr.rel (%p142) target = $region28
    $region27: #{ghost_conv_forward.3} parent=5 // pred_region
      %s146 = ssub.s32 %s10, 1
      %s147 = smul.u32 32, %s15
      %p148 = scmp.lt.s32.totalorder %s147, 63
      %s149 = scalar_select %p148, %s147, 63
      %s150 = smul.addr %s149, 4
      %s151 = scalar_lea.vmem %s0, %s150
      %p152 = pneg %p36
      %p153 = pneg %p33
      %p154 = pneg %p57
      %p155 = pneg %p54
      %p156 = pneg %p83
      %p157 = pneg %p80
      %s158 = smul.u32 32, %s15
      %p159 = scmp.lt.s32.totalorder %s158, 63
      %s160 = scalar_select %p159, %s158, 63
      %s161 = smul.addr %s160, 4
      %s162 = scalar_lea.vmem %s2, %s161
      %p163 = pneg %p109
      %p164 = pneg %p106
      %p165 = scmp.lt.s32.totalorder %s15, 1
      %s166 = scalar_select %p165, %s15, 1
      %s167 = smul.addr %s166, 2
      %s168 = scalar_lea.vmem %s3, %s167
      %s169 = smul.u32 32, %s15
      %p170 = scmp.lt.s32.totalorder %s169, 63
      %s171 = scalar_select %p170, %s169, 63
      %s172 = smul.addr %s171, 4
      %s173 = scalar_lea.vmem %s0, %s172
      %s174 = smul.u32 32, %s15
      %s175 = smul.u32 32, %s15
      %p176 = scmp.lt.s32.totalorder %s175, 63
      %s177 = scalar_select %p176, %s175, 63
      %s178 = smul.addr %s177, 4
      %s179 = scalar_lea.vmem %s2, %s178
      %s180 = smul.u32 32, %s15
      %p181 = scmp.lt.s32.totalorder %s15, 1
      %s182 = scalar_select %p181, %s15, 1
      %s183 = smul.addr %s182, 2
      %s184 = scalar_lea.vmem %s3, %s183
      %v186 = vld [vmem:[%s173] sm:$0xf]
      %v187 = vld [vmem:[%s173 + $0x4] sm:$0xf]
      %v188 = vld [vmem:[%s173 + $0x8] sm:$0xf]
      %v189 = vld [vmem:[%s173 + $0xc] sm:$0xf]
      %v190 = vld [vmem:[%s173 + $0x10] sm:$0xf]
      %v191 = vld [vmem:[%s173 + $0x14] sm:$0xf]
      %v192 = vld [vmem:[%s173 + $0x18] sm:$0xf]
      %v193 = vld [vmem:[%s173 + $0x1c] sm:$0xf]
      %v194 = vld [vmem:[%s173 + $0x20] sm:$0xf]
      %v195 = vld [vmem:[%s173 + $0x24] sm:$0xf]
      %v196 = vld [vmem:[%s173 + $0x28] sm:$0xf]
      %v197 = vld [vmem:[%s173 + $0x2c] sm:$0xf]
      %v198 = vld [vmem:[%s173 + $0x30] sm:$0xf]
      %v199 = vld [vmem:[%s173 + $0x34] sm:$0xf]
      %v200 = vld [vmem:[%s173 + $0x38] sm:$0xf]
      %v201 = vld [vmem:[%s173 + $0x3c] sm:$0xf]
      %v202 = vld [vmem:[%s173 + $0x40] sm:$0xf]
      %v203 = vld [vmem:[%s173 + $0x44] sm:$0xf]
      %v204 = vld [vmem:[%s173 + $0x48] sm:$0xf]
      %v205 = vld [vmem:[%s173 + $0x4c] sm:$0xf]
      %v206 = vld [vmem:[%s173 + $0x50] sm:$0xf]
      %v207 = vld [vmem:[%s173 + $0x54] sm:$0xf]
      %v208 = vld [vmem:[%s173 + $0x58] sm:$0xf]
      %v209 = vld [vmem:[%s173 + $0x5c] sm:$0xf]
      %v210 = vld [vmem:[%s173 + $0x60] sm:$0xf]
      %v211 = vld [vmem:[%s173 + $0x64] sm:$0xf]
      %v212 = vld [vmem:[%s173 + $0x68] sm:$0xf]
      %v213 = vld [vmem:[%s173 + $0x6c] sm:$0xf]
      %v214 = vld [vmem:[%s173 + $0x70] sm:$0xf]
      %v215 = vld [vmem:[%s173 + $0x74] sm:$0xf]
      %v216 = vld [vmem:[%s173 + $0x78] sm:$0xf]
      %v217 = vld [vmem:[%s173 + $0x7c] sm:$0xf]
      %v218 = vld [vmem:[%s1] sm:$0x3]
      %v251 = vunpack.c.l.b16 %v186
      %v252 = vunpack.c.l.b16 %v187
      %v253 = vunpack.c.l.b16 %v188
      %v254 = vunpack.c.l.b16 %v189
      %v255 = vunpack.c.l.b16 %v190
      %v256 = vunpack.c.l.b16 %v191
      %v257 = vunpack.c.l.b16 %v192
      %v258 = vunpack.c.l.b16 %v193
      %v259 = vunpack.c.l.b16 %v194
      %v260 = vunpack.c.l.b16 %v195
      %v261 = vunpack.c.l.b16 %v196
      %v262 = vunpack.c.l.b16 %v197
      %v263 = vunpack.c.l.b16 %v198
      %v264 = vunpack.c.l.b16 %v199
      %v265 = vunpack.c.l.b16 %v200
      %v266 = vunpack.c.l.b16 %v201
      %v267 = vunpack.c.l.b16 %v202
      %v268 = vunpack.c.l.b16 %v203
      %v269 = vunpack.c.l.b16 %v204
      %v270 = vunpack.c.l.b16 %v205
      %v271 = vunpack.c.l.b16 %v206
      %v272 = vunpack.c.l.b16 %v207
      %v273 = vunpack.c.l.b16 %v208
      %v274 = vunpack.c.l.b16 %v209
      %v275 = vunpack.c.l.b16 %v210
      %v276 = vunpack.c.l.b16 %v211
      %v277 = vunpack.c.l.b16 %v212
      %v278 = vunpack.c.l.b16 %v213
      %v279 = vunpack.c.l.b16 %v214
      %v280 = vunpack.c.l.b16 %v215
      %v281 = vunpack.c.l.b16 %v216
      %v282 = vunpack.c.l.b16 %v217
      %v283 = vpack.c.b16 %v252, %v251
      %v284 = vpack.c.b16 %v254, %v253
      %v285 = vpack.c.b16 %v256, %v255
      %v286 = vpack.c.b16 %v258, %v257
      %v287 = vpack.c.b16 %v260, %v259
      %v288 = vpack.c.b16 %v262, %v261
      %v289 = vpack.c.b16 %v264, %v263
      %v290 = vpack.c.b16 %v266, %v265
      %v291 = vpack.c.b16 %v268, %v267
      %v292 = vpack.c.b16 %v270, %v269
      %v293 = vpack.c.b16 %v272, %v271
      %v294 = vpack.c.b16 %v274, %v273
      %v295 = vpack.c.b16 %v276, %v275
      %v296 = vpack.c.b16 %v278, %v277
      %v297 = vpack.c.b16 %v280, %v279
      %v298 = vpack.c.b16 %v282, %v281
      %vm299 = vcmask 31744
      %v301 = vsel %vm299, %v283, 0
      %v304 = vsel %vm299, %v284, 0
      %v307 = vsel %vm299, %v285, 0
      %v310 = vsel %vm299, %v286, 0
      %v313 = vsel %vm299, %v287, 0
      %v316 = vsel %vm299, %v288, 0
      %v319 = vsel %vm299, %v289, 0
      %v322 = vsel %vm299, %v290, 0
      %v325 = vsel %vm299, %v291, 0
      %v328 = vsel %vm299, %v292, 0
      %v331 = vsel %vm299, %v293, 0
      %v334 = vsel %vm299, %v294, 0
      %v337 = vsel %vm299, %v295, 0
      %v340 = vsel %vm299, %v296, 0
      %v343 = vsel %vm299, %v297, 0
      %v346 = vsel %vm299, %v298, 0
      %vm348 = vcmask 1041408
      %v350 = vsel %vm348, %v218, 0
      %352 = vmatpush.bf16.msra.mxu0 0
      %353 = vmatpush.bf16.msra.mxu0 0
      %354 = vmatpush.bf16.msra.mxu0 0
      %355 = vmatpush.bf16.msra.mxu0 0
      %356 = vmatpush.bf16.msra.mxu0 0
      %357 = vmatpush.bf16.msra.mxu0 0
      %358 = vmatpush.bf16.msra.mxu0 0
      %359 = vmatpush.bf16.msra.mxu0 %v350
      %360 = vmatmul.bf16.gmra.mxu0 %v301
      %v361 = vpop.f32.mrf.mxu0
      %v362 = vadd.f32 0.0, %v361
      %v363 = vpop.f32.mrf.mxu0
      %v364 = vadd.f32 0.0, %v363
      %365 = vmatmul.bf16.gmra.mxu0 %v304
      %v366 = vpop.f32.mrf.mxu0
      %v367 = vadd.f32 0.0, %v366
      %v368 = vpop.f32.mrf.mxu0
      %v369 = vadd.f32 0.0, %v368
      %370 = vmatmul.bf16.gmra.mxu0 %v307
      %v371 = vpop.f32.mrf.mxu0
      %v372 = vadd.f32 0.0, %v371
      %v373 = vpop.f32.mrf.mxu0
      %v374 = vadd.f32 0.0, %v373
      %375 = vmatmul.bf16.gmra.mxu0 %v310
      %v376 = vpop.f32.mrf.mxu0
      %v377 = vadd.f32 0.0, %v376
      %v378 = vpop.f32.mrf.mxu0
      %v379 = vadd.f32 0.0, %v378
      %380 = vmatmul.bf16.gmra.mxu0 %v313
      %v381 = vpop.f32.mrf.mxu0
      %v382 = vadd.f32 0.0, %v381
      %v383 = vpop.f32.mrf.mxu0
      %v384 = vadd.f32 0.0, %v383
      %385 = vmatmul.bf16.gmra.mxu0 %v316
      %v386 = vpop.f32.mrf.mxu0
      %v387 = vadd.f32 0.0, %v386
      %v388 = vpop.f32.mrf.mxu0
      %v389 = vadd.f32 0.0, %v388
      %390 = vmatmul.bf16.gmra.mxu0 %v319
      %v391 = vpop.f32.mrf.mxu0
      %v392 = vadd.f32 0.0, %v391
      %v393 = vpop.f32.mrf.mxu0
      %v394 = vadd.f32 0.0, %v393
      %395 = vmatmul.bf16.gmra.mxu0 %v322
      %v396 = vpop.f32.mrf.mxu0
      %v397 = vadd.f32 0.0, %v396
      %v398 = vpop.f32.mrf.mxu0
      %v399 = vadd.f32 0.0, %v398
      %400 = vmatmul.bf16.gmra.mxu0 %v325
      %v401 = vpop.f32.mrf.mxu0
      %v402 = vadd.f32 0.0, %v401
      %v403 = vpop.f32.mrf.mxu0
      %v404 = vadd.f32 0.0, %v403
      %405 = vmatmul.bf16.gmra.mxu0 %v328
      %v406 = vpop.f32.mrf.mxu0
      %v407 = vadd.f32 0.0, %v406
      %v408 = vpop.f32.mrf.mxu0
      %v409 = vadd.f32 0.0, %v408
      %410 = vmatmul.bf16.gmra.mxu0 %v331
      %v411 = vpop.f32.mrf.mxu0
      %v412 = vadd.f32 0.0, %v411
      %v413 = vpop.f32.mrf.mxu0
      %v414 = vadd.f32 0.0, %v413
      %415 = vmatmul.bf16.gmra.mxu0 %v334
      %v416 = vpop.f32.mrf.mxu0
      %v417 = vadd.f32 0.0, %v416
      %v418 = vpop.f32.mrf.mxu0
      %v419 = vadd.f32 0.0, %v418
      %420 = vmatmul.bf16.gmra.mxu0 %v337
      %v421 = vpop.f32.mrf.mxu0
      %v422 = vadd.f32 0.0, %v421
      %v423 = vpop.f32.mrf.mxu0
      %v424 = vadd.f32 0.0, %v423
      %425 = vmatmul.bf16.gmra.mxu0 %v340
      %v426 = vpop.f32.mrf.mxu0
      %v427 = vadd.f32 0.0, %v426
      %v428 = vpop.f32.mrf.mxu0
      %v429 = vadd.f32 0.0, %v428
      %430 = vmatmul.bf16.gmra.mxu0 %v343
      %v431 = vpop.f32.mrf.mxu0
      %v432 = vadd.f32 0.0, %v431
      %v433 = vpop.f32.mrf.mxu0
      %v434 = vadd.f32 0.0, %v433
      %435 = vmatmul.bf16.gmra.mxu0 %v346
      %v436 = vpop.f32.mrf.mxu0
      %v437 = vadd.f32 0.0, %v436
      %v438 = vpop.f32.mrf.mxu0
      %v439 = vadd.f32 0.0, %v438
      %440 = vdwg.mxu0
      %v441 = vpack.c.bf16 %v362, %v362
      %v442 = vpack.c.bf16 %v364, %v364
      %v443 = vpack.c.bf16 %v367, %v367
      %v444 = vpack.c.bf16 %v369, %v369
      %v445 = vpack.c.bf16 %v372, %v372
      %v446 = vpack.c.bf16 %v374, %v374
      %v447 = vpack.c.bf16 %v377, %v377
      %v448 = vpack.c.bf16 %v379, %v379
      %v449 = vpack.c.bf16 %v382, %v382
      %v450 = vpack.c.bf16 %v384, %v384
      %v451 = vpack.c.bf16 %v387, %v387
      %v452 = vpack.c.bf16 %v389, %v389
      %v453 = vpack.c.bf16 %v392, %v392
      %v454 = vpack.c.bf16 %v394, %v394
      %v455 = vpack.c.bf16 %v397, %v397
      %v456 = vpack.c.bf16 %v399, %v399
      %v457 = vpack.c.bf16 %v402, %v402
      %v458 = vpack.c.bf16 %v404, %v404
      %v459 = vpack.c.bf16 %v407, %v407
      %v460 = vpack.c.bf16 %v409, %v409
      %v461 = vpack.c.bf16 %v412, %v412
      %v462 = vpack.c.bf16 %v414, %v414
      %v463 = vpack.c.bf16 %v417, %v417
      %v464 = vpack.c.bf16 %v419, %v419
      %v465 = vpack.c.bf16 %v422, %v422
      %v466 = vpack.c.bf16 %v424, %v424
      %v467 = vpack.c.bf16 %v427, %v427
      %v468 = vpack.c.bf16 %v429, %v429
      %v469 = vpack.c.bf16 %v432, %v432
      %v470 = vpack.c.bf16 %v434, %v434
      %v471 = vpack.c.bf16 %v437, %v437
      %v472 = vpack.c.bf16 %v439, %v439
      %vm473 = vcmask 27648
      %474 = vst.msk [vmem:[%s179] sm:$0xf] %vm473, %v441
      %475 = vst.msk [vmem:[%s179 + $0x4] sm:$0xf] %vm473, %v442
      %476 = vst.msk [vmem:[%s179 + $0x8] sm:$0xf] %vm473, %v443
      %477 = vst.msk [vmem:[%s179 + $0xc] sm:$0xf] %vm473, %v444
      %478 = vst.msk [vmem:[%s179 + $0x10] sm:$0xf] %vm473, %v445
      %479 = vst.msk [vmem:[%s179 + $0x14] sm:$0xf] %vm473, %v446
      %480 = vst.msk [vmem:[%s179 + $0x18] sm:$0xf] %vm473, %v447
      %481 = vst.msk [vmem:[%s179 + $0x1c] sm:$0xf] %vm473, %v448
      %482 = vst.msk [vmem:[%s179 + $0x20] sm:$0xf] %vm473, %v449
      %483 = vst.msk [vmem:[%s179 + $0x24] sm:$0xf] %vm473, %v450
      %484 = vst.msk [vmem:[%s179 + $0x28] sm:$0xf] %vm473, %v451
      %485 = vst.msk [vmem:[%s179 + $0x2c] sm:$0xf] %vm473, %v452
      %486 = vst.msk [vmem:[%s179 + $0x30] sm:$0xf] %vm473, %v453
      %487 = vst.msk [vmem:[%s179 + $0x34] sm:$0xf] %vm473, %v454
      %488 = vst.msk [vmem:[%s179 + $0x38] sm:$0xf] %vm473, %v455
      %489 = vst.msk [vmem:[%s179 + $0x3c] sm:$0xf] %vm473, %v456
      %490 = vst.msk [vmem:[%s179 + $0x40] sm:$0xf] %vm473, %v457
      %491 = vst.msk [vmem:[%s179 + $0x44] sm:$0xf] %vm473, %v458
      %492 = vst.msk [vmem:[%s179 + $0x48] sm:$0xf] %vm473, %v459
      %493 = vst.msk [vmem:[%s179 + $0x4c] sm:$0xf] %vm473, %v460
      %494 = vst.msk [vmem:[%s179 + $0x50] sm:$0xf] %vm473, %v461
      %495 = vst.msk [vmem:[%s179 + $0x54] sm:$0xf] %vm473, %v462
      %496 = vst.msk [vmem:[%s179 + $0x58] sm:$0xf] %vm473, %v463
      %497 = vst.msk [vmem:[%s179 + $0x5c] sm:$0xf] %vm473, %v464
      %498 = vst.msk [vmem:[%s179 + $0x60] sm:$0xf] %vm473, %v465
      %499 = vst.msk [vmem:[%s179 + $0x64] sm:$0xf] %vm473, %v466
      %500 = vst.msk [vmem:[%s179 + $0x68] sm:$0xf] %vm473, %v467
      %501 = vst.msk [vmem:[%s179 + $0x6c] sm:$0xf] %vm473, %v468
      %502 = vst.msk [vmem:[%s179 + $0x70] sm:$0xf] %vm473, %v469
      %503 = vst.msk [vmem:[%s179 + $0x74] sm:$0xf] %vm473, %v470
      %504 = vst.msk [vmem:[%s179 + $0x78] sm:$0xf] %vm473, %v471
      %505 = vst.msk [vmem:[%s179 + $0x7c] sm:$0xf] %vm473, %v472
      %v506 = vsel %vm299, %v362, 0.0
      %v507 = vsel %vm299, %v364, 0.0
      %v508 = vadd.f32 %v506, %v507
      %v509 = vsel %vm299, %v367, 0.0
      %v510 = vadd.f32 %v508, %v509
      %v511 = vsel %vm299, %v369, 0.0
      %v512 = vadd.f32 %v510, %v511
      %v513 = vsel %vm299, %v372, 0.0
      %v514 = vadd.f32 %v512, %v513
      %v515 = vsel %vm299, %v374, 0.0
      %v516 = vadd.f32 %v514, %v515
      %v517 = vsel %vm299, %v377, 0.0
      %v518 = vadd.f32 %v516, %v517
      %v519 = vsel %vm299, %v379, 0.0
      %v520 = vadd.f32 %v518, %v519
      %v521 = vsel %vm299, %v382, 0.0
      %v522 = vadd.f32 %v520, %v521
      %v523 = vsel %vm299, %v384, 0.0
      %v524 = vadd.f32 %v522, %v523
      %v525 = vsel %vm299, %v387, 0.0
      %v526 = vadd.f32 %v524, %v525
      %v527 = vsel %vm299, %v389, 0.0
      %v528 = vadd.f32 %v526, %v527
      %v529 = vsel %vm299, %v392, 0.0
      %v530 = vadd.f32 %v528, %v529
      %v531 = vsel %vm299, %v394, 0.0
      %v532 = vadd.f32 %v530, %v531
      %v533 = vsel %vm299, %v397, 0.0
      %v534 = vadd.f32 %v532, %v533
      %v535 = vsel %vm299, %v399, 0.0
      %v536 = vadd.f32 %v534, %v535
      %v537 = vsel %vm299, %v402, 0.0
      %v538 = vadd.f32 %v536, %v537
      %v539 = vsel %vm299, %v404, 0.0
      %v540 = vadd.f32 %v538, %v539
      %v541 = vsel %vm299, %v407, 0.0
      %v542 = vadd.f32 %v540, %v541
      %v543 = vsel %vm299, %v409, 0.0
      %v544 = vadd.f32 %v542, %v543
      %v545 = vsel %vm299, %v412, 0.0
      %v546 = vadd.f32 %v544, %v545
      %v547 = vsel %vm299, %v414, 0.0
      %v548 = vadd.f32 %v546, %v547
      %v549 = vsel %vm299, %v417, 0.0
      %v550 = vadd.f32 %v548, %v549
      %v551 = vsel %vm299, %v419, 0.0
      %v552 = vadd.f32 %v550, %v551
      %v553 = vsel %vm299, %v422, 0.0
      %v554 = vadd.f32 %v552, %v553
      %v555 = vsel %vm299, %v424, 0.0
      %v556 = vadd.f32 %v554, %v555
      %v557 = vsel %vm299, %v427, 0.0
      %v558 = vadd.f32 %v556, %v557
      %v559 = vsel %vm299, %v429, 0.0
      %v560 = vadd.f32 %v558, %v559
      %v561 = vsel %vm299, %v432, 0.0
      %v562 = vadd.f32 %v560, %v561
      %v563 = vsel %vm299, %v434, 0.0
      %v564 = vadd.f32 %v562, %v563
      %v565 = vsel %vm299, %v437, 0.0
      %v566 = vadd.f32 %v564, %v565
      %v567 = vsel %vm299, %v439, 0.0
      %v568 = vadd.f32 %v566, %v567
      %v569 = vrot.slane %v568, 4
      %v570 = vadd.f32 %v568, %v569
      %v571 = vrot.slane %v570, 2
      %v572 = vadd.f32 %v570, %v571
      %v573 = vrot.slane %v572, 1
      %v574 = vadd.f32 %v572, %v573
      %vm575 = vcmask 24576
      %576 = vst.msk [vmem:[%s184] sm:$0x1] %vm575, %v574
      %v577 = vmul.f32 %v362, %v362
      %v578 = vmul.f32 %v364, %v364
      %v579 = vmul.f32 %v367, %v367
      %v580 = vmul.f32 %v369, %v369
      %v581 = vmul.f32 %v372, %v372
      %v582 = vmul.f32 %v374, %v374
      %v583 = vmul.f32 %v377, %v377
      %v584 = vmul.f32 %v379, %v379
      %v585 = vmul.f32 %v382, %v382
      %v586 = vmul.f32 %v384, %v384
      %v587 = vmul.f32 %v387, %v387
      %v588 = vmul.f32 %v389, %v389
      %v589 = vmul.f32 %v392, %v392
      %v590 = vmul.f32 %v394, %v394
      %v591 = vmul.f32 %v397, %v397
      %v592 = vmul.f32 %v399, %v399
      %v593 = vmul.f32 %v402, %v402
      %v594 = vmul.f32 %v404, %v404
      %v595 = vmul.f32 %v407, %v407
      %v596 = vmul.f32 %v409, %v409
      %v597 = vmul.f32 %v412, %v412
      %v598 = vmul.f32 %v414, %v414
      %v599 = vmul.f32 %v417, %v417
      %v600 = vmul.f32 %v419, %v419
      %v601 = vmul.f32 %v422, %v422
      %v602 = vmul.f32 %v424, %v424
      %v603 = vmul.f32 %v427, %v427
      %v604 = vmul.f32 %v429, %v429
      %v605 = vmul.f32 %v432, %v432
      %v606 = vmul.f32 %v434, %v434
      %v607 = vmul.f32 %v437, %v437
      %v608 = vmul.f32 %v439, %v439
      %v609 = vsel %vm299, %v577, 0.0
      %v610 = vsel %vm299, %v578, 0.0
      %v611 = vadd.f32 %v609, %v610
      %v612 = vsel %vm299, %v579, 0.0
      %v613 = vadd.f32 %v611, %v612
      %v614 = vsel %vm299, %v580, 0.0
      %v615 = vadd.f32 %v613, %v614
      %v616 = vsel %vm299, %v581, 0.0
      %v617 = vadd.f32 %v615, %v616
      %v618 = vsel %vm299, %v582, 0.0
      %v619 = vadd.f32 %v617, %v618
      %v620 = vsel %vm299, %v583, 0.0
      %v621 = vadd.f32 %v619, %v620
      %v622 = vsel %vm299, %v584, 0.0
      %v623 = vadd.f32 %v621, %v622
      %v624 = vsel %vm299, %v585, 0.0
      %v625 = vadd.f32 %v623, %v624
      %v626 = vsel %vm299, %v586, 0.0
      %v627 = vadd.f32 %v625, %v626
      %v628 = vsel %vm299, %v587, 0.0
      %v629 = vadd.f32 %v627, %v628
      %v630 = vsel %vm299, %v588, 0.0
      %v631 = vadd.f32 %v629, %v630
      %v632 = vsel %vm299, %v589, 0.0
      %v633 = vadd.f32 %v631, %v632
      %v634 = vsel %vm299, %v590, 0.0
      %v635 = vadd.f32 %v633, %v634
      %v636 = vsel %vm299, %v591, 0.0
      %v637 = vadd.f32 %v635, %v636
      %v638 = vsel %vm299, %v592, 0.0
      %v639 = vadd.f32 %v637, %v638
      %v640 = vsel %vm299, %v593, 0.0
      %v641 = vadd.f32 %v639, %v640
      %v642 = vsel %vm299, %v594, 0.0
      %v643 = vadd.f32 %v641, %v642
      %v644 = vsel %vm299, %v595, 0.0
      %v645 = vadd.f32 %v643, %v644
      %v646 = vsel %vm299, %v596, 0.0
      %v647 = vadd.f32 %v645, %v646
      %v648 = vsel %vm299, %v597, 0.0
      %v649 = vadd.f32 %v647, %v648
      %v650 = vsel %vm299, %v598, 0.0
      %v651 = vadd.f32 %v649, %v650
      %v652 = vsel %vm299, %v599, 0.0
      %v653 = vadd.f32 %v651, %v652
      %v654 = vsel %vm299, %v600, 0.0
      %v655 = vadd.f32 %v653, %v654
      %v656 = vsel %vm299, %v601, 0.0
      %v657 = vadd.f32 %v655, %v656
      %v658 = vsel %vm299, %v602, 0.0
      %v659 = vadd.f32 %v657, %v658
      %v660 = vsel %vm299, %v603, 0.0
      %v661 = vadd.f32 %v659, %v660
      %v662 = vsel %vm299, %v604, 0.0
      %v663 = vadd.f32 %v661, %v662
      %v664 = vsel %vm299, %v605, 0.0
      %v665 = vadd.f32 %v663, %v664
      %v666 = vsel %vm299, %v606, 0.0
      %v667 = vadd.f32 %v665, %v666
      %v668 = vsel %vm299, %v607, 0.0
      %v669 = vadd.f32 %v667, %v668
      %v670 = vsel %vm299, %v608, 0.0
      %v671 = vadd.f32 %v669, %v670
      %v672 = vrot.slane %v671, 4
      %v673 = vadd.f32 %v671, %v672
      %v674 = vrot.slane %v673, 2
      %v675 = vadd.f32 %v673, %v674
      %v676 = vrot.slane %v675, 1
      %v677 = vadd.f32 %v675, %v676
      %678 = vst.msk [vmem:[%s184 + $0x1] sm:$0x1] %vm575, %v677
      %s679 = smul.u32 32, %s15
      %p680 = scmp.lt.s32.totalorder %s679, 63
      %s681 = scalar_select %p680, %s679, 63
      %s682 = smul.addr %s681, 4
      %s683 = scalar_lea.vmem %s2, %s682
      %p684 = scmp.lt.s32.totalorder %s15, 1
      %s685 = scalar_select %p684, %s15, 1
      %s686 = smul.addr %s685, 2
      %s687 = scalar_lea.vmem %s3, %s686
      // Predicated region
      $region29: #{ghost_conv_forward.3} parent=27 // pred_check
        %p688 = pneg %p80
      $region30: #{ghost_conv_forward.3} parent=27 // pred_check_branch
        %690 = sbr.rel (%p688) target = $region32
      $region31: #{ghost_conv_forward.3} parent=27 // pred_region
        %s691 = smul.u32 32, %s15
      $region32: #{ghost_conv_forward.3} parent=27 // pred_fallthru
        _
      // Predicated region
      $region33: #{ghost_conv_forward.3} parent=27 // pred_check
        %p692 = pneg %p106
      $region34: #{ghost_conv_forward.3} parent=27 // pred_check_branch
        %694 = sbr.rel (%p692) target = $region36
      $region35: #{ghost_conv_forward.3} parent=27 // pred_region
        _
      $region36: #{ghost_conv_forward.3} parent=27 // pred_fallthru
        _
    $region28: #{ghost_conv_forward.3} parent=5 // pred_fallthru
      _
    %p695 = scmp.le.s32.totalorder 2, %s10
    // Predicated region
    $region37: #{ghost_conv_forward.3} parent=5 // pred_check
      %p696 = pneg %p695
    $region38: #{ghost_conv_forward.3} parent=5 // pred_check_branch
      %698 = sbr.rel (%p696) target = $region40
    $region39: #{ghost_conv_forward.3} parent=5 // pred_region
      %s699 = ssub.s32 %s10, 2
      // Predicated region
      $region41: #{ghost_conv_forward.3} parent=39 // pred_check
        %p700 = pneg %p86
      $region42: #{ghost_conv_forward.3} parent=39 // pred_check_branch
        %702 = sbr.rel (%p700) target = $region44
      $region43: #{ghost_conv_forward.3} parent=39 // pred_region
        %s703 = smul.u32 32, %s16
        %p704 = scmp.lt.s32.totalorder %s703, 63
        %s705 = scalar_select %p704, %s703, 63
        %s706 = smul.addr %s705, 4
        %s707 = scalar_lea.vmem %s2, %s706
      $region44: #{ghost_conv_forward.3} parent=39 // pred_fallthru
        _
      // Predicated region
      $region45: #{ghost_conv_forward.3} parent=39 // pred_check
        %p708 = pneg %p112
      $region46: #{ghost_conv_forward.3} parent=39 // pred_check_branch
        %710 = sbr.rel (%p708) target = $region48
      $region47: #{ghost_conv_forward.3} parent=39 // pred_region
        %p711 = scmp.lt.s32.totalorder %s16, 1
        %s712 = scalar_select %p711, %s16, 1
        %s713 = smul.addr %s712, 2
        %s714 = scalar_lea.vmem %s3, %s713
      $region48: #{ghost_conv_forward.3} parent=39 // pred_fallthru
        _
    $region40: #{ghost_conv_forward.3} parent=5 // pred_fallthru
      _
  $region6: #{ghost_conv_forward.3} parent=0 // loop_footer
    %s14 = sadd.s32 1, %s10
  $region7: #{ghost_conv_forward.3} parent=0 // loop_footer_branch
    %9 = sbr.rel target = $region3
  $region8: #{ghost_conv_forward.3} parent=0 // loop_exit
    _

// kernel: ghost_conv_forward.5
$region0: #{ghost_conv_forward.5}
  #allocation0 [shape = 'u32[]', space=smem, size = 0x4, offset = 0x4, fixed_abs, tag = 'smem constant byte address 0x4 - core index']
  #allocation1 [shape = 'u32[72,128]{1,0:T(1,128)}', space=vmem, size = 0x9000, scoped, tag = 'internal scratch']
  %s0 = inlined_call_operand.vmem [shape: bf16[512,4], index: 0, kind: input, shape index: {}]
  %s1 = inlined_call_operand.vmem [shape: bf16[512,4], index: 1, kind: input, shape index: {}]
  %s2 = inlined_call_operand.vmem [shape: f32[1,4], index: 2, kind: input, shape index: {}]
  %s3 = inlined_call_operand.vmem [shape: f32[1,4], index: 3, kind: input, shape index: {}]
  %s4 = inlined_call_operand.vmem [shape: f32[1,4], index: 4, kind: input, shape index: {}]
  %s5 = inlined_call_operand.vmem [shape: f32[1,4], index: 5, kind: input, shape index: {}]
  %s6 = inlined_call_operand.vmem [shape: f32[2,512,4], index: 6, kind: output, shape index: {}]
  %s7 = sld [smem:[#allocation0]]
  $region91: #{ghost_conv_forward.5} parent=0
    _
  %s9 = ssub.s32 1, %s7
  %s10 = scalar_select 0, %s9, %s7
  $region1: #{ghost_conv_forward.5} parent=0
    #allocation2 [shape = 'u8[524288]{0}', space=vmem, size = 0x80000, scoped, tag = 'output window, operand 0']
    loop: start=0, step=1, limit=4
    $region2: #{ghost_conv_forward.5} parent=1 // loop_pre_header
      _
    $region3: #{ghost_conv_forward.5} parent=1 // loop_header
      %s12 = sphi 0, %s16
      %p13 = scmp.ge.s32.totalorder %s12, 4
      %s22 = sphi 0, %s24
      %s25 = sphi 0, %s22
      %s26 = sphi 0, %s25
      %s42 = sphi 0, %s26
      %s48 = sphi 0, %s50
      %s51 = sphi 0, %s48
      %s52 = sphi 0, %s51
      %s68 = sphi 0, %s52
      %s72 = sphi 0, %s72
      %s74 = sphi 0, %s72
      %s75 = sphi 0, %s74
      %s89 = sphi 0, %s75
      %s93 = sphi 0, %s93
      %s95 = sphi 0, %s93
      %s96 = sphi 0, %s95
      %s110 = sphi 0, %s96
      %s114 = sphi 0, %s114
      %s116 = sphi 0, %s114
      %s117 = sphi 0, %s116
      %s131 = sphi 0, %s117
      %s135 = sphi 0, %s135
      %s137 = sphi 0, %s135
      %s138 = sphi 0, %s137
      %s152 = sphi 0, %s138
      %s158 = sphi 0, %s160
      %s161 = sphi 0, %s158
      %s162 = sphi 0, %s161
      %s178 = sphi 0, %s162
    $region4: #{ghost_conv_forward.5} parent=1 // loop_header_branch
      %15 = sbr.rel (%p13) target = $region8
    $region5: #{ghost_conv_forward.5} parent=1 // loop_body
      %s17 = ssub.s32 %s12, 1
      %s18 = ssub.s32 %s12, 2
      %s19 = sadd.s32 %s12, 1
      %s20 = ssub.s32 %s12, %s19
      %p21 = scmp.eq.s32.totalorder %s20, 0
      %s23 = sadd.s32 %s22, 1
      %s24 = scalar_select %p21, %s22, %s23
      %p27 = pneg %p21
      %p28 = scmp.eq.s32.totalorder %s12, 1
      %p29 = por %p27, %p28
      %p30 = scmp.ne.s32.totalorder %s22, %s25
      %p31 = scmp.eq.s32.totalorder %s12, 0
      %p32 = por %p30, %p31
      %p33 = scmp.ne.s32.totalorder %s22, %s25
      %p34 = scmp.eq.s32.totalorder %s17, 1
      %p35 = por %p33, %p34
      %p36 = scmp.ne.s32.totalorder %s25, %s26
      %p37 = scmp.eq.s32.totalorder %s17, 0
      %p38 = por %p36, %p37
      %p39 = scmp.ne.s32.totalorder %s25, %s26
      %p40 = scmp.eq.s32.totalorder %s18, 1
      %p41 = por %p39, %p40
      %p43 = scmp.ne.s32.totalorder %s26, %s42
      %p44 = scmp.eq.s32.totalorder %s18, 0
      %p45 = por %p43, %p44
      %s46 = ssub.s32 %s12, %s19
      %p47 = scmp.eq.s32.totalorder %s46, 0
      %s49 = sadd.s32 %s48, 1
      %s50 = scalar_select %p47, %s48, %s49
      %p53 = pneg %p47
      %p54 = scmp.eq.s32.totalorder %s12, 1
      %p55 = por %p53, %p54
      %p56 = scmp.ne.s32.totalorder %s48, %s51
      %p57 = scmp.eq.s32.totalorder %s12, 0
      %p58 = por %p56, %p57
      %p59 = scmp.ne.s32.totalorder %s48, %s51
      %p60 = scmp.eq.s32.totalorder %s17, 1
      %p61 = por %p59, %p60
      %p62 = scmp.ne.s32.totalorder %s51, %s52
      %p63 = scmp.eq.s32.totalorder %s17, 0
      %p64 = por %p62, %p63
      %p65 = scmp.ne.s32.totalorder %s51, %s52
      %p66 = scmp.eq.s32.totalorder %s18, 1
      %p67 = por %p65, %p66
      %p69 = scmp.ne.s32.totalorder %s52, %s68
      %p70 = scmp.eq.s32.totalorder %s18, 0
      %p71 = por %p69, %p70
      %s73 = sadd.s32 %s72, 1
      %p76 = scmp.eq.s32.totalorder %s12, 1
      %p77 = scmp.ne.s32.totalorder %s72, %s74
      %p78 = scmp.eq.s32.totalorder %s12, 0
      %p79 = por %p77, %p78
      %p80 = scmp.ne.s32.totalorder %s72, %s74
      %p81 = scmp.eq.s32.totalorder %s17, 1
      %p82 = por %p80, %p81
      %p83 = scmp.ne.s32.totalorder %s74, %s75
      %p84 = scmp.eq.s32.totalorder %s17, 0
      %p85 = por %p83, %p84
      %p86 = scmp.ne.s32.totalorder %s74, %s75
      %p87 = scmp.eq.s32.totalorder %s18, 1
      %p88 = por %p86, %p87
      %p90 = scmp.ne.s32.totalorder %s75, %s89
      %p91 = scmp.eq.s32.totalorder %s18, 0
      %p92 = por %p90, %p91
      %s94 = sadd.s32 %s93, 1
      %p97 = scmp.eq.s32.totalorder %s12, 1
      %p98 = scmp.ne.s32.totalorder %s93, %s95
      %p99 = scmp.eq.s32.totalorder %s12, 0
      %p100 = por %p98, %p99
      %p101 = scmp.ne.s32.totalorder %s93, %s95
      %p102 = scmp.eq.s32.totalorder %s17, 1
      %p103 = por %p101, %p102
      %p104 = scmp.ne.s32.totalorder %s95, %s96
      %p105 = scmp.eq.s32.totalorder %s17, 0
      %p106 = por %p104, %p105
      %p107 = scmp.ne.s32.totalorder %s95, %s96
      %p108 = scmp.eq.s32.totalorder %s18, 1
      %p109 = por %p107, %p108
      %p111 = scmp.ne.s32.totalorder %s96, %s110
      %p112 = scmp.eq.s32.totalorder %s18, 0
      %p113 = por %p111, %p112
      %s115 = sadd.s32 %s114, 1
      %p118 = scmp.eq.s32.totalorder %s12, 1
      %p119 = scmp.ne.s32.totalorder %s114, %s116
      %p120 = scmp.eq.s32.totalorder %s12, 0
      %p121 = por %p119, %p120
      %p122 = scmp.ne.s32.totalorder %s114, %s116
      %p123 = scmp.eq.s32.totalorder %s17, 1
      %p124 = por %p122, %p123
      %p125 = scmp.ne.s32.totalorder %s116, %s117
      %p126 = scmp.eq.s32.totalorder %s17, 0
      %p127 = por %p125, %p126
      %p128 = scmp.ne.s32.totalorder %s116, %s117
      %p129 = scmp.eq.s32.totalorder %s18, 1
      %p130 = por %p128, %p129
      %p132 = scmp.ne.s32.totalorder %s117, %s131
      %p133 = scmp.eq.s32.totalorder %s18, 0
      %p134 = por %p132, %p133
      %s136 = sadd.s32 %s135, 1
      %p139 = scmp.eq.s32.totalorder %s12, 1
      %p140 = scmp.ne.s32.totalorder %s135, %s137
      %p141 = scmp.eq.s32.totalorder %s12, 0
      %p142 = por %p140, %p141
      %p143 = scmp.ne.s32.totalorder %s135, %s137
      %p144 = scmp.eq.s32.totalorder %s17, 1
      %p145 = por %p143, %p144
      %p146 = scmp.ne.s32.totalorder %s137, %s138
      %p147 = scmp.eq.s32.totalorder %s17, 0
      %p148 = por %p146, %p147
      %p149 = scmp.ne.s32.totalorder %s137, %s138
      %p150 = scmp.eq.s32.totalorder %s18, 1
      %p151 = por %p149, %p150
      %p153 = scmp.ne.s32.totalorder %s138, %s152
      %p154 = scmp.eq.s32.totalorder %s18, 0
      %p155 = por %p153, %p154
      %s156 = ssub.s32 %s12, %s19
      %p157 = scmp.eq.s32.totalorder %s156, 0
      %s159 = sadd.s32 %s158, 1
      %s160 = scalar_select %p157, %s158, %s159
      %p163 = pneg %p157
      %p164 = scmp.eq.s32.totalorder %s12, 1
      %p165 = por %p163, %p164
      %p166 = scmp.ne.s32.totalorder %s158, %s161
      %p167 = scmp.eq.s32.totalorder %s12, 0
      %p168 = por %p166, %p167
      %p169 = scmp.ne.s32.totalorder %s158, %s161
      %p170 = scmp.eq.s32.totalorder %s17, 1
      %p171 = por %p169, %p170
      %p172 = scmp.ne.s32.totalorder %s161, %s162
      %p173 = scmp.eq.s32.totalorder %s17, 0
      %p174 = por %p172, %p173
      %p175 = scmp.ne.s32.totalorder %s161, %s162
      %p176 = scmp.eq.s32.totalorder %s18, 1
      %p177 = por %p175, %p176
      %p179 = scmp.ne.s32.totalorder %s162, %s178
      %p180 = scmp.eq.s32.totalorder %s18, 0
      %p181 = por %p179, %p180
      %p182 = scmp.le.s32.totalorder 1, %s12
      %p183 = scmp.lt.s32.totalorder %s12, 3
      %p184 = pnand %p182, %p183
      %p185 = pneg %p184
      // Predicated region
      $region9: #{ghost_conv_forward.5} parent=5 // pred_check
        _
      $region10: #{ghost_conv_forward.5} parent=5 // pred_check_branch
        %187 = sbr.rel (%p184) target = $region12
      $region11: #{ghost_conv_forward.5} parent=5 // pred_region
        %s188 = ssub.s32 %s12, 1
        // Predicated region
        $region13: #{ghost_conv_forward.5} parent=11 // pred_check
          %p189 = pneg %p85
        $region14: #{ghost_conv_forward.5} parent=11 // pred_check_branch
          %191 = sbr.rel (%p189) target = $region16
        $region15: #{ghost_conv_forward.5} parent=11 // pred_region
          _
        $region16: #{ghost_conv_forward.5} parent=11 // pred_fallthru
          _
        // Predicated region
        $region17: #{ghost_conv_forward.5} parent=11 // pred_check
          %p192 = pneg %p106
        $region18: #{ghost_conv_forward.5} parent=11 // pred_check_branch
          %194 = sbr.rel (%p192) target = $region20
        $region19: #{ghost_conv_forward.5} parent=11 // pred_region
          _
        $region20: #{ghost_conv_forward.5} parent=11 // pred_fallthru
          _
        // Predicated region
        $region21: #{ghost_conv_forward.5} parent=11 // pred_check
          %p195 = pneg %p127
        $region22: #{ghost_conv_forward.5} parent=11 // pred_check_branch
          %197 = sbr.rel (%p195) target = $region24
        $region23: #{ghost_conv_forward.5} parent=11 // pred_region
          _
        $region24: #{ghost_conv_forward.5} parent=11 // pred_fallthru
          _
        // Predicated region
        $region25: #{ghost_conv_forward.5} parent=11 // pred_check
          %p198 = pneg %p148
        $region26: #{ghost_conv_forward.5} parent=11 // pred_check_branch
          %200 = sbr.rel (%p198) target = $region28
        $region27: #{ghost_conv_forward.5} parent=11 // pred_region
          _
        $region28: #{ghost_conv_forward.5} parent=11 // pred_fallthru
          _
      $region12: #{ghost_conv_forward.5} parent=5 // pred_fallthru
        _
      %p201 = scmp.lt.s32.totalorder %s12, 2
      // Predicated region
      $region29: #{ghost_conv_forward.5} parent=5 // pred_check
        %p202 = pneg %p201
      $region30: #{ghost_conv_forward.5} parent=5 // pred_check_branch
        %204 = sbr.rel (%p202) target = $region32
      $region31: #{ghost_conv_forward.5} parent=5 // pred_region
        // Predicated region
        $region33: #{ghost_conv_forward.5} parent=31 // pred_check
          %p205 = pneg %p32
        $region34: #{ghost_conv_forward.5} parent=31 // pred_check_branch
          %207 = sbr.rel (%p205) target = $region36
        $region35: #{ghost_conv_forward.5} parent=31 // pred_region
          %s208 = smul.u32 32, %s12
          %p209 = scmp.lt.s32.totalorder %s208, 63
          %s210 = scalar_select %p209, %s208, 63
          %s211 = smul.addr %s210, 4
          %s212 = scalar_lea.vmem %s0, %s211
          %s213 = smul.u32 32, %s12
        $region36: #{ghost_conv_forward.5} parent=31 // pred_fallthru
          _
        // Predicated region
        $region37: #{ghost_conv_forward.5} parent=31 // pred_check
          %p214 = pneg %p58
        $region38: #{ghost_conv_forward.5} parent=31 // pred_check_branch
          %216 = sbr.rel (%p214) target = $region40
        $region39: #{ghost_conv_forward.5} parent=31 // pred_region
          %s217 = smul.u32 32, %s12
          %p218 = scmp.lt.s32.totalorder %s217, 63
          %s219 = scalar_select %p218, %s217, 63
          %s220 = smul.addr %s219, 4
          %s221 = scalar_lea.vmem %s1, %s220
          %s222 = smul.u32 32, %s12
        $region40: #{ghost_conv_forward.5} parent=31 // pred_fallthru
          _
      $region32: #{ghost_conv_forward.5} parent=5 // pred_fallthru
        _
      %p223 = scmp.le.s32.totalorder 1, %s12
      %p224 = scmp.lt.s32.totalorder %s12, 3
      %p225 = pnand %p223, %p224
      %p226 = pneg %p225
      // Predicated region
      $region41: #{ghost_conv_forward.5} parent=5 // pred_check
        _
      $region42: #{ghost_conv_forward.5} parent=5 // pred_check_branch
        %228 = sbr.rel (%p225) target = $region44
      $region43: #{ghost_conv_forward.5} parent=5 // pred_region
        %s229 = ssub.s32 %s12, 1
        %s230 = smul.u32 32, %s17
        %p231 = scmp.lt.s32.totalorder %s230, 63
        %s232 = scalar_select %p231, %s230, 63
        %s233 = smul.addr %s232, 4
        %s234 = scalar_lea.vmem %s0, %s233
        %p235 = pneg %p38
        %p236 = pneg %p35
        %s237 = smul.u32 32, %s17
        %p238 = scmp.lt.s32.totalorder %s237, 63
        %s239 = scalar_select %p238, %s237, 63
        %s240 = smul.addr %s239, 4
        %s241 = scalar_lea.vmem %s1, %s240
        %p242 = pneg %p64
        %p243 = pneg %p61
        %p244 = pneg %p85
        %p245 = pneg %p82
        %p246 = pneg %p106
        %p247 = pneg %p103
        %p248 = pneg %p127
        %p249 = pneg %p124
        %p250 = pneg %p148
        %p251 = pneg %p145
        %p252 = pneg %p174
        %p253 = pneg %p171
        %s254 = sand.u32 %s161, 1
        %s255 = sand.u32 %s161, 1
        %s256 = smul.addr %s255, 512
        %s257 = scalar_lea.vmem [#allocation2], %s256
        %s258 = smul.u32 32, %s17
        %p259 = scmp.lt.s32.totalorder %s258, 63
        %s260 = scalar_select %p259, %s258, 63
        %s261 = smul.addr %s260, 4
        %s262 = scalar_lea.vmem %s0, %s261
        %s263 = smul.u32 32, %s17
        %s264 = smul.u32 32, %s17
        %p265 = scmp.lt.s32.totalorder %s264, 63
        %s266 = scalar_select %p265, %s264, 63
        %s267 = smul.addr %s266, 4
        %s268 = scalar_lea.vmem %s1, %s267
        %s269 = smul.u32 32, %s17
        %s270 = smul.u32 32, %s17
        %v271 = vld [vmem:[%s262] sm:$0xf]
        %v272 = vld [vmem:[%s262 + $0x4] sm:$0xf]
        %v273 = vld [vmem:[%s262 + $0x8] sm:$0xf]
        %v274 = vld [vmem:[%s262 + $0xc] sm:$0xf]
        %v275 = vld [vmem:[%s262 + $0x10] sm:$0xf]
        %v276 = vld [vmem:[%s262 + $0x14] sm:$0xf]
        %v277 = vld [vmem:[%s262 + $0x18] sm:$0xf]
        %v278 = vld [vmem:[%s262 + $0x1c] sm:$0xf]
        %v279 = vld [vmem:[%s262 + $0x20] sm:$0xf]
        %v280 = vld [vmem:[%s262 + $0x24] sm:$0xf]
        %v281 = vld [vmem:[%s262 + $0x28] sm:$0xf]
        %v282 = vld [vmem:[%s262 + $0x2c] sm:$0xf]
        %v283 = vld [vmem:[%s262 + $0x30] sm:$0xf]
        %v284 = vld [vmem:[%s262 + $0x34] sm:$0xf]
        %v285 = vld [vmem:[%s262 + $0x38] sm:$0xf]
        %v286 = vld [vmem:[%s262 + $0x3c] sm:$0xf]
        %v287 = vld [vmem:[%s262 + $0x40] sm:$0xf]
        %v288 = vld [vmem:[%s262 + $0x44] sm:$0xf]
        %v289 = vld [vmem:[%s262 + $0x48] sm:$0xf]
        %v290 = vld [vmem:[%s262 + $0x4c] sm:$0xf]
        %v291 = vld [vmem:[%s262 + $0x50] sm:$0xf]
        %v292 = vld [vmem:[%s262 + $0x54] sm:$0xf]
        %v293 = vld [vmem:[%s262 + $0x58] sm:$0xf]
        %v294 = vld [vmem:[%s262 + $0x5c] sm:$0xf]
        %v295 = vld [vmem:[%s262 + $0x60] sm:$0xf]
        %v296 = vld [vmem:[%s262 + $0x64] sm:$0xf]
        %v297 = vld [vmem:[%s262 + $0x68] sm:$0xf]
        %v298 = vld [vmem:[%s262 + $0x6c] sm:$0xf]
        %v299 = vld [vmem:[%s262 + $0x70] sm:$0xf]
        %v300 = vld [vmem:[%s262 + $0x74] sm:$0xf]
        %v301 = vld [vmem:[%s262 + $0x78] sm:$0xf]
        %v302 = vld [vmem:[%s262 + $0x7c] sm:$0xf]
        %v303 = vunpack.c.l.bf16 %v271
        %v304 = vunpack.c.l.bf16 %v272
        %v305 = vunpack.c.l.bf16 %v273
        %v306 = vunpack.c.l.bf16 %v274
        %v307 = vunpack.c.l.bf16 %v275
        %v308 = vunpack.c.l.bf16 %v276
        %v309 = vunpack.c.l.bf16 %v277
        %v310 = vunpack.c.l.bf16 %v278
        %v311 = vunpack.c.l.bf16 %v279
        %v312 = vunpack.c.l.bf16 %v280
        %v313 = vunpack.c.l.bf16 %v281
        %v314 = vunpack.c.l.bf16 %v282
        %v315 = vunpack.c.l.bf16 %v283
        %v316 = vunpack.c.l.bf16 %v284
        %v317 = vunpack.c.l.bf16 %v285
        %v318 = vunpack.c.l.bf16 %v286
        %v319 = vunpack.c.l.bf16 %v287
        %v320 = vunpack.c.l.bf16 %v288
        %v321 = vunpack.c.l.bf16 %v289
        %v322 = vunpack.c.l.bf16 %v290
        %v323 = vunpack.c.l.bf16 %v291
        %v324 = vunpack.c.l.bf16 %v292
        %v325 = vunpack.c.l.bf16 %v293
        %v326 = vunpack.c.l.bf16 %v294
        %v327 = vunpack.c.l.bf16 %v295
        %v328 = vunpack.c.l.bf16 %v296
        %v329 = vunpack.c.l.bf16 %v297
        %v330 = vunpack.c.l.bf16 %v298
        %v331 = vunpack.c.l.bf16 %v299
        %v332 = vunpack.c.l.bf16 %v300
        %v333 = vunpack.c.l.bf16 %v301
        %v334 = vunpack.c.l.bf16 %v302
        %v335 = vld [vmem:[%s2] sm:$0x1]
        %v337 = vperm.slane %v335, 0
        %v339 = vmul.f32 %v303, %v337
        %v340 = vmul.f32 %v304, %v337
        %v341 = vmul.f32 %v305, %v337
        %v342 = vmul.f32 %v306, %v337
        %v343 = vmul.f32 %v307, %v337
        %v344 = vmul.f32 %v308, %v337
        %v345 = vmul.f32 %v309, %v337
        %v346 = vmul.f32 %v310, %v337
        %v347 = vmul.f32 %v311, %v337
        %v348 = vmul.f32 %v312, %v337
        %v349 = vmul.f32 %v313, %v337
        %v350 = vmul.f32 %v314, %v337
        %v351 = vmul.f32 %v315, %v337
        %v352 = vmul.f32 %v316, %v337
        %v353 = vmul.f32 %v317, %v337
        %v354 = vmul.f32 %v318, %v337
        %v355 = vmul.f32 %v319, %v337
        %v356 = vmul.f32 %v320, %v337
        %v357 = vmul.f32 %v321, %v337
        %v358 = vmul.f32 %v322, %v337
        %v359 = vmul.f32 %v323, %v337
        %v360 = vmul.f32 %v324, %v337
        %v361 = vmul.f32 %v325, %v337
        %v362 = vmul.f32 %v326, %v337
        %v363 = vmul.f32 %v327, %v337
        %v364 = vmul.f32 %v328, %v337
        %v365 = vmul.f32 %v329, %v337
        %v366 = vmul.f32 %v330, %v337
        %v367 = vmul.f32 %v331, %v337
        %v368 = vmul.f32 %v332, %v337
        %v369 = vmul.f32 %v333, %v337
        %v370 = vmul.f32 %v334, %v337
        %v371 = vld [vmem:[%s3] sm:$0x1]
        %v373 = vperm.slane %v371, 0
        %v375 = vadd.f32 %v339, %v373
        %v376 = vadd.f32 %v340, %v373
        %v377 = vadd.f32 %v341, %v373
        %v378 = vadd.f32 %v342, %v373
        %v379 = vadd.f32 %v343, %v373
        %v380 = vadd.f32 %v344, %v373
        %v381 = vadd.f32 %v345, %v373
        %v382 = vadd.f32 %v346, %v373
        %v383 = vadd.f32 %v347, %v373
        %v384 = vadd.f32 %v348, %v373
        %v385 = vadd.f32 %v349, %v373
        %v386 = vadd.f32 %v350, %v373
        %v387 = vadd.f32 %v351, %v373
        %v388 = vadd.f32 %v352, %v373
        %v389 = vadd.f32 %v353, %v373
        %v390 = vadd.f32 %v354, %v373
        %v391 = vadd.f32 %v355, %v373
        %v392 = vadd.f32 %v356, %v373
        %v393 = vadd.f32 %v357, %v373
        %v394 = vadd.f32 %v358, %v373
        %v395 = vadd.f32 %v359, %v373
        %v396 = vadd.f32 %v360, %v373
        %v397 = vadd.f32 %v361, %v373
        %v398 = vadd.f32 %v362, %v373
        %v399 = vadd.f32 %v363, %v373
        %v400 = vadd.f32 %v364, %v373
        %v401 = vadd.f32 %v365, %v373
        %v402 = vadd.f32 %v366, %v373
        %v403 = vadd.f32 %v367, %v373
        %v404 = vadd.f32 %v368, %v373
        %v405 = vadd.f32 %v369, %v373
        %v406 = vadd.f32 %v370, %v373
        %v407 = vld [vmem:[%s268] sm:$0xf]
        %v408 = vld [vmem:[%s268 + $0x4] sm:$0xf]
        %v409 = vld [vmem:[%s268 + $0x8] sm:$0xf]
        %v410 = vld [vmem:[%s268 + $0xc] sm:$0xf]
        %v411 = vld [vmem:[%s268 + $0x10] sm:$0xf]
        %v412 = vld [vmem:[%s268 + $0x14] sm:$0xf]
        %v413 = vld [vmem:[%s268 + $0x18] sm:$0xf]
        %v414 = vld [vmem:[%s268 + $0x1c] sm:$0xf]
        %v415 = vld [vmem:[%s268 + $0x20] sm:$0xf]
        %v416 = vld [vmem:[%s268 + $0x24] sm:$0xf]
        %v417 = vld [vmem:[%s268 + $0x28] sm:$0xf]
        %v418 = vld [vmem:[%s268 + $0x2c] sm:$0xf]
        %v419 = vld [vmem:[%s268 + $0x30] sm:$0xf]
        %v420 = vld [vmem:[%s268 + $0x34] sm:$0xf]
        %v421 = vld [vmem:[%s268 + $0x38] sm:$0xf]
        %v422 = vld [vmem:[%s268 + $0x3c] sm:$0xf]
        %v423 = vld [vmem:[%s268 + $0x40] sm:$0xf]
        %v424 = vld [vmem:[%s268 + $0x44] sm:$0xf]
        %v425 = vld [vmem:[%s268 + $0x48] sm:$0xf]
        %v426 = vld [vmem:[%s268 + $0x4c] sm:$0xf]
        %v427 = vld [vmem:[%s268 + $0x50] sm:$0xf]
        %v428 = vld [vmem:[%s268 + $0x54] sm:$0xf]
        %v429 = vld [vmem:[%s268 + $0x58] sm:$0xf]
        %v430 = vld [vmem:[%s268 + $0x5c] sm:$0xf]
        %v431 = vld [vmem:[%s268 + $0x60] sm:$0xf]
        %v432 = vld [vmem:[%s268 + $0x64] sm:$0xf]
        %v433 = vld [vmem:[%s268 + $0x68] sm:$0xf]
        %v434 = vld [vmem:[%s268 + $0x6c] sm:$0xf]
        %v435 = vld [vmem:[%s268 + $0x70] sm:$0xf]
        %v436 = vld [vmem:[%s268 + $0x74] sm:$0xf]
        %v437 = vld [vmem:[%s268 + $0x78] sm:$0xf]
        %v438 = vld [vmem:[%s268 + $0x7c] sm:$0xf]
        %v439 = vunpack.c.l.bf16 %v407
        %v440 = vunpack.c.l.bf16 %v408
        %v441 = vunpack.c.l.bf16 %v409
        %v442 = vunpack.c.l.bf16 %v410
        %v443 = vunpack.c.l.bf16 %v411
        %v444 = vunpack.c.l.bf16 %v412
        %v445 = vunpack.c.l.bf16 %v413
        %v446 = vunpack.c.l.bf16 %v414
        %v447 = vunpack.c.l.bf16 %v415
        %v448 = vunpack.c.l.bf16 %v416
        %v449 = vunpack.c.l.bf16 %v417
        %v450 = vunpack.c.l.bf16 %v418
        %v451 = vunpack.c.l.bf16 %v419
        %v452 = vunpack.c.l.bf16 %v420
        %v453 = vunpack.c.l.bf16 %v421
        %v454 = vunpack.c.l.bf16 %v422
        %v455 = vunpack.c.l.bf16 %v423
        %v456 = vunpack.c.l.bf16 %v424
        %v457 = vunpack.c.l.bf16 %v425
        %v458 = vunpack.c.l.bf16 %v426
        %v459 = vunpack.c.l.bf16 %v427
        %v460 = vunpack.c.l.bf16 %v428
        %v461 = vunpack.c.l.bf16 %v429
        %v462 = vunpack.c.l.bf16 %v430
        %v463 = vunpack.c.l.bf16 %v431
        %v464 = vunpack.c.l.bf16 %v432
        %v465 = vunpack.c.l.bf16 %v433
        %v466 = vunpack.c.l.bf16 %v434
        %v467 = vunpack.c.l.bf16 %v435
        %v468 = vunpack.c.l.bf16 %v436
        %v469 = vunpack.c.l.bf16 %v437
        %v470 = vunpack.c.l.bf16 %v438
        %v471 = vld [vmem:[%s4] sm:$0x1]
        %v473 = vperm.slane %v471, 0
        %v475 = vmul.f32 %v439, %v473
        %v476 = vmul.f32 %v440, %v473
        %v477 = vmul.f32 %v441, %v473
        %v478 = vmul.f32 %v442, %v473
        %v479 = vmul.f32 %v443, %v473
        %v480 = vmul.f32 %v444, %v473
        %v481 = vmul.f32 %v445, %v473
        %v482 = vmul.f32 %v446, %v473
        %v483 = vmul.f32 %v447, %v473
        %v484 = vmul.f32 %v448, %v473
        %v485 = vmul.f32 %v449, %v473
        %v486 = vmul.f32 %v450, %v473
        %v487 = vmul.f32 %v451, %v473
        %v488 = vmul.f32 %v452, %v473
        %v489 = vmul.f32 %v453, %v473
        %v490 = vmul.f32 %v454, %v473
        %v491 = vmul.f32 %v455, %v473
        %v492 = vmul.f32 %v456, %v473
        %v493 = vmul.f32 %v457, %v473
        %v494 = vmul.f32 %v458, %v473
        %v495 = vmul.f32 %v459, %v473
        %v496 = vmul.f32 %v460, %v473
        %v497 = vmul.f32 %v461, %v473
        %v498 = vmul.f32 %v462, %v473
        %v499 = vmul.f32 %v463, %v473
        %v500 = vmul.f32 %v464, %v473
        %v501 = vmul.f32 %v465, %v473
        %v502 = vmul.f32 %v466, %v473
        %v503 = vmul.f32 %v467, %v473
        %v504 = vmul.f32 %v468, %v473
        %v505 = vmul.f32 %v469, %v473
        %v506 = vmul.f32 %v470, %v473
        %v507 = vld [vmem:[%s5] sm:$0x1]
        %v509 = vperm.slane %v507, 0
        %v511 = vadd.f32 %v475, %v509
        %v512 = vadd.f32 %v476, %v509
        %v513 = vadd.f32 %v477, %v509
        %v514 = vadd.f32 %v478, %v509
        %v515 = vadd.f32 %v479, %v509
        %v516 = vadd.f32 %v480, %v509
        %v517 = vadd.f32 %v481, %v509
        %v518 = vadd.f32 %v482, %v509
        %v519 = vadd.f32 %v483, %v509
        %v520 = vadd.f32 %v484, %v509
        %v521 = vadd.f32 %v485, %v509
        %v522 = vadd.f32 %v486, %v509
        %v523 = vadd.f32 %v487, %v509
        %v524 = vadd.f32 %v488, %v509
        %v525 = vadd.f32 %v489, %v509
        %v526 = vadd.f32 %v490, %v509
        %v527 = vadd.f32 %v491, %v509
        %v528 = vadd.f32 %v492, %v509
        %v529 = vadd.f32 %v493, %v509
        %v530 = vadd.f32 %v494, %v509
        %v531 = vadd.f32 %v495, %v509
        %v532 = vadd.f32 %v496, %v509
        %v533 = vadd.f32 %v497, %v509
        %v534 = vadd.f32 %v498, %v509
        %v535 = vadd.f32 %v499, %v509
        %v536 = vadd.f32 %v500, %v509
        %v537 = vadd.f32 %v501, %v509
        %v538 = vadd.f32 %v502, %v509
        %v539 = vadd.f32 %v503, %v509
        %v540 = vadd.f32 %v504, %v509
        %v541 = vadd.f32 %v505, %v509
        %v542 = vadd.f32 %v506, %v509
        %v543 = vsub.f32 0.0, %v375
        %v544 = vsub.f32 0.0, %v376
        %v545 = vsub.f32 0.0, %v377
        %v546 = vsub.f32 0.0, %v378
        %v547 = vsub.f32 0.0, %v379
        %v548 = vsub.f32 0.0, %v380
        %v549 = vsub.f32 0.0, %v381
        %v550 = vsub.f32 0.0, %v382
        %v551 = vsub.f32 0.0, %v383
        %v552 = vsub.f32 0.0, %v384
        %v553 = vsub.f32 0.0, %v385
        %v554 = vsub.f32 0.0, %v386
        %v555 = vsub.f32 0.0, %v387
        %v556 = vsub.f32 0.0, %v388
        %v557 = vsub.f32 0.0, %v389
        %v558 = vsub.f32 0.0, %v390
        %v559 = vsub.f32 0.0, %v391
        %v560 = vsub.f32 0.0, %v392
        %v561 = vsub.f32 0.0, %v393
        %v562 = vsub.f32 0.0, %v394
        %v563 = vsub.f32 0.0, %v395
        %v564 = vsub.f32 0.0, %v396
        %v565 = vsub.f32 0.0, %v397
        %v566 = vsub.f32 0.0, %v398
        %v567 = vsub.f32 0.0, %v399
        %v568 = vsub.f32 0.0, %v400
        %v569 = vsub.f32 0.0, %v401
        %v570 = vsub.f32 0.0, %v402
        %v571 = vsub.f32 0.0, %v403
        %v572 = vsub.f32 0.0, %v404
        %v573 = vsub.f32 0.0, %v405
        %v574 = vsub.f32 0.0, %v406
        %v575 = vmul.f32 %v543, 1.442695
        %v576 = vpow.pop %v575
        %v577 = vmul.f32 %v544, 1.442695
        %v578 = vpow.pop %v577
        %v579 = vmul.f32 %v545, 1.442695
        %v580 = vpow.pop %v579
        %v581 = vmul.f32 %v546, 1.442695
        %v582 = vpow.pop %v581
        %v583 = vmul.f32 %v547, 1.442695
        %v584 = vpow.pop %v583
        %v585 = vmul.f32 %v548, 1.442695
        %v586 = vpow.pop %v585
        %v587 = vmul.f32 %v549, 1.442695
        %v588 = vpow.pop %v587
        %v589 = vmul.f32 %v550, 1.442695
        %v590 = vpow.pop %v589
        %v591 = vmul.f32 %v551, 1.442695
        %v592 = vpow.pop %v591
        %v593 = vmul.f32 %v552, 1.442695
        %v594 = vpow.pop %v593
        %v595 = vmul.f32 %v553, 1.442695
        %v596 = vpow.pop %v595
        %v597 = vmul.f32 %v554, 1.442695
        %v598 = vpow.pop %v597
        %v599 = vmul.f32 %v555, 1.442695
        %v600 = vpow.pop %v599
        %v601 = vmul.f32 %v556, 1.442695
        %v602 = vpow.pop %v601
        %v603 = vmul.f32 %v557, 1.442695
        %v604 = vpow.pop %v603
        %v605 = vmul.f32 %v558, 1.442695
        %v606 = vpow.pop %v605
        %v607 = vmul.f32 %v559, 1.442695
        %v608 = vpow.pop %v607
        %v609 = vmul.f32 %v560, 1.442695
        %v610 = vpow.pop %v609
        %v611 = vmul.f32 %v561, 1.442695
        %v612 = vpow.pop %v611
        %v613 = vmul.f32 %v562, 1.442695
        %v614 = vpow.pop %v613
        %v615 = vmul.f32 %v563, 1.442695
        %v616 = vpow.pop %v615
        %v617 = vmul.f32 %v564, 1.442695
        %v618 = vpow.pop %v617
        %v619 = vmul.f32 %v565, 1.442695
        %v620 = vpow.pop %v619
        %v621 = vmul.f32 %v566, 1.442695
        %v622 = vpow.pop %v621
        %v623 = vmul.f32 %v567, 1.442695
        %v624 = vpow.pop %v623
        %v625 = vmul.f32 %v568, 1.442695
        %v626 = vpow.pop %v625
        %v627 = vmul.f32 %v569, 1.442695
        %v628 = vpow.pop %v627
        %v629 = vmul.f32 %v570, 1.442695
        %v630 = vpow.pop %v629
        %v631 = vmul.f32 %v571, 1.442695
        %v632 = vpow.pop %v631
        %v633 = vmul.f32 %v572, 1.442695
        %v634 = vpow.pop %v633
        %v635 = vmul.f32 %v573, 1.442695
        %v636 = vpow.pop %v635
        %v637 = vmul.f32 %v574, 1.442695
        %v638 = vpow.pop %v637
        %v639 = vadd.f32 %v576, 1.0
        %v640 = vadd.f32 %v578, 1.0
        %v641 = vadd.f32 %v580, 1.0
        %v642 = vadd.f32 %v582, 1.0
        %v643 = vadd.f32 %v584, 1.0
        %v644 = vadd.f32 %v586, 1.0
        %v645 = vadd.f32 %v588, 1.0
        %v646 = vadd.f32 %v590, 1.0
        %v647 = vadd.f32 %v592, 1.0
        %v648 = vadd.f32 %v594, 1.0
        %v649 = vadd.f32 %v596, 1.0
        %v650 = vadd.f32 %v598, 1.0
        %v651 = vadd.f32 %v600, 1.0
        %v652 = vadd.f32 %v602, 1.0
        %v653 = vadd.f32 %v604, 1.0
        %v654 = vadd.f32 %v606, 1.0
        %v655 = vadd.f32 %v608, 1.0
        %v656 = vadd.f32 %v610, 1.0
        %v657 = vadd.f32 %v612, 1.0
        %v658 = vadd.f32 %v614, 1.0
        %v659 = vadd.f32 %v616, 1.0
        %v660 = vadd.f32 %v618, 1.0
        %v661 = vadd.f32 %v620, 1.0
        %v662 = vadd.f32 %v622, 1.0
        %v663 = vadd.f32 %v624, 1.0
        %v664 = vadd.f32 %v626, 1.0
        %v665 = vadd.f32 %v628, 1.0
        %v666 = vadd.f32 %v630, 1.0
        %v667 = vadd.f32 %v632, 1.0
        %v668 = vadd.f32 %v634, 1.0
        %v669 = vadd.f32 %v636, 1.0
        %v670 = vadd.f32 %v638, 1.0
        %v671 = vrcp.pop %v639
        %v672 = vmul.f32 %v639, %v671
        %v673 = vsub.f32 1.0, %v672
        %v674 = vmul.f32 %v671, %v673
        %v675 = vadd.f32 %v671, %v674
        %vm676 = vweird.f32 %v639
        %vm677 = vweird.f32 %v671
        %vm678 = vmor %vm676, %vm677
        %v679 = vsel %vm678, %v671, %v675
        %v680 = vand.u32 2147483647, %v639
        %vm681 = vcmp.eq.f32.partialorder %v680, 8.507059e+37
        %v682 = vand.u32 %v639, 2147483648
        %v683 = vor.u32 1.1754944e-38, %v682
        %v684 = vsel %vm681, %v683, %v679
        %v685 = vmul.f32 %v375, %v684
        %v686 = vrcp.pop %v640
        %v687 = vmul.f32 %v640, %v686
        %v688 = vsub.f32 1.0, %v687
        %v689 = vmul.f32 %v686, %v688
        %v690 = vadd.f32 %v686, %v689
        %vm691 = vweird.f32 %v640
        %vm692 = vweird.f32 %v686
        %vm693 = vmor %vm691, %vm692
        %v694 = vsel %vm693, %v686, %v690
        %v695 = vand.u32 2147483647, %v640
        %vm696 = vcmp.eq.f32.partialorder %v695, 8.507059e+37
        %v697 = vand.u32 %v640, 2147483648
        %v698 = vor.u32 1.1754944e-38, %v697
        %v699 = vsel %vm696, %v698, %v694
        %v700 = vmul.f32 %v376, %v699
        %v701 = vrcp.pop %v641
        %v702 = vmul.f32 %v641, %v701
        %v703 = vsub.f32 1.0, %v702
        %v704 = vmul.f32 %v701, %v703
        %v705 = vadd.f32 %v701, %v704
        %vm706 = vweird.f32 %v641
        %vm707 = vweird.f32 %v701
        %vm708 = vmor %vm706, %vm707
        %v709 = vsel %vm708, %v701, %v705
        %v710 = vand.u32 2147483647, %v641
        %vm711 = vcmp.eq.f32.partialorder %v710, 8.507059e+37
        %v712 = vand.u32 %v641, 2147483648
        %v713 = vor.u32 1.1754944e-38, %v712
        %v714 = vsel %vm711, %v713, %v709
        %v715 = vmul.f32 %v377, %v714
        %v716 = vrcp.pop %v642
        %v717 = vmul.f32 %v642, %v716
        %v718 = vsub.f32 1.0, %v717
        %v719 = vmul.f32 %v716, %v718
        %v720 = vadd.f32 %v716, %v719
        %vm721 = vweird.f32 %v642
        %vm722 = vweird.f32 %v716
        %vm723 = vmor %vm721, %vm722
        %v724 = vsel %vm723, %v716, %v720
        %v725 = vand.u32 2147483647, %v642
        %vm726 = vcmp.eq.f32.partialorder %v725, 8.507059e+37
        %v727 = vand.u32 %v642, 2147483648
        %v728 = vor.u32 1.1754944e-38, %v727
        %v729 = vsel %vm726, %v728, %v724
        %v730 = vmul.f32 %v378, %v729
        %v731 = vrcp.pop %v643
        %v732 = vmul.f32 %v643, %v731
        %v733 = vsub.f32 1.0, %v732
        %v734 = vmul.f32 %v731, %v733
        %v735 = vadd.f32 %v731, %v734
        %vm736 = vweird.f32 %v643
        %vm737 = vweird.f32 %v731
        %vm738 = vmor %vm736, %vm737
        %v739 = vsel %vm738, %v731, %v735
        %v740 = vand.u32 2147483647, %v643
        %vm741 = vcmp.eq.f32.partialorder %v740, 8.507059e+37
        %v742 = vand.u32 %v643, 2147483648
        %v743 = vor.u32 1.1754944e-38, %v742
        %v744 = vsel %vm741, %v743, %v739
        %v745 = vmul.f32 %v379, %v744
        %v746 = vrcp.pop %v644
        %v747 = vmul.f32 %v644, %v746
        %v748 = vsub.f32 1.0, %v747
        %v749 = vmul.f32 %v746, %v748
        %v750 = vadd.f32 %v746, %v749
        %vm751 = vweird.f32 %v644
        %vm752 = vweird.f32 %v746
        %vm753 = vmor %vm751, %vm752
        %v754 = vsel %vm753, %v746, %v750
        %v755 = vand.u32 2147483647, %v644
        %vm756 = vcmp.eq.f32.partialorder %v755, 8.507059e+37
        %v757 = vand.u32 %v644, 2147483648
        %v758 = vor.u32 1.1754944e-38, %v757
        %v759 = vsel %vm756, %v758, %v754
        %v760 = vmul.f32 %v380, %v759
        %v761 = vrcp.pop %v645
        %v762 = vmul.f32 %v645, %v761
        %v763 = vsub.f32 1.0, %v762
        %v764 = vmul.f32 %v761, %v763
        %v765 = vadd.f32 %v761, %v764
        %vm766 = vweird.f32 %v645
        %vm767 = vweird.f32 %v761
        %vm768 = vmor %vm766, %vm767
        %v769 = vsel %vm768, %v761, %v765
        %v770 = vand.u32 2147483647, %v645
        %vm771 = vcmp.eq.f32.partialorder %v770, 8.507059e+37
        %v772 = vand.u32 %v645, 2147483648
        %v773 = vor.u32 1.1754944e-38, %v772
        %v774 = vsel %vm771, %v773, %v769
        %v775 = vmul.f32 %v381, %v774
        %v776 = vrcp.pop %v646
        %v777 = vmul.f32 %v646, %v776
        %v778 = vsub.f32 1.0, %v777
        %v779 = vmul.f32 %v776, %v778
        %v780 = vadd.f32 %v776, %v779
        %vm781 = vweird.f32 %v646
        %vm782 = vweird.f32 %v776
        %vm783 = vmor %vm781, %vm782
        %v784 = vsel %vm783, %v776, %v780
        %v785 = vand.u32 2147483647, %v646
        %vm786 = vcmp.eq.f32.partialorder %v785, 8.507059e+37
        %v787 = vand.u32 %v646, 2147483648
        %v788 = vor.u32 1.1754944e-38, %v787
        %v789 = vsel %vm786, %v788, %v784
        %v790 = vmul.f32 %v382, %v789
        %v791 = vrcp.pop %v647
        %v792 = vmul.f32 %v647, %v791
        %v793 = vsub.f32 1.0, %v792
        %v794 = vmul.f32 %v791, %v793
        %v795 = vadd.f32 %v791, %v794
        %vm796 = vweird.f32 %v647
        %vm797 = vweird.f32 %v791
        %vm798 = vmor %vm796, %vm797
        %v799 = vsel %vm798, %v791, %v795
        %v800 = vand.u32 2147483647, %v647
        %vm801 = vcmp.eq.f32.partialorder %v800, 8.507059e+37
        %v802 = vand.u32 %v647, 2147483648
        %v803 = vor.u32 1.1754944e-38, %v802
        %v804 = vsel %vm801, %v803, %v799
        %v805 = vmul.f32 %v383, %v804
        %v806 = vrcp.pop %v648
        %v807 = vmul.f32 %v648, %v806
        %v808 = vsub.f32 1.0, %v807
        %v809 = vmul.f32 %v806, %v808
        %v810 = vadd.f32 %v806, %v809
        %vm811 = vweird.f32 %v648
        %vm812 = vweird.f32 %v806
        %vm813 = vmor %vm811, %vm812
        %v814 = vsel %vm813, %v806, %v810
        %v815 = vand.u32 2147483647, %v648
        %vm816 = vcmp.eq.f32.partialorder %v815, 8.507059e+37
        %v817 = vand.u32 %v648, 2147483648
        %v818 = vor.u32 1.1754944e-38, %v817
        %v819 = vsel %vm816, %v818, %v814
        %v820 = vmul.f32 %v384, %v819
        %v821 = vrcp.pop %v649
        %v822 = vmul.f32 %v649, %v821
        %v823 = vsub.f32 1.0, %v822
        %v824 = vmul.f32 %v821, %v823
        %v825 = vadd.f32 %v821, %v824
        %vm826 = vweird.f32 %v649
        %vm827 = vweird.f32 %v821
        %vm828 = vmor %vm826, %vm827
        %v829 = vsel %vm828, %v821, %v825
        %v830 = vand.u32 2147483647, %v649
        %vm831 = vcmp.eq.f32.partialorder %v830, 8.507059e+37
        %v832 = vand.u32 %v649, 2147483648
        %v833 = vor.u32 1.1754944e-38, %v832
        %v834 = vsel %vm831, %v833, %v829
        %v835 = vmul.f32 %v385, %v834
        %v836 = vrcp.pop %v650
        %v837 = vmul.f32 %v650, %v836
        %v838 = vsub.f32 1.0, %v837
        %v839 = vmul.f32 %v836, %v838
        %v840 = vadd.f32 %v836, %v839
        %vm841 = vweird.f32 %v650
        %vm842 = vweird.f32 %v836
        %vm843 = vmor %vm841, %vm842
        %v844 = vsel %vm843, %v836, %v840
        %v845 = vand.u32 2147483647, %v650
        %vm846 = vcmp.eq.f32.partialorder %v845, 8.507059e+37
        %v847 = vand.u32 %v650, 2147483648
        %v848 = vor.u32 1.1754944e-38, %v847
        %v849 = vsel %vm846, %v848, %v844
        %v850 = vmul.f32 %v386, %v849
        %v851 = vrcp.pop %v651
        %v852 = vmul.f32 %v651, %v851
        %v853 = vsub.f32 1.0, %v852
        %v854 = vmul.f32 %v851, %v853
        %v855 = vadd.f32 %v851, %v854
        %vm856 = vweird.f32 %v651
        %vm857 = vweird.f32 %v851
        %vm858 = vmor %vm856, %vm857
        %v859 = vsel %vm858, %v851, %v855
        %v860 = vand.u32 2147483647, %v651
        %vm861 = vcmp.eq.f32.partialorder %v860, 8.507059e+37
        %v862 = vand.u32 %v651, 2147483648
        %v863 = vor.u32 1.1754944e-38, %v862
        %v864 = vsel %vm861, %v863, %v859
        %v865 = vmul.f32 %v387, %v864
        %v866 = vrcp.pop %v652
        %v867 = vmul.f32 %v652, %v866
        %v868 = vsub.f32 1.0, %v867
        %v869 = vmul.f32 %v866, %v868
        %v870 = vadd.f32 %v866, %v869
        %vm871 = vweird.f32 %v652
        %vm872 = vweird.f32 %v866
        %vm873 = vmor %vm871, %vm872
        %v874 = vsel %vm873, %v866, %v870
        %v875 = vand.u32 2147483647, %v652
        %vm876 = vcmp.eq.f32.partialorder %v875, 8.507059e+37
        %v877 = vand.u32 %v652, 2147483648
        %v878 = vor.u32 1.1754944e-38, %v877
        %v879 = vsel %vm876, %v878, %v874
        %v880 = vmul.f32 %v388, %v879
        %v881 = vrcp.pop %v653
        %v882 = vmul.f32 %v653, %v881
        %v883 = vsub.f32 1.0, %v882
        %v884 = vmul.f32 %v881, %v883
        %v885 = vadd.f32 %v881, %v884
        %vm886 = vweird.f32 %v653
        %vm887 = vweird.f32 %v881
        %vm888 = vmor %vm886, %vm887
        %v889 = vsel %vm888, %v881, %v885
        %v890 = vand.u32 2147483647, %v653
        %vm891 = vcmp.eq.f32.partialorder %v890, 8.507059e+37
        %v892 = vand.u32 %v653, 2147483648
        %v893 = vor.u32 1.1754944e-38, %v892
        %v894 = vsel %vm891, %v893, %v889
        %v895 = vmul.f32 %v389, %v894
        %v896 = vrcp.pop %v654
        %v897 = vmul.f32 %v654, %v896
        %v898 = vsub.f32 1.0, %v897
        %v899 = vmul.f32 %v896, %v898
        %v900 = vadd.f32 %v896, %v899
        %vm901 = vweird.f32 %v654
        %vm902 = vweird.f32 %v896
        %vm903 = vmor %vm901, %vm902
        %v904 = vsel %vm903, %v896, %v900
        %v905 = vand.u32 2147483647, %v654
        %vm906 = vcmp.eq.f32.partialorder %v905, 8.507059e+37
        %v907 = vand.u32 %v654, 2147483648
        %v908 = vor.u32 1.1754944e-38, %v907
        %v909 = vsel %vm906, %v908, %v904
        %v910 = vmul.f32 %v390, %v909
        %v911 = vrcp.pop %v655
        %v912 = vmul.f32 %v655, %v911
        %v913 = vsub.f32 1.0, %v912
        %v914 = vmul.f32 %v911, %v913
        %v915 = vadd.f32 %v911, %v914
        %vm916 = vweird.f32 %v655
        %vm917 = vweird.f32 %v911
        %vm918 = vmor %vm916, %vm917
        %v919 = vsel %vm918, %v911, %v915
        %v920 = vand.u32 2147483647, %v655
        %vm921 = vcmp.eq.f32.partialorder %v920, 8.507059e+37
        %v922 = vand.u32 %v655, 2147483648
        %v923 = vor.u32 1.1754944e-38, %v922
        %v924 = vsel %vm921, %v923, %v919
        %v925 = vmul.f32 %v391, %v924
        %v926 = vrcp.pop %v656
        %v927 = vmul.f32 %v656, %v926
        %v928 = vsub.f32 1.0, %v927
        %v929 = vmul.f32 %v926, %v928
        %v930 = vadd.f32 %v926, %v929
        %vm931 = vweird.f32 %v656
        %vm932 = vweird.f32 %v926
        %vm933 = vmor %vm931, %vm932
        %v934 = vsel %vm933, %v926, %v930
        %v935 = vand.u32 2147483647, %v656
        %vm936 = vcmp.eq.f32.partialorder %v935, 8.507059e+37
        %v937 = vand.u32 %v656, 2147483648
        %v938 = vor.u32 1.1754944e-38, %v937
        %v939 = vsel %vm936, %v938, %v934
        %v940 = vmul.f32 %v392, %v939
        %v941 = vrcp.pop %v657
        %v942 = vmul.f32 %v657, %v941
        %v943 = vsub.f32 1.0, %v942
        %v944 = vmul.f32 %v941, %v943
        %v945 = vadd.f32 %v941, %v944
        %vm946 = vweird.f32 %v657
        %vm947 = vweird.f32 %v941
        %vm948 = vmor %vm946, %vm947
        %v949 = vsel %vm948, %v941, %v945
        %v950 = vand.u32 2147483647, %v657
        %vm951 = vcmp.eq.f32.partialorder %v950, 8.507059e+37
        %v952 = vand.u32 %v657, 2147483648
        %v953 = vor.u32 1.1754944e-38, %v952
        %v954 = vsel %vm951, %v953, %v949
        %v955 = vmul.f32 %v393, %v954
        %v956 = vrcp.pop %v658
        %v957 = vmul.f32 %v658, %v956
        %v958 = vsub.f32 1.0, %v957
        %v959 = vmul.f32 %v956, %v958
        %v960 = vadd.f32 %v956, %v959
        %vm961 = vweird.f32 %v658
        %vm962 = vweird.f32 %v956
        %vm963 = vmor %vm961, %vm962
        %v964 = vsel %vm963, %v956, %v960
        %v965 = vand.u32 2147483647, %v658
        %vm966 = vcmp.eq.f32.partialorder %v965, 8.507059e+37
        %v967 = vand.u32 %v658, 2147483648
        %v968 = vor.u32 1.1754944e-38, %v967
        %v969 = vsel %vm966, %v968, %v964
        %v970 = vmul.f32 %v394, %v969
        %v971 = vrcp.pop %v659
        %v972 = vmul.f32 %v659, %v971
        %v973 = vsub.f32 1.0, %v972
        %v974 = vmul.f32 %v971, %v973
        %v975 = vadd.f32 %v971, %v974
        %vm976 = vweird.f32 %v659
        %vm977 = vweird.f32 %v971
        %vm978 = vmor %vm976, %vm977
        %v979 = vsel %vm978, %v971, %v975
        %v980 = vand.u32 2147483647, %v659
        %vm981 = vcmp.eq.f32.partialorder %v980, 8.507059e+37
        %v982 = vand.u32 %v659, 2147483648
        %v983 = vor.u32 1.1754944e-38, %v982
        %v984 = vsel %vm981, %v983, %v979
        %v985 = vmul.f32 %v395, %v984
        %v986 = vrcp.pop %v660
        %v987 = vmul.f32 %v660, %v986
        %v988 = vsub.f32 1.0, %v987
        %v989 = vmul.f32 %v986, %v988
        %v990 = vadd.f32 %v986, %v989
        %vm991 = vweird.f32 %v660
        %vm992 = vweird.f32 %v986
        %vm993 = vmor %vm991, %vm992
        %v994 = vsel %vm993, %v986, %v990
        %v995 = vand.u32 2147483647, %v660
        %vm996 = vcmp.eq.f32.partialorder %v995, 8.507059e+37
        %v997 = vand.u32 %v660, 2147483648
        %v998 = vor.u32 1.1754944e-38, %v997
        %v999 = vsel %vm996, %v998, %v994
        %v1000 = vmul.f32 %v396, %v999
        %v1001 = vrcp.pop %v661
        %v1002 = vmul.f32 %v661, %v1001
        %v1003 = vsub.f32 1.0, %v1002
        %v1004 = vmul.f32 %v1001, %v1003
        %v1005 = vadd.f32 %v1001, %v1004
        %vm1006 = vweird.f32 %v661
        %vm1007 = vweird.f32 %v1001
        %vm1008 = vmor %vm1006, %vm1007
        %v1009 = vsel %vm1008, %v1001, %v1005
        %v1010 = vand.u32 2147483647, %v661
        %vm1011 = vcmp.eq.f32.partialorder %v1010, 8.507059e+37
        %v1012 = vand.u32 %v661, 2147483648
        %v1013 = vor.u32 1.1754944e-38, %v1012
        %v1014 = vsel %vm1011, %v1013, %v1009
        %v1015 = vmul.f32 %v397, %v1014
        %v1016 = vrcp.pop %v662
        %v1017 = vmul.f32 %v662, %v1016
        %v1018 = vsub.f32 1.0, %v1017
        %v1019 = vmul.f32 %v1016, %v1018
        %v1020 = vadd.f32 %v1016, %v1019
        %vm1021 = vweird.f32 %v662
        %vm1022 = vweird.f32 %v1016
        %vm1023 = vmor %vm1021, %vm1022
        %v1024 = vsel %vm1023, %v1016, %v1020
        %v1025 = vand.u32 2147483647, %v662
        %vm1026 = vcmp.eq.f32.partialorder %v1025, 8.507059e+37
        %v1027 = vand.u32 %v662, 2147483648
        %v1028 = vor.u32 1.1754944e-38, %v1027
        %v1029 = vsel %vm1026, %v1028, %v1024
        %v1030 = vmul.f32 %v398, %v1029
        %v1031 = vrcp.pop %v663
        %v1032 = vmul.f32 %v663, %v1031
        %v1033 = vsub.f32 1.0, %v1032
        %v1034 = vmul.f32 %v1031, %v1033
        %v1035 = vadd.f32 %v1031, %v1034
        %vm1036 = vweird.f32 %v663
        %vm1037 = vweird.f32 %v1031
        %vm1038 = vmor %vm1036, %vm1037
        %v1039 = vsel %vm1038, %v1031, %v1035
        %v1040 = vand.u32 2147483647, %v663
        %vm1041 = vcmp.eq.f32.partialorder %v1040, 8.507059e+37
        %v1042 = vand.u32 %v663, 2147483648
        %v1043 = vor.u32 1.1754944e-38, %v1042
        %v1044 = vsel %vm1041, %v1043, %v1039
        %v1045 = vmul.f32 %v399, %v1044
        %v1046 = vrcp.pop %v664
        %v1047 = vmul.f32 %v664, %v1046
        %v1048 = vsub.f32 1.0, %v1047
        %v1049 = vmul.f32 %v1046, %v1048
        %v1050 = vadd.f32 %v1046, %v1049
        %vm1051 = vweird.f32 %v664
        %vm1052 = vweird.f32 %v1046
        %vm1053 = vmor %vm1051, %vm1052
        %v1054 = vsel %vm1053, %v1046, %v1050
        %v1055 = vand.u32 2147483647, %v664
        %vm1056 = vcmp.eq.f32.partialorder %v1055, 8.507059e+37
        %v1057 = vand.u32 %v664, 2147483648
        %v1058 = vor.u32 1.1754944e-38, %v1057
        %v1059 = vsel %vm1056, %v1058, %v1054
        %v1060 = vmul.f32 %v400, %v1059
        %v1061 = vrcp.pop %v665
        %v1062 = vmul.f32 %v665, %v1061
        %v1063 = vsub.f32 1.0, %v1062
        %v1064 = vmul.f32 %v1061, %v1063
        %v1065 = vadd.f32 %v1061, %v1064
        %vm1066 = vweird.f32 %v665
        %vm1067 = vweird.f32 %v1061
        %vm1068 = vmor %vm1066, %vm1067
        %v1069 = vsel %vm1068, %v1061, %v1065
        %v1070 = vand.u32 2147483647, %v665
        %vm1071 = vcmp.eq.f32.partialorder %v1070, 8.507059e+37
        %v1072 = vand.u32 %v665, 2147483648
        %v1073 = vor.u32 1.1754944e-38, %v1072
        %v1074 = vsel %vm1071, %v1073, %v1069
        %v1075 = vmul.f32 %v401, %v1074
        %v1076 = vrcp.pop %v666
        %v1077 = vmul.f32 %v666, %v1076
        %v1078 = vsub.f32 1.0, %v1077
        %v1079 = vmul.f32 %v1076, %v1078
        %v1080 = vadd.f32 %v1076, %v1079
        %vm1081 = vweird.f32 %v666
        %vm1082 = vweird.f32 %v1076
        %vm1083 = vmor %vm1081, %vm1082
        %v1084 = vsel %vm1083, %v1076, %v1080
        %v1085 = vand.u32 2147483647, %v666
        %vm1086 = vcmp.eq.f32.partialorder %v1085, 8.507059e+37
        %v1087 = vand.u32 %v666, 2147483648
        %v1088 = vor.u32 1.1754944e-38, %v1087
        %v1089 = vsel %vm1086, %v1088, %v1084
        %v1090 = vmul.f32 %v402, %v1089
        %v1091 = vrcp.pop %v667
        %v1092 = vmul.f32 %v667, %v1091
        %v1093 = vsub.f32 1.0, %v1092
        %v1094 = vmul.f32 %v1091, %v1093
        %v1095 = vadd.f32 %v1091, %v1094
        %vm1096 = vweird.f32 %v667
        %vm1097 = vweird.f32 %v1091
        %vm1098 = vmor %vm1096, %vm1097
        %v1099 = vsel %vm1098, %v1091, %v1095
        %v1100 = vand.u32 2147483647, %v667
        %vm1101 = vcmp.eq.f32.partialorder %v1100, 8.507059e+37
        %v1102 = vand.u32 %v667, 2147483648
        %v1103 = vor.u32 1.1754944e-38, %v1102
        %v1104 = vsel %vm1101, %v1103, %v1099
        %v1105 = vmul.f32 %v403, %v1104
        %v1106 = vrcp.pop %v668
        %v1107 = vmul.f32 %v668, %v1106
        %v1108 = vsub.f32 1.0, %v1107
        %v1109 = vmul.f32 %v1106, %v1108
        %v1110 = vadd.f32 %v1106, %v1109
        %vm1111 = vweird.f32 %v668
        %vm1112 = vweird.f32 %v1106
        %vm1113 = vmor %vm1111, %vm1112
        %v1114 = vsel %vm1113, %v1106, %v1110
        %v1115 = vand.u32 2147483647, %v668
        %vm1116 = vcmp.eq.f32.partialorder %v1115, 8.507059e+37
        %v1117 = vand.u32 %v668, 2147483648
        %v1118 = vor.u32 1.1754944e-38, %v1117
        %v1119 = vsel %vm1116, %v1118, %v1114
        %v1120 = vmul.f32 %v404, %v1119
        %v1121 = vrcp.pop %v669
        %v1122 = vmul.f32 %v669, %v1121
        %v1123 = vsub.f32 1.0, %v1122
        %v1124 = vmul.f32 %v1121, %v1123
        %v1125 = vadd.f32 %v1121, %v1124
        %vm1126 = vweird.f32 %v669
        %vm1127 = vweird.f32 %v1121
        %vm1128 = vmor %vm1126, %vm1127
        %v1129 = vsel %vm1128, %v1121, %v1125
        %v1130 = vand.u32 2147483647, %v669
        %vm1131 = vcmp.eq.f32.partialorder %v1130, 8.507059e+37
        %v1132 = vand.u32 %v669, 2147483648
        %v1133 = vor.u32 1.1754944e-38, %v1132
        %v1134 = vsel %vm1131, %v1133, %v1129
        %v1135 = vmul.f32 %v405, %v1134
        %v1136 = vrcp.pop %v670
        %v1137 = vmul.f32 %v670, %v1136
        %v1138 = vsub.f32 1.0, %v1137
        %v1139 = vmul.f32 %v1136, %v1138
        %v1140 = vadd.f32 %v1136, %v1139
        %vm1141 = vweird.f32 %v670
        %vm1142 = vweird.f32 %v1136
        %vm1143 = vmor %vm1141, %vm1142
        %v1144 = vsel %vm1143, %v1136, %v1140
        %v1145 = vand.u32 2147483647, %v670
        %vm1146 = vcmp.eq.f32.partialorder %v1145, 8.507059e+37
        %v1147 = vand.u32 %v670, 2147483648
        %v1148 = vor.u32 1.1754944e-38, %v1147
        %v1149 = vsel %vm1146, %v1148, %v1144
        %v1150 = vmul.f32 %v406, %v1149
        %vm1151 = vcmask 31744
        %1152 = vst.msk [vmem:[%s257] sm:$0xff] %vm1151, %v685
        %1153 = vst.msk [vmem:[%s257 + $0x8] sm:$0xff] %vm1151, %v700
        %1154 = vst.msk [vmem:[%s257 + $0x10] sm:$0xff] %vm1151, %v715
        %1155 = vst.msk [vmem:[%s257 + $0x18] sm:$0xff] %vm1151, %v730
        %1156 = vst.msk [vmem:[%s257 + $0x20] sm:$0xff] %vm1151, %v745
        %1157 = vst.msk [vmem:[%s257 + $0x28] sm:$0xff] %vm1151, %v760
        %1158 = vst.msk [vmem:[%s257 + $0x30] sm:$0xff] %vm1151, %v775
        %1159 = vst.msk [vmem:[%s257 + $0x38] sm:$0xff] %vm1151, %v790
        %1160 = vst.msk [vmem:[%s257 + $0x40] sm:$0xff] %vm1151, %v805
        %1161 = vst.msk [vmem:[%s257 + $0x48] sm:$0xff] %vm1151, %v820
        %1162 = vst.msk [vmem:[%s257 + $0x50] sm:$0xff] %vm1151, %v835
        %1163 = vst.msk [vmem:[%s257 + $0x58] sm:$0xff] %vm1151, %v850
        %1164 = vst.msk [vmem:[%s257 + $0x60] sm:$0xff] %vm1151, %v865
        %1165 = vst.msk [vmem:[%s257 + $0x68] sm:$0xff] %vm1151, %v880
        %1166 = vst.msk [vmem:[%s257 + $0x70] sm:$0xff] %vm1151, %v895
        %1167 = vst.msk [vmem:[%s257 + $0x78] sm:$0xff] %vm1151, %v910
        %1168 = vst.msk [vmem:[%s257 + $0x80] sm:$0xff] %vm1151, %v925
        %1169 = vst.msk [vmem:[%s257 + $0x88] sm:$0xff] %vm1151, %v940
        %1170 = vst.msk [vmem:[%s257 + $0x90] sm:$0xff] %vm1151, %v955
        %1171 = vst.msk [vmem:[%s257 + $0x98] sm:$0xff] %vm1151, %v970
        %1172 = vst.msk [vmem:[%s257 + $0xa0] sm:$0xff] %vm1151, %v985
        %1173 = vst.msk [vmem:[%s257 + $0xa8] sm:$0xff] %vm1151, %v1000
        %1174 = vst.msk [vmem:[%s257 + $0xb0] sm:$0xff] %vm1151, %v1015
        %1175 = vst.msk [vmem:[%s257 + $0xb8] sm:$0xff] %vm1151, %v1030
        %1176 = vst.msk [vmem:[%s257 + $0xc0] sm:$0xff] %vm1151, %v1045
        %1177 = vst.msk [vmem:[%s257 + $0xc8] sm:$0xff] %vm1151, %v1060
        %1178 = vst.msk [vmem:[%s257 + $0xd0] sm:$0xff] %vm1151, %v1075
        %1179 = vst.msk [vmem:[%s257 + $0xd8] sm:$0xff] %vm1151, %v1090
        %1180 = vst.msk [vmem:[%s257 + $0xe0] sm:$0xff] %vm1151, %v1105
        %1181 = vst.msk [vmem:[%s257 + $0xe8] sm:$0xff] %vm1151, %v1120
        %1182 = vst.msk [vmem:[%s257 + $0xf0] sm:$0xff] %vm1151, %v1135
        %1183 = vst.msk [vmem:[%s257 + $0xf8] sm:$0xff] %vm1151, %v1150
        %v1184 = vsub.f32 0.0, %v511
        %v1185 = vsub.f32 0.0, %v512
        %v1186 = vsub.f32 0.0, %v513
        %v1187 = vsub.f32 0.0, %v514
        %v1188 = vsub.f32 0.0, %v515
        %v1189 = vsub.f32 0.0, %v516
        %v1190 = vsub.f32 0.0, %v517
        %v1191 = vsub.f32 0.0, %v518
        %v1192 = vsub.f32 0.0, %v519
        %v1193 = vsub.f32 0.0, %v520
        %v1194 = vsub.f32 0.0, %v521
        %v1195 = vsub.f32 0.0, %v522
        %v1196 = vsub.f32 0.0, %v523
        %v1197 = vsub.f32 0.0, %v524
        %v1198 = vsub.f32 0.0, %v525
        %v1199 = vsub.f32 0.0, %v526
        %v1200 = vsub.f32 0.0, %v527
        %v1201 = vsub.f32 0.0, %v528
        %v1202 = vsub.f32 0.0, %v529
        %v1203 = vsub.f32 0.0, %v530
        %v1204 = vsub.f32 0.0, %v531
        %v1205 = vsub.f32 0.0, %v532
        %v1206 = vsub.f32 0.0, %v533
        %v1207 = vsub.f32 0.0, %v534
        %v1208 = vsub.f32 0.0, %v535
        %v1209 = vsub.f32 0.0, %v536
        %v1210 = vsub.f32 0.0, %v537
        %v1211 = vsub.f32 0.0, %v538
        %v1212 = vsub.f32 0.0, %v539
        %v1213 = vsub.f32 0.0, %v540
        %v1214 = vsub.f32 0.0, %v541
        %v1215 = vsub.f32 0.0, %v542
        %v1216 = vmul.f32 %v1184, 1.442695
        %v1217 = vpow.pop %v1216
        %v1218 = vmul.f32 %v1185, 1.442695
        %v1219 = vpow.pop %v1218
        %v1220 = vmul.f32 %v1186, 1.442695
        %v1221 = vpow.pop %v1220
        %v1222 = vmul.f32 %v1187, 1.442695
        %v1223 = vpow.pop %v1222
        %v1224 = vmul.f32 %v1188, 1.442695
        %v1225 = vpow.pop %v1224
        %v1226 = vmul.f32 %v1189, 1.442695
        %v1227 = vpow.pop %v1226
        %v1228 = vmul.f32 %v1190, 1.442695
        %v1229 = vpow.pop %v1228
        %v1230 = vmul.f32 %v1191, 1.442695
        %v1231 = vpow.pop %v1230
        %v1232 = vmul.f32 %v1192, 1.442695
        %v1233 = vpow.pop %v1232
        %v1234 = vmul.f32 %v1193, 1.442695
        %v1235 = vpow.pop %v1234
        %v1236 = vmul.f32 %v1194, 1.442695
        %v1237 = vpow.pop %v1236
        %v1238 = vmul.f32 %v1195, 1.442695
        %v1239 = vpow.pop %v1238
        %v1240 = vmul.f32 %v1196, 1.442695
        %v1241 = vpow.pop %v1240
        %v1242 = vmul.f32 %v1197, 1.442695
        %v1243 = vpow.pop %v1242
        %v1244 = vmul.f32 %v1198, 1.442695
        %v1245 = vpow.pop %v1244
        %v1246 = vmul.f32 %v1199, 1.442695
        %v1247 = vpow.pop %v1246
        %v1248 = vmul.f32 %v1200, 1.442695
        %v1249 = vpow.pop %v1248
        %v1250 = vmul.f32 %v1201, 1.442695
        %v1251 = vpow.pop %v1250
        %v1252 = vmul.f32 %v1202, 1.442695
        %v1253 = vpow.pop %v1252
        %v1254 = vmul.f32 %v1203, 1.442695
        %v1255 = vpow.pop %v1254
        %v1256 = vmul.f32 %v1204, 1.442695
        %v1257 = vpow.pop %v1256
        %v1258 = vmul.f32 %v1205, 1.442695
        %v1259 = vpow.pop %v1258
        %v1260 = vmul.f32 %v1206, 1.442695
        %v1261 = vpow.pop %v1260
        %v1262 = vmul.f32 %v1207, 1.442695
        %v1263 = vpow.pop %v1262
        %v1264 = vmul.f32 %v1208, 1.442695
        %v1265 = vpow.pop %v1264
        %v1266 = vmul.f32 %v1209, 1.442695
        %v1267 = vpow.pop %v1266
        %v1268 = vmul.f32 %v1210, 1.442695
        %v1269 = vpow.pop %v1268
        %v1270 = vmul.f32 %v1211, 1.442695
        %v1271 = vpow.pop %v1270
        %v1272 = vmul.f32 %v1212, 1.442695
        %v1273 = vpow.pop %v1272
        %v1274 = vmul.f32 %v1213, 1.442695
        %v1275 = vpow.pop %v1274
        %v1276 = vmul.f32 %v1214, 1.442695
        %v1277 = vpow.pop %v1276
        %v1278 = vmul.f32 %v1215, 1.442695
        %v1279 = vpow.pop %v1278
        %v1280 = vadd.f32 %v1217, 1.0
        %v1281 = vadd.f32 %v1219, 1.0
        %v1282 = vadd.f32 %v1221, 1.0
        %v1283 = vadd.f32 %v1223, 1.0
        %v1284 = vadd.f32 %v1225, 1.0
        %v1285 = vadd.f32 %v1227, 1.0
        %v1286 = vadd.f32 %v1229, 1.0
        %v1287 = vadd.f32 %v1231, 1.0
        %v1288 = vadd.f32 %v1233, 1.0
        %v1289 = vadd.f32 %v1235, 1.0
        %v1290 = vadd.f32 %v1237, 1.0
        %v1291 = vadd.f32 %v1239, 1.0
        %v1292 = vadd.f32 %v1241, 1.0
        %v1293 = vadd.f32 %v1243, 1.0
        %v1294 = vadd.f32 %v1245, 1.0
        %v1295 = vadd.f32 %v1247, 1.0
        %v1296 = vadd.f32 %v1249, 1.0
        %v1297 = vadd.f32 %v1251, 1.0
        %v1298 = vadd.f32 %v1253, 1.0
        %v1299 = vadd.f32 %v1255, 1.0
        %v1300 = vadd.f32 %v1257, 1.0
        %v1301 = vadd.f32 %v1259, 1.0
        %v1302 = vadd.f32 %v1261, 1.0
        %v1303 = vadd.f32 %v1263, 1.0
        %v1304 = vadd.f32 %v1265, 1.0
        %v1305 = vadd.f32 %v1267, 1.0
        %v1306 = vadd.f32 %v1269, 1.0
        %v1307 = vadd.f32 %v1271, 1.0
        %v1308 = vadd.f32 %v1273, 1.0
        %v1309 = vadd.f32 %v1275, 1.0
        %v1310 = vadd.f32 %v1277, 1.0
        %v1311 = vadd.f32 %v1279, 1.0
        %v1312 = vrcp.pop %v1280
        %v1313 = vmul.f32 %v1280, %v1312
        %v1314 = vsub.f32 1.0, %v1313
        %v1315 = vmul.f32 %v1312, %v1314
        %v1316 = vadd.f32 %v1312, %v1315
        %vm1317 = vweird.f32 %v1280
        %vm1318 = vweird.f32 %v1312
        %vm1319 = vmor %vm1317, %vm1318
        %v1320 = vsel %vm1319, %v1312, %v1316
        %v1321 = vand.u32 2147483647, %v1280
        %vm1322 = vcmp.eq.f32.partialorder %v1321, 8.507059e+37
        %v1323 = vand.u32 %v1280, 2147483648
        %v1324 = vor.u32 1.1754944e-38, %v1323
        %v1325 = vsel %vm1322, %v1324, %v1320
        %v1326 = vmul.f32 %v511, %v1325
        %v1327 = vrcp.pop %v1281
        %v1328 = vmul.f32 %v1281, %v1327
        %v1329 = vsub.f32 1.0, %v1328
        %v1330 = vmul.f32 %v1327, %v1329
        %v1331 = vadd.f32 %v1327, %v1330
        %vm1332 = vweird.f32 %v1281
        %vm1333 = vweird.f32 %v1327
        %vm1334 = vmor %vm1332, %vm1333
        %v1335 = vsel %vm1334, %v1327, %v1331
        %v1336 = vand.u32 2147483647, %v1281
        %vm1337 = vcmp.eq.f32.partialorder %v1336, 8.507059e+37
        %v1338 = vand.u32 %v1281, 2147483648
        %v1339 = vor.u32 1.1754944e-38, %v1338
        %v1340 = vsel %vm1337, %v1339, %v1335
        %v1341 = vmul.f32 %v512, %v1340
        %v1342 = vrcp.pop %v1282
        %v1343 = vmul.f32 %v1282, %v1342
        %v1344 = vsub.f32 1.0, %v1343
        %v1345 = vmul.f32 %v1342, %v1344
        %v1346 = vadd.f32 %v1342, %v1345
        %vm1347 = vweird.f32 %v1282
        %vm1348 = vweird.f32 %v1342
        %vm1349 = vmor %vm1347, %vm1348
        %v1350 = vsel %vm1349, %v1342, %v1346
        %v1351 = vand.u32 2147483647, %v1282
        %vm1352 = vcmp.eq.f32.partialorder %v1351, 8.507059e+37
        %v1353 = vand.u32 %v1282, 2147483648
        %v1354 = vor.u32 1.1754944e-38, %v1353
        %v1355 = vsel %vm1352, %v1354, %v1350
        %v1356 = vmul.f32 %v513, %v1355
        %v1357 = vrcp.pop %v1283
        %v1358 = vmul.f32 %v1283, %v1357
        %v1359 = vsub.f32 1.0, %v1358
        %v1360 = vmul.f32 %v1357, %v1359
        %v1361 = vadd.f32 %v1357, %v1360
        %vm1362 = vweird.f32 %v1283
        %vm1363 = vweird.f32 %v1357
        %vm1364 = vmor %vm1362, %vm1363
        %v1365 = vsel %vm1364, %v1357, %v1361
        %v1366 = vand.u32 2147483647, %v1283
        %vm1367 = vcmp.eq.f32.partialorder %v1366, 8.507059e+37
        %v1368 = vand.u32 %v1283, 2147483648
        %v1369 = vor.u32 1.1754944e-38, %v1368
        %v1370 = vsel %vm1367, %v1369, %v1365
        %v1371 = vmul.f32 %v514, %v1370
        %v1372 = vrcp.pop %v1284
        %v1373 = vmul.f32 %v1284, %v1372
        %v1374 = vsub.f32 1.0, %v1373
        %v1375 = vmul.f32 %v1372, %v1374
        %v1376 = vadd.f32 %v1372, %v1375
        %vm1377 = vweird.f32 %v1284
        %vm1378 = vweird.f32 %v1372
        %vm1379 = vmor %vm1377, %vm1378
        %v1380 = vsel %vm1379, %v1372, %v1376
        %v1381 = vand.u32 2147483647, %v1284
        %vm1382 = vcmp.eq.f32.partialorder %v1381, 8.507059e+37
        %v1383 = vand.u32 %v1284, 2147483648
        %v1384 = vor.u32 1.1754944e-38, %v1383
        %v1385 = vsel %vm1382, %v1384, %v1380
        %v1386 = vmul.f32 %v515, %v1385
        %v1387 = vrcp.pop %v1285
        %v1388 = vmul.f32 %v1285, %v1387
        %v1389 = vsub.f32 1.0, %v1388
        %v1390 = vmul.f32 %v1387, %v1389
        %v1391 = vadd.f32 %v1387, %v1390
        %vm1392 = vweird.f32 %v1285
        %vm1393 = vweird.f32 %v1387
        %vm1394 = vmor %vm1392, %vm1393
        %v1395 = vsel %vm1394, %v1387, %v1391
        %v1396 = vand.u32 2147483647, %v1285
        %vm1397 = vcmp.eq.f32.partialorder %v1396, 8.507059e+37
        %v1398 = vand.u32 %v1285, 2147483648
        %v1399 = vor.u32 1.1754944e-38, %v1398
        %v1400 = vsel %vm1397, %v1399, %v1395
        %v1401 = vmul.f32 %v516, %v1400
        %v1402 = vrcp.pop %v1286
        %v1403 = vmul.f32 %v1286, %v1402
        %v1404 = vsub.f32 1.0, %v1403
        %v1405 = vmul.f32 %v1402, %v1404
        %v1406 = vadd.f32 %v1402, %v1405
        %vm1407 = vweird.f32 %v1286
        %vm1408 = vweird.f32 %v1402
        %vm1409 = vmor %vm1407, %vm1408
        %v1410 = vsel %vm1409, %v1402, %v1406
        %v1411 = vand.u32 2147483647, %v1286
        %vm1412 = vcmp.eq.f32.partialorder %v1411, 8.507059e+37
        %v1413 = vand.u32 %v1286, 2147483648
        %v1414 = vor.u32 1.1754944e-38, %v1413
        %v1415 = vsel %vm1412, %v1414, %v1410
        %v1416 = vmul.f32 %v517, %v1415
        %v1417 = vrcp.pop %v1287
        %v1418 = vmul.f32 %v1287, %v1417
        %v1419 = vsub.f32 1.0, %v1418
        %v1420 = vmul.f32 %v1417, %v1419
        %v1421 = vadd.f32 %v1417, %v1420
        %vm1422 = vweird.f32 %v1287
        %vm1423 = vweird.f32 %v1417
        %vm1424 = vmor %vm1422, %vm1423
        %v1425 = vsel %vm1424, %v1417, %v1421
        %v1426 = vand.u32 2147483647, %v1287
        %vm1427 = vcmp.eq.f32.partialorder %v1426, 8.507059e+37
        %v1428 = vand.u32 %v1287, 2147483648
        %v1429 = vor.u32 1.1754944e-38, %v1428
        %v1430 = vsel %vm1427, %v1429, %v1425
        %v1431 = vmul.f32 %v518, %v1430
        %v1432 = vrcp.pop %v1288
        %v1433 = vmul.f32 %v1288, %v1432
        %v1434 = vsub.f32 1.0, %v1433
        %v1435 = vmul.f32 %v1432, %v1434
        %v1436 = vadd.f32 %v1432, %v1435
        %vm1437 = vweird.f32 %v1288
        %vm1438 = vweird.f32 %v1432
        %vm1439 = vmor %vm1437, %vm1438
        %v1440 = vsel %vm1439, %v1432, %v1436
        %v1441 = vand.u32 2147483647, %v1288
        %vm1442 = vcmp.eq.f32.partialorder %v1441, 8.507059e+37
        %v1443 = vand.u32 %v1288, 2147483648
        %v1444 = vor.u32 1.1754944e-38, %v1443
        %v1445 = vsel %vm1442, %v1444, %v1440
        %v1446 = vmul.f32 %v519, %v1445
        %v1447 = vrcp.pop %v1289
        %v1448 = vmul.f32 %v1289, %v1447
        %v1449 = vsub.f32 1.0, %v1448
        %v1450 = vmul.f32 %v1447, %v1449
        %v1451 = vadd.f32 %v1447, %v1450
        %vm1452 = vweird.f32 %v1289
        %vm1453 = vweird.f32 %v1447
        %vm1454 = vmor %vm1452, %vm1453
        %v1455 = vsel %vm1454, %v1447, %v1451
        %v1456 = vand.u32 2147483647, %v1289
        %vm1457 = vcmp.eq.f32.partialorder %v1456, 8.507059e+37
        %v1458 = vand.u32 %v1289, 2147483648
        %v1459 = vor.u32 1.1754944e-38, %v1458
        %v1460 = vsel %vm1457, %v1459, %v1455
        %v1461 = vmul.f32 %v520, %v1460
        %v1462 = vrcp.pop %v1290
        %v1463 = vmul.f32 %v1290, %v1462
        %v1464 = vsub.f32 1.0, %v1463
        %v1465 = vmul.f32 %v1462, %v1464
        %v1466 = vadd.f32 %v1462, %v1465
        %vm1467 = vweird.f32 %v1290
        %vm1468 = vweird.f32 %v1462
        %vm1469 = vmor %vm1467, %vm1468
        %v1470 = vsel %vm1469, %v1462, %v1466
        %v1471 = vand.u32 2147483647, %v1290
        %vm1472 = vcmp.eq.f32.partialorder %v1471, 8.507059e+37
        %v1473 = vand.u32 %v1290, 2147483648
        %v1474 = vor.u32 1.1754944e-38, %v1473
        %v1475 = vsel %vm1472, %v1474, %v1470
        %v1476 = vmul.f32 %v521, %v1475
        %v1477 = vrcp.pop %v1291
        %v1478 = vmul.f32 %v1291, %v1477
        %v1479 = vsub.f32 1.0, %v1478
        %v1480 = vmul.f32 %v1477, %v1479
        %v1481 = vadd.f32 %v1477, %v1480
        %vm1482 = vweird.f32 %v1291
        %vm1483 = vweird.f32 %v1477
        %vm1484 = vmor %vm1482, %vm1483
        %v1485 = vsel %vm1484, %v1477, %v1481
        %v1486 = vand.u32 2147483647, %v1291
        %vm1487 = vcmp.eq.f32.partialorder %v1486, 8.507059e+37
        %v1488 = vand.u32 %v1291, 2147483648
        %v1489 = vor.u32 1.1754944e-38, %v1488
        %v1490 = vsel %vm1487, %v1489, %v1485
        %v1491 = vmul.f32 %v522, %v1490
        %v1492 = vrcp.pop %v1292
        %v1493 = vmul.f32 %v1292, %v1492
        %v1494 = vsub.f32 1.0, %v1493
        %v1495 = vmul.f32 %v1492, %v1494
        %v1496 = vadd.f32 %v1492, %v1495
        %vm1497 = vweird.f32 %v1292
        %vm1498 = vweird.f32 %v1492
        %vm1499 = vmor %vm1497, %vm1498
        %v1500 = vsel %vm1499, %v1492, %v1496
        %v1501 = vand.u32 2147483647, %v1292
        %vm1502 = vcmp.eq.f32.partialorder %v1501, 8.507059e+37
        %v1503 = vand.u32 %v1292, 2147483648
        %v1504 = vor.u32 1.1754944e-38, %v1503
        %v1505 = vsel %vm1502, %v1504, %v1500
        %v1506 = vmul.f32 %v523, %v1505
        %v1507 = vrcp.pop %v1293
        %v1508 = vmul.f32 %v1293, %v1507
        %v1509 = vsub.f32 1.0, %v1508
        %v1510 = vmul.f32 %v1507, %v1509
        %v1511 = vadd.f32 %v1507, %v1510
        %vm1512 = vweird.f32 %v1293
        %vm1513 = vweird.f32 %v1507
        %vm1514 = vmor %vm1512, %vm1513
        %v1515 = vsel %vm1514, %v1507, %v1511
        %v1516 = vand.u32 2147483647, %v1293
        %vm1517 = vcmp.eq.f32.partialorder %v1516, 8.507059e+37
        %v1518 = vand.u32 %v1293, 2147483648
        %v1519 = vor.u32 1.1754944e-38, %v1518
        %v1520 = vsel %vm1517, %v1519, %v1515
        %v1521 = vmul.f32 %v524, %v1520
        %v1522 = vrcp.pop %v1294
        %v1523 = vmul.f32 %v1294, %v1522
        %v1524 = vsub.f32 1.0, %v1523
        %v1525 = vmul.f32 %v1522, %v1524
        %v1526 = vadd.f32 %v1522, %v1525
        %vm1527 = vweird.f32 %v1294
        %vm1528 = vweird.f32 %v1522
        %vm1529 = vmor %vm1527, %vm1528
        %v1530 = vsel %vm1529, %v1522, %v1526
        %v1531 = vand.u32 2147483647, %v1294
        %vm1532 = vcmp.eq.f32.partialorder %v1531, 8.507059e+37
        %v1533 = vand.u32 %v1294, 2147483648
        %v1534 = vor.u32 1.1754944e-38, %v1533
        %v1535 = vsel %vm1532, %v1534, %v1530
        %v1536 = vmul.f32 %v525, %v1535
        %v1537 = vrcp.pop %v1295
        %v1538 = vmul.f32 %v1295, %v1537
        %v1539 = vsub.f32 1.0, %v1538
        %v1540 = vmul.f32 %v1537, %v1539
        %v1541 = vadd.f32 %v1537, %v1540
        %vm1542 = vweird.f32 %v1295
        %vm1543 = vweird.f32 %v1537
        %vm1544 = vmor %vm1542, %vm1543
        %v1545 = vsel %vm1544, %v1537, %v1541
        %v1546 = vand.u32 2147483647, %v1295
        %vm1547 = vcmp.eq.f32.partialorder %v1546, 8.507059e+37
        %v1548 = vand.u32 %v1295, 2147483648
        %v1549 = vor.u32 1.1754944e-38, %v1548
        %v1550 = vsel %vm1547, %v1549, %v1545
        %v1551 = vmul.f32 %v526, %v1550
        %v1552 = vrcp.pop %v1296
        %v1553 = vmul.f32 %v1296, %v1552
        %v1554 = vsub.f32 1.0, %v1553
        %v1555 = vmul.f32 %v1552, %v1554
        %v1556 = vadd.f32 %v1552, %v1555
        %vm1557 = vweird.f32 %v1296
        %vm1558 = vweird.f32 %v1552
        %vm1559 = vmor %vm1557, %vm1558
        %v1560 = vsel %vm1559, %v1552, %v1556
        %v1561 = vand.u32 2147483647, %v1296
        %vm1562 = vcmp.eq.f32.partialorder %v1561, 8.507059e+37
        %v1563 = vand.u32 %v1296, 2147483648
        %v1564 = vor.u32 1.1754944e-38, %v1563
        %v1565 = vsel %vm1562, %v1564, %v1560
        %v1566 = vmul.f32 %v527, %v1565
        %v1567 = vrcp.pop %v1297
        %v1568 = vmul.f32 %v1297, %v1567
        %v1569 = vsub.f32 1.0, %v1568
        %v1570 = vmul.f32 %v1567, %v1569
        %v1571 = vadd.f32 %v1567, %v1570
        %vm1572 = vweird.f32 %v1297
        %vm1573 = vweird.f32 %v1567
        %vm1574 = vmor %vm1572, %vm1573
        %v1575 = vsel %vm1574, %v1567, %v1571
        %v1576 = vand.u32 2147483647, %v1297
        %vm1577 = vcmp.eq.f32.partialorder %v1576, 8.507059e+37
        %v1578 = vand.u32 %v1297, 2147483648
        %v1579 = vor.u32 1.1754944e-38, %v1578
        %v1580 = vsel %vm1577, %v1579, %v1575
        %v1581 = vmul.f32 %v528, %v1580
        %v1582 = vrcp.pop %v1298
        %v1583 = vmul.f32 %v1298, %v1582
        %v1584 = vsub.f32 1.0, %v1583
        %v1585 = vmul.f32 %v1582, %v1584
        %v1586 = vadd.f32 %v1582, %v1585
        %vm1587 = vweird.f32 %v1298
        %vm1588 = vweird.f32 %v1582
        %vm1589 = vmor %vm1587, %vm1588
        %v1590 = vsel %vm1589, %v1582, %v1586
        %v1591 = vand.u32 2147483647, %v1298
        %vm1592 = vcmp.eq.f32.partialorder %v1591, 8.507059e+37
        %v1593 = vand.u32 %v1298, 2147483648
        %v1594 = vor.u32 1.1754944e-38, %v1593
        %v1595 = vsel %vm1592, %v1594, %v1590
        %v1596 = vmul.f32 %v529, %v1595
        %v1597 = vrcp.pop %v1299
        %v1598 = vmul.f32 %v1299, %v1597
        %v1599 = vsub.f32 1.0, %v1598
        %v1600 = vmul.f32 %v1597, %v1599
        %v1601 = vadd.f32 %v1597, %v1600
        %vm1602 = vweird.f32 %v1299
        %vm1603 = vweird.f32 %v1597
        %vm1604 = vmor %vm1602, %vm1603
        %v1605 = vsel %vm1604, %v1597, %v1601
        %v1606 = vand.u32 2147483647, %v1299
        %vm1607 = vcmp.eq.f32.partialorder %v1606, 8.507059e+37
        %v1608 = vand.u32 %v1299, 2147483648
        %v1609 = vor.u32 1.1754944e-38, %v1608
        %v1610 = vsel %vm1607, %v1609, %v1605
        %v1611 = vmul.f32 %v530, %v1610
        %v1612 = vrcp.pop %v1300
        %v1613 = vmul.f32 %v1300, %v1612
        %v1614 = vsub.f32 1.0, %v1613
        %v1615 = vmul.f32 %v1612, %v1614
        %v1616 = vadd.f32 %v1612, %v1615
        %vm1617 = vweird.f32 %v1300
        %vm1618 = vweird.f32 %v1612
        %vm1619 = vmor %vm1617, %vm1618
        %v1620 = vsel %vm1619, %v1612, %v1616
        %v1621 = vand.u32 2147483647, %v1300
        %vm1622 = vcmp.eq.f32.partialorder %v1621, 8.507059e+37
        %v1623 = vand.u32 %v1300, 2147483648
        %v1624 = vor.u32 1.1754944e-38, %v1623
        %v1625 = vsel %vm1622, %v1624, %v1620
        %v1626 = vmul.f32 %v531, %v1625
        %v1627 = vrcp.pop %v1301
        %v1628 = vmul.f32 %v1301, %v1627
        %v1629 = vsub.f32 1.0, %v1628
        %v1630 = vmul.f32 %v1627, %v1629
        %v1631 = vadd.f32 %v1627, %v1630
        %vm1632 = vweird.f32 %v1301
        %vm1633 = vweird.f32 %v1627
        %vm1634 = vmor %vm1632, %vm1633
        %v1635 = vsel %vm1634, %v1627, %v1631
        %v1636 = vand.u32 2147483647, %v1301
        %vm1637 = vcmp.eq.f32.partialorder %v1636, 8.507059e+37
        %v1638 = vand.u32 %v1301, 2147483648
        %v1639 = vor.u32 1.1754944e-38, %v1638
        %v1640 = vsel %vm1637, %v1639, %v1635
        %v1641 = vmul.f32 %v532, %v1640
        %v1642 = vrcp.pop %v1302
        %v1643 = vmul.f32 %v1302, %v1642
        %v1644 = vsub.f32 1.0, %v1643
        %v1645 = vmul.f32 %v1642, %v1644
        %v1646 = vadd.f32 %v1642, %v1645
        %vm1647 = vweird.f32 %v1302
        %vm1648 = vweird.f32 %v1642
        %vm1649 = vmor %vm1647, %vm1648
        %v1650 = vsel %vm1649, %v1642, %v1646
        %v1651 = vand.u32 2147483647, %v1302
        %vm1652 = vcmp.eq.f32.partialorder %v1651, 8.507059e+37
        %v1653 = vand.u32 %v1302, 2147483648
        %v1654 = vor.u32 1.1754944e-38, %v1653
        %v1655 = vsel %vm1652, %v1654, %v1650
        %v1656 = vmul.f32 %v533, %v1655
        %v1657 = vrcp.pop %v1303
        %v1658 = vmul.f32 %v1303, %v1657
        %v1659 = vsub.f32 1.0, %v1658
        %v1660 = vmul.f32 %v1657, %v1659
        %v1661 = vadd.f32 %v1657, %v1660
        %vm1662 = vweird.f32 %v1303
        %vm1663 = vweird.f32 %v1657
        %vm1664 = vmor %vm1662, %vm1663
        %v1665 = vsel %vm1664, %v1657, %v1661
        %v1666 = vand.u32 2147483647, %v1303
        %vm1667 = vcmp.eq.f32.partialorder %v1666, 8.507059e+37
        %v1668 = vand.u32 %v1303, 2147483648
        %v1669 = vor.u32 1.1754944e-38, %v1668
        %v1670 = vsel %vm1667, %v1669, %v1665
        %v1671 = vmul.f32 %v534, %v1670
        %v1672 = vrcp.pop %v1304
        %v1673 = vmul.f32 %v1304, %v1672
        %v1674 = vsub.f32 1.0, %v1673
        %v1675 = vmul.f32 %v1672, %v1674
        %v1676 = vadd.f32 %v1672, %v1675
        %vm1677 = vweird.f32 %v1304
        %vm1678 = vweird.f32 %v1672
        %vm1679 = vmor %vm1677, %vm1678
        %v1680 = vsel %vm1679, %v1672, %v1676
        %v1681 = vand.u32 2147483647, %v1304
        %vm1682 = vcmp.eq.f32.partialorder %v1681, 8.507059e+37
        %v1683 = vand.u32 %v1304, 2147483648
        %v1684 = vor.u32 1.1754944e-38, %v1683
        %v1685 = vsel %vm1682, %v1684, %v1680
        %v1686 = vmul.f32 %v535, %v1685
        %v1687 = vrcp.pop %v1305
        %v1688 = vmul.f32 %v1305, %v1687
        %v1689 = vsub.f32 1.0, %v1688
        %v1690 = vmul.f32 %v1687, %v1689
        %v1691 = vadd.f32 %v1687, %v1690
        %vm1692 = vweird.f32 %v1305
        %vm1693 = vweird.f32 %v1687
        %vm1694 = vmor %vm1692, %vm1693
        %v1695 = vsel %vm1694, %v1687, %v1691
        %v1696 = vand.u32 2147483647, %v1305
        %vm1697 = vcmp.eq.f32.partialorder %v1696, 8.507059e+37
        %v1698 = vand.u32 %v1305, 2147483648
        %v1699 = vor.u32 1.1754944e-38, %v1698
        %v1700 = vsel %vm1697, %v1699, %v1695
        %v1701 = vmul.f32 %v536, %v1700
        %v1702 = vrcp.pop %v1306
        %v1703 = vmul.f32 %v1306, %v1702
        %v1704 = vsub.f32 1.0, %v1703
        %v1705 = vmul.f32 %v1702, %v1704
        %v1706 = vadd.f32 %v1702, %v1705
        %vm1707 = vweird.f32 %v1306
        %vm1708 = vweird.f32 %v1702
        %vm1709 = vmor %vm1707, %vm1708
        %v1710 = vsel %vm1709, %v1702, %v1706
        %v1711 = vand.u32 2147483647, %v1306
        %vm1712 = vcmp.eq.f32.partialorder %v1711, 8.507059e+37
        %v1713 = vand.u32 %v1306, 2147483648
        %v1714 = vor.u32 1.1754944e-38, %v1713
        %v1715 = vsel %vm1712, %v1714, %v1710
        %v1716 = vmul.f32 %v537, %v1715
        %v1717 = vrcp.pop %v1307
        %v1718 = vmul.f32 %v1307, %v1717
        %v1719 = vsub.f32 1.0, %v1718
        %v1720 = vmul.f32 %v1717, %v1719
        %v1721 = vadd.f32 %v1717, %v1720
        %vm1722 = vweird.f32 %v1307
        %vm1723 = vweird.f32 %v1717
        %vm1724 = vmor %vm1722, %vm1723
        %v1725 = vsel %vm1724, %v1717, %v1721
        %v1726 = vand.u32 2147483647, %v1307
        %vm1727 = vcmp.eq.f32.partialorder %v1726, 8.507059e+37
        %v1728 = vand.u32 %v1307, 2147483648
        %v1729 = vor.u32 1.1754944e-38, %v1728
        %v1730 = vsel %vm1727, %v1729, %v1725
        %v1731 = vmul.f32 %v538, %v1730
        %v1732 = vrcp.pop %v1308
        %v1733 = vmul.f32 %v1308, %v1732
        %v1734 = vsub.f32 1.0, %v1733
        %v1735 = vmul.f32 %v1732, %v1734
        %v1736 = vadd.f32 %v1732, %v1735
        %vm1737 = vweird.f32 %v1308
        %vm1738 = vweird.f32 %v1732
        %vm1739 = vmor %vm1737, %vm1738
        %v1740 = vsel %vm1739, %v1732, %v1736
        %v1741 = vand.u32 2147483647, %v1308
        %vm1742 = vcmp.eq.f32.partialorder %v1741, 8.507059e+37
        %v1743 = vand.u32 %v1308, 2147483648
        %v1744 = vor.u32 1.1754944e-38, %v1743
        %v1745 = vsel %vm1742, %v1744, %v1740
        %v1746 = vmul.f32 %v539, %v1745
        %v1747 = vrcp.pop %v1309
        %v1748 = vmul.f32 %v1309, %v1747
        %v1749 = vsub.f32 1.0, %v1748
        %v1750 = vmul.f32 %v1747, %v1749
        %v1751 = vadd.f32 %v1747, %v1750
        %vm1752 = vweird.f32 %v1309
        %vm1753 = vweird.f32 %v1747
        %vm1754 = vmor %vm1752, %vm1753
        %v1755 = vsel %vm1754, %v1747, %v1751
        %v1756 = vand.u32 2147483647, %v1309
        %vm1757 = vcmp.eq.f32.partialorder %v1756, 8.507059e+37
        %v1758 = vand.u32 %v1309, 2147483648
        %v1759 = vor.u32 1.1754944e-38, %v1758
        %v1760 = vsel %vm1757, %v1759, %v1755
        %v1761 = vmul.f32 %v540, %v1760
        %v1762 = vrcp.pop %v1310
        %v1763 = vmul.f32 %v1310, %v1762
        %v1764 = vsub.f32 1.0, %v1763
        %v1765 = vmul.f32 %v1762, %v1764
        %v1766 = vadd.f32 %v1762, %v1765
        %vm1767 = vweird.f32 %v1310
        %vm1768 = vweird.f32 %v1762
        %vm1769 = vmor %vm1767, %vm1768
        %v1770 = vsel %vm1769, %v1762, %v1766
        %v1771 = vand.u32 2147483647, %v1310
        %vm1772 = vcmp.eq.f32.partialorder %v1771, 8.507059e+37
        %v1773 = vand.u32 %v1310, 2147483648
        %v1774 = vor.u32 1.1754944e-38, %v1773
        %v1775 = vsel %vm1772, %v1774, %v1770
        %v1776 = vmul.f32 %v541, %v1775
        %v1777 = vrcp.pop %v1311
        %v1778 = vmul.f32 %v1311, %v1777
        %v1779 = vsub.f32 1.0, %v1778
        %v1780 = vmul.f32 %v1777, %v1779
        %v1781 = vadd.f32 %v1777, %v1780
        %vm1782 = vweird.f32 %v1311
        %vm1783 = vweird.f32 %v1777
        %vm1784 = vmor %vm1782, %vm1783
        %v1785 = vsel %vm1784, %v1777, %v1781
        %v1786 = vand.u32 2147483647, %v1311
        %vm1787 = vcmp.eq.f32.partialorder %v1786, 8.507059e+37
        %v1788 = vand.u32 %v1311, 2147483648
        %v1789 = vor.u32 1.1754944e-38, %v1788
        %v1790 = vsel %vm1787, %v1789, %v1785
        %v1791 = vmul.f32 %v542, %v1790
        %s1792 = scalar_lea.vmem %s257, 256 [#allocation2]
        %1793 = vst.msk [vmem:[%s1792] sm:$0xff] %vm1151, %v1326
        %1794 = vst.msk [vmem:[%s1792 + $0x8] sm:$0xff] %vm1151, %v1341
        %1795 = vst.msk [vmem:[%s1792 + $0x10] sm:$0xff] %vm1151, %v1356
        %1796 = vst.msk [vmem:[%s1792 + $0x18] sm:$0xff] %vm1151, %v1371
        %1797 = vst.msk [vmem:[%s1792 + $0x20] sm:$0xff] %vm1151, %v1386
        %1798 = vst.msk [vmem:[%s1792 + $0x28] sm:$0xff] %vm1151, %v1401
        %1799 = vst.msk [vmem:[%s1792 + $0x30] sm:$0xff] %vm1151, %v1416
        %1800 = vst.msk [vmem:[%s1792 + $0x38] sm:$0xff] %vm1151, %v1431
        %1801 = vst.msk [vmem:[%s1792 + $0x40] sm:$0xff] %vm1151, %v1446
        %1802 = vst.msk [vmem:[%s1792 + $0x48] sm:$0xff] %vm1151, %v1461
        %1803 = vst.msk [vmem:[%s1792 + $0x50] sm:$0xff] %vm1151, %v1476
        %1804 = vst.msk [vmem:[%s1792 + $0x58] sm:$0xff] %vm1151, %v1491
        %1805 = vst.msk [vmem:[%s1792 + $0x60] sm:$0xff] %vm1151, %v1506
        %1806 = vst.msk [vmem:[%s1792 + $0x68] sm:$0xff] %vm1151, %v1521
        %1807 = vst.msk [vmem:[%s1792 + $0x70] sm:$0xff] %vm1151, %v1536
        %1808 = vst.msk [vmem:[%s1792 + $0x78] sm:$0xff] %vm1151, %v1551
        %1809 = vst.msk [vmem:[%s1792 + $0x80] sm:$0xff] %vm1151, %v1566
        %1810 = vst.msk [vmem:[%s1792 + $0x88] sm:$0xff] %vm1151, %v1581
        %1811 = vst.msk [vmem:[%s1792 + $0x90] sm:$0xff] %vm1151, %v1596
        %1812 = vst.msk [vmem:[%s1792 + $0x98] sm:$0xff] %vm1151, %v1611
        %1813 = vst.msk [vmem:[%s1792 + $0xa0] sm:$0xff] %vm1151, %v1626
        %1814 = vst.msk [vmem:[%s1792 + $0xa8] sm:$0xff] %vm1151, %v1641
        %1815 = vst.msk [vmem:[%s1792 + $0xb0] sm:$0xff] %vm1151, %v1656
        %1816 = vst.msk [vmem:[%s1792 + $0xb8] sm:$0xff] %vm1151, %v1671
        %1817 = vst.msk [vmem:[%s1792 + $0xc0] sm:$0xff] %vm1151, %v1686
        %1818 = vst.msk [vmem:[%s1792 + $0xc8] sm:$0xff] %vm1151, %v1701
        %1819 = vst.msk [vmem:[%s1792 + $0xd0] sm:$0xff] %vm1151, %v1716
        %1820 = vst.msk [vmem:[%s1792 + $0xd8] sm:$0xff] %vm1151, %v1731
        %1821 = vst.msk [vmem:[%s1792 + $0xe0] sm:$0xff] %vm1151, %v1746
        %1822 = vst.msk [vmem:[%s1792 + $0xe8] sm:$0xff] %vm1151, %v1761
        %1823 = vst.msk [vmem:[%s1792 + $0xf0] sm:$0xff] %vm1151, %v1776
        %1824 = vst.msk [vmem:[%s1792 + $0xf8] sm:$0xff] %vm1151, %v1791
        %s1825 = sand.u32 %s161, 1
        %s1826 = sand.u32 %s161, 1
        %s1827 = smul.addr %s1826, 512
        %s1828 = scalar_lea.vmem [#allocation2], %s1827
        // Predicated region
        $region45: #{ghost_conv_forward.5} parent=43 // pred_check
          %p1829 = pneg %p171
        $region46: #{ghost_conv_forward.5} parent=43 // pred_check_branch
          %1831 = sbr.rel (%p1829) target = $region48
        $region47: #{ghost_conv_forward.5} parent=43 // pred_region
          %s1832 = smul.u32 32, %s17
          %s1833 = smul.addr %s1832, 8
          %s1834 = scalar_lea.vmem %s6, %s1833
          // Predicated region
          $region49: #{ghost_conv_forward.5} parent=47 // pred_check
            _
          $region50: #{ghost_conv_forward.5} parent=47 // pred_check_branch
            %1836 = sbr.rel (0) target = $region52
          $region51: #{ghost_conv_forward.5} parent=47 // pred_region
            // Predicated region
            $region53: #{ghost_conv_forward.5} parent=51 // pred_check
              _
            $region54: #{ghost_conv_forward.5} parent=51 // pred_check_branch
              %1838 = sbr.rel (0) target = $region56
            $region55: #{ghost_conv_forward.5} parent=51 // pred_region
              // Predicated region
              $region68: #{ghost_conv_forward.5} parent=55 // pred_check
                _
              $region69: #{ghost_conv_forward.5} parent=55 // pred_check_branch
                %1980 = sbr.rel (0) target = $region71
              $region70: #{ghost_conv_forward.5} parent=55 // pred_region
                loop: start=0, step=1, limit=1
                $region72: #{ghost_conv_forward.5} parent=70 // loop_pre_header
                  _
                $region73: #{ghost_conv_forward.5} parent=70 // loop_header
                  %s1982 = sphi 0, %s1986
                  %p1983 = scmp.ge.s32.totalorder %s1982, 1
                  %s1987 = sphi %s1828, %s1828
                  %s1988 = sphi %s1834, %s1834
                $region74: #{ghost_conv_forward.5} parent=70 // loop_header_branch
                  %1985 = sbr.rel (%p1983) target = $region78
                $region75: #{ghost_conv_forward.5} parent=70 // loop_body
                  %v1989 = vld [vmem:[%s1987] sm:$0xff]
                  %1990 = vst [vmem:[%s1988] sm:$0xff] %v1989
                  %v1991 = vld [vmem:[%s1987 + $0x8] sm:$0xff]
                  %1992 = vst [vmem:[%s1988 + $0x8] sm:$0xff] %v1991
                  %v1993 = vld [vmem:[%s1987 + $0x10] sm:$0xff]
                  %1994 = vst [vmem:[%s1988 + $0x10] sm:$0xff] %v1993
                  %v1995 = vld [vmem:[%s1987 + $0x18] sm:$0xff]
                  %1996 = vst [vmem:[%s1988 + $0x18] sm:$0xff] %v1995
                  %v1997 = vld [vmem:[%s1987 + $0x20] sm:$0xff]
                  %1998 = vst [vmem:[%s1988 + $0x20] sm:$0xff] %v1997
                  %v1999 = vld [vmem:[%s1987 + $0x28] sm:$0xff]
                  %2000 = vst [vmem:[%s1988 + $0x28] sm:$0xff] %v1999
                  %v2001 = vld [vmem:[%s1987 + $0x30] sm:$0xff]
                  %2002 = vst [vmem:[%s1988 + $0x30] sm:$0xff] %v2001
                  %v2003 = vld [vmem:[%s1987 + $0x38] sm:$0xff]
                  %2004 = vst [vmem:[%s1988 + $0x38] sm:$0xff] %v2003
                  %v2005 = vld [vmem:[%s1987 + $0x40] sm:$0xff]
                  %2006 = vst [vmem:[%s1988 + $0x40] sm:$0xff] %v2005
                  %v2007 = vld [vmem:[%s1987 + $0x48] sm:$0xff]
                  %2008 = vst [vmem:[%s1988 + $0x48] sm:$0xff] %v2007
                  %v2009 = vld [vmem:[%s1987 + $0x50] sm:$0xff]
                  %2010 = vst [vmem:[%s1988 + $0x50] sm:$0xff] %v2009
                  %v2011 = vld [vmem:[%s1987 + $0x58] sm:$0xff]
                  %2012 = vst [vmem:[%s1988 + $0x58] sm:$0xff] %v2011
                  %v2013 = vld [vmem:[%s1987 + $0x60] sm:$0xff]
                  %2014 = vst [vmem:[%s1988 + $0x60] sm:$0xff] %v2013
                  %v2015 = vld [vmem:[%s1987 + $0x68] sm:$0xff]
                  %2016 = vst [vmem:[%s1988 + $0x68] sm:$0xff] %v2015
                  %v2017 = vld [vmem:[%s1987 + $0x70] sm:$0xff]
                  %2018 = vst [vmem:[%s1988 + $0x70] sm:$0xff] %v2017
                  %v2019 = vld [vmem:[%s1987 + $0x78] sm:$0xff]
                  %2020 = vst [vmem:[%s1988 + $0x78] sm:$0xff] %v2019
                  %v2021 = vld [vmem:[%s1987 + $0x80] sm:$0xff]
                  %2022 = vst [vmem:[%s1988 + $0x80] sm:$0xff] %v2021
                  %v2023 = vld [vmem:[%s1987 + $0x88] sm:$0xff]
                  %2024 = vst [vmem:[%s1988 + $0x88] sm:$0xff] %v2023
                  %v2025 = vld [vmem:[%s1987 + $0x90] sm:$0xff]
                  %2026 = vst [vmem:[%s1988 + $0x90] sm:$0xff] %v2025
                  %v2027 = vld [vmem:[%s1987 + $0x98] sm:$0xff]
                  %2028 = vst [vmem:[%s1988 + $0x98] sm:$0xff] %v2027
                  %v2029 = vld [vmem:[%s1987 + $0xa0] sm:$0xff]
                  %2030 = vst [vmem:[%s1988 + $0xa0] sm:$0xff] %v2029
                  %v2031 = vld [vmem:[%s1987 + $0xa8] sm:$0xff]
                  %2032 = vst [vmem:[%s1988 + $0xa8] sm:$0xff] %v2031
                  %v2033 = vld [vmem:[%s1987 + $0xb0] sm:$0xff]
                  %2034 = vst [vmem:[%s1988 + $0xb0] sm:$0xff] %v2033
                  %v2035 = vld [vmem:[%s1987 + $0xb8] sm:$0xff]
                  %2036 = vst [vmem:[%s1988 + $0xb8] sm:$0xff] %v2035
                  %v2037 = vld [vmem:[%s1987 + $0xc0] sm:$0xff]
                  %2038 = vst [vmem:[%s1988 + $0xc0] sm:$0xff] %v2037
                  %v2039 = vld [vmem:[%s1987 + $0xc8] sm:$0xff]
                  %2040 = vst [vmem:[%s1988 + $0xc8] sm:$0xff] %v2039
                  %v2041 = vld [vmem:[%s1987 + $0xd0] sm:$0xff]
                  %2042 = vst [vmem:[%s1988 + $0xd0] sm:$0xff] %v2041
                  %v2043 = vld [vmem:[%s1987 + $0xd8] sm:$0xff]
                  %2044 = vst [vmem:[%s1988 + $0xd8] sm:$0xff] %v2043
                  %v2045 = vld [vmem:[%s1987 + $0xe0] sm:$0xff]
                  %2046 = vst [vmem:[%s1988 + $0xe0] sm:$0xff] %v2045
                  %v2047 = vld [vmem:[%s1987 + $0xe8] sm:$0xff]
                  %2048 = vst [vmem:[%s1988 + $0xe8] sm:$0xff] %v2047
                  %v2049 = vld [vmem:[%s1987 + $0xf0] sm:$0xff]
                  %2050 = vst [vmem:[%s1988 + $0xf0] sm:$0xff] %v2049
                  %v2051 = vld [vmem:[%s1987 + $0xf8] sm:$0xff]
                  %2052 = vst [vmem:[%s1988 + $0xf8] sm:$0xff] %v2051
                  %v2053 = vld [vmem:[%s1987 + $0x100] sm:$0xff]
                  %2054 = vst [vmem:[%s1988 + $0x200] sm:$0xff] %v2053
                  %v2055 = vld [vmem:[%s1987 + $0x108] sm:$0xff]
                  %2056 = vst [vmem:[%s1988 + $0x208] sm:$0xff] %v2055
                  %v2057 = vld [vmem:[%s1987 + $0x110] sm:$0xff]
                  %2058 = vst [vmem:[%s1988 + $0x210] sm:$0xff] %v2057
                  %v2059 = vld [vmem:[%s1987 + $0x118] sm:$0xff]
                  %2060 = vst [vmem:[%s1988 + $0x218] sm:$0xff] %v2059
                  %v2061 = vld [vmem:[%s1987 + $0x120] sm:$0xff]
                  %2062 = vst [vmem:[%s1988 + $0x220] sm:$0xff] %v2061
                  %v2063 = vld [vmem:[%s1987 + $0x128] sm:$0xff]
                  %2064 = vst [vmem:[%s1988 + $0x228] sm:$0xff] %v2063
                  %v2065 = vld [vmem:[%s1987 + $0x130] sm:$0xff]
                  %2066 = vst [vmem:[%s1988 + $0x230] sm:$0xff] %v2065
                  %v2067 = vld [vmem:[%s1987 + $0x138] sm:$0xff]
                  %2068 = vst [vmem:[%s1988 + $0x238] sm:$0xff] %v2067
                  %v2069 = vld [vmem:[%s1987 + $0x140] sm:$0xff]
                  %2070 = vst [vmem:[%s1988 + $0x240] sm:$0xff] %v2069
                  %v2071 = vld [vmem:[%s1987 + $0x148] sm:$0xff]
                  %2072 = vst [vmem:[%s1988 + $0x248] sm:$0xff] %v2071
                  %v2073 = vld [vmem:[%s1987 + $0x150] sm:$0xff]
                  %2074 = vst [vmem:[%s1988 + $0x250] sm:$0xff] %v2073
                  %v2075 = vld [vmem:[%s1987 + $0x158] sm:$0xff]
                  %2076 = vst [vmem:[%s1988 + $0x258] sm:$0xff] %v2075
                  %v2077 = vld [vmem:[%s1987 + $0x160] sm:$0xff]
                  %2078 = vst [vmem:[%s1988 + $0x260] sm:$0xff] %v2077
                  %v2079 = vld [vmem:[%s1987 + $0x168] sm:$0xff]
                  %2080 = vst [vmem:[%s1988 + $0x268] sm:$0xff] %v2079
                  %v2081 = vld [vmem:[%s1987 + $0x170] sm:$0xff]
                  %2082 = vst [vmem:[%s1988 + $0x270] sm:$0xff] %v2081
                  %v2083 = vld [vmem:[%s1987 + $0x178] sm:$0xff]
                  %2084 = vst [vmem:[%s1988 + $0x278] sm:$0xff] %v2083
                  %v2085 = vld [vmem:[%s1987 + $0x180] sm:$0xff]
                  %2086 = vst [vmem:[%s1988 + $0x280] sm:$0xff] %v2085
                  %v2087 = vld [vmem:[%s1987 + $0x188] sm:$0xff]
                  %2088 = vst [vmem:[%s1988 + $0x288] sm:$0xff] %v2087
                  %v2089 = vld [vmem:[%s1987 + $0x190] sm:$0xff]
                  %2090 = vst [vmem:[%s1988 + $0x290] sm:$0xff] %v2089
                  %v2091 = vld [vmem:[%s1987 + $0x198] sm:$0xff]
                  %2092 = vst [vmem:[%s1988 + $0x298] sm:$0xff] %v2091
                  %v2093 = vld [vmem:[%s1987 + $0x1a0] sm:$0xff]
                  %2094 = vst [vmem:[%s1988 + $0x2a0] sm:$0xff] %v2093
                  %v2095 = vld [vmem:[%s1987 + $0x1a8] sm:$0xff]
                  %2096 = vst [vmem:[%s1988 + $0x2a8] sm:$0xff] %v2095
                  %v2097 = vld [vmem:[%s1987 + $0x1b0] sm:$0xff]
                  %2098 = vst [vmem:[%s1988 + $0x2b0] sm:$0xff] %v2097
                  %v2099 = vld [vmem:[%s1987 + $0x1b8] sm:$0xff]
                  %2100 = vst [vmem:[%s1988 + $0x2b8] sm:$0xff] %v2099
                  %v2101 = vld [vmem:[%s1987 + $0x1c0] sm:$0xff]
                  %2102 = vst [vmem:[%s1988 + $0x2c0] sm:$0xff] %v2101
                  %v2103 = vld [vmem:[%s1987 + $0x1c8] sm:$0xff]
                  %2104 = vst [vmem:[%s1988 + $0x2c8] sm:$0xff] %v2103
                  %v2105 = vld [vmem:[%s1987 + $0x1d0] sm:$0xff]
                  %2106 = vst [vmem:[%s1988 + $0x2d0] sm:$0xff] %v2105
                  %v2107 = vld [vmem:[%s1987 + $0x1d8] sm:$0xff]
                  %2108 = vst [vmem:[%s1988 + $0x2d8] sm:$0xff] %v2107
                  %v2109 = vld [vmem:[%s1987 + $0x1e0] sm:$0xff]
                  %2110 = vst [vmem:[%s1988 + $0x2e0] sm:$0xff] %v2109
                  %v2111 = vld [vmem:[%s1987 + $0x1e8] sm:$0xff]
                  %2112 = vst [vmem:[%s1988 + $0x2e8] sm:$0xff] %v2111
                  %v2113 = vld [vmem:[%s1987 + $0x1f0] sm:$0xff]
                  %2114 = vst [vmem:[%s1988 + $0x2f0] sm:$0xff] %v2113
                  %v2115 = vld [vmem:[%s1987 + $0x1f8] sm:$0xff]
                  %2116 = vst [vmem:[%s1988 + $0x2f8] sm:$0xff] %v2115
                $region76: #{ghost_conv_forward.5} parent=70 // loop_footer
                  %s1986 = sadd.s32 1, %s1982
                $region77: #{ghost_conv_forward.5} parent=70 // loop_footer_branch
                  %1981 = sbr.rel target = $region73
                $region78: #{ghost_conv_forward.5} parent=70 // loop_exit
                  _
              $region71: #{ghost_conv_forward.5} parent=55 // pred_fallthru
                _
              // Predicated region
              $region79: #{ghost_conv_forward.5} parent=55 // pred_check
                _
              $region80: #{ghost_conv_forward.5} parent=55 // pred_check_branch
                %2118 = sbr.rel target = $region82
              $region81: #{ghost_conv_forward.5} parent=55 // pred_region
                _
              $region82: #{ghost_conv_forward.5} parent=55 // pred_fallthru
                _
            $region56: #{ghost_conv_forward.5} parent=51 // pred_fallthru
              _
            // Predicated region
            $region57: #{ghost_conv_forward.5} parent=51 // pred_check
              _
            $region58: #{ghost_conv_forward.5} parent=51 // pred_check_branch
              %1840 = sbr.rel target = $region60
            $region59: #{ghost_conv_forward.5} parent=51 // pred_region
              %s1842 = ssub.s32 256, 1
              loop: start=0, step=1, limit=1
              $region61: #{ghost_conv_forward.5} parent=59 // loop_pre_header
                _
              $region62: #{ghost_conv_forward.5} parent=59 // loop_header
                %s1844 = sphi 0, %s1848
                %p1845 = scmp.ge.s32.totalorder %s1844, 1
                %s1849 = sphi %s1828, %s1828
                %s1850 = sphi %s1834, %s1834
              $region63: #{ghost_conv_forward.5} parent=59 // loop_header_branch
                %1847 = sbr.rel (%p1845) target = $region67
              $region64: #{ghost_conv_forward.5} parent=59 // loop_body
                %v1851 = vld [vmem:[%s1849] sm:%s1842]
                %1852 = vst [vmem:[%s1850] sm:%s1842] %v1851
                %v1853 = vld [vmem:[%s1849 + $0x8] sm:%s1842]
                %1854 = vst [vmem:[%s1850 + $0x8] sm:%s1842] %v1853
                %v1855 = vld [vmem:[%s1849 + $0x10] sm:%s1842]
                %1856 = vst [vmem:[%s1850 + $0x10] sm:%s1842] %v1855
                %v1857 = vld [vmem:[%s1849 + $0x18] sm:%s1842]
                %1858 = vst [vmem:[%s1850 + $0x18] sm:%s1842] %v1857
                %v1859 = vld [vmem:[%s1849 + $0x20] sm:%s1842]
                %1860 = vst [vmem:[%s1850 + $0x20] sm:%s1842] %v1859
                %v1861 = vld [vmem:[%s1849 + $0x28] sm:%s1842]
                %1862 = vst [vmem:[%s1850 + $0x28] sm:%s1842] %v1861
                %v1863 = vld [vmem:[%s1849 + $0x30] sm:%s1842]
                %1864 = vst [vmem:[%s1850 + $0x30] sm:%s1842] %v1863
                %v1865 = vld [vmem:[%s1849 + $0x38] sm:%s1842]
                %1866 = vst [vmem:[%s1850 + $0x38] sm:%s1842] %v1865
                %v1867 = vld [vmem:[%s1849 + $0x40] sm:%s1842]
                %1868 = vst [vmem:[%s1850 + $0x40] sm:%s1842] %v1867
                %v1869 = vld [vmem:[%s1849 + $0x48] sm:%s1842]
                %1870 = vst [vmem:[%s1850 + $0x48] sm:%s1842] %v1869
                %v1871 = vld [vmem:[%s1849 + $0x50] sm:%s1842]
                %1872 = vst [vmem:[%s1850 + $0x50] sm:%s1842] %v1871
                %v1873 = vld [vmem:[%s1849 + $0x58] sm:%s1842]
                %1874 = vst [vmem:[%s1850 + $0x58] sm:%s1842] %v1873
                %v1875 = vld [vmem:[%s1849 + $0x60] sm:%s1842]
                %1876 = vst [vmem:[%s1850 + $0x60] sm:%s1842] %v1875
                %v1877 = vld [vmem:[%s1849 + $0x68] sm:%s1842]
                %1878 = vst [vmem:[%s1850 + $0x68] sm:%s1842] %v1877
                %v1879 = vld [vmem:[%s1849 + $0x70] sm:%s1842]
                %1880 = vst [vmem:[%s1850 + $0x70] sm:%s1842] %v1879
                %v1881 = vld [vmem:[%s1849 + $0x78] sm:%s1842]
                %1882 = vst [vmem:[%s1850 + $0x78] sm:%s1842] %v1881
                %v1883 = vld [vmem:[%s1849 + $0x80] sm:%s1842]
                %1884 = vst [vmem:[%s1850 + $0x80] sm:%s1842] %v1883
                %v1885 = vld [vmem:[%s1849 + $0x88] sm:%s1842]
                %1886 = vst [vmem:[%s1850 + $0x88] sm:%s1842] %v1885
                %v1887 = vld [vmem:[%s1849 + $0x90] sm:%s1842]
                %1888 = vst [vmem:[%s1850 + $0x90] sm:%s1842] %v1887
                %v1889 = vld [vmem:[%s1849 + $0x98] sm:%s1842]
                %1890 = vst [vmem:[%s1850 + $0x98] sm:%s1842] %v1889
                %v1891 = vld [vmem:[%s1849 + $0xa0] sm:%s1842]
                %1892 = vst [vmem:[%s1850 + $0xa0] sm:%s1842] %v1891
                %v1893 = vld [vmem:[%s1849 + $0xa8] sm:%s1842]
                %1894 = vst [vmem:[%s1850 + $0xa8] sm:%s1842] %v1893
                %v1895 = vld [vmem:[%s1849 + $0xb0] sm:%s1842]
                %1896 = vst [vmem:[%s1850 + $0xb0] sm:%s1842] %v1895
                %v1897 = vld [vmem:[%s1849 + $0xb8] sm:%s1842]
                %1898 = vst [vmem:[%s1850 + $0xb8] sm:%s1842] %v1897
                %v1899 = vld [vmem:[%s1849 + $0xc0] sm:%s1842]
                %1900 = vst [vmem:[%s1850 + $0xc0] sm:%s1842] %v1899
                %v1901 = vld [vmem:[%s1849 + $0xc8] sm:%s1842]
                %1902 = vst [vmem:[%s1850 + $0xc8] sm:%s1842] %v1901
                %v1903 = vld [vmem:[%s1849 + $0xd0] sm:%s1842]
                %1904 = vst [vmem:[%s1850 + $0xd0] sm:%s1842] %v1903
                %v1905 = vld [vmem:[%s1849 + $0xd8] sm:%s1842]
                %1906 = vst [vmem:[%s1850 + $0xd8] sm:%s1842] %v1905
                %v1907 = vld [vmem:[%s1849 + $0xe0] sm:%s1842]
                %1908 = vst [vmem:[%s1850 + $0xe0] sm:%s1842] %v1907
                %v1909 = vld [vmem:[%s1849 + $0xe8] sm:%s1842]
                %1910 = vst [vmem:[%s1850 + $0xe8] sm:%s1842] %v1909
                %v1911 = vld [vmem:[%s1849 + $0xf0] sm:%s1842]
                %1912 = vst [vmem:[%s1850 + $0xf0] sm:%s1842] %v1911
                %v1913 = vld [vmem:[%s1849 + $0xf8] sm:%s1842]
                %1914 = vst [vmem:[%s1850 + $0xf8] sm:%s1842] %v1913
                %v1915 = vld [vmem:[%s1849 + $0x100] sm:%s1842]
                %1916 = vst [vmem:[%s1850 + $0x200] sm:%s1842] %v1915
                %v1917 = vld [vmem:[%s1849 + $0x108] sm:%s1842]
                %1918 = vst [vmem:[%s1850 + $0x208] sm:%s1842] %v1917
                %v1919 = vld [vmem:[%s1849 + $0x110] sm:%s1842]
                %1920 = vst [vmem:[%s1850 + $0x210] sm:%s1842] %v1919
                %v1921 = vld [vmem:[%s1849 + $0x118] sm:%s1842]
                %1922 = vst [vmem:[%s1850 + $0x218] sm:%s1842] %v1921
                %v1923 = vld [vmem:[%s1849 + $0x120] sm:%s1842]
                %1924 = vst [vmem:[%s1850 + $0x220] sm:%s1842] %v1923
                %v1925 = vld [vmem:[%s1849 + $0x128] sm:%s1842]
                %1926 = vst [vmem:[%s1850 + $0x228] sm:%s1842] %v1925
                %v1927 = vld [vmem:[%s1849 + $0x130] sm:%s1842]
                %1928 = vst [vmem:[%s1850 + $0x230] sm:%s1842] %v1927
                %v1929 = vld [vmem:[%s1849 + $0x138] sm:%s1842]
                %1930 = vst [vmem:[%s1850 + $0x238] sm:%s1842] %v1929
                %v1931 = vld [vmem:[%s1849 + $0x140] sm:%s1842]
                %1932 = vst [vmem:[%s1850 + $0x240] sm:%s1842] %v1931
                %v1933 = vld [vmem:[%s1849 + $0x148] sm:%s1842]
                %1934 = vst [vmem:[%s1850 + $0x248] sm:%s1842] %v1933
                %v1935 = vld [vmem:[%s1849 + $0x150] sm:%s1842]
                %1936 = vst [vmem:[%s1850 + $0x250] sm:%s1842] %v1935
                %v1937 = vld [vmem:[%s1849 + $0x158] sm:%s1842]
                %1938 = vst [vmem:[%s1850 + $0x258] sm:%s1842] %v1937
                %v1939 = vld [vmem:[%s1849 + $0x160] sm:%s1842]
                %1940 = vst [vmem:[%s1850 + $0x260] sm:%s1842] %v1939
                %v1941 = vld [vmem:[%s1849 + $0x168] sm:%s1842]
                %1942 = vst [vmem:[%s1850 + $0x268] sm:%s1842] %v1941
                %v1943 = vld [vmem:[%s1849 + $0x170] sm:%s1842]
                %1944 = vst [vmem:[%s1850 + $0x270] sm:%s1842] %v1943
                %v1945 = vld [vmem:[%s1849 + $0x178] sm:%s1842]
                %1946 = vst [vmem:[%s1850 + $0x278] sm:%s1842] %v1945
                %v1947 = vld [vmem:[%s1849 + $0x180] sm:%s1842]
                %1948 = vst [vmem:[%s1850 + $0x280] sm:%s1842] %v1947
                %v1949 = vld [vmem:[%s1849 + $0x188] sm:%s1842]
                %1950 = vst [vmem:[%s1850 + $0x288] sm:%s1842] %v1949
                %v1951 = vld [vmem:[%s1849 + $0x190] sm:%s1842]
                %1952 = vst [vmem:[%s1850 + $0x290] sm:%s1842] %v1951
                %v1953 = vld [vmem:[%s1849 + $0x198] sm:%s1842]
                %1954 = vst [vmem:[%s1850 + $0x298] sm:%s1842] %v1953
                %v1955 = vld [vmem:[%s1849 + $0x1a0] sm:%s1842]
                %1956 = vst [vmem:[%s1850 + $0x2a0] sm:%s1842] %v1955
                %v1957 = vld [vmem:[%s1849 + $0x1a8] sm:%s1842]
                %1958 = vst [vmem:[%s1850 + $0x2a8] sm:%s1842] %v1957
                %v1959 = vld [vmem:[%s1849 + $0x1b0] sm:%s1842]
                %1960 = vst [vmem:[%s1850 + $0x2b0] sm:%s1842] %v1959
                %v1961 = vld [vmem:[%s1849 + $0x1b8] sm:%s1842]
                %1962 = vst [vmem:[%s1850 + $0x2b8] sm:%s1842] %v1961
                %v1963 = vld [vmem:[%s1849 + $0x1c0] sm:%s1842]
                %1964 = vst [vmem:[%s1850 + $0x2c0] sm:%s1842] %v1963
                %v1965 = vld [vmem:[%s1849 + $0x1c8] sm:%s1842]
                %1966 = vst [vmem:[%s1850 + $0x2c8] sm:%s1842] %v1965
                %v1967 = vld [vmem:[%s1849 + $0x1d0] sm:%s1842]
                %1968 = vst [vmem:[%s1850 + $0x2d0] sm:%s1842] %v1967
                %v1969 = vld [vmem:[%s1849 + $0x1d8] sm:%s1842]
                %1970 = vst [vmem:[%s1850 + $0x2d8] sm:%s1842] %v1969
                %v1971 = vld [vmem:[%s1849 + $0x1e0] sm:%s1842]
                %1972 = vst [vmem:[%s1850 + $0x2e0] sm:%s1842] %v1971
                %v1973 = vld [vmem:[%s1849 + $0x1e8] sm:%s1842]
                %1974 = vst [vmem:[%s1850 + $0x2e8] sm:%s1842] %v1973
                %v1975 = vld [vmem:[%s1849 + $0x1f0] sm:%s1842]
                %1976 = vst [vmem:[%s1850 + $0x2f0] sm:%s1842] %v1975
                %v1977 = vld [vmem:[%s1849 + $0x1f8] sm:%s1842]
                %1978 = vst [vmem:[%s1850 + $0x2f8] sm:%s1842] %v1977
              $region65: #{ghost_conv_forward.5} parent=59 // loop_footer
                %s1848 = sadd.s32 1, %s1844
              $region66: #{ghost_conv_forward.5} parent=59 // loop_footer_branch
                %1843 = sbr.rel target = $region62
              $region67: #{ghost_conv_forward.5} parent=59 // loop_exit
                _
            $region60: #{ghost_conv_forward.5} parent=51 // pred_fallthru
              _
          $region52: #{ghost_conv_forward.5} parent=47 // pred_fallthru
            _
          %2119 = vnop
        $region48: #{ghost_conv_forward.5} parent=43 // pred_fallthru
          _
      $region44: #{ghost_conv_forward.5} parent=5 // pred_fallthru
        _
      %p2120 = scmp.le.s32.totalorder 2, %s12
      // Predicated region
      $region83: #{ghost_conv_forward.5} parent=5 // pred_check
        %p2121 = pneg %p2120
      $region84: #{ghost_conv_forward.5} parent=5 // pred_check_branch
        %2123 = sbr.rel (%p2121) target = $region86
      $region85: #{ghost_conv_forward.5} parent=5 // pred_region
        %s2124 = ssub.s32 %s12, 2
        // Predicated region
        $region87: #{ghost_conv_forward.5} parent=85 // pred_check
          %p2125 = pneg %p177
        $region88: #{ghost_conv_forward.5} parent=85 // pred_check_branch
          %2127 = sbr.rel (%p2125) target = $region90
        $region89: #{ghost_conv_forward.5} parent=85 // pred_region
          %s2128 = sand.u32 %s162, 1
          %s2129 = sand.u32 %s162, 1
          %s2130 = smul.addr %s2129, 512
          %s2131 = scalar_lea.vmem [#allocation2], %s2130
        $region90: #{ghost_conv_forward.5} parent=85 // pred_fallthru
          _
      $region86: #{ghost_conv_forward.5} parent=5 // pred_fallthru
        _
    $region6: #{ghost_conv_forward.5} parent=1 // loop_footer
      %s16 = sadd.s32 1, %s12
    $region7: #{ghost_conv_forward.5} parent=1 // loop_footer_branch
      %11 = sbr.rel target = $region3
    $region8: #{ghost_conv_forward.5} parent=1 // loop_exit
      _

// kernel: ghost_conv_forward.4
$region0: #{ghost_conv_forward.4}
  #allocation0 [shape = 'u32[]', space=smem, size = 0x4, offset = 0x4, fixed_abs, tag = 'smem constant byte address 0x4 - core index']
  #allocation1 [shape = 'u32[72,128]{1,0:T(1,128)}', space=vmem, size = 0x9000, scoped, tag = 'internal scratch']
  #allocation2 [shape = 'f32[20,20,4]{2,1,0:T(8,128)}', space=vmem, size = 0x3c000, scoped, tag = 'scratch operand']
  %s0 = inlined_call_operand.vmem [shape: bf16[2,16,16,4], index: 0, kind: input, shape index: {}]
  %s1 = inlined_call_operand.vmem [shape: f32[25,4], index: 1, kind: input, shape index: {}]
  %s2 = inlined_call_operand.vmem [shape: f32[1,4], index: 2, kind: input, shape index: {}]
  %s3 = inlined_call_operand.vmem [shape: f32[1,4], index: 3, kind: input, shape index: {}]
  %s4 = inlined_call_operand.vmem [shape: bf16[2,16,16,4], index: 4, kind: output, shape index: {0}]
  %s5 = inlined_call_operand.vmem [shape: f32[2,1,2,4], index: 5, kind: output, shape index: {1}]
  %6 = xla_tuple %s4, %s5
  %s7 = sld [smem:[#allocation0]]
  $region65: #{ghost_conv_forward.4} parent=0
    _
  %s9 = ssub.s32 1, %s7
  %s10 = scalar_select 0, %s9, %s7
  loop: start=0, step=1, limit=4
  $region2: #{ghost_conv_forward.4} parent=0 // loop_pre_header
    _
  $region3: #{ghost_conv_forward.4} parent=0 // loop_header
    %s12 = sphi 0, %s16
    %p13 = scmp.ge.s32.totalorder %s12, 4
    %s19 = sphi 0, %s31
    %s20 = sphi 0, %s27
    %s21 = sphi 0, %s19
    %s22 = sphi 0, %s20
    %s23 = sphi 0, %s21
    %s24 = sphi 0, %s22
    %s34 = sphi 0, %s36
    %s37 = sphi 0, %s34
    %s38 = sphi 0, %s37
    %s54 = sphi 0, %s38
    %s58 = sphi 0, %s58
    %s60 = sphi 0, %s58
    %s61 = sphi 0, %s60
    %s75 = sphi 0, %s61
    %s79 = sphi 0, %s79
    %s81 = sphi 0, %s79
    %s82 = sphi 0, %s81
    %s96 = sphi 0, %s82
    %s100 = sphi 0, %s100
    %s102 = sphi 0, %s100
    %s103 = sphi 0, %s102
    %s117 = sphi 0, %s103
    %s125 = sphi 0, %s127
    %s128 = sphi 0, %s125
    %s129 = sphi 0, %s128
    %s145 = sphi 0, %s129
    %s153 = sphi 0, %s155
    %s156 = sphi 0, %s153
    %s157 = sphi 0, %s156
    %s173 = sphi 0, %s157
  $region4: #{ghost_conv_forward.4} parent=0 // loop_header_branch
    %15 = sbr.rel (%p13) target = $region8
  $region5: #{ghost_conv_forward.4} parent=0 // loop_body
    %s17 = ssub.s32 %s12, 1
    %s18 = ssub.s32 %s12, 2
    %s25 = sadd.s32 1, %s20
    %p26 = scmp.ge.s32.totalorder %s25, 1
    %s27 = scalar_select %p26, 0, %s25
    %s28 = sadd.s32 1, %s19
    %s29 = scalar_select %p26, %s28, %s19
    %p30 = scmp.ge.s32.totalorder %s29, 2
    %s31 = scalar_select %p30, 0, %s29
    %s32 = ssub.s32 %s19, %s31
    %p33 = scmp.eq.s32.totalorder %s32, 0
    %s35 = sadd.s32 %s34, 1
    %s36 = scalar_select %p33, %s34, %s35
    %p39 = pneg %p33
    %p40 = scmp.eq.s32.totalorder %s12, 1
    %p41 = por %p39, %p40
    %p42 = scmp.ne.s32.totalorder %s34, %s37
    %p43 = scmp.eq.s32.totalorder %s12, 0
    %p44 = por %p42, %p43
    %p45 = scmp.ne.s32.totalorder %s34, %s37
    %p46 = scmp.eq.s32.totalorder %s17, 1
    %p47 = por %p45, %p46
    %p48 = scmp.ne.s32.totalorder %s37, %s38
    %p49 = scmp.eq.s32.totalorder %s17, 0
    %p50 = por %p48, %p49
    %p51 = scmp.ne.s32.totalorder %s37, %s38
    %p52 = scmp.eq.s32.totalorder %s18, 1
    %p53 = por %p51, %p52
    %p55 = scmp.ne.s32.totalorder %s38, %s54
    %p56 = scmp.eq.s32.totalorder %s18, 0
    %p57 = por %p55, %p56
    %s59 = sadd.s32 %s58, 1
    %p62 = scmp.eq.s32.totalorder %s12, 1
    %p63 = scmp.ne.s32.totalorder %s58, %s60
    %p64 = scmp.eq.s32.totalorder %s12, 0
    %p65 = por %p63, %p64
    %p66 = scmp.ne.s32.totalorder %s58, %s60
    %p67 = scmp.eq.s32.totalorder %s17, 1
    %p68 = por %p66, %p67
    %p69 = scmp.ne.s32.totalorder %s60, %s61
    %p70 = scmp.eq.s32.totalorder %s17, 0
    %p71 = por %p69, %p70
    %p72 = scmp.ne.s32.totalorder %s60, %s61
    %p73 = scmp.eq.s32.totalorder %s18, 1
    %p74 = por %p72, %p73
    %p76 = scmp.ne.s32.totalorder %s61, %s75
    %p77 = scmp.eq.s32.totalorder %s18, 0
    %p78 = por %p76, %p77
    %s80 = sadd.s32 %s79, 1
    %p83 = scmp.eq.s32.totalorder %s12, 1
    %p84 = scmp.ne.s32.totalorder %s79, %s81
    %p85 = scmp.eq.s32.totalorder %s12, 0
    %p86 = por %p84, %p85
    %p87 = scmp.ne.s32.totalorder %s79, %s81
    %p88 = scmp.eq.s32.totalorder %s17, 1
    %p89 = por %p87, %p88
    %p90 = scmp.ne.s32.totalorder %s81, %s82
    %p91 = scmp.eq.s32.totalorder %s17, 0
    %p92 = por %p90, %p91
    %p93 = scmp.ne.s32.totalorder %s81, %s82
    %p94 = scmp.eq.s32.totalorder %s18, 1
    %p95 = por %p93, %p94
    %p97 = scmp.ne.s32.totalorder %s82, %s96
    %p98 = scmp.eq.s32.totalorder %s18, 0
    %p99 = por %p97, %p98
    %s101 = sadd.s32 %s100, 1
    %p104 = scmp.eq.s32.totalorder %s12, 1
    %p105 = scmp.ne.s32.totalorder %s100, %s102
    %p106 = scmp.eq.s32.totalorder %s12, 0
    %p107 = por %p105, %p106
    %p108 = scmp.ne.s32.totalorder %s100, %s102
    %p109 = scmp.eq.s32.totalorder %s17, 1
    %p110 = por %p108, %p109
    %p111 = scmp.ne.s32.totalorder %s102, %s103
    %p112 = scmp.eq.s32.totalorder %s17, 0
    %p113 = por %p111, %p112
    %p114 = scmp.ne.s32.totalorder %s102, %s103
    %p115 = scmp.eq.s32.totalorder %s18, 1
    %p116 = por %p114, %p115
    %p118 = scmp.ne.s32.totalorder %s103, %s117
    %p119 = scmp.eq.s32.totalorder %s18, 0
    %p120 = por %p118, %p119
    %s121 = ssub.s32 %s19, %s31
    %s122 = ssub.s32 %s20, %s27
    %s123 = sor.u32 %s121, %s122
    %p124 = scmp.eq.s32.totalorder %s123, 0
    %s126 = sadd.s32 %s125, 1
    %s127 = scalar_select %p124, %s125, %s126
    %p130 = pneg %p124
    %p131 = scmp.eq.s32.totalorder %s12, 1
    %p132 = por %p130, %p131
    %p133 = scmp.ne.s32.totalorder %s125, %s128
    %p134 = scmp.eq.s32.totalorder %s12, 0
    %p135 = por %p133, %p134
    %p136 = scmp.ne.s32.totalorder %s125, %s128
    %p137 = scmp.eq.s32.totalorder %s17, 1
    %p138 = por %p136, %p137
    %p139 = scmp.ne.s32.totalorder %s128, %s129
    %p140 = scmp.eq.s32.totalorder %s17, 0
    %p141 = por %p139, %p140
    %p142 = scmp.ne.s32.totalorder %s128, %s129
    %p143 = scmp.eq.s32.totalorder %s18, 1
    %p144 = por %p142, %p143
    %p146 = scmp.ne.s32.totalorder %s129, %s145
    %p147 = scmp.eq.s32.totalorder %s18, 0
    %p148 = por %p146, %p147
    %s149 = ssub.s32 %s19, %s31
    %s150 = ssub.s32 %s20, %s27
    %s151 = sor.u32 %s149, %s150
    %p152 = scmp.eq.s32.totalorder %s151, 0
    %s154 = sadd.s32 %s153, 1
    %s155 = scalar_select %p152, %s153, %s154
    %p158 = pneg %p152
    %p159 = scmp.eq.s32.totalorder %s12, 1
    %p160 = por %p158, %p159
    %p161 = scmp.ne.s32.totalorder %s153, %s156
    %p162 = scmp.eq.s32.totalorder %s12, 0
    %p163 = por %p161, %p162
    %p164 = scmp.ne.s32.totalorder %s153, %s156
    %p165 = scmp.eq.s32.totalorder %s17, 1
    %p166 = por %p164, %p165
    %p167 = scmp.ne.s32.totalorder %s156, %s157
    %p168 = scmp.eq.s32.totalorder %s17, 0
    %p169 = por %p167, %p168
    %p170 = scmp.ne.s32.totalorder %s156, %s157
    %p171 = scmp.eq.s32.totalorder %s18, 1
    %p172 = por %p170, %p171
    %p174 = scmp.ne.s32.totalorder %s157, %s173
    %p175 = scmp.eq.s32.totalorder %s18, 0
    %p176 = por %p174, %p175
    %p177 = scmp.le.s32.totalorder 1, %s12
    %p178 = scmp.lt.s32.totalorder %s12, 3
    %p179 = pnand %p177, %p178
    %p180 = pneg %p179
    // Predicated region
    $region9: #{ghost_conv_forward.4} parent=5 // pred_check
      _
    $region10: #{ghost_conv_forward.4} parent=5 // pred_check_branch
      %182 = sbr.rel (%p179) target = $region12
    $region11: #{ghost_conv_forward.4} parent=5 // pred_region
      %s183 = ssub.s32 %s12, 1
      // Predicated region
      $region13: #{ghost_conv_forward.4} parent=11 // pred_check
        %p184 = pneg %p71
      $region14: #{ghost_conv_forward.4} parent=11 // pred_check_branch
        %186 = sbr.rel (%p184) target = $region16
      $region15: #{ghost_conv_forward.4} parent=11 // pred_region
        _
      $region16: #{ghost_conv_forward.4} parent=11 // pred_fallthru
        _
      // Predicated region
      $region17: #{ghost_conv_forward.4} parent=11 // pred_check
        %p187 = pneg %p92
      $region18: #{ghost_conv_forward.4} parent=11 // pred_check_branch
        %189 = sbr.rel (%p187) target = $region20
      $region19: #{ghost_conv_forward.4} parent=11 // pred_region
        _
      $region20: #{ghost_conv_forward.4} parent=11 // pred_fallthru
        _
      // Predicated region
      $region21: #{ghost_conv_forward.4} parent=11 // pred_check
        %p190 = pneg %p113
      $region22: #{ghost_conv_forward.4} parent=11 // pred_check_branch
        %192 = sbr.rel (%p190) target = $region24
      $region23: #{ghost_conv_forward.4} parent=11 // pred_region
        _
      $region24: #{ghost_conv_forward.4} parent=11 // pred_fallthru
        _
    $region12: #{ghost_conv_forward.4} parent=5 // pred_fallthru
      _
    %p193 = scmp.lt.s32.totalorder %s12, 2
    // Predicated region
    $region25: #{ghost_conv_forward.4} parent=5 // pred_check
      %p194 = pneg %p193
    $region26: #{ghost_conv_forward.4} parent=5 // pred_check_branch
      %196 = sbr.rel (%p194) target = $region28
    $region27: #{ghost_conv_forward.4} parent=5 // pred_region
      // Predicated region
      $region29: #{ghost_conv_forward.4} parent=27 // pred_check
        %p197 = pneg %p44
      $region30: #{ghost_conv_forward.4} parent=27 // pred_check_branch
        %199 = sbr.rel (%p197) target = $region32
      $region31: #{ghost_conv_forward.4} parent=27 // pred_region
        %p200 = scmp.lt.s32.totalorder %s19, 1
        %s201 = scalar_select %p200, %s19, 1
        %s202 = smul.addr %s201, 32
        %s203 = smul.addr %s202, 4
        %s204 = scalar_lea.vmem %s0, %s203
      $region32: #{ghost_conv_forward.4} parent=27 // pred_fallthru
        _
    $region28: #{ghost_conv_forward.4} parent=5 // pred_fallthru
      _
    %p205 = scmp.le.s32.totalorder 1, %s12
    %p206 = scmp.lt.s32.totalorder %s12, 3
    %p207 = pnand %p205, %p206
    %p208 = pneg %p207
    // Predicated region
    $region33: #{ghost_conv_forward.4} parent=5 // pred_check
      _
    $region34: #{ghost_conv_forward.4} parent=5 // pred_check_branch
      %210 = sbr.rel (%p207) target = $region36
    $region35: #{ghost_conv_forward.4} parent=5 // pred_region
      %s211 = ssub.s32 %s12, 1
      %p212 = scmp.lt.s32.totalorder %s21, 1
      %s213 = scalar_select %p212, %s21, 1
      %s214 = smul.addr %s213, 32
      %s215 = smul.addr %s214, 4
      %s216 = scalar_lea.vmem %s0, %s215
      %p217 = pneg %p50
      %p218 = pneg %p47
      %p219 = pneg %p71
      %p220 = pneg %p68
      %p221 = pneg %p92
      %p222 = pneg %p89
      %p223 = pneg %p113
      %p224 = pneg %p110
      %p225 = pneg %p141
      %p226 = pneg %p138
      %s227 = smul.u32 16, %s22
      %p228 = scmp.lt.s32.totalorder %s21, 1
      %s229 = scalar_select %p228, %s21, 1
      %p230 = scmp.lt.s32.totalorder %s227, 15
      %s231 = scalar_select %p230, %s227, 15
      %s232 = smul.addr %s231, 2
      %s233 = smul.addr %s229, 32
      %s234 = sadd.s32 %s232, %s233
      %s235 = smul.addr %s234, 4
      %s236 = scalar_lea.vmem %s4, %s235
      %p237 = pneg %p169
      %p238 = pneg %p166
      %p239 = scmp.lt.s32.totalorder %s21, 1
      %s240 = scalar_select %p239, %s21, 1
      %p241 = scmp.lt.s32.totalorder %s22, 0
      %s242 = scalar_select %p241, %s22, 0
      %s243 = sadd.s32 %s242, %s240
      %s244 = smul.addr %s243, 2
      %s245 = scalar_lea.vmem %s5, %s244
      %p246 = scmp.lt.s32.totalorder %s21, 1
      %s247 = scalar_select %p246, %s21, 1
      %s248 = smul.addr %s247, 32
      %s249 = smul.addr %s248, 4
      %s250 = scalar_lea.vmem %s0, %s249
      %s251 = smul.u32 16, %s22
      %p252 = scmp.lt.s32.totalorder %s21, 1
      %s253 = scalar_select %p252, %s21, 1
      %p254 = scmp.lt.s32.totalorder %s251, 15
      %s255 = scalar_select %p254, %s251, 15
      %s256 = smul.addr %s255, 2
      %s257 = smul.addr %s253, 32
      %s258 = sadd.s32 %s256, %s257
      %s259 = smul.addr %s258, 4
      %s260 = scalar_lea.vmem %s4, %s259
      %s261 = smul.u32 16, %s22
      %p262 = scmp.lt.s32.totalorder %s21, 1
      %s263 = scalar_select %p262, %s21, 1
      %p264 = scmp.lt.s32.totalorder %s22, 0
      %s265 = scalar_select %p264, %s22, 0
      %s266 = sadd.s32 %s265, %s263
      %s267 = smul.addr %s266, 2
      %s268 = scalar_lea.vmem %s5, %s267
      %s269 = smul.u32 %s22, 16
      %v270 = vld [vmem:[%s2] sm:$0x1]
      %v271 = vld [vmem:[%s3] sm:$0x1]
      %vm272 = vcmask 31744
      %273 = vst.msk [vmem:[#allocation2] sm:$0xff] %vm272, 0.0
      %274 = vst.msk [vmem:[#allocation2 + $0x8] sm:$0xff] %vm272, 0.0
      %vm275 = vcmask 27648
      %276 = vst.msk [vmem:[#allocation2 + $0x10] sm:$0xf] %vm275, 0.0
      %277 = vst.msk [vmem:[#allocation2 + $0x18] sm:$0xff] %vm272, 0.0
      %278 = vst.msk [vmem:[#allocation2 + $0x20] sm:$0xff] %vm272, 0.0
      %279 = vst.msk [vmem:[#allocation2 + $0x28] sm:$0xf] %vm275, 0.0
      %280 = vst.msk [vmem:[#allocation2 + $0x30] sm:$0xff] %vm272, 0.0
      %281 = vst.msk [vmem:[#allocation2 + $0x38] sm:$0xff] %vm272, 0.0
      %282 = vst.msk [vmem:[#allocation2 + $0x40] sm:$0xf] %vm275, 0.0
      %283 = vst.msk [vmem:[#allocation2 + $0x48] sm:$0xff] %vm272, 0.0
      %284 = vst.msk [vmem:[#allocation2 + $0x50] sm:$0xff] %vm272, 0.0
      %285 = vst.msk [vmem:[#allocation2 + $0x58] sm:$0xf] %vm275, 0.0
      %286 = vst.msk [vmem:[#allocation2 + $0x60] sm:$0xff] %vm272, 0.0
      %287 = vst.msk [vmem:[#allocation2 + $0x68] sm:$0xff] %vm272, 0.0
      %288 = vst.msk [vmem:[#allocation2 + $0x70] sm:$0xf] %vm275, 0.0
      %289 = vst.msk [vmem:[#allocation2 + $0x78] sm:$0xff] %vm272, 0.0
      %290 = vst.msk [vmem:[#allocation2 + $0x80] sm:$0xff] %vm272, 0.0
      %291 = vst.msk [vmem:[#allocation2 + $0x88] sm:$0xf] %vm275, 0.0
      %292 = vst.msk [vmem:[#allocation2 + $0x90] sm:$0xff] %vm272, 0.0
      %293 = vst.msk [vmem:[#allocation2 + $0x98] sm:$0xff] %vm272, 0.0
      %294 = vst.msk [vmem:[#allocation2 + $0xa0] sm:$0xf] %vm275, 0.0
      %295 = vst.msk [vmem:[#allocation2 + $0xa8] sm:$0xff] %vm272, 0.0
      %296 = vst.msk [vmem:[#allocation2 + $0xb0] sm:$0xff] %vm272, 0.0
      %297 = vst.msk [vmem:[#allocation2 + $0xb8] sm:$0xf] %vm275, 0.0
      %298 = vst.msk [vmem:[#allocation2 + $0xc0] sm:$0xff] %vm272, 0.0
      %299 = vst.msk [vmem:[#allocation2 + $0xc8] sm:$0xff] %vm272, 0.0
      %300 = vst.msk [vmem:[#allocation2 + $0xd0] sm:$0xf] %vm275, 0.0
      %301 = vst.msk [vmem:[#allocation2 + $0xd8] sm:$0xff] %vm272, 0.0
      %302 = vst.msk [vmem:[#allocation2 + $0xe0] sm:$0xff] %vm272, 0.0
      %303 = vst.msk [vmem:[#allocation2 + $0xe8] sm:$0xf] %vm275, 0.0
      %304 = vst.msk [vmem:[#allocation2 + $0xf0] sm:$0xff] %vm272, 0.0
      %305 = vst.msk [vmem:[#allocation2 + $0xf8] sm:$0xff] %vm272, 0.0
      %306 = vst.msk [vmem:[#allocation2 + $0x100] sm:$0xf] %vm275, 0.0
      %307 = vst.msk [vmem:[#allocation2 + $0x108] sm:$0xff] %vm272, 0.0
      %308 = vst.msk [vmem:[#allocation2 + $0x110] sm:$0xff] %vm272, 0.0
      %309 = vst.msk [vmem:[#allocation2 + $0x118] sm:$0xf] %vm275, 0.0
      %310 = vst.msk [vmem:[#allocation2 + $0x120] sm:$0xff] %vm272, 0.0
      %311 = vst.msk [vmem:[#allocation2 + $0x128] sm:$0xff] %vm272, 0.0
      %312 = vst.msk [vmem:[#allocation2 + $0x130] sm:$0xf] %vm275, 0.0
      %313 = vst.msk [vmem:[#allocation2 + $0x138] sm:$0xff] %vm272, 0.0
      %314 = vst.msk [vmem:[#allocation2 + $0x140] sm:$0xff] %vm272, 0.0
      %315 = vst.msk [vmem:[#allocation2 + $0x148] sm:$0xf] %vm275, 0.0
      %316 = vst.msk [vmem:[#allocation2 + $0x150] sm:$0xff] %vm272, 0.0
      %317 = vst.msk [vmem:[#allocation2 + $0x158] sm:$0xff] %vm272, 0.0
      %318 = vst.msk [vmem:[#allocation2 + $0x160] sm:$0xf] %vm275, 0.0
      %319 = vst.msk [vmem:[#allocation2 + $0x168] sm:$0xff] %vm272, 0.0
      %320 = vst.msk [vmem:[#allocation2 + $0x170] sm:$0xff] %vm272, 0.0
      %321 = vst.msk [vmem:[#allocation2 + $0x178] sm:$0xf] %vm275, 0.0
      %322 = vst.msk [vmem:[#allocation2 + $0x180] sm:$0xff] %vm272, 0.0
      %323 = vst.msk [vmem:[#allocation2 + $0x188] sm:$0xff] %vm272, 0.0
      %324 = vst.msk [vmem:[#allocation2 + $0x190] sm:$0xf] %vm275, 0.0
      %325 = vst.msk [vmem:[#allocation2 + $0x198] sm:$0xff] %vm272, 0.0
      %326 = vst.msk [vmem:[#allocation2 + $0x1a0] sm:$0xff] %vm272, 0.0
      %327 = vst.msk [vmem:[#allocation2 + $0x1a8] sm:$0xf] %vm275, 0.0
      %328 = vst.msk [vmem:[#allocation2 + $0x1b0] sm:$0xff] %vm272, 0.0
      %329 = vst.msk [vmem:[#allocation2 + $0x1b8] sm:$0xff] %vm272, 0.0
      %330 = vst.msk [vmem:[#allocation2 + $0x1c0] sm:$0xf] %vm275, 0.0
      %331 = vst.msk [vmem:[#allocation2 + $0x1c8] sm:$0xff] %vm272, 0.0
      %332 = vst.msk [vmem:[#allocation2 + $0x1d0] sm:$0xff] %vm272, 0.0
      %333 = vst.msk [vmem:[#allocation2 + $0x1d8] sm:$0xf] %vm275, 0.0
      %s334 = smul.u32 %s269, 2
      %s335 = smul.addr %s334, 4
      %s336 = scalar_lea.vmem %s250, %s335
      %v337 = vld [vmem:[%s336] sm:$0xf]
      %v338 = vld [vmem:[%s336 + $0x4] sm:$0xf]
      %v339 = vld [vmem:[%s336 + $0x8] sm:$0xf]
      %v340 = vld [vmem:[%s336 + $0xc] sm:$0xf]
      %v341 = vld [vmem:[%s336 + $0x10] sm:$0xf]
      %v342 = vld [vmem:[%s336 + $0x14] sm:$0xf]
      %v343 = vld [vmem:[%s336 + $0x18] sm:$0xf]
      %v344 = vld [vmem:[%s336 + $0x1c] sm:$0xf]
      %v345 = vld [vmem:[%s336 + $0x20] sm:$0xf]
      %v346 = vld [vmem:[%s336 + $0x24] sm:$0xf]
      %v347 = vld [vmem:[%s336 + $0x28] sm:$0xf]
      %v348 = vld [vmem:[%s336 + $0x2c] sm:$0xf]
      %v349 = vld [vmem:[%s336 + $0x30] sm:$0xf]
      %v350 = vld [vmem:[%s336 + $0x34] sm:$0xf]
      %v351 = vld [vmem:[%s336 + $0x38] sm:$0xf]
      %v352 = vld [vmem:[%s336 + $0x3c] sm:$0xf]
      %v353 = vld [vmem:[%s336 + $0x40] sm:$0xf]
      %v354 = vld [vmem:[%s336 + $0x44] sm:$0xf]
      %v355 = vld [vmem:[%s336 + $0x48] sm:$0xf]
      %v356 = vld [vmem:[%s336 + $0x4c] sm:$0xf]
      %v357 = vld [vmem:[%s336 + $0x50] sm:$0xf]
      %v358 = vld [vmem:[%s336 + $0x54] sm:$0xf]
      %v359 = vld [vmem:[%s336 + $0x58] sm:$0xf]
      %v360 = vld [vmem:[%s336 + $0x5c] sm:$0xf]
      %v361 = vld [vmem:[%s336 + $0x60] sm:$0xf]
      %v362 = vld [vmem:[%s336 + $0x64] sm:$0xf]
      %v363 = vld [vmem:[%s336 + $0x68] sm:$0xf]
      %v364 = vld [vmem:[%s336 + $0x6c] sm:$0xf]
      %v365 = vld [vmem:[%s336 + $0x70] sm:$0xf]
      %v366 = vld [vmem:[%s336 + $0x74] sm:$0xf]
      %v367 = vld [vmem:[%s336 + $0x78] sm:$0xf]
      %v368 = vld [vmem:[%s336 + $0x7c] sm:$0xf]
      %v369 = vunpack.c.l.bf16 %v337
      %v370 = vunpack.c.l.bf16 %v338
      %v371 = vunpack.c.l.bf16 %v339
      %v372 = vunpack.c.l.bf16 %v340
      %v373 = vunpack.c.l.bf16 %v341
      %v374 = vunpack.c.l.bf16 %v342
      %v375 = vunpack.c.l.bf16 %v343
      %v376 = vunpack.c.l.bf16 %v344
      %v377 = vunpack.c.l.bf16 %v345
      %v378 = vunpack.c.l.bf16 %v346
      %v379 = vunpack.c.l.bf16 %v347
      %v380 = vunpack.c.l.bf16 %v348
      %v381 = vunpack.c.l.bf16 %v349
      %v382 = vunpack.c.l.bf16 %v350
      %v383 = vunpack.c.l.bf16 %v351
      %v384 = vunpack.c.l.bf16 %v352
      %v385 = vunpack.c.l.bf16 %v353
      %v386 = vunpack.c.l.bf16 %v354
      %v387 = vunpack.c.l.bf16 %v355
      %v388 = vunpack.c.l.bf16 %v356
      %v389 = vunpack.c.l.bf16 %v357
      %v390 = vunpack.c.l.bf16 %v358
      %v391 = vunpack.c.l.bf16 %v359
      %v392 = vunpack.c.l.bf16 %v360
      %v393 = vunpack.c.l.bf16 %v361
      %v394 = vunpack.c.l.bf16 %v362
      %v395 = vunpack.c.l.bf16 %v363
      %v396 = vunpack.c.l.bf16 %v364
      %v397 = vunpack.c.l.bf16 %v365
      %v398 = vunpack.c.l.bf16 %v366
      %v399 = vunpack.c.l.bf16 %v367
      %v400 = vunpack.c.l.bf16 %v368
      %v402 = vperm.slane %v270, 0
      %v404 = vmul.f32 %v369, %v402
      %v405 = vmul.f32 %v370, %v402
      %v406 = vmul.f32 %v371, %v402
      %v407 = vmul.f32 %v372, %v402
      %v408 = vmul.f32 %v373, %v402
      %v409 = vmul.f32 %v374, %v402
      %v410 = vmul.f32 %v375, %v402
      %v411 = vmul.f32 %v376, %v402
      %v412 = vmul.f32 %v377, %v402
      %v413 = vmul.f32 %v378, %v402
      %v414 = vmul.f32 %v379, %v402
      %v415 = vmul.f32 %v380, %v402
      %v416 = vmul.f32 %v381, %v402
      %v417 = vmul.f32 %v382, %v402
      %v418 = vmul.f32 %v383, %v402
      %v419 = vmul.f32 %v384, %v402
      %v420 = vmul.f32 %v385, %v402
      %v421 = vmul.f32 %v386, %v402
      %v422 = vmul.f32 %v387, %v402
      %v423 = vmul.f32 %v388, %v402
      %v424 = vmul.f32 %v389, %v402
      %v425 = vmul.f32 %v390, %v402
      %v426 = vmul.f32 %v391, %v402
      %v427 = vmul.f32 %v392, %v402
      %v428 = vmul.f32 %v393, %v402
      %v429 = vmul.f32 %v394, %v402
      %v430 = vmul.f32 %v395, %v402
      %v431 = vmul.f32 %v396, %v402
      %v432 = vmul.f32 %v397, %v402
      %v433 = vmul.f32 %v398, %v402
      %v434 = vmul.f32 %v399, %v402
      %v435 = vmul.f32 %v400, %v402
      %v437 = vperm.slane %v271, 0
      %v439 = vadd.f32 %v404, %v437
      %v440 = vadd.f32 %v405, %v437
      %v441 = vadd.f32 %v406, %v437
      %v442 = vadd.f32 %v407, %v437
      %v443 = vadd.f32 %v408, %v437
      %v444 = vadd.f32 %v409, %v437
      %v445 = vadd.f32 %v410, %v437
      %v446 = vadd.f32 %v411, %v437
      %v447 = vadd.f32 %v412, %v437
      %v448 = vadd.f32 %v413, %v437
      %v449 = vadd.f32 %v414, %v437
      %v450 = vadd.f32 %v415, %v437
      %v451 = vadd.f32 %v416, %v437
      %v452 = vadd.f32 %v417, %v437
      %v453 = vadd.f32 %v418, %v437
      %v454 = vadd.f32 %v419, %v437
      %v455 = vadd.f32 %v420, %v437
      %v456 = vadd.f32 %v421, %v437
      %v457 = vadd.f32 %v422, %v437
      %v458 = vadd.f32 %v423, %v437
      %v459 = vadd.f32 %v424, %v437
      %v460 = vadd.f32 %v425, %v437
      %v461 = vadd.f32 %v426, %v437
      %v462 = vadd.f32 %v427, %v437
      %v463 = vadd.f32 %v428, %v437
      %v464 = vadd.f32 %v429, %v437
      %v465 = vadd.f32 %v430, %v437
      %v466 = vadd.f32 %v431, %v437
      %v467 = vadd.f32 %v432, %v437
      %v468 = vadd.f32 %v433, %v437
      %v469 = vadd.f32 %v434, %v437
      %v470 = vadd.f32 %v435, %v437
      %v471 = vsub.f32 0.0, %v439
      %v472 = vsub.f32 0.0, %v440
      %v473 = vsub.f32 0.0, %v441
      %v474 = vsub.f32 0.0, %v442
      %v475 = vsub.f32 0.0, %v443
      %v476 = vsub.f32 0.0, %v444
      %v477 = vsub.f32 0.0, %v445
      %v478 = vsub.f32 0.0, %v446
      %v479 = vsub.f32 0.0, %v447
      %v480 = vsub.f32 0.0, %v448
      %v481 = vsub.f32 0.0, %v449
      %v482 = vsub.f32 0.0, %v450
      %v483 = vsub.f32 0.0, %v451
      %v484 = vsub.f32 0.0, %v452
      %v485 = vsub.f32 0.0, %v453
      %v486 = vsub.f32 0.0, %v454
      %v487 = vsub.f32 0.0, %v455
      %v488 = vsub.f32 0.0, %v456
      %v489 = vsub.f32 0.0, %v457
      %v490 = vsub.f32 0.0, %v458
      %v491 = vsub.f32 0.0, %v459
      %v492 = vsub.f32 0.0, %v460
      %v493 = vsub.f32 0.0, %v461
      %v494 = vsub.f32 0.0, %v462
      %v495 = vsub.f32 0.0, %v463
      %v496 = vsub.f32 0.0, %v464
      %v497 = vsub.f32 0.0, %v465
      %v498 = vsub.f32 0.0, %v466
      %v499 = vsub.f32 0.0, %v467
      %v500 = vsub.f32 0.0, %v468
      %v501 = vsub.f32 0.0, %v469
      %v502 = vsub.f32 0.0, %v470
      %v503 = vmul.f32 %v471, 1.442695
      %v504 = vpow.pop %v503
      %v505 = vmul.f32 %v472, 1.442695
      %v506 = vpow.pop %v505
      %v507 = vmul.f32 %v473, 1.442695
      %v508 = vpow.pop %v507
      %v509 = vmul.f32 %v474, 1.442695
      %v510 = vpow.pop %v509
      %v511 = vmul.f32 %v475, 1.442695
      %v512 = vpow.pop %v511
      %v513 = vmul.f32 %v476, 1.442695
      %v514 = vpow.pop %v513
      %v515 = vmul.f32 %v477, 1.442695
      %v516 = vpow.pop %v515
      %v517 = vmul.f32 %v478, 1.442695
      %v518 = vpow.pop %v517
      %v519 = vmul.f32 %v479, 1.442695
      %v520 = vpow.pop %v519
      %v521 = vmul.f32 %v480, 1.442695
      %v522 = vpow.pop %v521
      %v523 = vmul.f32 %v481, 1.442695
      %v524 = vpow.pop %v523
      %v525 = vmul.f32 %v482, 1.442695
      %v526 = vpow.pop %v525
      %v527 = vmul.f32 %v483, 1.442695
      %v528 = vpow.pop %v527
      %v529 = vmul.f32 %v484, 1.442695
      %v530 = vpow.pop %v529
      %v531 = vmul.f32 %v485, 1.442695
      %v532 = vpow.pop %v531
      %v533 = vmul.f32 %v486, 1.442695
      %v534 = vpow.pop %v533
      %v535 = vmul.f32 %v487, 1.442695
      %v536 = vpow.pop %v535
      %v537 = vmul.f32 %v488, 1.442695
      %v538 = vpow.pop %v537
      %v539 = vmul.f32 %v489, 1.442695
      %v540 = vpow.pop %v539
      %v541 = vmul.f32 %v490, 1.442695
      %v542 = vpow.pop %v541
      %v543 = vmul.f32 %v491, 1.442695
      %v544 = vpow.pop %v543
      %v545 = vmul.f32 %v492, 1.442695
      %v546 = vpow.pop %v545
      %v547 = vmul.f32 %v493, 1.442695
      %v548 = vpow.pop %v547
      %v549 = vmul.f32 %v494, 1.442695
      %v550 = vpow.pop %v549
      %v551 = vmul.f32 %v495, 1.442695
      %v552 = vpow.pop %v551
      %v553 = vmul.f32 %v496, 1.442695
      %v554 = vpow.pop %v553
      %v555 = vmul.f32 %v497, 1.442695
      %v556 = vpow.pop %v555
      %v557 = vmul.f32 %v498, 1.442695
      %v558 = vpow.pop %v557
      %v559 = vmul.f32 %v499, 1.442695
      %v560 = vpow.pop %v559
      %v561 = vmul.f32 %v500, 1.442695
      %v562 = vpow.pop %v561
      %v563 = vmul.f32 %v501, 1.442695
      %v564 = vpow.pop %v563
      %v565 = vmul.f32 %v502, 1.442695
      %v566 = vpow.pop %v565
      %v567 = vadd.f32 %v504, 1.0
      %v568 = vadd.f32 %v506, 1.0
      %v569 = vadd.f32 %v508, 1.0
      %v570 = vadd.f32 %v510, 1.0
      %v571 = vadd.f32 %v512, 1.0
      %v572 = vadd.f32 %v514, 1.0
      %v573 = vadd.f32 %v516, 1.0
      %v574 = vadd.f32 %v518, 1.0
      %v575 = vadd.f32 %v520, 1.0
      %v576 = vadd.f32 %v522, 1.0
      %v577 = vadd.f32 %v524, 1.0
      %v578 = vadd.f32 %v526, 1.0
      %v579 = vadd.f32 %v528, 1.0
      %v580 = vadd.f32 %v530, 1.0
      %v581 = vadd.f32 %v532, 1.0
      %v582 = vadd.f32 %v534, 1.0
      %v583 = vadd.f32 %v536, 1.0
      %v584 = vadd.f32 %v538, 1.0
      %v585 = vadd.f32 %v540, 1.0
      %v586 = vadd.f32 %v542, 1.0
      %v587 = vadd.f32 %v544, 1.0
      %v588 = vadd.f32 %v546, 1.0
      %v589 = vadd.f32 %v548, 1.0
      %v590 = vadd.f32 %v550, 1.0
      %v591 = vadd.f32 %v552, 1.0
      %v592 = vadd.f32 %v554, 1.0
      %v593 = vadd.f32 %v556, 1.0
      %v594 = vadd.f32 %v558, 1.0
      %v595 = vadd.f32 %v560, 1.0
      %v596 = vadd.f32 %v562, 1.0
      %v597 = vadd.f32 %v564, 1.0
      %v598 = vadd.f32 %v566, 1.0
      %v599 = vrcp.pop %v567
      %v600 = vmul.f32 %v567, %v599
      %v601 = vsub.f32 1.0, %v600
      %v602 = vmul.f32 %v599, %v601
      %v603 = vadd.f32 %v599, %v602
      %vm604 = vweird.f32 %v567
      %vm605 = vweird.f32 %v599
      %vm606 = vmor %vm604, %vm605
      %v607 = vsel %vm606, %v599, %v603
      %v608 = vand.u32 2147483647, %v567
      %vm609 = vcmp.eq.f32.partialorder %v608, 8.507059e+37
      %v610 = vand.u32 %v567, 2147483648
      %v611 = vor.u32 1.1754944e-38, %v610
      %v612 = vsel %vm609, %v611, %v607
      %v613 = vmul.f32 %v439, %v612
      %v614 = vrcp.pop %v568
      %v615 = vmul.f32 %v568, %v614
      %v616 = vsub.f32 1.0, %v615
      %v617 = vmul.f32 %v614, %v616
      %v618 = vadd.f32 %v614, %v617
      %vm619 = vweird.f32 %v568
      %vm620 = vweird.f32 %v614
      %vm621 = vmor %vm619, %vm620
      %v622 = vsel %vm621, %v614, %v618
      %v623 = vand.u32 2147483647, %v568
      %vm624 = vcmp.eq.f32.partialorder %v623, 8.507059e+37
      %v625 = vand.u32 %v568, 2147483648
      %v626 = vor.u32 1.1754944e-38, %v625
      %v627 = vsel %vm624, %v626, %v622
      %v628 = vmul.f32 %v440, %v627
      %v629 = vrcp.pop %v569
      %v630 = vmul.f32 %v569, %v629
      %v631 = vsub.f32 1.0, %v630
      %v632 = vmul.f32 %v629, %v631
      %v633 = vadd.f32 %v629, %v632
      %vm634 = vweird.f32 %v569
      %vm635 = vweird.f32 %v629
      %vm636 = vmor %vm634, %vm635
      %v637 = vsel %vm636, %v629, %v633
      %v638 = vand.u32 2147483647, %v569
      %vm639 = vcmp.eq.f32.partialorder %v638, 8.507059e+37
      %v640 = vand.u32 %v569, 2147483648
      %v641 = vor.u32 1.1754944e-38, %v640
      %v642 = vsel %vm639, %v641, %v637
      %v643 = vmul.f32 %v441, %v642
      %v644 = vrcp.pop %v570
      %v645 = vmul.f32 %v570, %v644
      %v646 = vsub.f32 1.0, %v645
      %v647 = vmul.f32 %v644, %v646
      %v648 = vadd.f32 %v644, %v647
      %vm649 = vweird.f32 %v570
      %vm650 = vweird.f32 %v644
      %vm651 = vmor %vm649, %vm650
      %v652 = vsel %vm651, %v644, %v648
      %v653 = vand.u32 2147483647, %v570
      %vm654 = vcmp.eq.f32.partialorder %v653, 8.507059e+37
      %v655 = vand.u32 %v570, 2147483648
      %v656 = vor.u32 1.1754944e-38, %v655
      %v657 = vsel %vm654, %v656, %v652
      %v658 = vmul.f32 %v442, %v657
      %v659 = vrcp.pop %v571
      %v660 = vmul.f32 %v571, %v659
      %v661 = vsub.f32 1.0, %v660
      %v662 = vmul.f32 %v659, %v661
      %v663 = vadd.f32 %v659, %v662
      %vm664 = vweird.f32 %v571
      %vm665 = vweird.f32 %v659
      %vm666 = vmor %vm664, %vm665
      %v667 = vsel %vm666, %v659, %v663
      %v668 = vand.u32 2147483647, %v571
      %vm669 = vcmp.eq.f32.partialorder %v668, 8.507059e+37
      %v670 = vand.u32 %v571, 2147483648
      %v671 = vor.u32 1.1754944e-38, %v670
      %v672 = vsel %vm669, %v671, %v667
      %v673 = vmul.f32 %v443, %v672
      %v674 = vrcp.pop %v572
      %v675 = vmul.f32 %v572, %v674
      %v676 = vsub.f32 1.0, %v675
      %v677 = vmul.f32 %v674, %v676
      %v678 = vadd.f32 %v674, %v677
      %vm679 = vweird.f32 %v572
      %vm680 = vweird.f32 %v674
      %vm681 = vmor %vm679, %vm680
      %v682 = vsel %vm681, %v674, %v678
      %v683 = vand.u32 2147483647, %v572
      %vm684 = vcmp.eq.f32.partialorder %v683, 8.507059e+37
      %v685 = vand.u32 %v572, 2147483648
      %v686 = vor.u32 1.1754944e-38, %v685
      %v687 = vsel %vm684, %v686, %v682
      %v688 = vmul.f32 %v444, %v687
      %v689 = vrcp.pop %v573
      %v690 = vmul.f32 %v573, %v689
      %v691 = vsub.f32 1.0, %v690
      %v692 = vmul.f32 %v689, %v691
      %v693 = vadd.f32 %v689, %v692
      %vm694 = vweird.f32 %v573
      %vm695 = vweird.f32 %v689
      %vm696 = vmor %vm694, %vm695
      %v697 = vsel %vm696, %v689, %v693
      %v698 = vand.u32 2147483647, %v573
      %vm699 = vcmp.eq.f32.partialorder %v698, 8.507059e+37
      %v700 = vand.u32 %v573, 2147483648
      %v701 = vor.u32 1.1754944e-38, %v700
      %v702 = vsel %vm699, %v701, %v697
      %v703 = vmul.f32 %v445, %v702
      %v704 = vrcp.pop %v574
      %v705 = vmul.f32 %v574, %v704
      %v706 = vsub.f32 1.0, %v705
      %v707 = vmul.f32 %v704, %v706
      %v708 = vadd.f32 %v704, %v707
      %vm709 = vweird.f32 %v574
      %vm710 = vweird.f32 %v704
      %vm711 = vmor %vm709, %vm710
      %v712 = vsel %vm711, %v704, %v708
      %v713 = vand.u32 2147483647, %v574
      %vm714 = vcmp.eq.f32.partialorder %v713, 8.507059e+37
      %v715 = vand.u32 %v574, 2147483648
      %v716 = vor.u32 1.1754944e-38, %v715
      %v717 = vsel %vm714, %v716, %v712
      %v718 = vmul.f32 %v446, %v717
      %v719 = vrcp.pop %v575
      %v720 = vmul.f32 %v575, %v719
      %v721 = vsub.f32 1.0, %v720
      %v722 = vmul.f32 %v719, %v721
      %v723 = vadd.f32 %v719, %v722
      %vm724 = vweird.f32 %v575
      %vm725 = vweird.f32 %v719
      %vm726 = vmor %vm724, %vm725
      %v727 = vsel %vm726, %v719, %v723
      %v728 = vand.u32 2147483647, %v575
      %vm729 = vcmp.eq.f32.partialorder %v728, 8.507059e+37
      %v730 = vand.u32 %v575, 2147483648
      %v731 = vor.u32 1.1754944e-38, %v730
      %v732 = vsel %vm729, %v731, %v727
      %v733 = vmul.f32 %v447, %v732
      %v734 = vrcp.pop %v576
      %v735 = vmul.f32 %v576, %v734
      %v736 = vsub.f32 1.0, %v735
      %v737 = vmul.f32 %v734, %v736
      %v738 = vadd.f32 %v734, %v737
      %vm739 = vweird.f32 %v576
      %vm740 = vweird.f32 %v734
      %vm741 = vmor %vm739, %vm740
      %v742 = vsel %vm741, %v734, %v738
      %v743 = vand.u32 2147483647, %v576
      %vm744 = vcmp.eq.f32.partialorder %v743, 8.507059e+37
      %v745 = vand.u32 %v576, 2147483648
      %v746 = vor.u32 1.1754944e-38, %v745
      %v747 = vsel %vm744, %v746, %v742
      %v748 = vmul.f32 %v448, %v747
      %v749 = vrcp.pop %v577
      %v750 = vmul.f32 %v577, %v749
      %v751 = vsub.f32 1.0, %v750
      %v752 = vmul.f32 %v749, %v751
      %v753 = vadd.f32 %v749, %v752
      %vm754 = vweird.f32 %v577
      %vm755 = vweird.f32 %v749
      %vm756 = vmor %vm754, %vm755
      %v757 = vsel %vm756, %v749, %v753
      %v758 = vand.u32 2147483647, %v577
      %vm759 = vcmp.eq.f32.partialorder %v758, 8.507059e+37
      %v760 = vand.u32 %v577, 2147483648
      %v761 = vor.u32 1.1754944e-38, %v760
      %v762 = vsel %vm759, %v761, %v757
      %v763 = vmul.f32 %v449, %v762
      %v764 = vrcp.pop %v578
      %v765 = vmul.f32 %v578, %v764
      %v766 = vsub.f32 1.0, %v765
      %v767 = vmul.f32 %v764, %v766
      %v768 = vadd.f32 %v764, %v767
      %vm769 = vweird.f32 %v578
      %vm770 = vweird.f32 %v764
      %vm771 = vmor %vm769, %vm770
      %v772 = vsel %vm771, %v764, %v768
      %v773 = vand.u32 2147483647, %v578
      %vm774 = vcmp.eq.f32.partialorder %v773, 8.507059e+37
      %v775 = vand.u32 %v578, 2147483648
      %v776 = vor.u32 1.1754944e-38, %v775
      %v777 = vsel %vm774, %v776, %v772
      %v778 = vmul.f32 %v450, %v777
      %v779 = vrcp.pop %v579
      %v780 = vmul.f32 %v579, %v779
      %v781 = vsub.f32 1.0, %v780
      %v782 = vmul.f32 %v779, %v781
      %v783 = vadd.f32 %v779, %v782
      %vm784 = vweird.f32 %v579
      %vm785 = vweird.f32 %v779
      %vm786 = vmor %vm784, %vm785
      %v787 = vsel %vm786, %v779, %v783
      %v788 = vand.u32 2147483647, %v579
      %vm789 = vcmp.eq.f32.partialorder %v788, 8.507059e+37
      %v790 = vand.u32 %v579, 2147483648
      %v791 = vor.u32 1.1754944e-38, %v790
      %v792 = vsel %vm789, %v791, %v787
      %v793 = vmul.f32 %v451, %v792
      %v794 = vrcp.pop %v580
      %v795 = vmul.f32 %v580, %v794
      %v796 = vsub.f32 1.0, %v795
      %v797 = vmul.f32 %v794, %v796
      %v798 = vadd.f32 %v794, %v797
      %vm799 = vweird.f32 %v580
      %vm800 = vweird.f32 %v794
      %vm801 = vmor %vm799, %vm800
      %v802 = vsel %vm801, %v794, %v798
      %v803 = vand.u32 2147483647, %v580
      %vm804 = vcmp.eq.f32.partialorder %v803, 8.507059e+37
      %v805 = vand.u32 %v580, 2147483648
      %v806 = vor.u32 1.1754944e-38, %v805
      %v807 = vsel %vm804, %v806, %v802
      %v808 = vmul.f32 %v452, %v807
      %v809 = vrcp.pop %v581
      %v810 = vmul.f32 %v581, %v809
      %v811 = vsub.f32 1.0, %v810
      %v812 = vmul.f32 %v809, %v811
      %v813 = vadd.f32 %v809, %v812
      %vm814 = vweird.f32 %v581
      %vm815 = vweird.f32 %v809
      %vm816 = vmor %vm814, %vm815
      %v817 = vsel %vm816, %v809, %v813
      %v818 = vand.u32 2147483647, %v581
      %vm819 = vcmp.eq.f32.partialorder %v818, 8.507059e+37
      %v820 = vand.u32 %v581, 2147483648
      %v821 = vor.u32 1.1754944e-38, %v820
      %v822 = vsel %vm819, %v821, %v817
      %v823 = vmul.f32 %v453, %v822
      %v824 = vrcp.pop %v582
      %v825 = vmul.f32 %v582, %v824
      %v826 = vsub.f32 1.0, %v825
      %v827 = vmul.f32 %v824, %v826
      %v828 = vadd.f32 %v824, %v827
      %vm829 = vweird.f32 %v582
      %vm830 = vweird.f32 %v824
      %vm831 = vmor %vm829, %vm830
      %v832 = vsel %vm831, %v824, %v828
      %v833 = vand.u32 2147483647, %v582
      %vm834 = vcmp.eq.f32.partialorder %v833, 8.507059e+37
      %v835 = vand.u32 %v582, 2147483648
      %v836 = vor.u32 1.1754944e-38, %v835
      %v837 = vsel %vm834, %v836, %v832
      %v838 = vmul.f32 %v454, %v837
      %v839 = vrcp.pop %v583
      %v840 = vmul.f32 %v583, %v839
      %v841 = vsub.f32 1.0, %v840
      %v842 = vmul.f32 %v839, %v841
      %v843 = vadd.f32 %v839, %v842
      %vm844 = vweird.f32 %v583
      %vm845 = vweird.f32 %v839
      %vm846 = vmor %vm844, %vm845
      %v847 = vsel %vm846, %v839, %v843
      %v848 = vand.u32 2147483647, %v583
      %vm849 = vcmp.eq.f32.partialorder %v848, 8.507059e+37
      %v850 = vand.u32 %v583, 2147483648
      %v851 = vor.u32 1.1754944e-38, %v850
      %v852 = vsel %vm849, %v851, %v847
      %v853 = vmul.f32 %v455, %v852
      %v854 = vrcp.pop %v584
      %v855 = vmul.f32 %v584, %v854
      %v856 = vsub.f32 1.0, %v855
      %v857 = vmul.f32 %v854, %v856
      %v858 = vadd.f32 %v854, %v857
      %vm859 = vweird.f32 %v584
      %vm860 = vweird.f32 %v854
      %vm861 = vmor %vm859, %vm860
      %v862 = vsel %vm861, %v854, %v858
      %v863 = vand.u32 2147483647, %v584
      %vm864 = vcmp.eq.f32.partialorder %v863, 8.507059e+37
      %v865 = vand.u32 %v584, 2147483648
      %v866 = vor.u32 1.1754944e-38, %v865
      %v867 = vsel %vm864, %v866, %v862
      %v868 = vmul.f32 %v456, %v867
      %v869 = vrcp.pop %v585
      %v870 = vmul.f32 %v585, %v869
      %v871 = vsub.f32 1.0, %v870
      %v872 = vmul.f32 %v869, %v871
      %v873 = vadd.f32 %v869, %v872
      %vm874 = vweird.f32 %v585
      %vm875 = vweird.f32 %v869
      %vm876 = vmor %vm874, %vm875
      %v877 = vsel %vm876, %v869, %v873
      %v878 = vand.u32 2147483647, %v585
      %vm879 = vcmp.eq.f32.partialorder %v878, 8.507059e+37
      %v880 = vand.u32 %v585, 2147483648
      %v881 = vor.u32 1.1754944e-38, %v880
      %v882 = vsel %vm879, %v881, %v877
      %v883 = vmul.f32 %v457, %v882
      %v884 = vrcp.pop %v586
      %v885 = vmul.f32 %v586, %v884
      %v886 = vsub.f32 1.0, %v885
      %v887 = vmul.f32 %v884, %v886
      %v888 = vadd.f32 %v884, %v887
      %vm889 = vweird.f32 %v586
      %vm890 = vweird.f32 %v884
      %vm891 = vmor %vm889, %vm890
      %v892 = vsel %vm891, %v884, %v888
      %v893 = vand.u32 2147483647, %v586
      %vm894 = vcmp.eq.f32.partialorder %v893, 8.507059e+37
      %v895 = vand.u32 %v586, 2147483648
      %v896 = vor.u32 1.1754944e-38, %v895
      %v897 = vsel %vm894, %v896, %v892
      %v898 = vmul.f32 %v458, %v897
      %v899 = vrcp.pop %v587
      %v900 = vmul.f32 %v587, %v899
      %v901 = vsub.f32 1.0, %v900
      %v902 = vmul.f32 %v899, %v901
      %v903 = vadd.f32 %v899, %v902
      %vm904 = vweird.f32 %v587
      %vm905 = vweird.f32 %v899
      %vm906 = vmor %vm904, %vm905
      %v907 = vsel %vm906, %v899, %v903
      %v908 = vand.u32 2147483647, %v587
      %vm909 = vcmp.eq.f32.partialorder %v908, 8.507059e+37
      %v910 = vand.u32 %v587, 2147483648
      %v911 = vor.u32 1.1754944e-38, %v910
      %v912 = vsel %vm909, %v911, %v907
      %v913 = vmul.f32 %v459, %v912
      %v914 = vrcp.pop %v588
      %v915 = vmul.f32 %v588, %v914
      %v916 = vsub.f32 1.0, %v915
      %v917 = vmul.f32 %v914, %v916
      %v918 = vadd.f32 %v914, %v917
      %vm919 = vweird.f32 %v588
      %vm920 = vweird.f32 %v914
      %vm921 = vmor %vm919, %vm920
      %v922 = vsel %vm921, %v914, %v918
      %v923 = vand.u32 2147483647, %v588
      %vm924 = vcmp.eq.f32.partialorder %v923, 8.507059e+37
      %v925 = vand.u32 %v588, 2147483648
      %v926 = vor.u32 1.1754944e-38, %v925
      %v927 = vsel %vm924, %v926, %v922
      %v928 = vmul.f32 %v460, %v927
      %v929 = vrcp.pop %v589
      %v930 = vmul.f32 %v589, %v929
      %v931 = vsub.f32 1.0, %v930
      %v932 = vmul.f32 %v929, %v931
      %v933 = vadd.f32 %v929, %v932
      %vm934 = vweird.f32 %v589
      %vm935 = vweird.f32 %v929
      %vm936 = vmor %vm934, %vm935
      %v937 = vsel %vm936, %v929, %v933
      %v938 = vand.u32 2147483647, %v589
      %vm939 = vcmp.eq.f32.partialorder %v938, 8.507059e+37
      %v940 = vand.u32 %v589, 2147483648
      %v941 = vor.u32 1.1754944e-38, %v940
      %v942 = vsel %vm939, %v941, %v937
      %v943 = vmul.f32 %v461, %v942
      %v944 = vrcp.pop %v590
      %v945 = vmul.f32 %v590, %v944
      %v946 = vsub.f32 1.0, %v945
      %v947 = vmul.f32 %v944, %v946
      %v948 = vadd.f32 %v944, %v947
      %vm949 = vweird.f32 %v590
      %vm950 = vweird.f32 %v944
      %vm951 = vmor %vm949, %vm950
      %v952 = vsel %vm951, %v944, %v948
      %v953 = vand.u32 2147483647, %v590
      %vm954 = vcmp.eq.f32.partialorder %v953, 8.507059e+37
      %v955 = vand.u32 %v590, 2147483648
      %v956 = vor.u32 1.1754944e-38, %v955
      %v957 = vsel %vm954, %v956, %v952
      %v958 = vmul.f32 %v462, %v957
      %v959 = vrcp.pop %v591
      %v960 = vmul.f32 %v591, %v959
      %v961 = vsub.f32 1.0, %v960
      %v962 = vmul.f32 %v959, %v961
      %v963 = vadd.f32 %v959, %v962
      %vm964 = vweird.f32 %v591
      %vm965 = vweird.f32 %v959
      %vm966 = vmor %vm964, %vm965
      %v967 = vsel %vm966, %v959, %v963
      %v968 = vand.u32 2147483647, %v591
      %vm969 = vcmp.eq.f32.partialorder %v968, 8.507059e+37
      %v970 = vand.u32 %v591, 2147483648
      %v971 = vor.u32 1.1754944e-38, %v970
      %v972 = vsel %vm969, %v971, %v967
      %v973 = vmul.f32 %v463, %v972
      %v974 = vrcp.pop %v592
      %v975 = vmul.f32 %v592, %v974
      %v976 = vsub.f32 1.0, %v975
      %v977 = vmul.f32 %v974, %v976
      %v978 = vadd.f32 %v974, %v977
      %vm979 = vweird.f32 %v592
      %vm980 = vweird.f32 %v974
      %vm981 = vmor %vm979, %vm980
      %v982 = vsel %vm981, %v974, %v978
      %v983 = vand.u32 2147483647, %v592
      %vm984 = vcmp.eq.f32.partialorder %v983, 8.507059e+37
      %v985 = vand.u32 %v592, 2147483648
      %v986 = vor.u32 1.1754944e-38, %v985
      %v987 = vsel %vm984, %v986, %v982
      %v988 = vmul.f32 %v464, %v987
      %v989 = vrcp.pop %v593
      %v990 = vmul.f32 %v593, %v989
      %v991 = vsub.f32 1.0, %v990
      %v992 = vmul.f32 %v989, %v991
      %v993 = vadd.f32 %v989, %v992
      %vm994 = vweird.f32 %v593
      %vm995 = vweird.f32 %v989
      %vm996 = vmor %vm994, %vm995
      %v997 = vsel %vm996, %v989, %v993
      %v998 = vand.u32 2147483647, %v593
      %vm999 = vcmp.eq.f32.partialorder %v998, 8.507059e+37
      %v1000 = vand.u32 %v593, 2147483648
      %v1001 = vor.u32 1.1754944e-38, %v1000
      %v1002 = vsel %vm999, %v1001, %v997
      %v1003 = vmul.f32 %v465, %v1002
      %v1004 = vrcp.pop %v594
      %v1005 = vmul.f32 %v594, %v1004
      %v1006 = vsub.f32 1.0, %v1005
      %v1007 = vmul.f32 %v1004, %v1006
      %v1008 = vadd.f32 %v1004, %v1007
      %vm1009 = vweird.f32 %v594
      %vm1010 = vweird.f32 %v1004
      %vm1011 = vmor %vm1009, %vm1010
      %v1012 = vsel %vm1011, %v1004, %v1008
      %v1013 = vand.u32 2147483647, %v594
      %vm1014 = vcmp.eq.f32.partialorder %v1013, 8.507059e+37
      %v1015 = vand.u32 %v594, 2147483648
      %v1016 = vor.u32 1.1754944e-38, %v1015
      %v1017 = vsel %vm1014, %v1016, %v1012
      %v1018 = vmul.f32 %v466, %v1017
      %v1019 = vrcp.pop %v595
      %v1020 = vmul.f32 %v595, %v1019
      %v1021 = vsub.f32 1.0, %v1020
      %v1022 = vmul.f32 %v1019, %v1021
      %v1023 = vadd.f32 %v1019, %v1022
      %vm1024 = vweird.f32 %v595
      %vm1025 = vweird.f32 %v1019
      %vm1026 = vmor %vm1024, %vm1025
      %v1027 = vsel %vm1026, %v1019, %v1023
      %v1028 = vand.u32 2147483647, %v595
      %vm1029 = vcmp.eq.f32.partialorder %v1028, 8.507059e+37
      %v1030 = vand.u32 %v595, 2147483648
      %v1031 = vor.u32 1.1754944e-38, %v1030
      %v1032 = vsel %vm1029, %v1031, %v1027
      %v1033 = vmul.f32 %v467, %v1032
      %v1034 = vrcp.pop %v596
      %v1035 = vmul.f32 %v596, %v1034
      %v1036 = vsub.f32 1.0, %v1035
      %v1037 = vmul.f32 %v1034, %v1036
      %v1038 = vadd.f32 %v1034, %v1037
      %vm1039 = vweird.f32 %v596
      %vm1040 = vweird.f32 %v1034
      %vm1041 = vmor %vm1039, %vm1040
      %v1042 = vsel %vm1041, %v1034, %v1038
      %v1043 = vand.u32 2147483647, %v596
      %vm1044 = vcmp.eq.f32.partialorder %v1043, 8.507059e+37
      %v1045 = vand.u32 %v596, 2147483648
      %v1046 = vor.u32 1.1754944e-38, %v1045
      %v1047 = vsel %vm1044, %v1046, %v1042
      %v1048 = vmul.f32 %v468, %v1047
      %v1049 = vrcp.pop %v597
      %v1050 = vmul.f32 %v597, %v1049
      %v1051 = vsub.f32 1.0, %v1050
      %v1052 = vmul.f32 %v1049, %v1051
      %v1053 = vadd.f32 %v1049, %v1052
      %vm1054 = vweird.f32 %v597
      %vm1055 = vweird.f32 %v1049
      %vm1056 = vmor %vm1054, %vm1055
      %v1057 = vsel %vm1056, %v1049, %v1053
      %v1058 = vand.u32 2147483647, %v597
      %vm1059 = vcmp.eq.f32.partialorder %v1058, 8.507059e+37
      %v1060 = vand.u32 %v597, 2147483648
      %v1061 = vor.u32 1.1754944e-38, %v1060
      %v1062 = vsel %vm1059, %v1061, %v1057
      %v1063 = vmul.f32 %v469, %v1062
      %v1064 = vrcp.pop %v598
      %v1065 = vmul.f32 %v598, %v1064
      %v1066 = vsub.f32 1.0, %v1065
      %v1067 = vmul.f32 %v1064, %v1066
      %v1068 = vadd.f32 %v1064, %v1067
      %vm1069 = vweird.f32 %v598
      %vm1070 = vweird.f32 %v1064
      %vm1071 = vmor %vm1069, %vm1070
      %v1072 = vsel %vm1071, %v1064, %v1068
      %v1073 = vand.u32 2147483647, %v598
      %vm1074 = vcmp.eq.f32.partialorder %v1073, 8.507059e+37
      %v1075 = vand.u32 %v598, 2147483648
      %v1076 = vor.u32 1.1754944e-38, %v1075
      %v1077 = vsel %vm1074, %v1076, %v1072
      %v1078 = vmul.f32 %v470, %v1077
      %s1079 = scalar_lea.vmem [#allocation2], 48
      %1080 = vst.msk [vmem:[%s1079 + $0x2] sm:$0xff] %vm272, %v613
      %1081 = vst.msk [vmem:[%s1079 + $0xa] sm:$0xff] %vm272, %v628
      %1082 = vst.msk [vmem:[%s1079 + $0x1a] sm:$0xff] %vm272, %v643
      %1083 = vst.msk [vmem:[%s1079 + $0x22] sm:$0xff] %vm272, %v658
      %1084 = vst.msk [vmem:[%s1079 + $0x32] sm:$0xff] %vm272, %v673
      %1085 = vst.msk [vmem:[%s1079 + $0x3a] sm:$0xff] %vm272, %v688
      %1086 = vst.msk [vmem:[%s1079 + $0x4a] sm:$0xff] %vm272, %v703
      %1087 = vst.msk [vmem:[%s1079 + $0x52] sm:$0xff] %vm272, %v718
      %1088 = vst.msk [vmem:[%s1079 + $0x62] sm:$0xff] %vm272, %v733
      %1089 = vst.msk [vmem:[%s1079 + $0x6a] sm:$0xff] %vm272, %v748
      %1090 = vst.msk [vmem:[%s1079 + $0x7a] sm:$0xff] %vm272, %v763
      %1091 = vst.msk [vmem:[%s1079 + $0x82] sm:$0xff] %vm272, %v778
      %1092 = vst.msk [vmem:[%s1079 + $0x92] sm:$0xff] %vm272, %v793
      %1093 = vst.msk [vmem:[%s1079 + $0x9a] sm:$0xff] %vm272, %v808
      %1094 = vst.msk [vmem:[%s1079 + $0xaa] sm:$0xff] %vm272, %v823
      %1095 = vst.msk [vmem:[%s1079 + $0xb2] sm:$0xff] %vm272, %v838
      %1096 = vst.msk [vmem:[%s1079 + $0xc2] sm:$0xff] %vm272, %v853
      %1097 = vst.msk [vmem:[%s1079 + $0xca] sm:$0xff] %vm272, %v868
      %1098 = vst.msk [vmem:[%s1079 + $0xda] sm:$0xff] %vm272, %v883
      %1099 = vst.msk [vmem:[%s1079 + $0xe2] sm:$0xff] %vm272, %v898
      %1100 = vst.msk [vmem:[%s1079 + $0xf2] sm:$0xff] %vm272, %v913
      %1101 = vst.msk [vmem:[%s1079 + $0xfa] sm:$0xff] %vm272, %v928
      %1102 = vst.msk [vmem:[%s1079 + $0x10a] sm:$0xff] %vm272, %v943
      %1103 = vst.msk [vmem:[%s1079 + $0x112] sm:$0xff] %vm272, %v958
      %1104 = vst.msk [vmem:[%s1079 + $0x122] sm:$0xff] %vm272, %v973
      %1105 = vst.msk [vmem:[%s1079 + $0x12a] sm:$0xff] %vm272, %v988
      %1106 = vst.msk [vmem:[%s1079 + $0x13a] sm:$0xff] %vm272, %v1003
      %1107 = vst.msk [vmem:[%s1079 + $0x142] sm:$0xff] %vm272, %v1018
      %1108 = vst.msk [vmem:[%s1079 + $0x152] sm:$0xff] %vm272, %v1033
      %1109 = vst.msk [vmem:[%s1079 + $0x15a] sm:$0xff] %vm272, %v1048
      %1110 = vst.msk [vmem:[%s1079 + $0x16a] sm:$0xff] %vm272, %v1063
      %1111 = vst.msk [vmem:[%s1079 + $0x172] sm:$0xff] %vm272, %v1078
      %p1112 = scmp.gt.s32.totalorder %s22, 0
      // Predicated region
      $region37: #{ghost_conv_forward.4} parent=35 // pred_check
        %p1113 = pneg %p1112
      $region38: #{ghost_conv_forward.4} parent=35 // pred_check_branch
        %1115 = sbr.rel (%p1113) target = $region40
      $region39: #{ghost_conv_forward.4} parent=35 // pred_region
        %s1116 = ssub.s32 %s269, 2
        %s1117 = smul.u32 %s1116, 2
        %s1118 = smul.addr %s1117, 4
        %s1119 = scalar_lea.vmem %s250, %s1118
        %v1120 = vld [vmem:[%s1119] sm:$0xf]
        %v1121 = vld [vmem:[%s1119 + $0x4] sm:$0xf]
        %v1122 = vld [vmem:[%s1119 + $0x8] sm:$0xf]
        %v1123 = vld [vmem:[%s1119 + $0xc] sm:$0xf]
        %v1124 = vunpack.c.l.bf16 %v1120
        %v1125 = vunpack.c.l.bf16 %v1121
        %v1126 = vunpack.c.l.bf16 %v1122
        %v1127 = vunpack.c.l.bf16 %v1123
        %v1128 = vmul.f32 %v1124, %v402
        %v1129 = vmul.f32 %v1125, %v402
        %v1130 = vmul.f32 %v1126, %v402
        %v1131 = vmul.f32 %v1127, %v402
        %v1132 = vadd.f32 %v1128, %v437
        %v1133 = vadd.f32 %v1129, %v437
        %v1134 = vadd.f32 %v1130, %v437
        %v1135 = vadd.f32 %v1131, %v437
        %v1136 = vsub.f32 0.0, %v1132
        %v1137 = vsub.f32 0.0, %v1133
        %v1138 = vsub.f32 0.0, %v1134
        %v1139 = vsub.f32 0.0, %v1135
        %v1140 = vmul.f32 %v1136, 1.442695
        %v1141 = vpow.pop %v1140
        %v1142 = vmul.f32 %v1137, 1.442695
        %v1143 = vpow.pop %v1142
        %v1144 = vmul.f32 %v1138, 1.442695
        %v1145 = vpow.pop %v1144
        %v1146 = vmul.f32 %v1139, 1.442695
        %v1147 = vpow.pop %v1146
        %v1148 = vadd.f32 %v1141, 1.0
        %v1149 = vadd.f32 %v1143, 1.0
        %v1150 = vadd.f32 %v1145, 1.0
        %v1151 = vadd.f32 %v1147, 1.0
        %v1152 = vrcp.pop %v1148
        %v1153 = vmul.f32 %v1148, %v1152
        %v1154 = vsub.f32 1.0, %v1153
        %v1155 = vmul.f32 %v1152, %v1154
        %v1156 = vadd.f32 %v1152, %v1155
        %vm1157 = vweird.f32 %v1148
        %vm1158 = vweird.f32 %v1152
        %vm1159 = vmor %vm1157, %vm1158
        %v1160 = vsel %vm1159, %v1152, %v1156
        %v1161 = vand.u32 2147483647, %v1148
        %vm1162 = vcmp.eq.f32.partialorder %v1161, 8.507059e+37
        %v1163 = vand.u32 %v1148, 2147483648
        %v1164 = vor.u32 1.1754944e-38, %v1163
        %v1165 = vsel %vm1162, %v1164, %v1160
        %v1166 = vmul.f32 %v1132, %v1165
        %v1167 = vrcp.pop %v1149
        %v1168 = vmul.f32 %v1149, %v1167
        %v1169 = vsub.f32 1.0, %v1168
        %v1170 = vmul.f32 %v1167, %v1169
        %v1171 = vadd.f32 %v1167, %v1170
        %vm1172 = vweird.f32 %v1149
        %vm1173 = vweird.f32 %v1167
        %vm1174 = vmor %vm1172, %vm1173
        %v1175 = vsel %vm1174, %v1167, %v1171
        %v1176 = vand.u32 2147483647, %v1149
        %vm1177 = vcmp.eq.f32.partialorder %v1176, 8.507059e+37
        %v1178 = vand.u32 %v1149, 2147483648
        %v1179 = vor.u32 1.1754944e-38, %v1178
        %v1180 = vsel %vm1177, %v1179, %v1175
        %v1181 = vmul.f32 %v1133, %v1180
        %v1182 = vrcp.pop %v1150
        %v1183 = vmul.f32 %v1150, %v1182
        %v1184 = vsub.f32 1.0, %v1183
        %v1185 = vmul.f32 %v1182, %v1184
        %v1186 = vadd.f32 %v1182, %v1185
        %vm1187 = vweird.f32 %v1150
        %vm1188 = vweird.f32 %v1182
        %vm1189 = vmor %vm1187, %vm1188
        %v1190 = vsel %vm1189, %v1182, %v1186
        %v1191 = vand.u32 2147483647, %v1150
        %vm1192 = vcmp.eq.f32.partialorder %v1191, 8.507059e+37
        %v1193 = vand.u32 %v1150, 2147483648
        %v1194 = vor.u32 1.1754944e-38, %v1193
        %v1195 = vsel %vm1192, %v1194, %v1190
        %v1196 = vmul.f32 %v1134, %v1195
        %v1197 = vrcp.pop %v1151
        %v1198 = vmul.f32 %v1151, %v1197
        %v1199 = vsub.f32 1.0, %v1198
        %v1200 = vmul.f32 %v1197, %v1199
        %v1201 = vadd.f32 %v1197, %v1200
        %vm1202 = vweird.f32 %v1151
        %vm1203 = vweird.f32 %v1197
        %vm1204 = vmor %vm1202, %vm1203
        %v1205 = vsel %vm1204, %v1197, %v1201
        %v1206 = vand.u32 2147483647, %v1151
        %vm1207 = vcmp.eq.f32.partialorder %v1206, 8.507059e+37
        %v1208 = vand.u32 %v1151, 2147483648
        %v1209 = vor.u32 1.1754944e-38, %v1208
        %v1210 = vsel %vm1207, %v1209, %v1205
        %v1211 = vmul.f32 %v1135, %v1210
        %1212 = vst.msk [vmem:[#allocation2 + $0x2] sm:$0xff] %vm272, %v1166
        %1213 = vst.msk [vmem:[#allocation2 + $0xa] sm:$0xff] %vm272, %v1181
        %1214 = vst.msk [vmem:[#allocation2 + $0x1a] sm:$0xff] %vm272, %v1196
        %1215 = vst.msk [vmem:[#allocation2 + $0x22] sm:$0xff] %vm272, %v1211
      $region40: #{ghost_conv_forward.4} parent=35 // pred_fallthru
        _
      %p1216 = scmp.lt.s32.totalorder %s22, 0
      // Predicated region
      $region41: #{ghost_conv_forward.4} parent=35 // pred_check
        %p1217 = pneg %p1216
      $region42: #{ghost_conv_forward.4} parent=35 // pred_check_branch
        %1219 = sbr.rel (%p1217) target = $region44
      $region43: #{ghost_conv_forward.4} parent=35 // pred_region
        %s1220 = sadd.s32 %s269, 16
        %s1221 = smul.u32 %s1220, 2
        %s1222 = smul.addr %s1221, 4
        %s1223 = scalar_lea.vmem %s250, %s1222
        %v1224 = vld [vmem:[%s1223] sm:$0xf]
        %v1225 = vld [vmem:[%s1223 + $0x4] sm:$0xf]
        %v1226 = vld [vmem:[%s1223 + $0x8] sm:$0xf]
        %v1227 = vld [vmem:[%s1223 + $0xc] sm:$0xf]
        %v1228 = vunpack.c.l.bf16 %v1224
        %v1229 = vunpack.c.l.bf16 %v1225
        %v1230 = vunpack.c.l.bf16 %v1226
        %v1231 = vunpack.c.l.bf16 %v1227
        %v1232 = vmul.f32 %v1228, %v402
        %v1233 = vmul.f32 %v1229, %v402
        %v1234 = vmul.f32 %v1230, %v402
        %v1235 = vmul.f32 %v1231, %v402
        %v1236 = vadd.f32 %v1232, %v437
        %v1237 = vadd.f32 %v1233, %v437
        %v1238 = vadd.f32 %v1234, %v437
        %v1239 = vadd.f32 %v1235, %v437
        %v1240 = vsub.f32 0.0, %v1236
        %v1241 = vsub.f32 0.0, %v1237
        %v1242 = vsub.f32 0.0, %v1238
        %v1243 = vsub.f32 0.0, %v1239
        %v1244 = vmul.f32 %v1240, 1.442695
        %v1245 = vpow.pop %v1244
        %v1246 = vmul.f32 %v1241, 1.442695
        %v1247 = vpow.pop %v1246
        %v1248 = vmul.f32 %v1242, 1.442695
        %v1249 = vpow.pop %v1248
        %v1250 = vmul.f32 %v1243, 1.442695
        %v1251 = vpow.pop %v1250
        %v1252 = vadd.f32 %v1245, 1.0
        %v1253 = vadd.f32 %v1247, 1.0
        %v1254 = vadd.f32 %v1249, 1.0
        %v1255 = vadd.f32 %v1251, 1.0
        %v1256 = vrcp.pop %v1252
        %v1257 = vmul.f32 %v1252, %v1256
        %v1258 = vsub.f32 1.0, %v1257
        %v1259 = vmul.f32 %v1256, %v1258
        %v1260 = vadd.f32 %v1256, %v1259
        %vm1261 = vweird.f32 %v1252
        %vm1262 = vweird.f32 %v1256
        %vm1263 = vmor %vm1261, %vm1262
        %v1264 = vsel %vm1263, %v1256, %v1260
        %v1265 = vand.u32 2147483647, %v1252
        %vm1266 = vcmp.eq.f32.partialorder %v1265, 8.507059e+37
        %v1267 = vand.u32 %v1252, 2147483648
        %v1268 = vor.u32 1.1754944e-38, %v1267
        %v1269 = vsel %vm1266, %v1268, %v1264
        %v1270 = vmul.f32 %v1236, %v1269
        %v1271 = vrcp.pop %v1253
        %v1272 = vmul.f32 %v1253, %v1271
        %v1273 = vsub.f32 1.0, %v1272
        %v1274 = vmul.f32 %v1271, %v1273
        %v1275 = vadd.f32 %v1271, %v1274
        %vm1276 = vweird.f32 %v1253
        %vm1277 = vweird.f32 %v1271
        %vm1278 = vmor %vm1276, %vm1277
        %v1279 = vsel %vm1278, %v1271, %v1275
        %v1280 = vand.u32 2147483647, %v1253
        %vm1281 = vcmp.eq.f32.partialorder %v1280, 8.507059e+37
        %v1282 = vand.u32 %v1253, 2147483648
        %v1283 = vor.u32 1.1754944e-38, %v1282
        %v1284 = vsel %vm1281, %v1283, %v1279
        %v1285 = vmul.f32 %v1237, %v1284
        %v1286 = vrcp.pop %v1254
        %v1287 = vmul.f32 %v1254, %v1286
        %v1288 = vsub.f32 1.0, %v1287
        %v1289 = vmul.f32 %v1286, %v1288
        %v1290 = vadd.f32 %v1286, %v1289
        %vm1291 = vweird.f32 %v1254
        %vm1292 = vweird.f32 %v1286
        %vm1293 = vmor %vm1291, %vm1292
        %v1294 = vsel %vm1293, %v1286, %v1290
        %v1295 = vand.u32 2147483647, %v1254
        %vm1296 = vcmp.eq.f32.partialorder %v1295, 8.507059e+37
        %v1297 = vand.u32 %v1254, 2147483648
        %v1298 = vor.u32 1.1754944e-38, %v1297
        %v1299 = vsel %vm1296, %v1298, %v1294
        %v1300 = vmul.f32 %v1238, %v1299
        %v1301 = vrcp.pop %v1255
        %v1302 = vmul.f32 %v1255, %v1301
        %v1303 = vsub.f32 1.0, %v1302
        %v1304 = vmul.f32 %v1301, %v1303
        %v1305 = vadd.f32 %v1301, %v1304
        %vm1306 = vweird.f32 %v1255
        %vm1307 = vweird.f32 %v1301
        %vm1308 = vmor %vm1306, %vm1307
        %v1309 = vsel %vm1308, %v1301, %v1305
        %v1310 = vand.u32 2147483647, %v1255
        %vm1311 = vcmp.eq.f32.partialorder %v1310, 8.507059e+37
        %v1312 = vand.u32 %v1255, 2147483648
        %v1313 = vor.u32 1.1754944e-38, %v1312
        %v1314 = vsel %vm1311, %v1313, %v1309
        %v1315 = vmul.f32 %v1239, %v1314
        %s1316 = scalar_lea.vmem [#allocation2], 432
        %1317 = vst.msk [vmem:[%s1316 + $0x2] sm:$0xff] %vm272, %v1270
        %1318 = vst.msk [vmem:[%s1316 + $0xa] sm:$0xff] %vm272, %v1285
        %1319 = vst.msk [vmem:[%s1316 + $0x1a] sm:$0xff] %vm272, %v1300
        %1320 = vst.msk [vmem:[%s1316 + $0x22] sm:$0xff] %vm272, %v1315
      $region44: #{ghost_conv_forward.4} parent=35 // pred_fallthru
        _
      %v1321 = vld [vmem:[%s1] sm:$0xff]
      %v1322 = vld [vmem:[%s1 + $0x8] sm:$0xff]
      %v1323 = vld [vmem:[%s1 + $0x10] sm:$0xff]
      %v1324 = vld [vmem:[%s1 + $0x18] sm:$0x1]
      %v1325 = vld [vmem:[#allocation2] sm:$0xff]
      %v1326 = vld [vmem:[#allocation2 + $0x8] sm:$0xff]
      %v1327 = vld [vmem:[#allocation2 + $0x18] sm:$0xff]
      %v1328 = vld [vmem:[#allocation2 + $0x20] sm:$0xff]
      %v1329 = vld [vmem:[#allocation2 + $0x30] sm:$0xff]
      %v1330 = vld [vmem:[#allocation2 + $0x38] sm:$0xff]
      %v1331 = vld [vmem:[#allocation2 + $0x48] sm:$0xff]
      %v1332 = vld [vmem:[#allocation2 + $0x50] sm:$0xff]
      %v1333 = vld [vmem:[#allocation2 + $0x60] sm:$0xff]
      %v1334 = vld [vmem:[#allocation2 + $0x68] sm:$0xff]
      %v1335 = vld [vmem:[#allocation2 + $0x78] sm:$0xff]
      %v1336 = vld [vmem:[#allocation2 + $0x80] sm:$0xff]
      %v1337 = vld [vmem:[#allocation2 + $0x90] sm:$0xff]
      %v1338 = vld [vmem:[#allocation2 + $0x98] sm:$0xff]
      %v1339 = vld [vmem:[#allocation2 + $0xa8] sm:$0xff]
      %v1340 = vld [vmem:[#allocation2 + $0xb0] sm:$0xff]
      %v1341 = vld [vmem:[#allocation2 + $0xc0] sm:$0xff]
      %v1342 = vld [vmem:[#allocation2 + $0xc8] sm:$0xff]
      %v1343 = vld [vmem:[#allocation2 + $0xd8] sm:$0xff]
      %v1344 = vld [vmem:[#allocation2 + $0xe0] sm:$0xff]
      %v1345 = vld [vmem:[#allocation2 + $0xf0] sm:$0xff]
      %v1346 = vld [vmem:[#allocation2 + $0xf8] sm:$0xff]
      %v1347 = vld [vmem:[#allocation2 + $0x108] sm:$0xff]
      %v1348 = vld [vmem:[#allocation2 + $0x110] sm:$0xff]
      %v1349 = vld [vmem:[#allocation2 + $0x120] sm:$0xff]
      %v1350 = vld [vmem:[#allocation2 + $0x128] sm:$0xff]
      %v1351 = vld [vmem:[#allocation2 + $0x138] sm:$0xff]
      %v1352 = vld [vmem:[#allocation2 + $0x140] sm:$0xff]
      %v1353 = vld [vmem:[#allocation2 + $0x150] sm:$0xff]
      %v1354 = vld [vmem:[#allocation2 + $0x158] sm:$0xff]
      %v1355 = vld [vmem:[#allocation2 + $0x168] sm:$0xff]
      %v1356 = vld [vmem:[#allocation2 + $0x170] sm:$0xff]
      %v1357 = vld [vmem:[#allocation2 + $0x180] sm:$0xff]
      %v1358 = vld [vmem:[#allocation2 + $0x188] sm:$0xff]
      %v1359 = vld [vmem:[#allocation2 + $0x198] sm:$0xff]
      %v1360 = vld [vmem:[#allocation2 + $0x1a0] sm:$0xff]
      %v1361 = vld [vmem:[#allocation2 + $0x1b0] sm:$0xff]
      %v1362 = vld [vmem:[#allocation2 + $0x1b8] sm:$0xff]
      %v1363 = vld [vmem:[#allocation2 + $0x1c8] sm:$0xff]
      %v1364 = vld [vmem:[#allocation2 + $0x1d0] sm:$0xff]
      %v1365 = vperm.slane %v1321, 0
      %v1366 = vmul.f32 %v1325, %v1365
      %v1367 = vmul.f32 %v1326, %v1365
      %v1368 = vmul.f32 %v1327, %v1365
      %v1369 = vmul.f32 %v1328, %v1365
      %v1370 = vmul.f32 %v1329, %v1365
      %v1371 = vmul.f32 %v1330, %v1365
      %v1372 = vmul.f32 %v1331, %v1365
      %v1373 = vmul.f32 %v1332, %v1365
      %v1374 = vmul.f32 %v1333, %v1365
      %v1375 = vmul.f32 %v1334, %v1365
      %v1376 = vmul.f32 %v1335, %v1365
      %v1377 = vmul.f32 %v1336, %v1365
      %v1378 = vmul.f32 %v1337, %v1365
      %v1379 = vmul.f32 %v1338, %v1365
      %v1380 = vmul.f32 %v1339, %v1365
      %v1381 = vmul.f32 %v1340, %v1365
      %v1382 = vmul.f32 %v1341, %v1365
      %v1383 = vmul.f32 %v1342, %v1365
      %v1384 = vmul.f32 %v1343, %v1365
      %v1385 = vmul.f32 %v1344, %v1365
      %v1386 = vmul.f32 %v1345, %v1365
      %v1387 = vmul.f32 %v1346, %v1365
      %v1388 = vmul.f32 %v1347, %v1365
      %v1389 = vmul.f32 %v1348, %v1365
      %v1390 = vmul.f32 %v1349, %v1365
      %v1391 = vmul.f32 %v1350, %v1365
      %v1392 = vmul.f32 %v1351, %v1365
      %v1393 = vmul.f32 %v1352, %v1365
      %v1394 = vmul.f32 %v1353, %v1365
      %v1395 = vmul.f32 %v1354, %v1365
      %v1396 = vmul.f32 %v1355, %v1365
      %v1397 = vmul.f32 %v1356, %v1365
      %v1398 = vadd.f32 %v1366, 0.0
      %v1399 = vadd.f32 %v1367, 0.0
      %v1400 = vadd.f32 %v1368, 0.0
      %v1401 = vadd.f32 %v1369, 0.0
      %v1402 = vadd.f32 %v1370, 0.0
      %v1403 = vadd.f32 %v1371, 0.0
      %v1404 = vadd.f32 %v1372, 0.0
      %v1405 = vadd.f32 %v1373, 0.0
      %v1406 = vadd.f32 %v1374, 0.0
      %v1407 = vadd.f32 %v1375, 0.0
      %v1408 = vadd.f32 %v1376, 0.0
      %v1409 = vadd.f32 %v1377, 0.0
      %v1410 = vadd.f32 %v1378, 0.0
      %v1411 = vadd.f32 %v1379, 0.0
      %v1412 = vadd.f32 %v1380, 0.0
      %v1413 = vadd.f32 %v1381, 0.0
      %v1414 = vadd.f32 %v1382, 0.0
      %v1415 = vadd.f32 %v1383, 0.0
      %v1416 = vadd.f32 %v1384, 0.0
      %v1417 = vadd.f32 %v1385, 0.0
      %v1418 = vadd.f32 %v1386, 0.0
      %v1419 = vadd.f32 %v1387, 0.0
      %v1420 = vadd.f32 %v1388, 0.0
      %v1421 = vadd.f32 %v1389, 0.0
      %v1422 = vadd.f32 %v1390, 0.0
      %v1423 = vadd.f32 %v1391, 0.0
      %v1424 = vadd.f32 %v1392, 0.0
      %v1425 = vadd.f32 %v1393, 0.0
      %v1426 = vadd.f32 %v1394, 0.0
      %v1427 = vadd.f32 %v1395, 0.0
      %v1428 = vadd.f32 %v1396, 0.0
      %v1429 = vadd.f32 %v1397, 0.0
      %v1430 = vperm.slane %v1321, 5
      %v1431 = vmul.f32 %v1327, %v1430
      %v1432 = vmul.f32 %v1328, %v1430
      %v1433 = vmul.f32 %v1329, %v1430
      %v1434 = vmul.f32 %v1330, %v1430
      %v1435 = vmul.f32 %v1331, %v1430
      %v1436 = vmul.f32 %v1332, %v1430
      %v1437 = vmul.f32 %v1333, %v1430
      %v1438 = vmul.f32 %v1334, %v1430
      %v1439 = vmul.f32 %v1335, %v1430
      %v1440 = vmul.f32 %v1336, %v1430
      %v1441 = vmul.f32 %v1337, %v1430
      %v1442 = vmul.f32 %v1338, %v1430
      %v1443 = vmul.f32 %v1339, %v1430
      %v1444 = vmul.f32 %v1340, %v1430
      %v1445 = vmul.f32 %v1341, %v1430
      %v1446 = vmul.f32 %v1342, %v1430
      %v1447 = vmul.f32 %v1343, %v1430
      %v1448 = vmul.f32 %v1344, %v1430
      %v1449 = vmul.f32 %v1345, %v1430
      %v1450 = vmul.f32 %v1346, %v1430
      %v1451 = vmul.f32 %v1347, %v1430
      %v1452 = vmul.f32 %v1348, %v1430
      %v1453 = vmul.f32 %v1349, %v1430
      %v1454 = vmul.f32 %v1350, %v1430
      %v1455 = vmul.f32 %v1351, %v1430
      %v1456 = vmul.f32 %v1352, %v1430
      %v1457 = vmul.f32 %v1353, %v1430
      %v1458 = vmul.f32 %v1354, %v1430
      %v1459 = vmul.f32 %v1355, %v1430
      %v1460 = vmul.f32 %v1356, %v1430
      %v1461 = vmul.f32 %v1357, %v1430
      %v1462 = vmul.f32 %v1358, %v1430
      %v1463 = vadd.f32 %v1398, %v1431
      %v1464 = vadd.f32 %v1399, %v1432
      %v1465 = vadd.f32 %v1400, %v1433
      %v1466 = vadd.f32 %v1401, %v1434
      %v1467 = vadd.f32 %v1402, %v1435
      %v1468 = vadd.f32 %v1403, %v1436
      %v1469 = vadd.f32 %v1404, %v1437
      %v1470 = vadd.f32 %v1405, %v1438
      %v1471 = vadd.f32 %v1406, %v1439
      %v1472 = vadd.f32 %v1407, %v1440
      %v1473 = vadd.f32 %v1408, %v1441
      %v1474 = vadd.f32 %v1409, %v1442
      %v1475 = vadd.f32 %v1410, %v1443
      %v1476 = vadd.f32 %v1411, %v1444
      %v1477 = vadd.f32 %v1412, %v1445
      %v1478 = vadd.f32 %v1413, %v1446
      %v1479 = vadd.f32 %v1414, %v1447
      %v1480 = vadd.f32 %v1415, %v1448
      %v1481 = vadd.f32 %v1416, %v1449
      %v1482 = vadd.f32 %v1417, %v1450
      %v1483 = vadd.f32 %v1418, %v1451
      %v1484 = vadd.f32 %v1419, %v1452
      %v1485 = vadd.f32 %v1420, %v1453
      %v1486 = vadd.f32 %v1421, %v1454
      %v1487 = vadd.f32 %v1422, %v1455
      %v1488 = vadd.f32 %v1423, %v1456
      %v1489 = vadd.f32 %v1424, %v1457
      %v1490 = vadd.f32 %v1425, %v1458
      %v1491 = vadd.f32 %v1426, %v1459
      %v1492 = vadd.f32 %v1427, %v1460
      %v1493 = vadd.f32 %v1428, %v1461
      %v1494 = vadd.f32 %v1429, %v1462
      %v1495 = vperm.slane %v1322, 2
      %v1496 = vmul.f32 %v1329, %v1495
      %v1497 = vmul.f32 %v1330, %v1495
      %v1498 = vmul.f32 %v1331, %v1495
      %v1499 = vmul.f32 %v1332, %v1495
      %v1500 = vmul.f32 %v1333, %v1495
      %v1501 = vmul.f32 %v1334, %v1495
      %v1502 = vmul.f32 %v1335, %v1495
      %v1503 = vmul.f32 %v1336, %v1495
      %v1504 = vmul.f32 %v1337, %v1495
      %v1505 = vmul.f32 %v1338, %v1495
      %v1506 = vmul.f32 %v1339, %v1495
      %v1507 = vmul.f32 %v1340, %v1495
      %v1508 = vmul.f32 %v1341, %v1495
      %v1509 = vmul.f32 %v1342, %v1495
      %v1510 = vmul.f32 %v1343, %v1495
      %v1511 = vmul.f32 %v1344, %v1495
      %v1512 = vmul.f32 %v1345, %v1495
      %v1513 = vmul.f32 %v1346, %v1495
      %v1514 = vmul.f32 %v1347, %v1495
      %v1515 = vmul.f32 %v1348, %v1495
      %v1516 = vmul.f32 %v1349, %v1495
      %v1517 = vmul.f32 %v1350, %v1495
      %v1518 = vmul.f32 %v1351, %v1495
      %v1519 = vmul.f32 %v1352, %v1495
      %v1520 = vmul.f32 %v1353, %v1495
      %v1521 = vmul.f32 %v1354, %v1495
      %v1522 = vmul.f32 %v1355, %v1495
      %v1523 = vmul.f32 %v1356, %v1495
      %v1524 = vmul.f32 %v1357, %v1495
      %v1525 = vmul.f32 %v1358, %v1495
      %v1526 = vmul.f32 %v1359, %v1495
      %v1527 = vmul.f32 %v1360, %v1495
      %v1528 = vadd.f32 %v1463, %v1496
      %v1529 = vadd.f32 %v1464, %v1497
      %v1530 = vadd.f32 %v1465, %v1498
      %v1531 = vadd.f32 %v1466, %v1499
      %v1532 = vadd.f32 %v1467, %v1500
      %v1533 = vadd.f32 %v1468, %v1501
      %v1534 = vadd.f32 %v1469, %v1502
      %v1535 = vadd.f32 %v1470, %v1503
      %v1536 = vadd.f32 %v1471, %v1504
      %v1537 = vadd.f32 %v1472, %v1505
      %v1538 = vadd.f32 %v1473, %v1506
      %v1539 = vadd.f32 %v1474, %v1507
      %v1540 = vadd.f32 %v1475, %v1508
      %v1541 = vadd.f32 %v1476, %v1509
      %v1542 = vadd.f32 %v1477, %v1510
      %v1543 = vadd.f32 %v1478, %v1511
      %v1544 = vadd.f32 %v1479, %v1512
      %v1545 = vadd.f32 %v1480, %v1513
      %v1546 = vadd.f32 %v1481, %v1514
      %v1547 = vadd.f32 %v1482, %v1515
      %v1548 = vadd.f32 %v1483, %v1516
      %v1549 = vadd.f32 %v1484, %v1517
      %v1550 = vadd.f32 %v1485, %v1518
      %v1551 = vadd.f32 %v1486, %v1519
      %v1552 = vadd.f32 %v1487, %v1520
      %v1553 = vadd.f32 %v1488, %v1521
      %v1554 = vadd.f32 %v1489, %v1522
      %v1555 = vadd.f32 %v1490, %v1523
      %v1556 = vadd.f32 %v1491, %v1524
      %v1557 = vadd.f32 %v1492, %v1525
      %v1558 = vadd.f32 %v1493, %v1526
      %v1559 = vadd.f32 %v1494, %v1527
      %v1560 = vperm.slane %v1322, 7
      %v1561 = vmul.f32 %v1331, %v1560
      %v1562 = vmul.f32 %v1332, %v1560
      %v1563 = vmul.f32 %v1333, %v1560
      %v1564 = vmul.f32 %v1334, %v1560
      %v1565 = vmul.f32 %v1335, %v1560
      %v1566 = vmul.f32 %v1336, %v1560
      %v1567 = vmul.f32 %v1337, %v1560
      %v1568 = vmul.f32 %v1338, %v1560
      %v1569 = vmul.f32 %v1339, %v1560
      %v1570 = vmul.f32 %v1340, %v1560
      %v1571 = vmul.f32 %v1341, %v1560
      %v1572 = vmul.f32 %v1342, %v1560
      %v1573 = vmul.f32 %v1343, %v1560
      %v1574 = vmul.f32 %v1344, %v1560
      %v1575 = vmul.f32 %v1345, %v1560
      %v1576 = vmul.f32 %v1346, %v1560
      %v1577 = vmul.f32 %v1347, %v1560
      %v1578 = vmul.f32 %v1348, %v1560
      %v1579 = vmul.f32 %v1349, %v1560
      %v1580 = vmul.f32 %v1350, %v1560
      %v1581 = vmul.f32 %v1351, %v1560
      %v1582 = vmul.f32 %v1352, %v1560
      %v1583 = vmul.f32 %v1353, %v1560
      %v1584 = vmul.f32 %v1354, %v1560
      %v1585 = vmul.f32 %v1355, %v1560
      %v1586 = vmul.f32 %v1356, %v1560
      %v1587 = vmul.f32 %v1357, %v1560
      %v1588 = vmul.f32 %v1358, %v1560
      %v1589 = vmul.f32 %v1359, %v1560
      %v1590 = vmul.f32 %v1360, %v1560
      %v1591 = vmul.f32 %v1361, %v1560
      %v1592 = vmul.f32 %v1362, %v1560
      %v1593 = vadd.f32 %v1528, %v1561
      %v1594 = vadd.f32 %v1529, %v1562
      %v1595 = vadd.f32 %v1530, %v1563
      %v1596 = vadd.f32 %v1531, %v1564
      %v1597 = vadd.f32 %v1532, %v1565
      %v1598 = vadd.f32 %v1533, %v1566
      %v1599 = vadd.f32 %v1534, %v1567
      %v1600 = vadd.f32 %v1535, %v1568
      %v1601 = vadd.f32 %v1536, %v1569
      %v1602 = vadd.f32 %v1537, %v1570
      %v1603 = vadd.f32 %v1538, %v1571
      %v1604 = vadd.f32 %v1539, %v1572
      %v1605 = vadd.f32 %v1540, %v1573
      %v1606 = vadd.f32 %v1541, %v1574
      %v1607 = vadd.f32 %v1542, %v1575
      %v1608 = vadd.f32 %v1543, %v1576
      %v1609 = vadd.f32 %v1544, %v1577
      %v1610 = vadd.f32 %v1545, %v1578
      %v1611 = vadd.f32 %v1546, %v1579
      %v1612 = vadd.f32 %v1547, %v1580
      %v1613 = vadd.f32 %v1548, %v1581
      %v1614 = vadd.f32 %v1549, %v1582
      %v1615 = vadd.f32 %v1550, %v1583
      %v1616 = vadd.f32 %v1551, %v1584
      %v1617 = vadd.f32 %v1552, %v1585
      %v1618 = vadd.f32 %v1553, %v1586
      %v1619 = vadd.f32 %v1554, %v1587
      %v1620 = vadd.f32 %v1555, %v1588
      %v1621 = vadd.f32 %v1556, %v1589
      %v1622 = vadd.f32 %v1557, %v1590
      %v1623 = vadd.f32 %v1558, %v1591
      %v1624 = vadd.f32 %v1559, %v1592
      %v1625 = vperm.slane %v1323, 4
      %v1626 = vmul.f32 %v1333, %v1625
      %v1627 = vmul.f32 %v1334, %v1625
      %v1628 = vmul.f32 %v1335, %v1625
      %v1629 = vmul.f32 %v1336, %v1625
      %v1630 = vmul.f32 %v1337, %v1625
      %v1631 = vmul.f32 %v1338, %v1625
      %v1632 = vmul.f32 %v1339, %v1625
      %v1633 = vmul.f32 %v1340, %v1625
      %v1634 = vmul.f32 %v1341, %v1625
      %v1635 = vmul.f32 %v1342, %v1625
      %v1636 = vmul.f32 %v1343, %v1625
      %v1637 = vmul.f32 %v1344, %v1625
      %v1638 = vmul.f32 %v1345, %v1625
      %v1639 = vmul.f32 %v1346, %v1625
      %v1640 = vmul.f32 %v1347, %v1625
      %v1641 = vmul.f32 %v1348, %v1625
      %v1642 = vmul.f32 %v1349, %v1625
      %v1643 = vmul.f32 %v1350, %v1625
      %v1644 = vmul.f32 %v1351, %v1625
      %v1645 = vmul.f32 %v1352, %v1625
      %v1646 = vmul.f32 %v1353, %v1625
      %v1647 = vmul.f32 %v1354, %v1625
      %v1648 = vmul.f32 %v1355, %v1625
      %v1649 = vmul.f32 %v1356, %v1625
      %v1650 = vmul.f32 %v1357, %v1625
      %v1651 = vmul.f32 %v1358, %v1625
      %v1652 = vmul.f32 %v1359, %v1625
      %v1653 = vmul.f32 %v1360, %v1625
      %v1654 = vmul.f32 %v1361, %v1625
      %v1655 = vmul.f32 %v1362, %v1625
      %v1656 = vmul.f32 %v1363, %v1625
      %v1657 = vmul.f32 %v1364, %v1625
      %v1658 = vadd.f32 %v1593, %v1626
      %v1659 = vadd.f32 %v1594, %v1627
      %v1660 = vadd.f32 %v1595, %v1628
      %v1661 = vadd.f32 %v1596, %v1629
      %v1662 = vadd.f32 %v1597, %v1630
      %v1663 = vadd.f32 %v1598, %v1631
      %v1664 = vadd.f32 %v1599, %v1632
      %v1665 = vadd.f32 %v1600, %v1633
      %v1666 = vadd.f32 %v1601, %v1634
      %v1667 = vadd.f32 %v1602, %v1635
      %v1668 = vadd.f32 %v1603, %v1636
      %v1669 = vadd.f32 %v1604, %v1637
      %v1670 = vadd.f32 %v1605, %v1638
      %v1671 = vadd.f32 %v1606, %v1639
      %v1672 = vadd.f32 %v1607, %v1640
      %v1673 = vadd.f32 %v1608, %v1641
      %v1674 = vadd.f32 %v1609, %v1642
      %v1675 = vadd.f32 %v1610, %v1643
      %v1676 = vadd.f32 %v1611, %v1644
      %v1677 = vadd.f32 %v1612, %v1645
      %v1678 = vadd.f32 %v1613, %v1646
      %v1679 = vadd.f32 %v1614, %v1647
      %v1680 = vadd.f32 %v1615, %v1648
      %v1681 = vadd.f32 %v1616, %v1649
      %v1682 = vadd.f32 %v1617, %v1650
      %v1683 = vadd.f32 %v1618, %v1651
      %v1684 = vadd.f32 %v1619, %v1652
      %v1685 = vadd.f32 %v1620, %v1653
      %v1686 = vadd.f32 %v1621, %v1654
      %v1687 = vadd.f32 %v1622, %v1655
      %v1688 = vadd.f32 %v1623, %v1656
      %v1689 = vadd.f32 %v1624, %v1657
      %v1690 = vld [vmem:[#allocation2 + $0x1] sm:$0xff]
      %v1691 = vld [vmem:[#allocation2 + $0x9] sm:$0xff]
      %v1692 = vld [vmem:[#allocation2 + $0x19] sm:$0xff]
      %v1693 = vld [vmem:[#allocation2 + $0x21] sm:$0xff]
      %v1694 = vld [vmem:[#allocation2 + $0x31] sm:$0xff]
      %v1695 = vld [vmem:[#allocation2 + $0x39] sm:$0xff]
      %v1696 = vld [vmem:[#allocation2 + $0x49] sm:$0xff]
      %v1697 = vld [vmem:[#allocation2 + $0x51] sm:$0xff]
      %v1698 = vld [vmem:[#allocation2 + $0x61] sm:$0xff]
      %v1699 = vld [vmem:[#allocation2 + $0x69] sm:$0xff]
      %v1700 = vld [vmem:[#allocation2 + $0x79] sm:$0xff]
      %v1701 = vld [vmem:[#allocation2 + $0x81] sm:$0xff]
      %v1702 = vld [vmem:[#allocation2 + $0x91] sm:$0xff]
      %v1703 = vld [vmem:[#allocation2 + $0x99] sm:$0xff]
      %v1704 = vld [vmem:[#allocation2 + $0xa9] sm:$0xff]
      %v1705 = vld [vmem:[#allocation2 + $0xb1] sm:$0xff]
      %v1706 = vld [vmem:[#allocation2 + $0xc1] sm:$0xff]
      %v1707 = vld [vmem:[#allocation2 + $0xc9] sm:$0xff]
      %v1708 = vld [vmem:[#allocation2 + $0xd9] sm:$0xff]
      %v1709 = vld [vmem:[#allocation2 + $0xe1] sm:$0xff]
      %v1710 = vld [vmem:[#allocation2 + $0xf1] sm:$0xff]
      %v1711 = vld [vmem:[#allocation2 + $0xf9] sm:$0xff]
      %v1712 = vld [vmem:[#allocation2 + $0x109] sm:$0xff]
      %v1713 = vld [vmem:[#allocation2 + $0x111] sm:$0xff]
      %v1714 = vld [vmem:[#allocation2 + $0x121] sm:$0xff]
      %v1715 = vld [vmem:[#allocation2 + $0x129] sm:$0xff]
      %v1716 = vld [vmem:[#allocation2 + $0x139] sm:$0xff]
      %v1717 = vld [vmem:[#allocation2 + $0x141] sm:$0xff]
      %v1718 = vld [vmem:[#allocation2 + $0x151] sm:$0xff]
      %v1719 = vld [vmem:[#allocation2 + $0x159] sm:$0xff]
      %v1720 = vld [vmem:[#allocation2 + $0x169] sm:$0xff]
      %v1721 = vld [vmem:[#allocation2 + $0x171] sm:$0xff]
      %v1722 = vld [vmem:[#allocation2 + $0x181] sm:$0xff]
      %v1723 = vld [vmem:[#allocation2 + $0x189] sm:$0xff]
      %v1724 = vld [vmem:[#allocation2 + $0x199] sm:$0xff]
      %v1725 = vld [vmem:[#allocation2 + $0x1a1] sm:$0xff]
      %v1726 = vld [vmem:[#allocation2 + $0x1b1] sm:$0xff]
      %v1727 = vld [vmem:[#allocation2 + $0x1b9] sm:$0xff]
      %v1728 = vld [vmem:[#allocation2 + $0x1c9] sm:$0xff]
      %v1729 = vld [vmem:[#allocation2 + $0x1d1] sm:$0xff]
      %v1730 = vperm.slane %v1321, 1
      %v1731 = vmul.f32 %v1690, %v1730
      %v1732 = vmul.f32 %v1691, %v1730
      %v1733 = vmul.f32 %v1692, %v1730
      %v1734 = vmul.f32 %v1693, %v1730
      %v1735 = vmul.f32 %v1694, %v1730
      %v1736 = vmul.f32 %v1695, %v1730
      %v1737 = vmul.f32 %v1696, %v1730
      %v1738 = vmul.f32 %v1697, %v1730
      %v1739 = vmul.f32 %v1698, %v1730
      %v1740 = vmul.f32 %v1699, %v1730
      %v1741 = vmul.f32 %v1700, %v1730
      %v1742 = vmul.f32 %v1701, %v1730
      %v1743 = vmul.f32 %v1702, %v1730
      %v1744 = vmul.f32 %v1703, %v1730
      %v1745 = vmul.f32 %v1704, %v1730
      %v1746 = vmul.f32 %v1705, %v1730
      %v1747 = vmul.f32 %v1706, %v1730
      %v1748 = vmul.f32 %v1707, %v1730
      %v1749 = vmul.f32 %v1708, %v1730
      %v1750 = vmul.f32 %v1709, %v1730
      %v1751 = vmul.f32 %v1710, %v1730
      %v1752 = vmul.f32 %v1711, %v1730
      %v1753 = vmul.f32 %v1712, %v1730
      %v1754 = vmul.f32 %v1713, %v1730
      %v1755 = vmul.f32 %v1714, %v1730
      %v1756 = vmul.f32 %v1715, %v1730
      %v1757 = vmul.f32 %v1716, %v1730
      %v1758 = vmul.f32 %v1717, %v1730
      %v1759 = vmul.f32 %v1718, %v1730
      %v1760 = vmul.f32 %v1719, %v1730
      %v1761 = vmul.f32 %v1720, %v1730
      %v1762 = vmul.f32 %v1721, %v1730
      %v1763 = vadd.f32 %v1658, %v1731
      %v1764 = vadd.f32 %v1659, %v1732
      %v1765 = vadd.f32 %v1660, %v1733
      %v1766 = vadd.f32 %v1661, %v1734
      %v1767 = vadd.f32 %v1662, %v1735
      %v1768 = vadd.f32 %v1663, %v1736
      %v1769 = vadd.f32 %v1664, %v1737
      %v1770 = vadd.f32 %v1665, %v1738
      %v1771 = vadd.f32 %v1666, %v1739
      %v1772 = vadd.f32 %v1667, %v1740
      %v1773 = vadd.f32 %v1668, %v1741
      %v1774 = vadd.f32 %v1669, %v1742
      %v1775 = vadd.f32 %v1670, %v1743
      %v1776 = vadd.f32 %v1671, %v1744
      %v1777 = vadd.f32 %v1672, %v1745
      %v1778 = vadd.f32 %v1673, %v1746
      %v1779 = vadd.f32 %v1674, %v1747
      %v1780 = vadd.f32 %v1675, %v1748
      %v1781 = vadd.f32 %v1676, %v1749
      %v1782 = vadd.f32 %v1677, %v1750
      %v1783 = vadd.f32 %v1678, %v1751
      %v1784 = vadd.f32 %v1679, %v1752
      %v1785 = vadd.f32 %v1680, %v1753
      %v1786 = vadd.f32 %v1681, %v1754
      %v1787 = vadd.f32 %v1682, %v1755
      %v1788 = vadd.f32 %v1683, %v1756
      %v1789 = vadd.f32 %v1684, %v1757
      %v1790 = vadd.f32 %v1685, %v1758
      %v1791 = vadd.f32 %v1686, %v1759
      %v1792 = vadd.f32 %v1687, %v1760
      %v1793 = vadd.f32 %v1688, %v1761
      %v1794 = vadd.f32 %v1689, %v1762
      %v1795 = vperm.slane %v1321, 6
      %v1796 = vmul.f32 %v1692, %v1795
      %v1797 = vmul.f32 %v1693, %v1795
      %v1798 = vmul.f32 %v1694, %v1795
      %v1799 = vmul.f32 %v1695, %v1795
      %v1800 = vmul.f32 %v1696, %v1795
      %v1801 = vmul.f32 %v1697, %v1795
      %v1802 = vmul.f32 %v1698, %v1795
      %v1803 = vmul.f32 %v1699, %v1795
      %v1804 = vmul.f32 %v1700, %v1795
      %v1805 = vmul.f32 %v1701, %v1795
      %v1806 = vmul.f32 %v1702, %v1795
      %v1807 = vmul.f32 %v1703, %v1795
      %v1808 = vmul.f32 %v1704, %v1795
      %v1809 = vmul.f32 %v1705, %v1795
      %v1810 = vmul.f32 %v1706, %v1795
      %v1811 = vmul.f32 %v1707, %v1795
      %v1812 = vmul.f32 %v1708, %v1795
      %v1813 = vmul.f32 %v1709, %v1795
      %v1814 = vmul.f32 %v1710, %v1795
      %v1815 = vmul.f32 %v1711, %v1795
      %v1816 = vmul.f32 %v1712, %v1795
      %v1817 = vmul.f32 %v1713, %v1795
      %v1818 = vmul.f32 %v1714, %v1795
      %v1819 = vmul.f32 %v1715, %v1795
      %v1820 = vmul.f32 %v1716, %v1795
      %v1821 = vmul.f32 %v1717, %v1795
      %v1822 = vmul.f32 %v1718, %v1795
      %v1823 = vmul.f32 %v1719, %v1795
      %v1824 = vmul.f32 %v1720, %v1795
      %v1825 = vmul.f32 %v1721, %v1795
      %v1826 = vmul.f32 %v1722, %v1795
      %v1827 = vmul.f32 %v1723, %v1795
      %v1828 = vadd.f32 %v1763, %v1796
      %v1829 = vadd.f32 %v1764, %v1797
      %v1830 = vadd.f32 %v1765, %v1798
      %v1831 = vadd.f32 %v1766, %v1799
      %v1832 = vadd.f32 %v1767, %v1800
      %v1833 = vadd.f32 %v1768, %v1801
      %v1834 = vadd.f32 %v1769, %v1802
      %v1835 = vadd.f32 %v1770, %v1803
      %v1836 = vadd.f32 %v1771, %v1804
      %v1837 = vadd.f32 %v1772, %v1805
      %v1838 = vadd.f32 %v1773, %v1806
      %v1839 = vadd.f32 %v1774, %v1807
      %v1840 = vadd.f32 %v1775, %v1808
      %v1841 = vadd.f32 %v1776, %v1809
      %v1842 = vadd.f32 %v1777, %v1810
      %v1843 = vadd.f32 %v1778, %v1811
      %v1844 = vadd.f32 %v1779, %v1812
      %v1845 = vadd.f32 %v1780, %v1813
      %v1846 = vadd.f32 %v1781, %v1814
      %v1847 = vadd.f32 %v1782, %v1815
      %v1848 = vadd.f32 %v1783, %v1816
      %v1849 = vadd.f32 %v1784, %v1817
      %v1850 = vadd.f32 %v1785, %v1818
      %v1851 = vadd.f32 %v1786, %v1819
      %v1852 = vadd.f32 %v1787, %v1820
      %v1853 = vadd.f32 %v1788, %v1821
      %v1854 = vadd.f32 %v1789, %v1822
      %v1855 = vadd.f32 %v1790, %v1823
      %v1856 = vadd.f32 %v1791, %v1824
      %v1857 = vadd.f32 %v1792, %v1825
      %v1858 = vadd.f32 %v1793, %v1826
      %v1859 = vadd.f32 %v1794, %v1827
      %v1860 = vperm.slane %v1322, 3
      %v1861 = vmul.f32 %v1694, %v1860
      %v1862 = vmul.f32 %v1695, %v1860
      %v1863 = vmul.f32 %v1696, %v1860
      %v1864 = vmul.f32 %v1697, %v1860
      %v1865 = vmul.f32 %v1698, %v1860
      %v1866 = vmul.f32 %v1699, %v1860
      %v1867 = vmul.f32 %v1700, %v1860
      %v1868 = vmul.f32 %v1701, %v1860
      %v1869 = vmul.f32 %v1702, %v1860
      %v1870 = vmul.f32 %v1703, %v1860
      %v1871 = vmul.f32 %v1704, %v1860
      %v1872 = vmul.f32 %v1705, %v1860
      %v1873 = vmul.f32 %v1706, %v1860
      %v1874 = vmul.f32 %v1707, %v1860
      %v1875 = vmul.f32 %v1708, %v1860
      %v1876 = vmul.f32 %v1709, %v1860
      %v1877 = vmul.f32 %v1710, %v1860
      %v1878 = vmul.f32 %v1711, %v1860
      %v1879 = vmul.f32 %v1712, %v1860
      %v1880 = vmul.f32 %v1713, %v1860
      %v1881 = vmul.f32 %v1714, %v1860
      %v1882 = vmul.f32 %v1715, %v1860
      %v1883 = vmul.f32 %v1716, %v1860
      %v1884 = vmul.f32 %v1717, %v1860
      %v1885 = vmul.f32 %v1718, %v1860
      %v1886 = vmul.f32 %v1719, %v1860
      %v1887 = vmul.f32 %v1720, %v1860
      %v1888 = vmul.f32 %v1721, %v1860
      %v1889 = vmul.f32 %v1722, %v1860
      %v1890 = vmul.f32 %v1723, %v1860
      %v1891 = vmul.f32 %v1724, %v1860
      %v1892 = vmul.f32 %v1725, %v1860
      %v1893 = vadd.f32 %v1828, %v1861
      %v1894 = vadd.f32 %v1829, %v1862
      %v1895 = vadd.f32 %v1830, %v1863
      %v1896 = vadd.f32 %v1831, %v1864
      %v1897 = vadd.f32 %v1832, %v1865
      %v1898 = vadd.f32 %v1833, %v1866
      %v1899 = vadd.f32 %v1834, %v1867
      %v1900 = vadd.f32 %v1835, %v1868
      %v1901 = vadd.f32 %v1836, %v1869
      %v1902 = vadd.f32 %v1837, %v1870
      %v1903 = vadd.f32 %v1838, %v1871
      %v1904 = vadd.f32 %v1839, %v1872
      %v1905 = vadd.f32 %v1840, %v1873
      %v1906 = vadd.f32 %v1841, %v1874
      %v1907 = vadd.f32 %v1842, %v1875
      %v1908 = vadd.f32 %v1843, %v1876
      %v1909 = vadd.f32 %v1844, %v1877
      %v1910 = vadd.f32 %v1845, %v1878
      %v1911 = vadd.f32 %v1846, %v1879
      %v1912 = vadd.f32 %v1847, %v1880
      %v1913 = vadd.f32 %v1848, %v1881
      %v1914 = vadd.f32 %v1849, %v1882
      %v1915 = vadd.f32 %v1850, %v1883
      %v1916 = vadd.f32 %v1851, %v1884
      %v1917 = vadd.f32 %v1852, %v1885
      %v1918 = vadd.f32 %v1853, %v1886
      %v1919 = vadd.f32 %v1854, %v1887
      %v1920 = vadd.f32 %v1855, %v1888
      %v1921 = vadd.f32 %v1856, %v1889
      %v1922 = vadd.f32 %v1857, %v1890
      %v1923 = vadd.f32 %v1858, %v1891
      %v1924 = vadd.f32 %v1859, %v1892
      %v1925 = vperm.slane %v1323, 0
      %v1926 = vmul.f32 %v1696, %v1925
      %v1927 = vmul.f32 %v1697, %v1925
      %v1928 = vmul.f32 %v1698, %v1925
      %v1929 = vmul.f32 %v1699, %v1925
      %v1930 = vmul.f32 %v1700, %v1925
      %v1931 = vmul.f32 %v1701, %v1925
      %v1932 = vmul.f32 %v1702, %v1925
      %v1933 = vmul.f32 %v1703, %v1925
      %v1934 = vmul.f32 %v1704, %v1925
      %v1935 = vmul.f32 %v1705, %v1925
      %v1936 = vmul.f32 %v1706, %v1925
      %v1937 = vmul.f32 %v1707, %v1925
      %v1938 = vmul.f32 %v1708, %v1925
      %v1939 = vmul.f32 %v1709, %v1925
      %v1940 = vmul.f32 %v1710, %v1925
      %v1941 = vmul.f32 %v1711, %v1925
      %v1942 = vmul.f32 %v1712, %v1925
      %v1943 = vmul.f32 %v1713, %v1925
      %v1944 = vmul.f32 %v1714, %v1925
      %v1945 = vmul.f32 %v1715, %v1925
      %v1946 = vmul.f32 %v1716, %v1925
      %v1947 = vmul.f32 %v1717, %v1925
      %v1948 = vmul.f32 %v1718, %v1925
      %v1949 = vmul.f32 %v1719, %v1925
      %v1950 = vmul.f32 %v1720, %v1925
      %v1951 = vmul.f32 %v1721, %v1925
      %v1952 = vmul.f32 %v1722, %v1925
      %v1953 = vmul.f32 %v1723, %v1925
      %v1954 = vmul.f32 %v1724, %v1925
      %v1955 = vmul.f32 %v1725, %v1925
      %v1956 = vmul.f32 %v1726, %v1925
      %v1957 = vmul.f32 %v1727, %v1925
      %v1958 = vadd.f32 %v1893, %v1926
      %v1959 = vadd.f32 %v1894, %v1927
      %v1960 = vadd.f32 %v1895, %v1928
      %v1961 = vadd.f32 %v1896, %v1929
      %v1962 = vadd.f32 %v1897, %v1930
      %v1963 = vadd.f32 %v1898, %v1931
      %v1964 = vadd.f32 %v1899, %v1932
      %v1965 = vadd.f32 %v1900, %v1933
      %v1966 = vadd.f32 %v1901, %v1934
      %v1967 = vadd.f32 %v1902, %v1935
      %v1968 = vadd.f32 %v1903, %v1936
      %v1969 = vadd.f32 %v1904, %v1937
      %v1970 = vadd.f32 %v1905, %v1938
      %v1971 = vadd.f32 %v1906, %v1939
      %v1972 = vadd.f32 %v1907, %v1940
      %v1973 = vadd.f32 %v1908, %v1941
      %v1974 = vadd.f32 %v1909, %v1942
      %v1975 = vadd.f32 %v1910, %v1943
      %v1976 = vadd.f32 %v1911, %v1944
      %v1977 = vadd.f32 %v1912, %v1945
      %v1978 = vadd.f32 %v1913, %v1946
      %v1979 = vadd.f32 %v1914, %v1947
      %v1980 = vadd.f32 %v1915, %v1948
      %v1981 = vadd.f32 %v1916, %v1949
      %v1982 = vadd.f32 %v1917, %v1950
      %v1983 = vadd.f32 %v1918, %v1951
      %v1984 = vadd.f32 %v1919, %v1952
      %v1985 = vadd.f32 %v1920, %v1953
      %v1986 = vadd.f32 %v1921, %v1954
      %v1987 = vadd.f32 %v1922, %v1955
      %v1988 = vadd.f32 %v1923, %v1956
      %v1989 = vadd.f32 %v1924, %v1957
      %v1990 = vperm.slane %v1323, 5
      %v1991 = vmul.f32 %v1698, %v1990
      %v1992 = vmul.f32 %v1699, %v1990
      %v1993 = vmul.f32 %v1700, %v1990
      %v1994 = vmul.f32 %v1701, %v1990
      %v1995 = vmul.f32 %v1702, %v1990
      %v1996 = vmul.f32 %v1703, %v1990
      %v1997 = vmul.f32 %v1704, %v1990
      %v1998 = vmul.f32 %v1705, %v1990
      %v1999 = vmul.f32 %v1706, %v1990
      %v2000 = vmul.f32 %v1707, %v1990
      %v2001 = vmul.f32 %v1708, %v1990
      %v2002 = vmul.f32 %v1709, %v1990
      %v2003 = vmul.f32 %v1710, %v1990
      %v2004 = vmul.f32 %v1711, %v1990
      %v2005 = vmul.f32 %v1712, %v1990
      %v2006 = vmul.f32 %v1713, %v1990
      %v2007 = vmul.f32 %v1714, %v1990
      %v2008 = vmul.f32 %v1715, %v1990
      %v2009 = vmul.f32 %v1716, %v1990
      %v2010 = vmul.f32 %v1717, %v1990
      %v2011 = vmul.f32 %v1718, %v1990
      %v2012 = vmul.f32 %v1719, %v1990
      %v2013 = vmul.f32 %v1720, %v1990
      %v2014 = vmul.f32 %v1721, %v1990
      %v2015 = vmul.f32 %v1722, %v1990
      %v2016 = vmul.f32 %v1723, %v1990
      %v2017 = vmul.f32 %v1724, %v1990
      %v2018 = vmul.f32 %v1725, %v1990
      %v2019 = vmul.f32 %v1726, %v1990
      %v2020 = vmul.f32 %v1727, %v1990
      %v2021 = vmul.f32 %v1728, %v1990
      %v2022 = vmul.f32 %v1729, %v1990
      %v2023 = vadd.f32 %v1958, %v1991
      %v2024 = vadd.f32 %v1959, %v1992
      %v2025 = vadd.f32 %v1960, %v1993
      %v2026 = vadd.f32 %v1961, %v1994
      %v2027 = vadd.f32 %v1962, %v1995
      %v2028 = vadd.f32 %v1963, %v1996
      %v2029 = vadd.f32 %v1964, %v1997
      %v2030 = vadd.f32 %v1965, %v1998
      %v2031 = vadd.f32 %v1966, %v1999
      %v2032 = vadd.f32 %v1967, %v2000
      %v2033 = vadd.f32 %v1968, %v2001
      %v2034 = vadd.f32 %v1969, %v2002
      %v2035 = vadd.f32 %v1970, %v2003
      %v2036 = vadd.f32 %v1971, %v2004
      %v2037 = vadd.f32 %v1972, %v2005
      %v2038 = vadd.f32 %v1973, %v2006
      %v2039 = vadd.f32 %v1974, %v2007
      %v2040 = vadd.f32 %v1975, %v2008
      %v2041 = vadd.f32 %v1976, %v2009
      %v2042 = vadd.f32 %v1977, %v2010
      %v2043 = vadd.f32 %v1978, %v2011
      %v2044 = vadd.f32 %v1979, %v2012
      %v2045 = vadd.f32 %v1980, %v2013
      %v2046 = vadd.f32 %v1981, %v2014
      %v2047 = vadd.f32 %v1982, %v2015
      %v2048 = vadd.f32 %v1983, %v2016
      %v2049 = vadd.f32 %v1984, %v2017
      %v2050 = vadd.f32 %v1985, %v2018
      %v2051 = vadd.f32 %v1986, %v2019
      %v2052 = vadd.f32 %v1987, %v2020
      %v2053 = vadd.f32 %v1988, %v2021
      %v2054 = vadd.f32 %v1989, %v2022
      %v2055 = vld [vmem:[#allocation2 + $0x2] sm:$0xff]
      %v2056 = vld [vmem:[#allocation2 + $0xa] sm:$0xff]
      %v2057 = vld [vmem:[#allocation2 + $0x1a] sm:$0xff]
      %v2058 = vld [vmem:[#allocation2 + $0x22] sm:$0xff]
      %v2059 = vld [vmem:[#allocation2 + $0x32] sm:$0xff]
      %v2060 = vld [vmem:[#allocation2 + $0x3a] sm:$0xff]
      %v2061 = vld [vmem:[#allocation2 + $0x4a] sm:$0xff]
      %v2062 = vld [vmem:[#allocation2 + $0x52] sm:$0xff]
      %v2063 = vld [vmem:[#allocation2 + $0x62] sm:$0xff]
      %v2064 = vld [vmem:[#allocation2 + $0x6a] sm:$0xff]
      %v2065 = vld [vmem:[#allocation2 + $0x7a] sm:$0xff]
      %v2066 = vld [vmem:[#allocation2 + $0x82] sm:$0xff]
      %v2067 = vld [vmem:[#allocation2 + $0x92] sm:$0xff]
      %v2068 = vld [vmem:[#allocation2 + $0x9a] sm:$0xff]
      %v2069 = vld [vmem:[#allocation2 + $0xaa] sm:$0xff]
      %v2070 = vld [vmem:[#allocation2 + $0xb2] sm:$0xff]
      %v2071 = vld [vmem:[#allocation2 + $0xc2] sm:$0xff]
      %v2072 = vld [vmem:[#allocation2 + $0xca] sm:$0xff]
      %v2073 = vld [vmem:[#allocation2 + $0xda] sm:$0xff]
      %v2074 = vld [vmem:[#allocation2 + $0xe2] sm:$0xff]
      %v2075 = vld [vmem:[#allocation2 + $0xf2] sm:$0xff]
      %v2076 = vld [vmem:[#allocation2 + $0xfa] sm:$0xff]
      %v2077 = vld [vmem:[#allocation2 + $0x10a] sm:$0xff]
      %v2078 = vld [vmem:[#allocation2 + $0x112] sm:$0xff]
      %v2079 = vld [vmem:[#allocation2 + $0x122] sm:$0xff]
      %v2080 = vld [vmem:[#allocation2 + $0x12a] sm:$0xff]
      %v2081 = vld [vmem:[#allocation2 + $0x13a] sm:$0xff]
      %v2082 = vld [vmem:[#allocation2 + $0x142] sm:$0xff]
      %v2083 = vld [vmem:[#allocation2 + $0x152] sm:$0xff]
      %v2084 = vld [vmem:[#allocation2 + $0x15a] sm:$0xff]
      %v2085 = vld [vmem:[#allocation2 + $0x16a] sm:$0xff]
      %v2086 = vld [vmem:[#allocation2 + $0x172] sm:$0xff]
      %v2087 = vld [vmem:[#allocation2 + $0x182] sm:$0xff]
      %v2088 = vld [vmem:[#allocation2 + $0x18a] sm:$0xff]
      %v2089 = vld [vmem:[#allocation2 + $0x19a] sm:$0xff]
      %v2090 = vld [vmem:[#allocation2 + $0x1a2] sm:$0xff]
      %v2091 = vld [vmem:[#allocation2 + $0x1b2] sm:$0xff]
      %v2092 = vld [vmem:[#allocation2 + $0x1ba] sm:$0xff]
      %v2093 = vld [vmem:[#allocation2 + $0x1ca] sm:$0xff]
      %v2094 = vld [vmem:[#allocation2 + $0x1d2] sm:$0xff]
      %v2095 = vperm.slane %v1321, 2
      %v2096 = vmul.f32 %v2055, %v2095
      %v2097 = vmul.f32 %v2056, %v2095
      %v2098 = vmul.f32 %v2057, %v2095
      %v2099 = vmul.f32 %v2058, %v2095
      %v2100 = vmul.f32 %v2059, %v2095
      %v2101 = vmul.f32 %v2060, %v2095
      %v2102 = vmul.f32 %v2061, %v2095
      %v2103 = vmul.f32 %v2062, %v2095
      %v2104 = vmul.f32 %v2063, %v2095
      %v2105 = vmul.f32 %v2064, %v2095
      %v2106 = vmul.f32 %v2065, %v2095
      %v2107 = vmul.f32 %v2066, %v2095
      %v2108 = vmul.f32 %v2067, %v2095
      %v2109 = vmul.f32 %v2068, %v2095
      %v2110 = vmul.f32 %v2069, %v2095
      %v2111 = vmul.f32 %v2070, %v2095
      %v2112 = vmul.f32 %v2071, %v2095
      %v2113 = vmul.f32 %v2072, %v2095
      %v2114 = vmul.f32 %v2073, %v2095
      %v2115 = vmul.f32 %v2074, %v2095
      %v2116 = vmul.f32 %v2075, %v2095
      %v2117 = vmul.f32 %v2076, %v2095
      %v2118 = vmul.f32 %v2077, %v2095
      %v2119 = vmul.f32 %v2078, %v2095
      %v2120 = vmul.f32 %v2079, %v2095
      %v2121 = vmul.f32 %v2080, %v2095
      %v2122 = vmul.f32 %v2081, %v2095
      %v2123 = vmul.f32 %v2082, %v2095
      %v2124 = vmul.f32 %v2083, %v2095
      %v2125 = vmul.f32 %v2084, %v2095
      %v2126 = vmul.f32 %v2085, %v2095
      %v2127 = vmul.f32 %v2086, %v2095
      %v2128 = vadd.f32 %v2023, %v2096
      %v2129 = vadd.f32 %v2024, %v2097
      %v2130 = vadd.f32 %v2025, %v2098
      %v2131 = vadd.f32 %v2026, %v2099
      %v2132 = vadd.f32 %v2027, %v2100
      %v2133 = vadd.f32 %v2028, %v2101
      %v2134 = vadd.f32 %v2029, %v2102
      %v2135 = vadd.f32 %v2030, %v2103
      %v2136 = vadd.f32 %v2031, %v2104
      %v2137 = vadd.f32 %v2032, %v2105
      %v2138 = vadd.f32 %v2033, %v2106
      %v2139 = vadd.f32 %v2034, %v2107
      %v2140 = vadd.f32 %v2035, %v2108
      %v2141 = vadd.f32 %v2036, %v2109
      %v2142 = vadd.f32 %v2037, %v2110
      %v2143 = vadd.f32 %v2038, %v2111
      %v2144 = vadd.f32 %v2039, %v2112
      %v2145 = vadd.f32 %v2040, %v2113
      %v2146 = vadd.f32 %v2041, %v2114
      %v2147 = vadd.f32 %v2042, %v2115
      %v2148 = vadd.f32 %v2043, %v2116
      %v2149 = vadd.f32 %v2044, %v2117
      %v2150 = vadd.f32 %v2045, %v2118
      %v2151 = vadd.f32 %v2046, %v2119
      %v2152 = vadd.f32 %v2047, %v2120
      %v2153 = vadd.f32 %v2048, %v2121
      %v2154 = vadd.f32 %v2049, %v2122
      %v2155 = vadd.f32 %v2050, %v2123
      %v2156 = vadd.f32 %v2051, %v2124
      %v2157 = vadd.f32 %v2052, %v2125
      %v2158 = vadd.f32 %v2053, %v2126
      %v2159 = vadd.f32 %v2054, %v2127
      %v2160 = vperm.slane %v1321, 7
      %v2161 = vmul.f32 %v2057, %v2160
      %v2162 = vmul.f32 %v2058, %v2160
      %v2163 = vmul.f32 %v2059, %v2160
      %v2164 = vmul.f32 %v2060, %v2160
      %v2165 = vmul.f32 %v2061, %v2160
      %v2166 = vmul.f32 %v2062, %v2160
      %v2167 = vmul.f32 %v2063, %v2160
      %v2168 = vmul.f32 %v2064, %v2160
      %v2169 = vmul.f32 %v2065, %v2160
      %v2170 = vmul.f32 %v2066, %v2160
      %v2171 = vmul.f32 %v2067, %v2160
      %v2172 = vmul.f32 %v2068, %v2160
      %v2173 = vmul.f32 %v2069, %v2160
      %v2174 = vmul.f32 %v2070, %v2160
      %v2175 = vmul.f32 %v2071, %v2160
      %v2176 = vmul.f32 %v2072, %v2160
      %v2177 = vmul.f32 %v2073, %v2160
      %v2178 = vmul.f32 %v2074, %v2160
      %v2179 = vmul.f32 %v2075, %v2160
      %v2180 = vmul.f32 %v2076, %v2160
      %v2181 = vmul.f32 %v2077, %v2160
      %v2182 = vmul.f32 %v2078, %v2160
      %v2183 = vmul.f32 %v2079, %v2160
      %v2184 = vmul.f32 %v2080, %v2160
      %v2185 = vmul.f32 %v2081, %v2160
      %v2186 = vmul.f32 %v2082, %v2160
      %v2187 = vmul.f32 %v2083, %v2160
      %v2188 = vmul.f32 %v2084, %v2160
      %v2189 = vmul.f32 %v2085, %v2160
      %v2190 = vmul.f32 %v2086, %v2160
      %v2191 = vmul.f32 %v2087, %v2160
      %v2192 = vmul.f32 %v2088, %v2160
      %v2193 = vadd.f32 %v2128, %v2161
      %v2194 = vadd.f32 %v2129, %v2162
      %v2195 = vadd.f32 %v2130, %v2163
      %v2196 = vadd.f32 %v2131, %v2164
      %v2197 = vadd.f32 %v2132, %v2165
      %v2198 = vadd.f32 %v2133, %v2166
      %v2199 = vadd.f32 %v2134, %v2167
      %v2200 = vadd.f32 %v2135, %v2168
      %v2201 = vadd.f32 %v2136, %v2169
      %v2202 = vadd.f32 %v2137, %v2170
      %v2203 = vadd.f32 %v2138, %v2171
      %v2204 = vadd.f32 %v2139, %v2172
      %v2205 = vadd.f32 %v2140, %v2173
      %v2206 = vadd.f32 %v2141, %v2174
      %v2207 = vadd.f32 %v2142, %v2175
      %v2208 = vadd.f32 %v2143, %v2176
      %v2209 = vadd.f32 %v2144, %v2177
      %v2210 = vadd.f32 %v2145, %v2178
      %v2211 = vadd.f32 %v2146, %v2179
      %v2212 = vadd.f32 %v2147, %v2180
      %v2213 = vadd.f32 %v2148, %v2181
      %v2214 = vadd.f32 %v2149, %v2182
      %v2215 = vadd.f32 %v2150, %v2183
      %v2216 = vadd.f32 %v2151, %v2184
      %v2217 = vadd.f32 %v2152, %v2185
      %v2218 = vadd.f32 %v2153, %v2186
      %v2219 = vadd.f32 %v2154, %v2187
      %v2220 = vadd.f32 %v2155, %v2188
      %v2221 = vadd.f32 %v2156, %v2189
      %v2222 = vadd.f32 %v2157, %v2190
      %v2223 = vadd.f32 %v2158, %v2191
      %v2224 = vadd.f32 %v2159, %v2192
      %v2225 = vperm.slane %v1322, 4
      %v2226 = vmul.f32 %v2059, %v2225
      %v2227 = vmul.f32 %v2060, %v2225
      %v2228 = vmul.f32 %v2061, %v2225
      %v2229 = vmul.f32 %v2062, %v2225
      %v2230 = vmul.f32 %v2063, %v2225
      %v2231 = vmul.f32 %v2064, %v2225
      %v2232 = vmul.f32 %v2065, %v2225
      %v2233 = vmul.f32 %v2066, %v2225
      %v2234 = vmul.f32 %v2067, %v2225
      %v2235 = vmul.f32 %v2068, %v2225
      %v2236 = vmul.f32 %v2069, %v2225
      %v2237 = vmul.f32 %v2070, %v2225
      %v2238 = vmul.f32 %v2071, %v2225
      %v2239 = vmul.f32 %v2072, %v2225
      %v2240 = vmul.f32 %v2073, %v2225
      %v2241 = vmul.f32 %v2074, %v2225
      %v2242 = vmul.f32 %v2075, %v2225
      %v2243 = vmul.f32 %v2076, %v2225
      %v2244 = vmul.f32 %v2077, %v2225
      %v2245 = vmul.f32 %v2078, %v2225
      %v2246 = vmul.f32 %v2079, %v2225
      %v2247 = vmul.f32 %v2080, %v2225
      %v2248 = vmul.f32 %v2081, %v2225
      %v2249 = vmul.f32 %v2082, %v2225
      %v2250 = vmul.f32 %v2083, %v2225
      %v2251 = vmul.f32 %v2084, %v2225
      %v2252 = vmul.f32 %v2085, %v2225
      %v2253 = vmul.f32 %v2086, %v2225
      %v2254 = vmul.f32 %v2087, %v2225
      %v2255 = vmul.f32 %v2088, %v2225
      %v2256 = vmul.f32 %v2089, %v2225
      %v2257 = vmul.f32 %v2090, %v2225
      %v2258 = vadd.f32 %v2193, %v2226
      %v2259 = vadd.f32 %v2194, %v2227
      %v2260 = vadd.f32 %v2195, %v2228
      %v2261 = vadd.f32 %v2196, %v2229
      %v2262 = vadd.f32 %v2197, %v2230
      %v2263 = vadd.f32 %v2198, %v2231
      %v2264 = vadd.f32 %v2199, %v2232
      %v2265 = vadd.f32 %v2200, %v2233
      %v2266 = vadd.f32 %v2201, %v2234
      %v2267 = vadd.f32 %v2202, %v2235
      %v2268 = vadd.f32 %v2203, %v2236
      %v2269 = vadd.f32 %v2204, %v2237
      %v2270 = vadd.f32 %v2205, %v2238
      %v2271 = vadd.f32 %v2206, %v2239
      %v2272 = vadd.f32 %v2207, %v2240
      %v2273 = vadd.f32 %v2208, %v2241
      %v2274 = vadd.f32 %v2209, %v2242
      %v2275 = vadd.f32 %v2210, %v2243
      %v2276 = vadd.f32 %v2211, %v2244
      %v2277 = vadd.f32 %v2212, %v2245
      %v2278 = vadd.f32 %v2213, %v2246
      %v2279 = vadd.f32 %v2214, %v2247
      %v2280 = vadd.f32 %v2215, %v2248
      %v2281 = vadd.f32 %v2216, %v2249
      %v2282 = vadd.f32 %v2217, %v2250
      %v2283 = vadd.f32 %v2218, %v2251
      %v2284 = vadd.f32 %v2219, %v2252
      %v2285 = vadd.f32 %v2220, %v2253
      %v2286 = vadd.f32 %v2221, %v2254
      %v2287 = vadd.f32 %v2222, %v2255
      %v2288 = vadd.f32 %v2223, %v2256
      %v2289 = vadd.f32 %v2224, %v2257
      %v2290 = vperm.slane %v1323, 1
      %v2291 = vmul.f32 %v2061, %v2290
      %v2292 = vmul.f32 %v2062, %v2290
      %v2293 = vmul.f32 %v2063, %v2290
      %v2294 = vmul.f32 %v2064, %v2290
      %v2295 = vmul.f32 %v2065, %v2290
      %v2296 = vmul.f32 %v2066, %v2290
      %v2297 = vmul.f32 %v2067, %v2290
      %v2298 = vmul.f32 %v2068, %v2290
      %v2299 = vmul.f32 %v2069, %v2290
      %v2300 = vmul.f32 %v2070, %v2290
      %v2301 = vmul.f32 %v2071, %v2290
      %v2302 = vmul.f32 %v2072, %v2290
      %v2303 = vmul.f32 %v2073, %v2290
      %v2304 = vmul.f32 %v2074, %v2290
      %v2305 = vmul.f32 %v2075, %v2290
      %v2306 = vmul.f32 %v2076, %v2290
      %v2307 = vmul.f32 %v2077, %v2290
      %v2308 = vmul.f32 %v2078, %v2290
      %v2309 = vmul.f32 %v2079, %v2290
      %v2310 = vmul.f32 %v2080, %v2290
      %v2311 = vmul.f32 %v2081, %v2290
      %v2312 = vmul.f32 %v2082, %v2290
      %v2313 = vmul.f32 %v2083, %v2290
      %v2314 = vmul.f32 %v2084, %v2290
      %v2315 = vmul.f32 %v2085, %v2290
      %v2316 = vmul.f32 %v2086, %v2290
      %v2317 = vmul.f32 %v2087, %v2290
      %v2318 = vmul.f32 %v2088, %v2290
      %v2319 = vmul.f32 %v2089, %v2290
      %v2320 = vmul.f32 %v2090, %v2290
      %v2321 = vmul.f32 %v2091, %v2290
      %v2322 = vmul.f32 %v2092, %v2290
      %v2323 = vadd.f32 %v2258, %v2291
      %v2324 = vadd.f32 %v2259, %v2292
      %v2325 = vadd.f32 %v2260, %v2293
      %v2326 = vadd.f32 %v2261, %v2294
      %v2327 = vadd.f32 %v2262, %v2295
      %v2328 = vadd.f32 %v2263, %v2296
      %v2329 = vadd.f32 %v2264, %v2297
      %v2330 = vadd.f32 %v2265, %v2298
      %v2331 = vadd.f32 %v2266, %v2299
      %v2332 = vadd.f32 %v2267, %v2300
      %v2333 = vadd.f32 %v2268, %v2301
      %v2334 = vadd.f32 %v2269, %v2302
      %v2335 = vadd.f32 %v2270, %v2303
      %v2336 = vadd.f32 %v2271, %v2304
      %v2337 = vadd.f32 %v2272, %v2305
      %v2338 = vadd.f32 %v2273, %v2306
      %v2339 = vadd.f32 %v2274, %v2307
      %v2340 = vadd.f32 %v2275, %v2308
      %v2341 = vadd.f32 %v2276, %v2309
      %v2342 = vadd.f32 %v2277, %v2310
      %v2343 = vadd.f32 %v2278, %v2311
      %v2344 = vadd.f32 %v2279, %v2312
      %v2345 = vadd.f32 %v2280, %v2313
      %v2346 = vadd.f32 %v2281, %v2314
      %v2347 = vadd.f32 %v2282, %v2315
      %v2348 = vadd.f32 %v2283, %v2316
      %v2349 = vadd.f32 %v2284, %v2317
      %v2350 = vadd.f32 %v2285, %v2318
      %v2351 = vadd.f32 %v2286, %v2319
      %v2352 = vadd.f32 %v2287, %v2320
      %v2353 = vadd.f32 %v2288, %v2321
      %v2354 = vadd.f32 %v2289, %v2322
      %v2355 = vperm.slane %v1323, 6
      %v2356 = vmul.f32 %v2063, %v2355
      %v2357 = vmul.f32 %v2064, %v2355
      %v2358 = vmul.f32 %v2065, %v2355
      %v2359 = vmul.f32 %v2066, %v2355
      %v2360 = vmul.f32 %v2067, %v2355
      %v2361 = vmul.f32 %v2068, %v2355
      %v2362 = vmul.f32 %v2069, %v2355
      %v2363 = vmul.f32 %v2070, %v2355
      %v2364 = vmul.f32 %v2071, %v2355
      %v2365 = vmul.f32 %v2072, %v2355
      %v2366 = vmul.f32 %v2073, %v2355
      %v2367 = vmul.f32 %v2074, %v2355
      %v2368 = vmul.f32 %v2075, %v2355
      %v2369 = vmul.f32 %v2076, %v2355
      %v2370 = vmul.f32 %v2077, %v2355
      %v2371 = vmul.f32 %v2078, %v2355
      %v2372 = vmul.f32 %v2079, %v2355
      %v2373 = vmul.f32 %v2080, %v2355
      %v2374 = vmul.f32 %v2081, %v2355
      %v2375 = vmul.f32 %v2082, %v2355
      %v2376 = vmul.f32 %v2083, %v2355
      %v2377 = vmul.f32 %v2084, %v2355
      %v2378 = vmul.f32 %v2085, %v2355
      %v2379 = vmul.f32 %v2086, %v2355
      %v2380 = vmul.f32 %v2087, %v2355
      %v2381 = vmul.f32 %v2088, %v2355
      %v2382 = vmul.f32 %v2089, %v2355
      %v2383 = vmul.f32 %v2090, %v2355
      %v2384 = vmul.f32 %v2091, %v2355
      %v2385 = vmul.f32 %v2092, %v2355
      %v2386 = vmul.f32 %v2093, %v2355
      %v2387 = vmul.f32 %v2094, %v2355
      %v2388 = vadd.f32 %v2323, %v2356
      %v2389 = vadd.f32 %v2324, %v2357
      %v2390 = vadd.f32 %v2325, %v2358
      %v2391 = vadd.f32 %v2326, %v2359
      %v2392 = vadd.f32 %v2327, %v2360
      %v2393 = vadd.f32 %v2328, %v2361
      %v2394 = vadd.f32 %v2329, %v2362
      %v2395 = vadd.f32 %v2330, %v2363
      %v2396 = vadd.f32 %v2331, %v2364
      %v2397 = vadd.f32 %v2332, %v2365
      %v2398 = vadd.f32 %v2333, %v2366
      %v2399 = vadd.f32 %v2334, %v2367
      %v2400 = vadd.f32 %v2335, %v2368
      %v2401 = vadd.f32 %v2336, %v2369
      %v2402 = vadd.f32 %v2337, %v2370
      %v2403 = vadd.f32 %v2338, %v2371
      %v2404 = vadd.f32 %v2339, %v2372
      %v2405 = vadd.f32 %v2340, %v2373
      %v2406 = vadd.f32 %v2341, %v2374
      %v2407 = vadd.f32 %v2342, %v2375
      %v2408 = vadd.f32 %v2343, %v2376
      %v2409 = vadd.f32 %v2344, %v2377
      %v2410 = vadd.f32 %v2345, %v2378
      %v2411 = vadd.f32 %v2346, %v2379
      %v2412 = vadd.f32 %v2347, %v2380
      %v2413 = vadd.f32 %v2348, %v2381
      %v2414 = vadd.f32 %v2349, %v2382
      %v2415 = vadd.f32 %v2350, %v2383
      %v2416 = vadd.f32 %v2351, %v2384
      %v2417 = vadd.f32 %v2352, %v2385
      %v2418 = vadd.f32 %v2353, %v2386
      %v2419 = vadd.f32 %v2354, %v2387
      %v2420 = vld [vmem:[#allocation2 + $0x3] sm:$0xff]
      %v2421 = vld [vmem:[#allocation2 + $0xb] sm:$0xff]
      %v2422 = vld [vmem:[#allocation2 + $0x1b] sm:$0xff]
      %v2423 = vld [vmem:[#allocation2 + $0x23] sm:$0xff]
      %v2424 = vld [vmem:[#allocation2 + $0x33] sm:$0xff]
      %v2425 = vld [vmem:[#allocation2 + $0x3b] sm:$0xff]
      %v2426 = vld [vmem:[#allocation2 + $0x4b] sm:$0xff]
      %v2427 = vld [vmem:[#allocation2 + $0x53] sm:$0xff]
      %v2428 = vld [vmem:[#allocation2 + $0x63] sm:$0xff]
      %v2429 = vld [vmem:[#allocation2 + $0x6b] sm:$0xff]
      %v2430 = vld [vmem:[#allocation2 + $0x7b] sm:$0xff]
      %v2431 = vld [vmem:[#allocation2 + $0x83] sm:$0xff]
      %v2432 = vld [vmem:[#allocation2 + $0x93] sm:$0xff]
      %v2433 = vld [vmem:[#allocation2 + $0x9b] sm:$0xff]
      %v2434 = vld [vmem:[#allocation2 + $0xab] sm:$0xff]
      %v2435 = vld [vmem:[#allocation2 + $0xb3] sm:$0xff]
      %v2436 = vld [vmem:[#allocation2 + $0xc3] sm:$0xff]
      %v2437 = vld [vmem:[#allocation2 + $0xcb] sm:$0xff]
      %v2438 = vld [vmem:[#allocation2 + $0xdb] sm:$0xff]
      %v2439 = vld [vmem:[#allocation2 + $0xe3] sm:$0xff]
      %v2440 = vld [vmem:[#allocation2 + $0xf3] sm:$0xff]
      %v2441 = vld [vmem:[#allocation2 + $0xfb] sm:$0xff]
      %v2442 = vld [vmem:[#allocation2 + $0x10b] sm:$0xff]
      %v2443 = vld [vmem:[#allocation2 + $0x113] sm:$0xff]
      %v2444 = vld [vmem:[#allocation2 + $0x123] sm:$0xff]
      %v2445 = vld [vmem:[#allocation2 + $0x12b] sm:$0xff]
      %v2446 = vld [vmem:[#allocation2 + $0x13b] sm:$0xff]
      %v2447 = vld [vmem:[#allocation2 + $0x143] sm:$0xff]
      %v2448 = vld [vmem:[#allocation2 + $0x153] sm:$0xff]
      %v2449 = vld [vmem:[#allocation2 + $0x15b] sm:$0xff]
      %v2450 = vld [vmem:[#allocation2 + $0x16b] sm:$0xff]
      %v2451 = vld [vmem:[#allocation2 + $0x173] sm:$0xff]
      %v2452 = vld [vmem:[#allocation2 + $0x183] sm:$0xff]
      %v2453 = vld [vmem:[#allocation2 + $0x18b] sm:$0xff]
      %v2454 = vld [vmem:[#allocation2 + $0x19b] sm:$0xff]
      %v2455 = vld [vmem:[#allocation2 + $0x1a3] sm:$0xff]
      %v2456 = vld [vmem:[#allocation2 + $0x1b3] sm:$0xff]
      %v2457 = vld [vmem:[#allocation2 + $0x1bb] sm:$0xff]
      %v2458 = vld [vmem:[#allocation2 + $0x1cb] sm:$0xff]
      %v2459 = vld [vmem:[#allocation2 + $0x1d3] sm:$0xff]
      %v2460 = vperm.slane %v1321, 3
      %v2461 = vmul.f32 %v2420, %v2460
      %v2462 = vmul.f32 %v2421, %v2460
      %v2463 = vmul.f32 %v2422, %v2460
      %v2464 = vmul.f32 %v2423, %v2460
      %v2465 = vmul.f32 %v2424, %v2460
      %v2466 = vmul.f32 %v2425, %v2460
      %v2467 = vmul.f32 %v2426, %v2460
      %v2468 = vmul.f32 %v2427, %v2460
      %v2469 = vmul.f32 %v2428, %v2460
      %v2470 = vmul.f32 %v2429, %v2460
      %v2471 = vmul.f32 %v2430, %v2460
      %v2472 = vmul.f32 %v2431, %v2460
      %v2473 = vmul.f32 %v2432, %v2460
      %v2474 = vmul.f32 %v2433, %v2460
      %v2475 = vmul.f32 %v2434, %v2460
      %v2476 = vmul.f32 %v2435, %v2460
      %v2477 = vmul.f32 %v2436, %v2460
      %v2478 = vmul.f32 %v2437, %v2460
      %v2479 = vmul.f32 %v2438, %v2460
      %v2480 = vmul.f32 %v2439, %v2460
      %v2481 = vmul.f32 %v2440, %v2460
      %v2482 = vmul.f32 %v2441, %v2460
      %v2483 = vmul.f32 %v2442, %v2460
      %v2484 = vmul.f32 %v2443, %v2460
      %v2485 = vmul.f32 %v2444, %v2460
      %v2486 = vmul.f32 %v2445, %v2460
      %v2487 = vmul.f32 %v2446, %v2460
      %v2488 = vmul.f32 %v2447, %v2460
      %v2489 = vmul.f32 %v2448, %v2460
      %v2490 = vmul.f32 %v2449, %v2460
      %v2491 = vmul.f32 %v2450, %v2460
      %v2492 = vmul.f32 %v2451, %v2460
      %v2493 = vadd.f32 %v2388, %v2461
      %v2494 = vadd.f32 %v2389, %v2462
      %v2495 = vadd.f32 %v2390, %v2463
      %v2496 = vadd.f32 %v2391, %v2464
      %v2497 = vadd.f32 %v2392, %v2465
      %v2498 = vadd.f32 %v2393, %v2466
      %v2499 = vadd.f32 %v2394, %v2467
      %v2500 = vadd.f32 %v2395, %v2468
      %v2501 = vadd.f32 %v2396, %v2469
      %v2502 = vadd.f32 %v2397, %v2470
      %v2503 = vadd.f32 %v2398, %v2471
      %v2504 = vadd.f32 %v2399, %v2472
      %v2505 = vadd.f32 %v2400, %v2473
      %v2506 = vadd.f32 %v2401, %v2474
      %v2507 = vadd.f32 %v2402, %v2475
      %v2508 = vadd.f32 %v2403, %v2476
      %v2509 = vadd.f32 %v2404, %v2477
      %v2510 = vadd.f32 %v2405, %v2478
      %v2511 = vadd.f32 %v2406, %v2479
      %v2512 = vadd.f32 %v2407, %v2480
      %v2513 = vadd.f32 %v2408, %v2481
      %v2514 = vadd.f32 %v2409, %v2482
      %v2515 = vadd.f32 %v2410, %v2483
      %v2516 = vadd.f32 %v2411, %v2484
      %v2517 = vadd.f32 %v2412, %v2485
      %v2518 = vadd.f32 %v2413, %v2486
      %v2519 = vadd.f32 %v2414, %v2487
      %v2520 = vadd.f32 %v2415, %v2488
      %v2521 = vadd.f32 %v2416, %v2489
      %v2522 = vadd.f32 %v2417, %v2490
      %v2523 = vadd.f32 %v2418, %v2491
      %v2524 = vadd.f32 %v2419, %v2492
      %v2525 = vperm.slane %v1322, 0
      %v2526 = vmul.f32 %v2422, %v2525
      %v2527 = vmul.f32 %v2423, %v2525
      %v2528 = vmul.f32 %v2424, %v2525
      %v2529 = vmul.f32 %v2425, %v2525
      %v2530 = vmul.f32 %v2426, %v2525
      %v2531 = vmul.f32 %v2427, %v2525
      %v2532 = vmul.f32 %v2428, %v2525
      %v2533 = vmul.f32 %v2429, %v2525
      %v2534 = vmul.f32 %v2430, %v2525
      %v2535 = vmul.f32 %v2431, %v2525
      %v2536 = vmul.f32 %v2432, %v2525
      %v2537 = vmul.f32 %v2433, %v2525
      %v2538 = vmul.f32 %v2434, %v2525
      %v2539 = vmul.f32 %v2435, %v2525
      %v2540 = vmul.f32 %v2436, %v2525
      %v2541 = vmul.f32 %v2437, %v2525
      %v2542 = vmul.f32 %v2438, %v2525
      %v2543 = vmul.f32 %v2439, %v2525
      %v2544 = vmul.f32 %v2440, %v2525
      %v2545 = vmul.f32 %v2441, %v2525
      %v2546 = vmul.f32 %v2442, %v2525
      %v2547 = vmul.f32 %v2443, %v2525
      %v2548 = vmul.f32 %v2444, %v2525
      %v2549 = vmul.f32 %v2445, %v2525
      %v2550 = vmul.f32 %v2446, %v2525
      %v2551 = vmul.f32 %v2447, %v2525
      %v2552 = vmul.f32 %v2448, %v2525
      %v2553 = vmul.f32 %v2449, %v2525
      %v2554 = vmul.f32 %v2450, %v2525
      %v2555 = vmul.f32 %v2451, %v2525
      %v2556 = vmul.f32 %v2452, %v2525
      %v2557 = vmul.f32 %v2453, %v2525
      %v2558 = vadd.f32 %v2493, %v2526
      %v2559 = vadd.f32 %v2494, %v2527
      %v2560 = vadd.f32 %v2495, %v2528
      %v2561 = vadd.f32 %v2496, %v2529
      %v2562 = vadd.f32 %v2497, %v2530
      %v2563 = vadd.f32 %v2498, %v2531
      %v2564 = vadd.f32 %v2499, %v2532
      %v2565 = vadd.f32 %v2500, %v2533
      %v2566 = vadd.f32 %v2501, %v2534
      %v2567 = vadd.f32 %v2502, %v2535
      %v2568 = vadd.f32 %v2503, %v2536
      %v2569 = vadd.f32 %v2504, %v2537
      %v2570 = vadd.f32 %v2505, %v2538
      %v2571 = vadd.f32 %v2506, %v2539
      %v2572 = vadd.f32 %v2507, %v2540
      %v2573 = vadd.f32 %v2508, %v2541
      %v2574 = vadd.f32 %v2509, %v2542
      %v2575 = vadd.f32 %v2510, %v2543
      %v2576 = vadd.f32 %v2511, %v2544
      %v2577 = vadd.f32 %v2512, %v2545
      %v2578 = vadd.f32 %v2513, %v2546
      %v2579 = vadd.f32 %v2514, %v2547
      %v2580 = vadd.f32 %v2515, %v2548
      %v2581 = vadd.f32 %v2516, %v2549
      %v2582 = vadd.f32 %v2517, %v2550
      %v2583 = vadd.f32 %v2518, %v2551
      %v2584 = vadd.f32 %v2519, %v2552
      %v2585 = vadd.f32 %v2520, %v2553
      %v2586 = vadd.f32 %v2521, %v2554
      %v2587 = vadd.f32 %v2522, %v2555
      %v2588 = vadd.f32 %v2523, %v2556
      %v2589 = vadd.f32 %v2524, %v2557
      %v2590 = vperm.slane %v1322, 5
      %v2591 = vmul.f32 %v2424, %v2590
      %v2592 = vmul.f32 %v2425, %v2590
      %v2593 = vmul.f32 %v2426, %v2590
      %v2594 = vmul.f32 %v2427, %v2590
      %v2595 = vmul.f32 %v2428, %v2590
      %v2596 = vmul.f32 %v2429, %v2590
      %v2597 = vmul.f32 %v2430, %v2590
      %v2598 = vmul.f32 %v2431, %v2590
      %v2599 = vmul.f32 %v2432, %v2590
      %v2600 = vmul.f32 %v2433, %v2590
      %v2601 = vmul.f32 %v2434, %v2590
      %v2602 = vmul.f32 %v2435, %v2590
      %v2603 = vmul.f32 %v2436, %v2590
      %v2604 = vmul.f32 %v2437, %v2590
      %v2605 = vmul.f32 %v2438, %v2590
      %v2606 = vmul.f32 %v2439, %v2590
      %v2607 = vmul.f32 %v2440, %v2590
      %v2608 = vmul.f32 %v2441, %v2590
      %v2609 = vmul.f32 %v2442, %v2590
      %v2610 = vmul.f32 %v2443, %v2590
      %v2611 = vmul.f32 %v2444, %v2590
      %v2612 = vmul.f32 %v2445, %v2590
      %v2613 = vmul.f32 %v2446, %v2590
      %v2614 = vmul.f32 %v2447, %v2590
      %v2615 = vmul.f32 %v2448, %v2590
      %v2616 = vmul.f32 %v2449, %v2590
      %v2617 = vmul.f32 %v2450, %v2590
      %v2618 = vmul.f32 %v2451, %v2590
      %v2619 = vmul.f32 %v2452, %v2590
      %v2620 = vmul.f32 %v2453, %v2590
      %v2621 = vmul.f32 %v2454, %v2590
      %v2622 = vmul.f32 %v2455, %v2590
      %v2623 = vadd.f32 %v2558, %v2591
      %v2624 = vadd.f32 %v2559, %v2592
      %v2625 = vadd.f32 %v2560, %v2593
      %v2626 = vadd.f32 %v2561, %v2594
      %v2627 = vadd.f32 %v2562, %v2595
      %v2628 = vadd.f32 %v2563, %v2596
      %v2629 = vadd.f32 %v2564, %v2597
      %v2630 = vadd.f32 %v2565, %v2598
      %v2631 = vadd.f32 %v2566, %v2599
      %v2632 = vadd.f32 %v2567, %v2600
      %v2633 = vadd.f32 %v2568, %v2601
      %v2634 = vadd.f32 %v2569, %v2602
      %v2635 = vadd.f32 %v2570, %v2603
      %v2636 = vadd.f32 %v2571, %v2604
      %v2637 = vadd.f32 %v2572, %v2605
      %v2638 = vadd.f32 %v2573, %v2606
      %v2639 = vadd.f32 %v2574, %v2607
      %v2640 = vadd.f32 %v2575, %v2608
      %v2641 = vadd.f32 %v2576, %v2609
      %v2642 = vadd.f32 %v2577, %v2610
      %v2643 = vadd.f32 %v2578, %v2611
      %v2644 = vadd.f32 %v2579, %v2612
      %v2645 = vadd.f32 %v2580, %v2613
      %v2646 = vadd.f32 %v2581, %v2614
      %v2647 = vadd.f32 %v2582, %v2615
      %v2648 = vadd.f32 %v2583, %v2616
      %v2649 = vadd.f32 %v2584, %v2617
      %v2650 = vadd.f32 %v2585, %v2618
      %v2651 = vadd.f32 %v2586, %v2619
      %v2652 = vadd.f32 %v2587, %v2620
      %v2653 = vadd.f32 %v2588, %v2621
      %v2654 = vadd.f32 %v2589, %v2622
      %v2655 = vperm.slane %v1323, 2
      %v2656 = vmul.f32 %v2426, %v2655
      %v2657 = vmul.f32 %v2427, %v2655
      %v2658 = vmul.f32 %v2428, %v2655
      %v2659 = vmul.f32 %v2429, %v2655
      %v2660 = vmul.f32 %v2430, %v2655
      %v2661 = vmul.f32 %v2431, %v2655
      %v2662 = vmul.f32 %v2432, %v2655
      %v2663 = vmul.f32 %v2433, %v2655
      %v2664 = vmul.f32 %v2434, %v2655
      %v2665 = vmul.f32 %v2435, %v2655
      %v2666 = vmul.f32 %v2436, %v2655
      %v2667 = vmul.f32 %v2437, %v2655
      %v2668 = vmul.f32 %v2438, %v2655
      %v2669 = vmul.f32 %v2439, %v2655
      %v2670 = vmul.f32 %v2440, %v2655
      %v2671 = vmul.f32 %v2441, %v2655
      %v2672 = vmul.f32 %v2442, %v2655
      %v2673 = vmul.f32 %v2443, %v2655
      %v2674 = vmul.f32 %v2444, %v2655
      %v2675 = vmul.f32 %v2445, %v2655
      %v2676 = vmul.f32 %v2446, %v2655
      %v2677 = vmul.f32 %v2447, %v2655
      %v2678 = vmul.f32 %v2448, %v2655
      %v2679 = vmul.f32 %v2449, %v2655
      %v2680 = vmul.f32 %v2450, %v2655
      %v2681 = vmul.f32 %v2451, %v2655
      %v2682 = vmul.f32 %v2452, %v2655
      %v2683 = vmul.f32 %v2453, %v2655
      %v2684 = vmul.f32 %v2454, %v2655
      %v2685 = vmul.f32 %v2455, %v2655
      %v2686 = vmul.f32 %v2456, %v2655
      %v2687 = vmul.f32 %v2457, %v2655
      %v2688 = vadd.f32 %v2623, %v2656
      %v2689 = vadd.f32 %v2624, %v2657
      %v2690 = vadd.f32 %v2625, %v2658
      %v2691 = vadd.f32 %v2626, %v2659
      %v2692 = vadd.f32 %v2627, %v2660
      %v2693 = vadd.f32 %v2628, %v2661
      %v2694 = vadd.f32 %v2629, %v2662
      %v2695 = vadd.f32 %v2630, %v2663
      %v2696 = vadd.f32 %v2631, %v2664
      %v2697 = vadd.f32 %v2632, %v2665
      %v2698 = vadd.f32 %v2633, %v2666
      %v2699 = vadd.f32 %v2634, %v2667
      %v2700 = vadd.f32 %v2635, %v2668
      %v2701 = vadd.f32 %v2636, %v2669
      %v2702 = vadd.f32 %v2637, %v2670
      %v2703 = vadd.f32 %v2638, %v2671
      %v2704 = vadd.f32 %v2639, %v2672
      %v2705 = vadd.f32 %v2640, %v2673
      %v2706 = vadd.f32 %v2641, %v2674
      %v2707 = vadd.f32 %v2642, %v2675
      %v2708 = vadd.f32 %v2643, %v2676
      %v2709 = vadd.f32 %v2644, %v2677
      %v2710 = vadd.f32 %v2645, %v2678
      %v2711 = vadd.f32 %v2646, %v2679
      %v2712 = vadd.f32 %v2647, %v2680
      %v2713 = vadd.f32 %v2648, %v2681
      %v2714 = vadd.f32 %v2649, %v2682
      %v2715 = vadd.f32 %v2650, %v2683
      %v2716 = vadd.f32 %v2651, %v2684
      %v2717 = vadd.f32 %v2652, %v2685
      %v2718 = vadd.f32 %v2653, %v2686
      %v2719 = vadd.f32 %v2654, %v2687
      %v2720 = vperm.slane %v1323, 7
      %v2721 = vmul.f32 %v2428, %v2720
      %v2722 = vmul.f32 %v2429, %v2720
      %v2723 = vmul.f32 %v2430, %v2720
      %v2724 = vmul.f32 %v2431, %v2720
      %v2725 = vmul.f32 %v2432, %v2720
      %v2726 = vmul.f32 %v2433, %v2720
      %v2727 = vmul.f32 %v2434, %v2720
      %v2728 = vmul.f32 %v2435, %v2720
      %v2729 = vmul.f32 %v2436, %v2720
      %v2730 = vmul.f32 %v2437, %v2720
      %v2731 = vmul.f32 %v2438, %v2720
      %v2732 = vmul.f32 %v2439, %v2720
      %v2733 = vmul.f32 %v2440, %v2720
      %v2734 = vmul.f32 %v2441, %v2720
      %v2735 = vmul.f32 %v2442, %v2720
      %v2736 = vmul.f32 %v2443, %v2720
      %v2737 = vmul.f32 %v2444, %v2720
      %v2738 = vmul.f32 %v2445, %v2720
      %v2739 = vmul.f32 %v2446, %v2720
      %v2740 = vmul.f32 %v2447, %v2720
      %v2741 = vmul.f32 %v2448, %v2720
      %v2742 = vmul.f32 %v2449, %v2720
      %v2743 = vmul.f32 %v2450, %v2720
      %v2744 = vmul.f32 %v2451, %v2720
      %v2745 = vmul.f32 %v2452, %v2720
      %v2746 = vmul.f32 %v2453, %v2720
      %v2747 = vmul.f32 %v2454, %v2720
      %v2748 = vmul.f32 %v2455, %v2720
      %v2749 = vmul.f32 %v2456, %v2720
      %v2750 = vmul.f32 %v2457, %v2720
      %v2751 = vmul.f32 %v2458, %v2720
      %v2752 = vmul.f32 %v2459, %v2720
      %v2753 = vadd.f32 %v2688, %v2721
      %v2754 = vadd.f32 %v2689, %v2722
      %v2755 = vadd.f32 %v2690, %v2723
      %v2756 = vadd.f32 %v2691, %v2724
      %v2757 = vadd.f32 %v2692, %v2725
      %v2758 = vadd.f32 %v2693, %v2726
      %v2759 = vadd.f32 %v2694, %v2727
      %v2760 = vadd.f32 %v2695, %v2728
      %v2761 = vadd.f32 %v2696, %v2729
      %v2762 = vadd.f32 %v2697, %v2730
      %v2763 = vadd.f32 %v2698, %v2731
      %v2764 = vadd.f32 %v2699, %v2732
      %v2765 = vadd.f32 %v2700, %v2733
      %v2766 = vadd.f32 %v2701, %v2734
      %v2767 = vadd.f32 %v2702, %v2735
      %v2768 = vadd.f32 %v2703, %v2736
      %v2769 = vadd.f32 %v2704, %v2737
      %v2770 = vadd.f32 %v2705, %v2738
      %v2771 = vadd.f32 %v2706, %v2739
      %v2772 = vadd.f32 %v2707, %v2740
      %v2773 = vadd.f32 %v2708, %v2741
      %v2774 = vadd.f32 %v2709, %v2742
      %v2775 = vadd.f32 %v2710, %v2743
      %v2776 = vadd.f32 %v2711, %v2744
      %v2777 = vadd.f32 %v2712, %v2745
      %v2778 = vadd.f32 %v2713, %v2746
      %v2779 = vadd.f32 %v2714, %v2747
      %v2780 = vadd.f32 %v2715, %v2748
      %v2781 = vadd.f32 %v2716, %v2749
      %v2782 = vadd.f32 %v2717, %v2750
      %v2783 = vadd.f32 %v2718, %v2751
      %v2784 = vadd.f32 %v2719, %v2752
      %v2785 = vld [vmem:[#allocation2 + $0x4] sm:$0xff]
      %v2786 = vld [vmem:[#allocation2 + $0xc] sm:$0xff]
      %v2787 = vld [vmem:[#allocation2 + $0x1c] sm:$0xff]
      %v2788 = vld [vmem:[#allocation2 + $0x24] sm:$0xff]
      %v2789 = vld [vmem:[#allocation2 + $0x34] sm:$0xff]
      %v2790 = vld [vmem:[#allocation2 + $0x3c] sm:$0xff]
      %v2791 = vld [vmem:[#allocation2 + $0x4c] sm:$0xff]
      %v2792 = vld [vmem:[#allocation2 + $0x54] sm:$0xff]
      %v2793 = vld [vmem:[#allocation2 + $0x64] sm:$0xff]
      %v2794 = vld [vmem:[#allocation2 + $0x6c] sm:$0xff]
      %v2795 = vld [vmem:[#allocation2 + $0x7c] sm:$0xff]
      %v2796 = vld [vmem:[#allocation2 + $0x84] sm:$0xff]
      %v2797 = vld [vmem:[#allocation2 + $0x94] sm:$0xff]
      %v2798 = vld [vmem:[#allocation2 + $0x9c] sm:$0xff]
      %v2799 = vld [vmem:[#allocation2 + $0xac] sm:$0xff]
      %v2800 = vld [vmem:[#allocation2 + $0xb4] sm:$0xff]
      %v2801 = vld [vmem:[#allocation2 + $0xc4] sm:$0xff]
      %v2802 = vld [vmem:[#allocation2 + $0xcc] sm:$0xff]
      %v2803 = vld [vmem:[#allocation2 + $0xdc] sm:$0xff]
      %v2804 = vld [vmem:[#allocation2 + $0xe4] sm:$0xff]
      %v2805 = vld [vmem:[#allocation2 + $0xf4] sm:$0xff]
      %v2806 = vld [vmem:[#allocation2 + $0xfc] sm:$0xff]
      %v2807 = vld [vmem:[#allocation2 + $0x10c] sm:$0xff]
      %v2808 = vld [vmem:[#allocation2 + $0x114] sm:$0xff]
      %v2809 = vld [vmem:[#allocation2 + $0x124] sm:$0xff]
      %v2810 = vld [vmem:[#allocation2 + $0x12c] sm:$0xff]
      %v2811 = vld [vmem:[#allocation2 + $0x13c] sm:$0xff]
      %v2812 = vld [vmem:[#allocation2 + $0x144] sm:$0xff]
      %v2813 = vld [vmem:[#allocation2 + $0x154] sm:$0xff]
      %v2814 = vld [vmem:[#allocation2 + $0x15c] sm:$0xff]
      %v2815 = vld [vmem:[#allocation2 + $0x16c] sm:$0xff]
      %v2816 = vld [vmem:[#allocation2 + $0x174] sm:$0xff]
      %v2817 = vld [vmem:[#allocation2 + $0x184] sm:$0xff]
      %v2818 = vld [vmem:[#allocation2 + $0x18c] sm:$0xff]
      %v2819 = vld [vmem:[#allocation2 + $0x19c] sm:$0xff]
      %v2820 = vld [vmem:[#allocation2 + $0x1a4] sm:$0xff]
      %v2821 = vld [vmem:[#allocation2 + $0x1b4] sm:$0xff]
      %v2822 = vld [vmem:[#allocation2 + $0x1bc] sm:$0xff]
      %v2823 = vld [vmem:[#allocation2 + $0x1cc] sm:$0xff]
      %v2824 = vld [vmem:[#allocation2 + $0x1d4] sm:$0xff]
      %v2825 = vperm.slane %v1321, 4
      %v2826 = vmul.f32 %v2785, %v2825
      %v2827 = vmul.f32 %v2786, %v2825
      %v2828 = vmul.f32 %v2787, %v2825
      %v2829 = vmul.f32 %v2788, %v2825
      %v2830 = vmul.f32 %v2789, %v2825
      %v2831 = vmul.f32 %v2790, %v2825
      %v2832 = vmul.f32 %v2791, %v2825
      %v2833 = vmul.f32 %v2792, %v2825
      %v2834 = vmul.f32 %v2793, %v2825
      %v2835 = vmul.f32 %v2794, %v2825
      %v2836 = vmul.f32 %v2795, %v2825
      %v2837 = vmul.f32 %v2796, %v2825
      %v2838 = vmul.f32 %v2797, %v2825
      %v2839 = vmul.f32 %v2798, %v2825
      %v2840 = vmul.f32 %v2799, %v2825
      %v2841 = vmul.f32 %v2800, %v2825
      %v2842 = vmul.f32 %v2801, %v2825
      %v2843 = vmul.f32 %v2802, %v2825
      %v2844 = vmul.f32 %v2803, %v2825
      %v2845 = vmul.f32 %v2804, %v2825
      %v2846 = vmul.f32 %v2805, %v2825
      %v2847 = vmul.f32 %v2806, %v2825
      %v2848 = vmul.f32 %v2807, %v2825
      %v2849 = vmul.f32 %v2808, %v2825
      %v2850 = vmul.f32 %v2809, %v2825
      %v2851 = vmul.f32 %v2810, %v2825
      %v2852 = vmul.f32 %v2811, %v2825
      %v2853 = vmul.f32 %v2812, %v2825
      %v2854 = vmul.f32 %v2813, %v2825
      %v2855 = vmul.f32 %v2814, %v2825
      %v2856 = vmul.f32 %v2815, %v2825
      %v2857 = vmul.f32 %v2816, %v2825
      %v2858 = vadd.f32 %v2753, %v2826
      %v2859 = vadd.f32 %v2754, %v2827
      %v2860 = vadd.f32 %v2755, %v2828
      %v2861 = vadd.f32 %v2756, %v2829
      %v2862 = vadd.f32 %v2757, %v2830
      %v2863 = vadd.f32 %v2758, %v2831
      %v2864 = vadd.f32 %v2759, %v2832
      %v2865 = vadd.f32 %v2760, %v2833
      %v2866 = vadd.f32 %v2761, %v2834
      %v2867 = vadd.f32 %v2762, %v2835
      %v2868 = vadd.f32 %v2763, %v2836
      %v2869 = vadd.f32 %v2764, %v2837
      %v2870 = vadd.f32 %v2765, %v2838
      %v2871 = vadd.f32 %v2766, %v2839
      %v2872 = vadd.f32 %v2767, %v2840
      %v2873 = vadd.f32 %v2768, %v2841
      %v2874 = vadd.f32 %v2769, %v2842
      %v2875 = vadd.f32 %v2770, %v2843
      %v2876 = vadd.f32 %v2771, %v2844
      %v2877 = vadd.f32 %v2772, %v2845
      %v2878 = vadd.f32 %v2773, %v2846
      %v2879 = vadd.f32 %v2774, %v2847
      %v2880 = vadd.f32 %v2775, %v2848
      %v2881 = vadd.f32 %v2776, %v2849
      %v2882 = vadd.f32 %v2777, %v2850
      %v2883 = vadd.f32 %v2778, %v2851
      %v2884 = vadd.f32 %v2779, %v2852
      %v2885 = vadd.f32 %v2780, %v2853
      %v2886 = vadd.f32 %v2781, %v2854
      %v2887 = vadd.f32 %v2782, %v2855
      %v2888 = vadd.f32 %v2783, %v2856
      %v2889 = vadd.f32 %v2784, %v2857
      %v2890 = vperm.slane %v1322, 1
      %v2891 = vmul.f32 %v2787, %v2890
      %v2892 = vmul.f32 %v2788, %v2890
      %v2893 = vmul.f32 %v2789, %v2890
      %v2894 = vmul.f32 %v2790, %v2890
      %v2895 = vmul.f32 %v2791, %v2890
      %v2896 = vmul.f32 %v2792, %v2890
      %v2897 = vmul.f32 %v2793, %v2890
      %v2898 = vmul.f32 %v2794, %v2890
      %v2899 = vmul.f32 %v2795, %v2890
      %v2900 = vmul.f32 %v2796, %v2890
      %v2901 = vmul.f32 %v2797, %v2890
      %v2902 = vmul.f32 %v2798, %v2890
      %v2903 = vmul.f32 %v2799, %v2890
      %v2904 = vmul.f32 %v2800, %v2890
      %v2905 = vmul.f32 %v2801, %v2890
      %v2906 = vmul.f32 %v2802, %v2890
      %v2907 = vmul.f32 %v2803, %v2890
      %v2908 = vmul.f32 %v2804, %v2890
      %v2909 = vmul.f32 %v2805, %v2890
      %v2910 = vmul.f32 %v2806, %v2890
      %v2911 = vmul.f32 %v2807, %v2890
      %v2912 = vmul.f32 %v2808, %v2890
      %v2913 = vmul.f32 %v2809, %v2890
      %v2914 = vmul.f32 %v2810, %v2890
      %v2915 = vmul.f32 %v2811, %v2890
      %v2916 = vmul.f32 %v2812, %v2890
      %v2917 = vmul.f32 %v2813, %v2890
      %v2918 = vmul.f32 %v2814, %v2890
      %v2919 = vmul.f32 %v2815, %v2890
      %v2920 = vmul.f32 %v2816, %v2890
      %v2921 = vmul.f32 %v2817, %v2890
      %v2922 = vmul.f32 %v2818, %v2890
      %v2923 = vadd.f32 %v2858, %v2891
      %v2924 = vadd.f32 %v2859, %v2892
      %v2925 = vadd.f32 %v2860, %v2893
      %v2926 = vadd.f32 %v2861, %v2894
      %v2927 = vadd.f32 %v2862, %v2895
      %v2928 = vadd.f32 %v2863, %v2896
      %v2929 = vadd.f32 %v2864, %v2897
      %v2930 = vadd.f32 %v2865, %v2898
      %v2931 = vadd.f32 %v2866, %v2899
      %v2932 = vadd.f32 %v2867, %v2900
      %v2933 = vadd.f32 %v2868, %v2901
      %v2934 = vadd.f32 %v2869, %v2902
      %v2935 = vadd.f32 %v2870, %v2903
      %v2936 = vadd.f32 %v2871, %v2904
      %v2937 = vadd.f32 %v2872, %v2905
      %v2938 = vadd.f32 %v2873, %v2906
      %v2939 = vadd.f32 %v2874, %v2907
      %v2940 = vadd.f32 %v2875, %v2908
      %v2941 = vadd.f32 %v2876, %v2909
      %v2942 = vadd.f32 %v2877, %v2910
      %v2943 = vadd.f32 %v2878, %v2911
      %v2944 = vadd.f32 %v2879, %v2912
      %v2945 = vadd.f32 %v2880, %v2913
      %v2946 = vadd.f32 %v2881, %v2914
      %v2947 = vadd.f32 %v2882, %v2915
      %v2948 = vadd.f32 %v2883, %v2916
      %v2949 = vadd.f32 %v2884, %v2917
      %v2950 = vadd.f32 %v2885, %v2918
      %v2951 = vadd.f32 %v2886, %v2919
      %v2952 = vadd.f32 %v2887, %v2920
      %v2953 = vadd.f32 %v2888, %v2921
      %v2954 = vadd.f32 %v2889, %v2922
      %v2955 = vperm.slane %v1322, 6
      %v2956 = vmul.f32 %v2789, %v2955
      %v2957 = vmul.f32 %v2790, %v2955
      %v2958 = vmul.f32 %v2791, %v2955
      %v2959 = vmul.f32 %v2792, %v2955
      %v2960 = vmul.f32 %v2793, %v2955
      %v2961 = vmul.f32 %v2794, %v2955
      %v2962 = vmul.f32 %v2795, %v2955
      %v2963 = vmul.f32 %v2796, %v2955
      %v2964 = vmul.f32 %v2797, %v2955
      %v2965 = vmul.f32 %v2798, %v2955
      %v2966 = vmul.f32 %v2799, %v2955
      %v2967 = vmul.f32 %v2800, %v2955
      %v2968 = vmul.f32 %v2801, %v2955
      %v2969 = vmul.f32 %v2802, %v2955
      %v2970 = vmul.f32 %v2803, %v2955
      %v2971 = vmul.f32 %v2804, %v2955
      %v2972 = vmul.f32 %v2805, %v2955
      %v2973 = vmul.f32 %v2806, %v2955
      %v2974 = vmul.f32 %v2807, %v2955
      %v2975 = vmul.f32 %v2808, %v2955
      %v2976 = vmul.f32 %v2809, %v2955
      %v2977 = vmul.f32 %v2810, %v2955
      %v2978 = vmul.f32 %v2811, %v2955
      %v2979 = vmul.f32 %v2812, %v2955
      %v2980 = vmul.f32 %v2813, %v2955
      %v2981 = vmul.f32 %v2814, %v2955
      %v2982 = vmul.f32 %v2815, %v2955
      %v2983 = vmul.f32 %v2816, %v2955
      %v2984 = vmul.f32 %v2817, %v2955
      %v2985 = vmul.f32 %v2818, %v2955
      %v2986 = vmul.f32 %v2819, %v2955
      %v2987 = vmul.f32 %v2820, %v2955
      %v2988 = vadd.f32 %v2923, %v2956
      %v2989 = vadd.f32 %v2924, %v2957
      %v2990 = vadd.f32 %v2925, %v2958
      %v2991 = vadd.f32 %v2926, %v2959
      %v2992 = vadd.f32 %v2927, %v2960
      %v2993 = vadd.f32 %v2928, %v2961
      %v2994 = vadd.f32 %v2929, %v2962
      %v2995 = vadd.f32 %v2930, %v2963
      %v2996 = vadd.f32 %v2931, %v2964
      %v2997 = vadd.f32 %v2932, %v2965
      %v2998 = vadd.f32 %v2933, %v2966
      %v2999 = vadd.f32 %v2934, %v2967
      %v3000 = vadd.f32 %v2935, %v2968
      %v3001 = vadd.f32 %v2936, %v2969
      %v3002 = vadd.f32 %v2937, %v2970
      %v3003 = vadd.f32 %v2938, %v2971
      %v3004 = vadd.f32 %v2939, %v2972
      %v3005 = vadd.f32 %v2940, %v2973
      %v3006 = vadd.f32 %v2941, %v2974
      %v3007 = vadd.f32 %v2942, %v2975
      %v3008 = vadd.f32 %v2943, %v2976
      %v3009 = vadd.f32 %v2944, %v2977
      %v3010 = vadd.f32 %v2945, %v2978
      %v3011 = vadd.f32 %v2946, %v2979
      %v3012 = vadd.f32 %v2947, %v2980
      %v3013 = vadd.f32 %v2948, %v2981
      %v3014 = vadd.f32 %v2949, %v2982
      %v3015 = vadd.f32 %v2950, %v2983
      %v3016 = vadd.f32 %v2951, %v2984
      %v3017 = vadd.f32 %v2952, %v2985
      %v3018 = vadd.f32 %v2953, %v2986
      %v3019 = vadd.f32 %v2954, %v2987
      %v3020 = vperm.slane %v1323, 3
      %v3021 = vmul.f32 %v2791, %v3020
      %v3022 = vmul.f32 %v2792, %v3020
      %v3023 = vmul.f32 %v2793, %v3020
      %v3024 = vmul.f32 %v2794, %v3020
      %v3025 = vmul.f32 %v2795, %v3020
      %v3026 = vmul.f32 %v2796, %v3020
      %v3027 = vmul.f32 %v2797, %v3020
      %v3028 = vmul.f32 %v2798, %v3020
      %v3029 = vmul.f32 %v2799, %v3020
      %v3030 = vmul.f32 %v2800, %v3020
      %v3031 = vmul.f32 %v2801, %v3020
      %v3032 = vmul.f32 %v2802, %v3020
      %v3033 = vmul.f32 %v2803, %v3020
      %v3034 = vmul.f32 %v2804, %v3020
      %v3035 = vmul.f32 %v2805, %v3020
      %v3036 = vmul.f32 %v2806, %v3020
      %v3037 = vmul.f32 %v2807, %v3020
      %v3038 = vmul.f32 %v2808, %v3020
      %v3039 = vmul.f32 %v2809, %v3020
      %v3040 = vmul.f32 %v2810, %v3020
      %v3041 = vmul.f32 %v2811, %v3020
      %v3042 = vmul.f32 %v2812, %v3020
      %v3043 = vmul.f32 %v2813, %v3020
      %v3044 = vmul.f32 %v2814, %v3020
      %v3045 = vmul.f32 %v2815, %v3020
      %v3046 = vmul.f32 %v2816, %v3020
      %v3047 = vmul.f32 %v2817, %v3020
      %v3048 = vmul.f32 %v2818, %v3020
      %v3049 = vmul.f32 %v2819, %v3020
      %v3050 = vmul.f32 %v2820, %v3020
      %v3051 = vmul.f32 %v2821, %v3020
      %v3052 = vmul.f32 %v2822, %v3020
      %v3053 = vadd.f32 %v2988, %v3021
      %v3054 = vadd.f32 %v2989, %v3022
      %v3055 = vadd.f32 %v2990, %v3023
      %v3056 = vadd.f32 %v2991, %v3024
      %v3057 = vadd.f32 %v2992, %v3025
      %v3058 = vadd.f32 %v2993, %v3026
      %v3059 = vadd.f32 %v2994, %v3027
      %v3060 = vadd.f32 %v2995, %v3028
      %v3061 = vadd.f32 %v2996, %v3029
      %v3062 = vadd.f32 %v2997, %v3030
      %v3063 = vadd.f32 %v2998, %v3031
      %v3064 = vadd.f32 %v2999, %v3032
      %v3065 = vadd.f32 %v3000, %v3033
      %v3066 = vadd.f32 %v3001, %v3034
      %v3067 = vadd.f32 %v3002, %v3035
      %v3068 = vadd.f32 %v3003, %v3036
      %v3069 = vadd.f32 %v3004, %v3037
      %v3070 = vadd.f32 %v3005, %v3038
      %v3071 = vadd.f32 %v3006, %v3039
      %v3072 = vadd.f32 %v3007, %v3040
      %v3073 = vadd.f32 %v3008, %v3041
      %v3074 = vadd.f32 %v3009, %v3042
      %v3075 = vadd.f32 %v3010, %v3043
      %v3076 = vadd.f32 %v3011, %v3044
      %v3077 = vadd.f32 %v3012, %v3045
      %v3078 = vadd.f32 %v3013, %v3046
      %v3079 = vadd.f32 %v3014, %v3047
      %v3080 = vadd.f32 %v3015, %v3048
      %v3081 = vadd.f32 %v3016, %v3049
      %v3082 = vadd.f32 %v3017, %v3050
      %v3083 = vadd.f32 %v3018, %v3051
      %v3084 = vadd.f32 %v3019, %v3052
      %v3085 = vperm.slane %v1324, 0
      %v3086 = vmul.f32 %v2793, %v3085
      %v3087 = vmul.f32 %v2794, %v3085
      %v3088 = vmul.f32 %v2795, %v3085
      %v3089 = vmul.f32 %v2796, %v3085
      %v3090 = vmul.f32 %v2797, %v3085
      %v3091 = vmul.f32 %v2798, %v3085
      %v3092 = vmul.f32 %v2799, %v3085
      %v3093 = vmul.f32 %v2800, %v3085
      %v3094 = vmul.f32 %v2801, %v3085
      %v3095 = vmul.f32 %v2802, %v3085
      %v3096 = vmul.f32 %v2803, %v3085
      %v3097 = vmul.f32 %v2804, %v3085
      %v3098 = vmul.f32 %v2805, %v3085
      %v3099 = vmul.f32 %v2806, %v3085
      %v3100 = vmul.f32 %v2807, %v3085
      %v3101 = vmul.f32 %v2808, %v3085
      %v3102 = vmul.f32 %v2809, %v3085
      %v3103 = vmul.f32 %v2810, %v3085
      %v3104 = vmul.f32 %v2811, %v3085
      %v3105 = vmul.f32 %v2812, %v3085
      %v3106 = vmul.f32 %v2813, %v3085
      %v3107 = vmul.f32 %v2814, %v3085
      %v3108 = vmul.f32 %v2815, %v3085
      %v3109 = vmul.f32 %v2816, %v3085
      %v3110 = vmul.f32 %v2817, %v3085
      %v3111 = vmul.f32 %v2818, %v3085
      %v3112 = vmul.f32 %v2819, %v3085
      %v3113 = vmul.f32 %v2820, %v3085
      %v3114 = vmul.f32 %v2821, %v3085
      %v3115 = vmul.f32 %v2822, %v3085
      %v3116 = vmul.f32 %v2823, %v3085
      %v3117 = vmul.f32 %v2824, %v3085
      %v3118 = vadd.f32 %v3053, %v3086
      %v3119 = vadd.f32 %v3054, %v3087
      %v3120 = vadd.f32 %v3055, %v3088
      %v3121 = vadd.f32 %v3056, %v3089
      %v3122 = vadd.f32 %v3057, %v3090
      %v3123 = vadd.f32 %v3058, %v3091
      %v3124 = vadd.f32 %v3059, %v3092
      %v3125 = vadd.f32 %v3060, %v3093
      %v3126 = vadd.f32 %v3061, %v3094
      %v3127 = vadd.f32 %v3062, %v3095
      %v3128 = vadd.f32 %v3063, %v3096
      %v3129 = vadd.f32 %v3064, %v3097
      %v3130 = vadd.f32 %v3065, %v3098
      %v3131 = vadd.f32 %v3066, %v3099
      %v3132 = vadd.f32 %v3067, %v3100
      %v3133 = vadd.f32 %v3068, %v3101
      %v3134 = vadd.f32 %v3069, %v3102
      %v3135 = vadd.f32 %v3070, %v3103
      %v3136 = vadd.f32 %v3071, %v3104
      %v3137 = vadd.f32 %v3072, %v3105
      %v3138 = vadd.f32 %v3073, %v3106
      %v3139 = vadd.f32 %v3074, %v3107
      %v3140 = vadd.f32 %v3075, %v3108
      %v3141 = vadd.f32 %v3076, %v3109
      %v3142 = vadd.f32 %v3077, %v3110
      %v3143 = vadd.f32 %v3078, %v3111
      %v3144 = vadd.f32 %v3079, %v3112
      %v3145 = vadd.f32 %v3080, %v3113
      %v3146 = vadd.f32 %v3081, %v3114
      %v3147 = vadd.f32 %v3082, %v3115
      %v3148 = vadd.f32 %v3083, %v3116
      %v3149 = vadd.f32 %v3084, %v3117
      %v3150 = vpack.c.bf16 %v3118, %v3118
      %v3151 = vpack.c.bf16 %v3119, %v3119
      %v3152 = vpack.c.bf16 %v3120, %v3120
      %v3153 = vpack.c.bf16 %v3121, %v3121
      %v3154 = vpack.c.bf16 %v3122, %v3122
      %v3155 = vpack.c.bf16 %v3123, %v3123
      %v3156 = vpack.c.bf16 %v3124, %v3124
      %v3157 = vpack.c.bf16 %v3125, %v3125
      %v3158 = vpack.c.bf16 %v3126, %v3126
      %v3159 = vpack.c.bf16 %v3127, %v3127
      %v3160 = vpack.c.bf16 %v3128, %v3128
      %v3161 = vpack.c.bf16 %v3129, %v3129
      %v3162 = vpack.c.bf16 %v3130, %v3130
      %v3163 = vpack.c.bf16 %v3131, %v3131
      %v3164 = vpack.c.bf16 %v3132, %v3132
      %v3165 = vpack.c.bf16 %v3133, %v3133
      %v3166 = vpack.c.bf16 %v3134, %v3134
      %v3167 = vpack.c.bf16 %v3135, %v3135
      %v3168 = vpack.c.bf16 %v3136, %v3136
      %v3169 = vpack.c.bf16 %v3137, %v3137
      %v3170 = vpack.c.bf16 %v3138, %v3138
      %v3171 = vpack.c.bf16 %v3139, %v3139
      %v3172 = vpack.c.bf16 %v3140, %v3140
      %v3173 = vpack.c.bf16 %v3141, %v3141
      %v3174 = vpack.c.bf16 %v3142, %v3142
      %v3175 = vpack.c.bf16 %v3143, %v3143
      %v3176 = vpack.c.bf16 %v3144, %v3144
      %v3177 = vpack.c.bf16 %v3145, %v3145
      %v3178 = vpack.c.bf16 %v3146, %v3146
      %v3179 = vpack.c.bf16 %v3147, %v3147
      %v3180 = vpack.c.bf16 %v3148, %v3148
      %v3181 = vpack.c.bf16 %v3149, %v3149
      %3182 = vst.msk [vmem:[%s260] sm:$0xf] %vm275, %v3150
      %3183 = vst.msk [vmem:[%s260 + $0x4] sm:$0xf] %vm275, %v3151
      %3184 = vst.msk [vmem:[%s260 + $0x8] sm:$0xf] %vm275, %v3152
      %3185 = vst.msk [vmem:[%s260 + $0xc] sm:$0xf] %vm275, %v3153
      %3186 = vst.msk [vmem:[%s260 + $0x10] sm:$0xf] %vm275, %v3154
      %3187 = vst.msk [vmem:[%s260 + $0x14] sm:$0xf] %vm275, %v3155
      %3188 = vst.msk [vmem:[%s260 + $0x18] sm:$0xf] %vm275, %v3156
      %3189 = vst.msk [vmem:[%s260 + $0x1c] sm:$0xf] %vm275, %v3157
      %3190 = vst.msk [vmem:[%s260 + $0x20] sm:$0xf] %vm275, %v3158
      %3191 = vst.msk [vmem:[%s260 + $0x24] sm:$0xf] %vm275, %v3159
      %3192 = vst.msk [vmem:[%s260 + $0x28] sm:$0xf] %vm275, %v3160
      %3193 = vst.msk [vmem:[%s260 + $0x2c] sm:$0xf] %vm275, %v3161
      %3194 = vst.msk [vmem:[%s260 + $0x30] sm:$0xf] %vm275, %v3162
      %3195 = vst.msk [vmem:[%s260 + $0x34] sm:$0xf] %vm275, %v3163
      %3196 = vst.msk [vmem:[%s260 + $0x38] sm:$0xf] %vm275, %v3164
      %3197 = vst.msk [vmem:[%s260 + $0x3c] sm:$0xf] %vm275, %v3165
      %3198 = vst.msk [vmem:[%s260 + $0x40] sm:$0xf] %vm275, %v3166
      %3199 = vst.msk [vmem:[%s260 + $0x44] sm:$0xf] %vm275, %v3167
      %3200 = vst.msk [vmem:[%s260 + $0x48] sm:$0xf] %vm275, %v3168
      %3201 = vst.msk [vmem:[%s260 + $0x4c] sm:$0xf] %vm275, %v3169
      %3202 = vst.msk [vmem:[%s260 + $0x50] sm:$0xf] %vm275, %v3170
      %3203 = vst.msk [vmem:[%s260 + $0x54] sm:$0xf] %vm275, %v3171
      %3204 = vst.msk [vmem:[%s260 + $0x58] sm:$0xf] %vm275, %v3172
      %3205 = vst.msk [vmem:[%s260 + $0x5c] sm:$0xf] %vm275, %v3173
      %3206 = vst.msk [vmem:[%s260 + $0x60] sm:$0xf] %vm275, %v3174
      %3207 = vst.msk [vmem:[%s260 + $0x64] sm:$0xf] %vm275, %v3175
      %3208 = vst.msk [vmem:[%s260 + $0x68] sm:$0xf] %vm275, %v3176
      %3209 = vst.msk [vmem:[%s260 + $0x6c] sm:$0xf] %vm275, %v3177
      %3210 = vst.msk [vmem:[%s260 + $0x70] sm:$0xf] %vm275, %v3178
      %3211 = vst.msk [vmem:[%s260 + $0x74] sm:$0xf] %vm275, %v3179
      %3212 = vst.msk [vmem:[%s260 + $0x78] sm:$0xf] %vm275, %v3180
      %3213 = vst.msk [vmem:[%s260 + $0x7c] sm:$0xf] %vm275, %v3181
      %v3214 = vsel %vm272, %v3118, 0.0
      %v3215 = vsel %vm272, %v3120, 0.0
      %v3216 = vadd.f32 %v3214, %v3215
      %v3217 = vsel %vm272, %v3122, 0.0
      %v3218 = vadd.f32 %v3216, %v3217
      %v3219 = vsel %vm272, %v3124, 0.0
      %v3220 = vadd.f32 %v3218, %v3219
      %v3221 = vsel %vm272, %v3126, 0.0
      %v3222 = vadd.f32 %v3220, %v3221
      %v3223 = vsel %vm272, %v3128, 0.0
      %v3224 = vadd.f32 %v3222, %v3223
      %v3225 = vsel %vm272, %v3130, 0.0
      %v3226 = vadd.f32 %v3224, %v3225
      %v3227 = vsel %vm272, %v3132, 0.0
      %v3228 = vadd.f32 %v3226, %v3227
      %v3229 = vsel %vm272, %v3134, 0.0
      %v3230 = vadd.f32 %v3228, %v3229
      %v3231 = vsel %vm272, %v3136, 0.0
      %v3232 = vadd.f32 %v3230, %v3231
      %v3233 = vsel %vm272, %v3138, 0.0
      %v3234 = vadd.f32 %v3232, %v3233
      %v3235 = vsel %vm272, %v3140, 0.0
      %v3236 = vadd.f32 %v3234, %v3235
      %v3237 = vsel %vm272, %v3142, 0.0
      %v3238 = vadd.f32 %v3236, %v3237
      %v3239 = vsel %vm272, %v3144, 0.0
      %v3240 = vadd.f32 %v3238, %v3239
      %v3241 = vsel %vm272, %v3146, 0.0
      %v3242 = vadd.f32 %v3240, %v3241
      %v3243 = vsel %vm272, %v3148, 0.0
      %v3244 = vadd.f32 %v3242, %v3243
      %v3245 = vsel %vm272, %v3119, 0.0
      %v3246 = vsel %vm272, %v3121, 0.0
      %v3247 = vadd.f32 %v3245, %v3246
      %v3248 = vsel %vm272, %v3123, 0.0
      %v3249 = vadd.f32 %v3247, %v3248
      %v3250 = vsel %vm272, %v3125, 0.0
      %v3251 = vadd.f32 %v3249, %v3250
      %v3252 = vsel %vm272, %v3127, 0.0
      %v3253 = vadd.f32 %v3251, %v3252
      %v3254 = vsel %vm272, %v3129, 0.0
      %v3255 = vadd.f32 %v3253, %v3254
      %v3256 = vsel %vm272, %v3131, 0.0
      %v3257 = vadd.f32 %v3255, %v3256
      %v3258 = vsel %vm272, %v3133, 0.0
      %v3259 = vadd.f32 %v3257, %v3258
      %v3260 = vsel %vm272, %v3135, 0.0
      %v3261 = vadd.f32 %v3259, %v3260
      %v3262 = vsel %vm272, %v3137, 0.0
      %v3263 = vadd.f32 %v3261, %v3262
      %v3264 = vsel %vm272, %v3139, 0.0
      %v3265 = vadd.f32 %v3263, %v3264
      %v3266 = vsel %vm272, %v3141, 0.0
      %v3267 = vadd.f32 %v3265, %v3266
      %v3268 = vsel %vm272, %v3143, 0.0
      %v3269 = vadd.f32 %v3267, %v3268
      %v3270 = vsel %vm272, %v3145, 0.0
      %v3271 = vadd.f32 %v3269, %v3270
      %v3272 = vsel %vm272, %v3147, 0.0
      %v3273 = vadd.f32 %v3271, %v3272
      %v3274 = vsel %vm272, %v3149, 0.0
      %v3275 = vadd.f32 %v3273, %v3274
      %v3276 = vsel %vm272, %v3244, 0.0
      %v3277 = vsel %vm272, %v3275, 0.0
      %v3278 = vadd.f32 %v3276, %v3277
      %v3279 = vrot.slane %v3278, 4
      %v3280 = vadd.f32 %v3278, %v3279
      %v3281 = vrot.slane %v3280, 2
      %v3282 = vadd.f32 %v3280, %v3281
      %v3283 = vrot.slane %v3282, 1
      %v3284 = vadd.f32 %v3282, %v3283
      %vm3285 = vcmask 24576
      %3286 = vst.msk [vmem:[%s268] sm:$0x1] %vm3285, %v3284
      %v3287 = vmul.f32 %v3118, %v3118
      %v3288 = vmul.f32 %v3119, %v3119
      %v3289 = vmul.f32 %v3120, %v3120
      %v3290 = vmul.f32 %v3121, %v3121
      %v3291 = vmul.f32 %v3122, %v3122
      %v3292 = vmul.f32 %v3123, %v3123
      %v3293 = vmul.f32 %v3124, %v3124
      %v3294 = vmul.f32 %v3125, %v3125
      %v3295 = vmul.f32 %v3126, %v3126
      %v3296 = vmul.f32 %v3127, %v3127
      %v3297 = vmul.f32 %v3128, %v3128
      %v3298 = vmul.f32 %v3129, %v3129
      %v3299 = vmul.f32 %v3130, %v3130
      %v3300 = vmul.f32 %v3131, %v3131
      %v3301 = vmul.f32 %v3132, %v3132
      %v3302 = vmul.f32 %v3133, %v3133
      %v3303 = vmul.f32 %v3134, %v3134
      %v3304 = vmul.f32 %v3135, %v3135
      %v3305 = vmul.f32 %v3136, %v3136
      %v3306 = vmul.f32 %v3137, %v3137
      %v3307 = vmul.f32 %v3138, %v3138
      %v3308 = vmul.f32 %v3139, %v3139
      %v3309 = vmul.f32 %v3140, %v3140
      %v3310 = vmul.f32 %v3141, %v3141
      %v3311 = vmul.f32 %v3142, %v3142
      %v3312 = vmul.f32 %v3143, %v3143
      %v3313 = vmul.f32 %v3144, %v3144
      %v3314 = vmul.f32 %v3145, %v3145
      %v3315 = vmul.f32 %v3146, %v3146
      %v3316 = vmul.f32 %v3147, %v3147
      %v3317 = vmul.f32 %v3148, %v3148
      %v3318 = vmul.f32 %v3149, %v3149
      %v3319 = vsel %vm272, %v3287, 0.0
      %v3320 = vsel %vm272, %v3289, 0.0
      %v3321 = vadd.f32 %v3319, %v3320
      %v3322 = vsel %vm272, %v3291, 0.0
      %v3323 = vadd.f32 %v3321, %v3322
      %v3324 = vsel %vm272, %v3293, 0.0
      %v3325 = vadd.f32 %v3323, %v3324
      %v3326 = vsel %vm272, %v3295, 0.0
      %v3327 = vadd.f32 %v3325, %v3326
      %v3328 = vsel %vm272, %v3297, 0.0
      %v3329 = vadd.f32 %v3327, %v3328
      %v3330 = vsel %vm272, %v3299, 0.0
      %v3331 = vadd.f32 %v3329, %v3330
      %v3332 = vsel %vm272, %v3301, 0.0
      %v3333 = vadd.f32 %v3331, %v3332
      %v3334 = vsel %vm272, %v3303, 0.0
      %v3335 = vadd.f32 %v3333, %v3334
      %v3336 = vsel %vm272, %v3305, 0.0
      %v3337 = vadd.f32 %v3335, %v3336
      %v3338 = vsel %vm272, %v3307, 0.0
      %v3339 = vadd.f32 %v3337, %v3338
      %v3340 = vsel %vm272, %v3309, 0.0
      %v3341 = vadd.f32 %v3339, %v3340
      %v3342 = vsel %vm272, %v3311, 0.0
      %v3343 = vadd.f32 %v3341, %v3342
      %v3344 = vsel %vm272, %v3313, 0.0
      %v3345 = vadd.f32 %v3343, %v3344
      %v3346 = vsel %vm272, %v3315, 0.0
      %v3347 = vadd.f32 %v3345, %v3346
      %v3348 = vsel %vm272, %v3317, 0.0
      %v3349 = vadd.f32 %v3347, %v3348
      %v3350 = vsel %vm272, %v3288, 0.0
      %v3351 = vsel %vm272, %v3290, 0.0
      %v3352 = vadd.f32 %v3350, %v3351
      %v3353 = vsel %vm272, %v3292, 0.0
      %v3354 = vadd.f32 %v3352, %v3353
      %v3355 = vsel %vm272, %v3294, 0.0
      %v3356 = vadd.f32 %v3354, %v3355
      %v3357 = vsel %vm272, %v3296, 0.0
      %v3358 = vadd.f32 %v3356, %v3357
      %v3359 = vsel %vm272, %v3298, 0.0
      %v3360 = vadd.f32 %v3358, %v3359
      %v3361 = vsel %vm272, %v3300, 0.0
      %v3362 = vadd.f32 %v3360, %v3361
      %v3363 = vsel %vm272, %v3302, 0.0
      %v3364 = vadd.f32 %v3362, %v3363
      %v3365 = vsel %vm272, %v3304, 0.0
      %v3366 = vadd.f32 %v3364, %v3365
      %v3367 = vsel %vm272, %v3306, 0.0
      %v3368 = vadd.f32 %v3366, %v3367
      %v3369 = vsel %vm272, %v3308, 0.0
      %v3370 = vadd.f32 %v3368, %v3369
      %v3371 = vsel %vm272, %v3310, 0.0
      %v3372 = vadd.f32 %v3370, %v3371
      %v3373 = vsel %vm272, %v3312, 0.0
      %v3374 = vadd.f32 %v3372, %v3373
      %v3375 = vsel %vm272, %v3314, 0.0
      %v3376 = vadd.f32 %v3374, %v3375
      %v3377 = vsel %vm272, %v3316, 0.0
      %v3378 = vadd.f32 %v3376, %v3377
      %v3379 = vsel %vm272, %v3318, 0.0
      %v3380 = vadd.f32 %v3378, %v3379
      %v3381 = vsel %vm272, %v3349, 0.0
      %v3382 = vsel %vm272, %v3380, 0.0
      %v3383 = vadd.f32 %v3381, %v3382
      %v3384 = vrot.slane %v3383, 4
      %v3385 = vadd.f32 %v3383, %v3384
      %v3386 = vrot.slane %v3385, 2
      %v3387 = vadd.f32 %v3385, %v3386
      %v3388 = vrot.slane %v3387, 1
      %v3389 = vadd.f32 %v3387, %v3388
      %3390 = vst.msk [vmem:[%s268 + $0x1] sm:$0x1] %vm3285, %v3389
      %s3391 = smul.u32 16, %s22
      %p3392 = scmp.lt.s32.totalorder %s21, 1
      %s3393 = scalar_select %p3392, %s21, 1
      %p3394 = scmp.lt.s32.totalorder %s3391, 15
      %s3395 = scalar_select %p3394, %s3391, 15
      %s3396 = smul.addr %s3395, 2
      %s3397 = smul.addr %s3393, 32
      %s3398 = sadd.s32 %s3396, %s3397
      %s3399 = smul.addr %s3398, 4
      %s3400 = scalar_lea.vmem %s4, %s3399
      %p3401 = scmp.lt.s32.totalorder %s21, 1
      %s3402 = scalar_select %p3401, %s21, 1
      %p3403 = scmp.lt.s32.totalorder %s22, 0
      %s3404 = scalar_select %p3403, %s22, 0
      %s3405 = sadd.s32 %s3404, %s3402
      %s3406 = smul.addr %s3405, 2
      %s3407 = scalar_lea.vmem %s5, %s3406
      // Predicated region
      $region45: #{ghost_conv_forward.4} parent=35 // pred_check
        %p3408 = pneg %p138
      $region46: #{ghost_conv_forward.4} parent=35 // pred_check_branch
        %3410 = sbr.rel (%p3408) target = $region48
      $region47: #{ghost_conv_forward.4} parent=35 // pred_region
        %s3411 = smul.u32 16, %s22
      $region48: #{ghost_conv_forward.4} parent=35 // pred_fallthru
        _
      // Predicated region
      $region49: #{ghost_conv_forward.4} parent=35 // pred_check
        %p3412 = pneg %p166
      $region50: #{ghost_conv_forward.4} parent=35 // pred_check_branch
        %3414 = sbr.rel (%p3412) target = $region52
      $region51: #{ghost_conv_forward.4} parent=35 // pred_region
        _
      $region52: #{ghost_conv_forward.4} parent=35 // pred_fallthru
        _
    $region36: #{ghost_conv_forward.4} parent=5 // pred_fallthru
      _
    %p3415 = scmp.le.s32.totalorder 2, %s12
    // Predicated region
    $region53: #{ghost_conv_forward.4} parent=5 // pred_check
      %p3416 = pneg %p3415
    $region54: #{ghost_conv_forward.4} parent=5 // pred_check_branch
      %3418 = sbr.rel (%p3416) target = $region56
    $region55: #{ghost_conv_forward.4} parent=5 // pred_region
      %s3419 = ssub.s32 %s12, 2
      // Predicated region
      $region57: #{ghost_conv_forward.4} parent=55 // pred_check
        %p3420 = pneg %p144
      $region58: #{ghost_conv_forward.4} parent=55 // pred_check_branch
        %3422 = sbr.rel (%p3420) target = $region60
      $region59: #{ghost_conv_forward.4} parent=55 // pred_region
        %s3423 = smul.u32 16, %s24
        %p3424 = scmp.lt.s32.totalorder %s23, 1
        %s3425 = scalar_select %p3424, %s23, 1
        %p3426 = scmp.lt.s32.totalorder %s3423, 15
        %s3427 = scalar_select %p3426, %s3423, 15
        %s3428 = smul.addr %s3427, 2
        %s3429 = smul.addr %s3425, 32
        %s3430 = sadd.s32 %s3428, %s3429
        %s3431 = smul.addr %s3430, 4
        %s3432 = scalar_lea.vmem %s4, %s3431
      $region60: #{ghost_conv_forward.4} parent=55 // pred_fallthru
        _
      // Predicated region
      $region61: #{ghost_conv_forward.4} parent=55 // pred_check
        %p3433 = pneg %p172
      $region62: #{ghost_conv_forward.4} parent=55 // pred_check_branch
        %3435 = sbr.rel (%p3433) target = $region64
      $region63: #{ghost_conv_forward.4} parent=55 // pred_region
        %p3436 = scmp.lt.s32.totalorder %s23, 1
        %s3437 = scalar_select %p3436, %s23, 1
        %p3438 = scmp.lt.s32.totalorder %s24, 0
        %s3439 = scalar_select %p3438, %s24, 0
        %s3440 = sadd.s32 %s3439, %s3437
        %s3441 = smul.addr %s3440, 2
        %s3442 = scalar_lea.vmem %s5, %s3441
      $region64: #{ghost_conv_forward.4} parent=55 // pred_fallthru
        _
    $region56: #{ghost_conv_forward.4} parent=5 // pred_fallthru
      _
  $region6: #{ghost_conv_forward.4} parent=0 // loop_footer
    %s16 = sadd.s32 1, %s12
  $region7: #{ghost_conv_forward.4} parent=0 // loop_footer_branch
    %11 = sbr.rel target = $region3
  $region8: #{ghost_conv_forward.4} parent=0 // loop_exit
    _

</llo_original>
